<compile_context>
chip_gen: v7x
topology: tpu7x:2x2x1
jax: 0.10.0
libtpu: 0.0.40
codegen_flags: <defaults>
</compile_context>

<pallas_src>
import functools
import math

import jax
import jax.numpy as jnp
from jax.experimental import pallas as pl
from jax.experimental.pallas import tpu as pltpu

_BN_EPS = 1e-5
_TM_TARGET = 256          # lane width of one tile (multiple of 128)


# ----------------------------------------------------------------------------
# Pallas kernels
# ----------------------------------------------------------------------------

def _sqnxt_conv_kernel(x_ref, w_ref, sc_ref, sh_ref, b_ref,
                       y_ref, s1_ref, s2_ref,
                       *, apply_in_act, taps, su, period):
    """Fused SqnxtConv tile:  y = W @ act(scale*x + shift) + b   (+ BN partial stats of y).

    x_ref  : (Cin,  TM)       raw output of the previous conv (or the unit input), f32
    w_ref  : (taps, Cout, Cin) conv weights, bf16  (tap 0 = offset -1, 1 = center, 2 = +1)
    sc_ref : (Cin, 1)         per-channel BN scale of the previous layer (1.0 for raw input)
    sh_ref : (Cin, 1)         per-channel BN shift of the previous layer (0.0 for raw input)
    b_ref  : (Cout, 1)        conv bias
    y_ref  : (Cout, TM)       raw conv output (pre-BN) -- consumed by the next fused conv
    s1_ref : (1, Cout, 128)   per-tile partial sum   of y (replicated across lanes)
    s2_ref : (1, Cout, 128)   per-tile partial sum of y*y
    """
    x = x_ref[...] * sc_ref[...] + sh_ref[...]            # previous layer's BN (f32)
    if apply_in_act:
        x = jnp.maximum(x, 0.0)                           # previous layer's ReLU
    xb = x.astype(jnp.bfloat16)                           # bf16 operands, f32 accumulation
    tm = xb.shape[-1]

    acc = jnp.dot(w_ref[taps // 2], xb, preferred_element_type=jnp.float32)

    if taps == 3:
        cin = xb.shape[0]
        zpad = jnp.zeros((cin, su), dtype=xb.dtype)
        pos = jax.lax.broadcasted_iota(jnp.int32, (1, tm), 1) % period
        # tap 0 (kernel offset -1): operand x[m - su], zero where pos < su
        x_m = jnp.concatenate([zpad, xb[:, : tm - su]], axis=1)
        x_m = jnp.where(pos >= su, x_m, jnp.zeros_like(x_m))
        acc = acc + jnp.dot(w_ref[0], x_m, preferred_element_type=jnp.float32)
        # tap 2 (kernel offset +1): operand x[m + su], zero where pos >= period - su
        x_p = jnp.concatenate([xb[:, su:], zpad], axis=1)
        x_p = jnp.where(pos < period - su, x_p, jnp.zeros_like(x_p))
        acc = acc + jnp.dot(w_ref[2], x_p, preferred_element_type=jnp.float32)

    y = acc + b_ref[...]
    y_ref[...] = y

    cout = y.shape[0]
    s1 = jnp.sum(y, axis=1, keepdims=True)                # (Cout, 1)
    s2 = jnp.sum(y * y, axis=1, keepdims=True)
    s1_ref[...] = jnp.broadcast_to(s1[None], (1, cout, 128))
    s2_ref[...] = jnp.broadcast_to(s2[None], (1, cout, 128))


def _residual_kernel(y_ref, ysc_ref, ysh_ref, i_ref, isc_ref, ish_ref, o_ref):
    """out = relu( relu(bn5(y5)) + relu(bn_id(identity)) )."""
    y = jnp.maximum(y_ref[...] * ysc_ref[...] + ysh_ref[...], 0.0)
    idn = jnp.maximum(i_ref[...] * isc_ref[...] + ish_ref[...], 0.0)
    o_ref[...] = jnp.maximum(y + idn, 0.0)


# ----------------------------------------------------------------------------
# wrappers
# ----------------------------------------------------------------------------

def _pick_tm(m, period, target=_TM_TARGET):
    """Largest tile <= target that divides m, is a multiple of `period` and of 128 lanes."""
    best = m                                   # full extent is always a legal block
    t = period
    while t <= min(m, target):
        if m % t == 0 and t % 128 == 0:
            best = t
        t += period
    return best


def _fused_conv(x_cm, w, b, in_scale, in_shift, *, apply_in_act, taps, su, period, tm):
    cin, m = x_cm.shape
    cout = w.shape[1]
    assert m % tm == 0 and tm % period == 0, (m, tm, period)
    n_m = m // tm
    kern = functools.partial(_sqnxt_conv_kernel, apply_in_act=apply_in_act,
                             taps=taps, su=su, period=period)
    y, s1, s2 = pl.pallas_call(
        kern,
        grid=(n_m,),
        in_specs=[
            pl.BlockSpec((cin, tm), lambda i: (0, i)),             # activation tile
            pl.BlockSpec((taps, cout, cin), lambda i: (0, 0, 0)),  # weights (resident)
            pl.BlockSpec((cin, 1), lambda i: (0, 0)),              # input BN scale
            pl.BlockSpec((cin, 1), lambda i: (0, 0)),              # input BN shift
            pl.BlockSpec((cout, 1), lambda i: (0, 0)),             # bias
        ],
        out_specs=(
            pl.BlockSpec((cout, tm), lambda i: (0, i)),            # raw conv output
            pl.BlockSpec((1, cout, 128), lambda i: (i, 0, 0)),     # partial sum
            pl.BlockSpec((1, cout, 128), lambda i: (i, 0, 0)),     # partial sum of squares
        ),
        out_shape=(
            jax.ShapeDtypeStruct((cout, m), jnp.float32),
            jax.ShapeDtypeStruct((n_m, cout, 128), jnp.float32),
            jax.ShapeDtypeStruct((n_m, cout, 128), jnp.float32),
        ),
        compiler_params=pltpu.CompilerParams(dimension_semantics=("parallel",)),
    )(x_cm, w, in_scale, in_shift, b)
    return y, jnp.sum(s1[:, :, 0], axis=0), jnp.sum(s2[:, :, 0], axis=0)


def _bn_affine(s1, s2, count, gamma, beta, eps=_BN_EPS):
    """Training-mode BatchNorm folded into a per-channel affine: y_norm = scale*y + shift."""
    mean = s1 / count
    var = jnp.maximum(s2 / count - mean * mean, 0.0)
    scale = gamma * jax.lax.rsqrt(var + eps)
    shift = beta - mean * scale
    return scale.reshape(-1, 1), shift.reshape(-1, 1)


def _residual_epilogue(y, y_scale, y_shift, idn, id_scale, id_shift, *, tm):
    cout, m = y.shape
    n_m = m // tm
    return pl.pallas_call(
        _residual_kernel,
        grid=(n_m,),
        in_specs=[
            pl.BlockSpec((cout, tm), lambda i: (0, i)),
            pl.BlockSpec((cout, 1), lambda i: (0, 0)),
            pl.BlockSpec((cout, 1), lambda i: (0, 0)),
            pl.BlockSpec((cout, tm), lambda i: (0, i)),
            pl.BlockSpec((cout, 1), lambda i: (0, 0)),
            pl.BlockSpec((cout, 1), lambda i: (0, 0)),
        ],
        out_specs=pl.BlockSpec((cout, tm), lambda i: (0, i)),
        out_shape=jax.ShapeDtypeStruct((cout, m), jnp.float32),
        compiler_params=pltpu.CompilerParams(dimension_semantics=("parallel",)),
    )(y, y_scale, y_shift, idn, id_scale, id_shift)


# ----------------------------------------------------------------------------
# SqnxtUnit forward
# ----------------------------------------------------------------------------

def sqnxt_unit_forward(x_nchw, params, *, stride, resize):
    n, cin, h, w = x_nchw.shape
    x = jnp.transpose(x_nchw.astype(jnp.float32), (1, 0, 2, 3))     # (C, N, H, W)
    if stride > 1:
        # TODO(synk): the stride-2 subsample is a JAX-side strided slice (one small copy,
        # shared by conv1 and identity_conv); a 2-D strided gather is not expressible in a
        # BlockSpec index_map for the flattened-M matmul layout used here.
        x = x[:, :, ::stride, ::stride]
    ho, wo = x.shape[2], x.shape[3]
    m = n * ho * wo
    xs = x.reshape(cin, m)                                          # lane-dense (C, M)

    tm_flat = _pick_tm(m, 1)
    tm_w = _pick_tm(m, wo)
    tm_hw = _pick_tm(m, ho * wo)

    one_in = jnp.ones((cin, 1), jnp.float32)
    zero_in = jnp.zeros((cin, 1), jnp.float32)

    def conv(name, x_in, sc, sh, act, taps, su, period, tm):
        p = params[name]
        y, s1, s2 = _fused_conv(x_in, p['w'], p['b'], sc, sh, apply_in_act=act,
                                taps=taps, su=su, period=period, tm=tm)
        scale, shift = _bn_affine(s1, s2, m, p['gamma'], p['beta'])
        return y, scale, shift

    y1, sc1, sh1 = conv('conv1', xs, one_in, zero_in, False, 1, 0, 1, tm_flat)      # 1x1, stride s
    y2, sc2, sh2 = conv('conv2', y1, sc1, sh1, True, 1, 0, 1, tm_flat)              # 1x1
    y3, sc3, sh3 = conv('conv3', y2, sc2, sh2, True, 3, 1, wo, tm_w)                # (1,3), pad (0,1)
    y4, sc4, sh4 = conv('conv4', y3, sc3, sh3, True, 3, wo, ho * wo, tm_hw)         # (3,1), pad (1,0)
    y5, sc5, sh5 = conv('conv5', y4, sc4, sh4, True, 1, 0, 1, tm_flat)              # 1x1

    if resize:
        yid, scid, shid = conv('identity', xs, one_in, zero_in, False, 1, 0, 1, tm_flat)
    else:
        assert cin == y5.shape[0], "non-resize SqnxtUnit requires in_channels == out_channels"
        yid = xs
        scid = jnp.ones((cin, 1), jnp.float32)
        shid = jnp.zeros((cin, 1), jnp.float32)

    out_cm = _residual_epilogue(y5, sc5, sh5, yid, scid, shid, tm=tm_flat)
    cout = out_cm.shape[0]
    return jnp.transpose(out_cm.reshape(cout, n, ho, wo), (1, 0, 2, 3))             # NCHW


def make_sqnxt_unit(key, in_channels, out_channels, stride):
    """Mirrors SqnxtUnit.__init__ branching; returns (params, jitted forward)."""
    if stride == 2:
        red, resize = 1, True
    elif in_channels > out_channels:
        red, resize = 4, True
    else:
        red, resize = 2, False
    c1 = in_channels // red
    c2 = in_channels // (2 * red)
    for c in (in_channels, out_channels, c1, c2):
        assert c % 8 == 0, "channel counts must be multiples of 8 (sublane tiling)"

    keys = iter(jax.random.split(key, 16))

    def conv_params(cin, cout, taps):
        bound = 1.0 / math.sqrt(cin * taps)               # PyTorch Conv2d default-style init
        w = jax.random.uniform(next(keys), (taps, cout, cin), jnp.float32, -bound, bound)
        b = jax.random.uniform(next(keys), (cout, 1), jnp.float32, -bound, bound)
        return {'w': w.astype(jnp.bfloat16), 'b': b,
                'gamma': jnp.ones((cout,), jnp.float32),   # BatchNorm2d init
                'beta': jnp.zeros((cout,), jnp.float32)}

    params = {
        'conv1': conv_params(in_channels, c1, 1),
        'conv2': conv_params(c1, c2, 1),
        'conv3': conv_params(c2, c1, 3),                   # (1,3) conv
        'conv4': conv_params(c1, c1, 3),                   # (3,1) conv
        'conv5': conv_params(c1, out_channels, 1),
    }
    if resize:
        params['identity'] = conv_params(in_channels, out_channels, 1)

    fwd = jax.jit(functools.partial(sqnxt_unit_forward, stride=stride, resize=resize))
    return params, fwd


if __name__ == "__main__":
    root = jax.random.PRNGKey(0)
    kp1, kp2, kx1, kx2 = jax.random.split(root, 4)

    # config A: stride-2 unit (resize_identity path: identity_conv + all five convs)
    params_a, fwd_a = make_sqnxt_unit(kp1, in_channels=64, out_channels=64, stride=2)
    x_a = jax.random.normal(kx1, (2, 64, 32, 32), jnp.float32)        # NCHW
    out_a = jax.block_until_ready(fwd_a(x_a, params_a))
    assert out_a.shape == (2, 64, 16, 16), out_a.shape
    assert bool(jnp.all(jnp.isfinite(out_a)))

    # config B: stride-1 unit with in == out (plain ReLU-identity residual path)
    params_b, fwd_b = make_sqnxt_unit(kp2, in_channels=64, out_channels=64, stride=1)
    x_b = jax.random.normal(kx2, (2, 64, 16, 16), jnp.float32)
    out_b = jax.block_until_ready(fwd_b(x_b, params_b))
    assert out_b.shape == (2, 64, 16, 16), out_b.shape
    assert bool(jnp.all(jnp.isfinite(out_b)))

    print("KERNEL_OK")
</pallas_src>

<mosaic_0001>
module attributes {stable_mosaic.version = 11 : i64} {
  func.func @_sqnxt_conv_kernel(%arg0: i32, %arg1: memref<64x256xf32, #tpu.memory_space<vmem>>, %arg2: memref<1x64x64xbf16, #tpu.memory_space<vmem>>, %arg3: memref<64x1xf32, #tpu.memory_space<vmem>>, %arg4: memref<64x1xf32, #tpu.memory_space<vmem>>, %arg5: memref<64x1xf32, #tpu.memory_space<vmem>>, %arg6: memref<64x256xf32, #tpu.memory_space<vmem>>, %arg7: memref<1x64x128xf32, #tpu.memory_space<vmem>>, %arg8: memref<1x64x128xf32, #tpu.memory_space<vmem>>) attributes {dimension_semantics = [#tpu.dimension_semantics<parallel>], iteration_bounds = array<i64: 2>, scalar_prefetch = 0 : i64, scratch_operands = 0 : i64, tpu.core_type = #tpu.core_type<tc>, window_params = [{transform_indices = @transform_0, window_bounds = array<i64: 64, 256>}, {pipeline_mode = #tpu.pipeline_mode<synchronous>, transform_indices = @transform_1, window_bounds = array<i64: 1, 64, 64>}, {pipeline_mode = #tpu.pipeline_mode<synchronous>, transform_indices = @transform_2, window_bounds = array<i64: 64, 1>}, {pipeline_mode = #tpu.pipeline_mode<synchronous>, transform_indices = @transform_3, window_bounds = array<i64: 64, 1>}, {pipeline_mode = #tpu.pipeline_mode<synchronous>, transform_indices = @transform_4, window_bounds = array<i64: 64, 1>}, {transform_indices = @transform_5, window_bounds = array<i64: 64, 256>}, {transform_indices = @transform_6, window_bounds = array<i64: 1, 64, 128>}, {transform_indices = @transform_7, window_bounds = array<i64: 1, 64, 128>}]} {
    %c0 = arith.constant 0 : index
    %c0_0 = arith.constant 0 : index
    %0 = vector.load %arg1[%c0, %c0_0] : memref<64x256xf32, #tpu.memory_space<vmem>>, vector<64x256xf32>
    %c0_1 = arith.constant 0 : index
    %c0_2 = arith.constant 0 : index
    %1 = vector.load %arg3[%c0_1, %c0_2] : memref<64x1xf32, #tpu.memory_space<vmem>>, vector<64x1xf32>
    %2 = vector.broadcast %1 : vector<64x1xf32> to vector<64x256xf32>
    %3 = arith.mulf %0, %2 : vector<64x256xf32>
    %c0_3 = arith.constant 0 : index
    %c0_4 = arith.constant 0 : index
    %4 = vector.load %arg4[%c0_3, %c0_4] : memref<64x1xf32, #tpu.memory_space<vmem>>, vector<64x1xf32>
    %5 = vector.broadcast %4 : vector<64x1xf32> to vector<64x256xf32>
    %6 = arith.addf %3, %5 : vector<64x256xf32>
    %7 = arith.truncf %6 : vector<64x256xf32> to vector<64x256xbf16>
    %c0_5 = arith.constant 0 : index
    %c0_6 = arith.constant 0 : index
    %c0_7 = arith.constant 0 : index
    %8 = vector.load %arg2[%c0_5, %c0_6, %c0_7] : memref<1x64x64xbf16, #tpu.memory_space<vmem>>, vector<1x64x64xbf16>
    %9 = vector.shape_cast %8 : vector<1x64x64xbf16> to vector<64x64xbf16>
    %cst = arith.constant dense<0.000000e+00> : vector<64x256xf32>
    %10 = tpu.matmul %9, %7, %cst {dimension_numbers = #tpu.dot_dimension_numbers<[1], [0], [0], [1], [0, 0, 1, 1], [], []>} : vector<64x64xbf16>, vector<64x256xbf16>, vector<64x256xf32> -> vector<64x256xf32>
    %c0_8 = arith.constant 0 : index
    %c0_9 = arith.constant 0 : index
    %11 = vector.load %arg5[%c0_8, %c0_9] : memref<64x1xf32, #tpu.memory_space<vmem>>, vector<64x1xf32>
    %12 = vector.broadcast %11 : vector<64x1xf32> to vector<64x256xf32>
    %13 = arith.addf %10, %12 : vector<64x256xf32>
    %c0_10 = arith.constant 0 : index
    %c0_11 = arith.constant 0 : index
    %14 = vector.load %arg6[%c0_10, %c0_11] : memref<64x256xf32, #tpu.memory_space<vmem>>, vector<64x256xf32>
    tpu.vector_store %arg6[%c0_10, %c0_11], %13 {strides = array<i32>} : memref<64x256xf32, #tpu.memory_space<vmem>>, vector<64x256xf32>,
    %cst_12 = arith.constant dense<0.000000e+00> : vector<64xf32>
    %15 = vector.multi_reduction <add>, %13, %cst_12 [1] : vector<64x256xf32> to vector<64xf32>
    %16 = vector.shape_cast %15 : vector<64xf32> to vector<64x1xf32>
    %17 = arith.mulf %13, %13 : vector<64x256xf32>
    %cst_13 = arith.constant dense<0.000000e+00> : vector<64xf32>
    %18 = vector.multi_reduction <add>, %17, %cst_13 [1] : vector<64x256xf32> to vector<64xf32>
    %19 = vector.shape_cast %18 : vector<64xf32> to vector<64x1xf32>
    %20 = vector.shape_cast %16 : vector<64x1xf32> to vector<1x64x1xf32>
    %21 = vector.shape_cast %20 : vector<1x64x1xf32> to vector<1x64x1xf32>
    %22 = vector.broadcast %21 : vector<1x64x1xf32> to vector<1x64x128xf32>
    %c0_14 = arith.constant 0 : index
    %c0_15 = arith.constant 0 : index
    %c0_16 = arith.constant 0 : index
    %23 = vector.load %arg7[%c0_14, %c0_15, %c0_16] : memref<1x64x128xf32, #tpu.memory_space<vmem>>, vector<1x64x128xf32>
    tpu.vector_store %arg7[%c0_14, %c0_15, %c0_16], %22 {strides = array<i32>} : memref<1x64x128xf32, #tpu.memory_space<vmem>>, vector<1x64x128xf32>,
    %24 = vector.shape_cast %19 : vector<64x1xf32> to vector<1x64x1xf32>
    %25 = vector.shape_cast %24 : vector<1x64x1xf32> to vector<1x64x1xf32>
    %26 = vector.broadcast %25 : vector<1x64x1xf32> to vector<1x64x128xf32>
    %c0_17 = arith.constant 0 : index
    %c0_18 = arith.constant 0 : index
    %c0_19 = arith.constant 0 : index
    %27 = vector.load %arg8[%c0_17, %c0_18, %c0_19] : memref<1x64x128xf32, #tpu.memory_space<vmem>>, vector<1x64x128xf32>
    tpu.vector_store %arg8[%c0_17, %c0_18, %c0_19], %26 {strides = array<i32>} : memref<1x64x128xf32, #tpu.memory_space<vmem>>, vector<1x64x128xf32>,
    return
  }
  func.func @transform_0(%arg0: i32) -> (i32, i32) {
    %c0_i32 = arith.constant 0 : i32
    %c0_i32_0 = arith.constant 0 : i32
    return %c0_i32, %arg0 : i32, i32
  }
  func.func @transform_1(%arg0: i32) -> (i32, i32, i32) {
    %c0_i32 = arith.constant 0 : i32
    %c0_i32_0 = arith.constant 0 : i32
    %c0_i32_1 = arith.constant 0 : i32
    %c0_i32_2 = arith.constant 0 : i32
    return %c0_i32, %c0_i32_0, %c0_i32_1 : i32, i32, i32
  }
  func.func @transform_2(%arg0: i32) -> (i32, i32) {
    %c0_i32 = arith.constant 0 : i32
    %c0_i32_0 = arith.constant 0 : i32
    %c0_i32_1 = arith.constant 0 : i32
    return %c0_i32, %c0_i32_0 : i32, i32
  }
  func.func @transform_3(%arg0: i32) -> (i32, i32) {
    %c0_i32 = arith.constant 0 : i32
    %c0_i32_0 = arith.constant 0 : i32
    %c0_i32_1 = arith.constant 0 : i32
    return %c0_i32, %c0_i32_0 : i32, i32
  }
  func.func @transform_4(%arg0: i32) -> (i32, i32) {
    %c0_i32 = arith.constant 0 : i32
    %c0_i32_0 = arith.constant 0 : i32
    %c0_i32_1 = arith.constant 0 : i32
    return %c0_i32, %c0_i32_0 : i32, i32
  }
  func.func @transform_5(%arg0: i32) -> (i32, i32) {
    %c0_i32 = arith.constant 0 : i32
    %c0_i32_0 = arith.constant 0 : i32
    return %c0_i32, %arg0 : i32, i32
  }
  func.func @transform_6(%arg0: i32) -> (i32, i32, i32) {
    %c0_i32 = arith.constant 0 : i32
    %c0_i32_0 = arith.constant 0 : i32
    %c0_i32_1 = arith.constant 0 : i32
    return %arg0, %c0_i32, %c0_i32_0 : i32, i32, i32
  }
  func.func @transform_7(%arg0: i32) -> (i32, i32, i32) {
    %c0_i32 = arith.constant 0 : i32
    %c0_i32_0 = arith.constant 0 : i32
    %c0_i32_1 = arith.constant 0 : i32
    return %arg0, %c0_i32, %c0_i32_0 : i32, i32, i32
  }
}

module attributes {stable_mosaic.version = 11 : i64} {
  func.func @_sqnxt_conv_kernel(%arg0: i32, %arg1: memref<64x256xf32, #tpu.memory_space<vmem>>, %arg2: memref<1x32x64xbf16, #tpu.memory_space<vmem>>, %arg3: memref<64x1xf32, #tpu.memory_space<vmem>>, %arg4: memref<64x1xf32, #tpu.memory_space<vmem>>, %arg5: memref<32x1xf32, #tpu.memory_space<vmem>>, %arg6: memref<32x256xf32, #tpu.memory_space<vmem>>, %arg7: memref<1x32x128xf32, #tpu.memory_space<vmem>>, %arg8: memref<1x32x128xf32, #tpu.memory_space<vmem>>) attributes {dimension_semantics = [#tpu.dimension_semantics<parallel>], iteration_bounds = array<i64: 2>, scalar_prefetch = 0 : i64, scratch_operands = 0 : i64, tpu.core_type = #tpu.core_type<tc>, window_params = [{transform_indices = @transform_0, window_bounds = array<i64: 64, 256>}, {pipeline_mode = #tpu.pipeline_mode<synchronous>, transform_indices = @transform_1, window_bounds = array<i64: 1, 32, 64>}, {pipeline_mode = #tpu.pipeline_mode<synchronous>, transform_indices = @transform_2, window_bounds = array<i64: 64, 1>}, {pipeline_mode = #tpu.pipeline_mode<synchronous>, transform_indices = @transform_3, window_bounds = array<i64: 64, 1>}, {pipeline_mode = #tpu.pipeline_mode<synchronous>, transform_indices = @transform_4, window_bounds = array<i64: 32, 1>}, {transform_indices = @transform_5, window_bounds = array<i64: 32, 256>}, {transform_indices = @transform_6, window_bounds = array<i64: 1, 32, 128>}, {transform_indices = @transform_7, window_bounds = array<i64: 1, 32, 128>}]} {
    %c0 = arith.constant 0 : index
    %c0_0 = arith.constant 0 : index
    %0 = vector.load %arg1[%c0, %c0_0] : memref<64x256xf32, #tpu.memory_space<vmem>>, vector<64x256xf32>
    %c0_1 = arith.constant 0 : index
    %c0_2 = arith.constant 0 : index
    %1 = vector.load %arg3[%c0_1, %c0_2] : memref<64x1xf32, #tpu.memory_space<vmem>>, vector<64x1xf32>
    %2 = vector.broadcast %1 : vector<64x1xf32> to vector<64x256xf32>
    %3 = arith.mulf %0, %2 : vector<64x256xf32>
    %c0_3 = arith.constant 0 : index
    %c0_4 = arith.constant 0 : index
    %4 = vector.load %arg4[%c0_3, %c0_4] : memref<64x1xf32, #tpu.memory_space<vmem>>, vector<64x1xf32>
    %5 = vector.broadcast %4 : vector<64x1xf32> to vector<64x256xf32>
    %6 = arith.addf %3, %5 : vector<64x256xf32>
    %cst = arith.constant 0.000000e+00 : f32
    %7 = vector.broadcast %cst : f32 to vector<64x256xf32>
    %8 = arith.maximumf %6, %7 : vector<64x256xf32>
    %9 = arith.truncf %8 : vector<64x256xf32> to vector<64x256xbf16>
    %c0_5 = arith.constant 0 : index
    %c0_6 = arith.constant 0 : index
    %c0_7 = arith.constant 0 : index
    %10 = vector.load %arg2[%c0_5, %c0_6, %c0_7] : memref<1x32x64xbf16, #tpu.memory_space<vmem>>, vector<1x32x64xbf16>
    %11 = vector.shape_cast %10 : vector<1x32x64xbf16> to vector<32x64xbf16>
    %cst_8 = arith.constant dense<0.000000e+00> : vector<32x256xf32>
    %12 = tpu.matmul %11, %9, %cst_8 {dimension_numbers = #tpu.dot_dimension_numbers<[1], [0], [0], [1], [0, 0, 1, 1], [], []>} : vector<32x64xbf16>, vector<64x256xbf16>, vector<32x256xf32> -> vector<32x256xf32>
    %c0_9 = arith.constant 0 : index
    %c0_10 = arith.constant 0 : index
    %13 = vector.load %arg5[%c0_9, %c0_10] : memref<32x1xf32, #tpu.memory_space<vmem>>, vector<32x1xf32>
    %14 = vector.broadcast %13 : vector<32x1xf32> to vector<32x256xf32>
    %15 = arith.addf %12, %14 : vector<32x256xf32>
    %c0_11 = arith.constant 0 : index
    %c0_12 = arith.constant 0 : index
    %16 = vector.load %arg6[%c0_11, %c0_12] : memref<32x256xf32, #tpu.memory_space<vmem>>, vector<32x256xf32>
    tpu.vector_store %arg6[%c0_11, %c0_12], %15 {strides = array<i32>} : memref<32x256xf32, #tpu.memory_space<vmem>>, vector<32x256xf32>,
    %cst_13 = arith.constant dense<0.000000e+00> : vector<32xf32>
    %17 = vector.multi_reduction <add>, %15, %cst_13 [1] : vector<32x256xf32> to vector<32xf32>
    %18 = vector.shape_cast %17 : vector<32xf32> to vector<32x1xf32>
    %19 = arith.mulf %15, %15 : vector<32x256xf32>
    %cst_14 = arith.constant dense<0.000000e+00> : vector<32xf32>
    %20 = vector.multi_reduction <add>, %19, %cst_14 [1] : vector<32x256xf32> to vector<32xf32>
    %21 = vector.shape_cast %20 : vector<32xf32> to vector<32x1xf32>
    %22 = vector.shape_cast %18 : vector<32x1xf32> to vector<1x32x1xf32>
    %23 = vector.shape_cast %22 : vector<1x32x1xf32> to vector<1x32x1xf32>
    %24 = vector.broadcast %23 : vector<1x32x1xf32> to vector<1x32x128xf32>
    %c0_15 = arith.constant 0 : index
    %c0_16 = arith.constant 0 : index
    %c0_17 = arith.constant 0 : index
    %25 = vector.load %arg7[%c0_15, %c0_16, %c0_17] : memref<1x32x128xf32, #tpu.memory_space<vmem>>, vector<1x32x128xf32>
    tpu.vector_store %arg7[%c0_15, %c0_16, %c0_17], %24 {strides = array<i32>} : memref<1x32x128xf32, #tpu.memory_space<vmem>>, vector<1x32x128xf32>,
    %26 = vector.shape_cast %21 : vector<32x1xf32> to vector<1x32x1xf32>
    %27 = vector.shape_cast %26 : vector<1x32x1xf32> to vector<1x32x1xf32>
    %28 = vector.broadcast %27 : vector<1x32x1xf32> to vector<1x32x128xf32>
    %c0_18 = arith.constant 0 : index
    %c0_19 = arith.constant 0 : index
    %c0_20 = arith.constant 0 : index
    %29 = vector.load %arg8[%c0_18, %c0_19, %c0_20] : memref<1x32x128xf32, #tpu.memory_space<vmem>>, vector<1x32x128xf32>
    tpu.vector_store %arg8[%c0_18, %c0_19, %c0_20], %28 {strides = array<i32>} : memref<1x32x128xf32, #tpu.memory_space<vmem>>, vector<1x32x128xf32>,
    return
  }
  func.func @transform_0(%arg0: i32) -> (i32, i32) {
    %c0_i32 = arith.constant 0 : i32
    %c0_i32_0 = arith.constant 0 : i32
    return %c0_i32, %arg0 : i32, i32
  }
  func.func @transform_1(%arg0: i32) -> (i32, i32, i32) {
    %c0_i32 = arith.constant 0 : i32
    %c0_i32_0 = arith.constant 0 : i32
    %c0_i32_1 = arith.constant 0 : i32
    %c0_i32_2 = arith.constant 0 : i32
    return %c0_i32, %c0_i32_0, %c0_i32_1 : i32, i32, i32
  }
  func.func @transform_2(%arg0: i32) -> (i32, i32) {
    %c0_i32 = arith.constant 0 : i32
    %c0_i32_0 = arith.constant 0 : i32
    %c0_i32_1 = arith.constant 0 : i32
    return %c0_i32, %c0_i32_0 : i32, i32
  }
  func.func @transform_3(%arg0: i32) -> (i32, i32) {
    %c0_i32 = arith.constant 0 : i32
    %c0_i32_0 = arith.constant 0 : i32
    %c0_i32_1 = arith.constant 0 : i32
    return %c0_i32, %c0_i32_0 : i32, i32
  }
  func.func @transform_4(%arg0: i32) -> (i32, i32) {
    %c0_i32 = arith.constant 0 : i32
    %c0_i32_0 = arith.constant 0 : i32
    %c0_i32_1 = arith.constant 0 : i32
    return %c0_i32, %c0_i32_0 : i32, i32
  }
  func.func @transform_5(%arg0: i32) -> (i32, i32) {
    %c0_i32 = arith.constant 0 : i32
    %c0_i32_0 = arith.constant 0 : i32
    return %c0_i32, %arg0 : i32, i32
  }
  func.func @transform_6(%arg0: i32) -> (i32, i32, i32) {
    %c0_i32 = arith.constant 0 : i32
    %c0_i32_0 = arith.constant 0 : i32
    %c0_i32_1 = arith.constant 0 : i32
    return %arg0, %c0_i32, %c0_i32_0 : i32, i32, i32
  }
  func.func @transform_7(%arg0: i32) -> (i32, i32, i32) {
    %c0_i32 = arith.constant 0 : i32
    %c0_i32_0 = arith.constant 0 : i32
    %c0_i32_1 = arith.constant 0 : i32
    return %arg0, %c0_i32, %c0_i32_0 : i32, i32, i32
  }
}

module attributes {stable_mosaic.version = 11 : i64} {
  func.func @_sqnxt_conv_kernel(%arg0: i32, %arg1: memref<32x256xf32, #tpu.memory_space<vmem>>, %arg2: memref<3x64x32xbf16, #tpu.memory_space<vmem>>, %arg3: memref<32x1xf32, #tpu.memory_space<vmem>>, %arg4: memref<32x1xf32, #tpu.memory_space<vmem>>, %arg5: memref<64x1xf32, #tpu.memory_space<vmem>>, %arg6: memref<64x256xf32, #tpu.memory_space<vmem>>, %arg7: memref<1x64x128xf32, #tpu.memory_space<vmem>>, %arg8: memref<1x64x128xf32, #tpu.memory_space<vmem>>) attributes {dimension_semantics = [#tpu.dimension_semantics<parallel>], iteration_bounds = array<i64: 2>, scalar_prefetch = 0 : i64, scratch_operands = 0 : i64, tpu.core_type = #tpu.core_type<tc>, window_params = [{transform_indices = @transform_0, window_bounds = array<i64: 32, 256>}, {pipeline_mode = #tpu.pipeline_mode<synchronous>, transform_indices = @transform_1, window_bounds = array<i64: 3, 64, 32>}, {pipeline_mode = #tpu.pipeline_mode<synchronous>, transform_indices = @transform_2, window_bounds = array<i64: 32, 1>}, {pipeline_mode = #tpu.pipeline_mode<synchronous>, transform_indices = @transform_3, window_bounds = array<i64: 32, 1>}, {pipeline_mode = #tpu.pipeline_mode<synchronous>, transform_indices = @transform_4, window_bounds = array<i64: 64, 1>}, {transform_indices = @transform_5, window_bounds = array<i64: 64, 256>}, {transform_indices = @transform_6, window_bounds = array<i64: 1, 64, 128>}, {transform_indices = @transform_7, window_bounds = array<i64: 1, 64, 128>}]} {
    %c0 = arith.constant 0 : index
    %c0_0 = arith.constant 0 : index
    %0 = vector.load %arg1[%c0, %c0_0] : memref<32x256xf32, #tpu.memory_space<vmem>>, vector<32x256xf32>
    %c0_1 = arith.constant 0 : index
    %c0_2 = arith.constant 0 : index
    %1 = vector.load %arg3[%c0_1, %c0_2] : memref<32x1xf32, #tpu.memory_space<vmem>>, vector<32x1xf32>
    %2 = vector.broadcast %1 : vector<32x1xf32> to vector<32x256xf32>
    %3 = arith.mulf %0, %2 : vector<32x256xf32>
    %c0_3 = arith.constant 0 : index
    %c0_4 = arith.constant 0 : index
    %4 = vector.load %arg4[%c0_3, %c0_4] : memref<32x1xf32, #tpu.memory_space<vmem>>, vector<32x1xf32>
    %5 = vector.broadcast %4 : vector<32x1xf32> to vector<32x256xf32>
    %6 = arith.addf %3, %5 : vector<32x256xf32>
    %cst = arith.constant 0.000000e+00 : f32
    %7 = vector.broadcast %cst : f32 to vector<32x256xf32>
    %8 = arith.maximumf %6, %7 : vector<32x256xf32>
    %9 = arith.truncf %8 : vector<32x256xf32> to vector<32x256xbf16>
    %c1 = arith.constant 1 : index
    %c0_5 = arith.constant 0 : index
    %c0_6 = arith.constant 0 : index
    %10 = vector.load %arg2[%c1, %c0_5, %c0_6] : memref<3x64x32xbf16, #tpu.memory_space<vmem>>, vector<1x64x32xbf16>
    %11 = vector.shape_cast %10 : vector<1x64x32xbf16> to vector<64x32xbf16>
    %cst_7 = arith.constant dense<0.000000e+00> : vector<64x256xf32>
    %12 = tpu.matmul %11, %9, %cst_7 {dimension_numbers = #tpu.dot_dimension_numbers<[1], [0], [0], [1], [0, 0, 1, 1], [], []>} : vector<64x32xbf16>, vector<32x256xbf16>, vector<64x256xf32> -> vector<64x256xf32>
    %cst_8 = arith.constant 0.000000e+00 : bf16
    %13 = vector.broadcast %cst_8 : bf16 to vector<32x1xbf16>
    %14 = tpu.iota {dimensions = array<i32: 1>} : vector<1x256xi32>
    %c16_i32 = arith.constant 16 : i32
    %c0_i32 = arith.constant 0 : i32
    %15 = arith.cmpi eq, %c16_i32, %c0_i32 : i32
    %c1_i32 = arith.constant 1 : i32
    %16 = arith.select %15, %c1_i32, %c16_i32 : i32
    %17 = vector.broadcast %16 : i32 to vector<1x256xi32>
    %18 = arith.remsi %14, %17 : vector<1x256xi32>
    %c0_i32_9 = arith.constant 0 : i32
    %19 = vector.broadcast %c0_i32_9 : i32 to vector<1x256xi32>
    %20 = arith.cmpi ne, %18, %19 : vector<1x256xi32>
    %c0_i32_10 = arith.constant 0 : i32
    %21 = vector.broadcast %c0_i32_10 : i32 to vector<1x256xi32>
    %22 = arith.cmpi slt, %18, %21 : vector<1x256xi32>
    %c0_i32_11 = arith.constant 0 : i32
    %23 = arith.cmpi slt, %16, %c0_i32_11 : i32
    %24 = vector.broadcast %23 : i1 to vector<1x256xi1>
    %25 = vector.broadcast %24 : vector<1x256xi1> to vector<1x256xi1>
    %26 = arith.xori %22, %25 : vector<1x256xi1>
    %27 = arith.andi %26, %20 : vector<1x256xi1>
    %28 = vector.broadcast %16 : i32 to vector<1x256xi32>
    %29 = arith.addi %18, %28 : vector<1x256xi32>
    %30 = arith.select %27, %29, %18 : vector<1x256xi1>, vector<1x256xi32>
    %31 = vector.extract_strided_slice %9 {offsets = [0, 0], sizes = [32, 255], strides = [1, 1]} : vector<32x256xbf16> to vector<32x255xbf16>
    %32 = tpu.concatenate %13, %31 in 1 : vector<32x1xbf16>, vector<32x255xbf16> -> vector<32x256xbf16>
    %c1_i32_12 = arith.constant 1 : i32
    %33 = vector.broadcast %c1_i32_12 : i32 to vector<1x256xi32>
    %34 = arith.cmpi sge, %30, %33 : vector<1x256xi32>
    %cst_13 = arith.constant 0.000000e+00 : bf16
    %35 = vector.broadcast %cst_13 : bf16 to vector<32x256xbf16>
    %36 = vector.shape_cast %34 : vector<1x256xi1> to vector<1x256xi1>
    %37 = vector.broadcast %36 : vector<1x256xi1> to vector<32x256xi1>
    %38 = arith.select %37, %32, %35 : vector<32x256xi1>, vector<32x256xbf16>
    %c0_14 = arith.constant 0 : index
    %c0_15 = arith.constant 0 : index
    %c0_16 = arith.constant 0 : index
    %39 = vector.load %arg2[%c0_14, %c0_15, %c0_16] : memref<3x64x32xbf16, #tpu.memory_space<vmem>>, vector<1x64x32xbf16>
    %40 = vector.shape_cast %39 : vector<1x64x32xbf16> to vector<64x32xbf16>
    %cst_17 = arith.constant dense<0.000000e+00> : vector<64x256xf32>
    %41 = tpu.matmul %40, %38, %cst_17 {dimension_numbers = #tpu.dot_dimension_numbers<[1], [0], [0], [1], [0, 0, 1, 1], [], []>} : vector<64x32xbf16>, vector<32x256xbf16>, vector<64x256xf32> -> vector<64x256xf32>
    %42 = arith.addf %12, %41 : vector<64x256xf32>
    %43 = vector.extract_strided_slice %9 {offsets = [0, 1], sizes = [32, 255], strides = [1, 1]} : vector<32x256xbf16> to vector<32x255xbf16>
    %44 = tpu.concatenate %43, %13 in 1 : vector<32x255xbf16>, vector<32x1xbf16> -> vector<32x256xbf16>
    %c15_i32 = arith.constant 15 : i32
    %45 = vector.broadcast %c15_i32 : i32 to vector<1x256xi32>
    %46 = arith.cmpi slt, %30, %45 : vector<1x256xi32>
    %cst_18 = arith.constant 0.000000e+00 : bf16
    %47 = vector.broadcast %cst_18 : bf16 to vector<32x256xbf16>
    %48 = vector.shape_cast %46 : vector<1x256xi1> to vector<1x256xi1>
    %49 = vector.broadcast %48 : vector<1x256xi1> to vector<32x256xi1>
    %50 = arith.select %49, %44, %47 : vector<32x256xi1>, vector<32x256xbf16>
    %c2 = arith.constant 2 : index
    %c0_19 = arith.constant 0 : index
    %c0_20 = arith.constant 0 : index
    %51 = vector.load %arg2[%c2, %c0_19, %c0_20] : memref<3x64x32xbf16, #tpu.memory_space<vmem>>, vector<1x64x32xbf16>
    %52 = vector.shape_cast %51 : vector<1x64x32xbf16> to vector<64x32xbf16>
    %cst_21 = arith.constant dense<0.000000e+00> : vector<64x256xf32>
    %53 = tpu.matmul %52, %50, %cst_21 {dimension_numbers = #tpu.dot_dimension_numbers<[1], [0], [0], [1], [0, 0, 1, 1], [], []>} : vector<64x32xbf16>, vector<32x256xbf16>, vector<64x256xf32> -> vector<64x256xf32>
    %54 = arith.addf %42, %53 : vector<64x256xf32>
    %c0_22 = arith.constant 0 : index
    %c0_23 = arith.constant 0 : index
    %55 = vector.load %arg5[%c0_22, %c0_23] : memref<64x1xf32, #tpu.memory_space<vmem>>, vector<64x1xf32>
    %56 = vector.broadcast %55 : vector<64x1xf32> to vector<64x256xf32>
    %57 = arith.addf %54, %56 : vector<64x256xf32>
    %c0_24 = arith.constant 0 : index
    %c0_25 = arith.constant 0 : index
    %58 = vector.load %arg6[%c0_24, %c0_25] : memref<64x256xf32, #tpu.memory_space<vmem>>, vector<64x256xf32>
    tpu.vector_store %arg6[%c0_24, %c0_25], %57 {strides = array<i32>} : memref<64x256xf32, #tpu.memory_space<vmem>>, vector<64x256xf32>,
    %cst_26 = arith.constant dense<0.000000e+00> : vector<64xf32>
    %59 = vector.multi_reduction <add>, %57, %cst_26 [1] : vector<64x256xf32> to vector<64xf32>
    %60 = vector.shape_cast %59 : vector<64xf32> to vector<64x1xf32>
    %61 = arith.mulf %57, %57 : vector<64x256xf32>
    %cst_27 = arith.constant dense<0.000000e+00> : vector<64xf32>
    %62 = vector.multi_reduction <add>, %61, %cst_27 [1] : vector<64x256xf32> to vector<64xf32>
    %63 = vector.shape_cast %62 : vector<64xf32> to vector<64x1xf32>
    %64 = vector.shape_cast %60 : vector<64x1xf32> to vector<1x64x1xf32>
    %65 = vector.shape_cast %64 : vector<1x64x1xf32> to vector<1x64x1xf32>
    %66 = vector.broadcast %65 : vector<1x64x1xf32> to vector<1x64x128xf32>
    %c0_28 = arith.constant 0 : index
    %c0_29 = arith.constant 0 : index
    %c0_30 = arith.constant 0 : index
    %67 = vector.load %arg7[%c0_28, %c0_29, %c0_30] : memref<1x64x128xf32, #tpu.memory_space<vmem>>, vector<1x64x128xf32>
    tpu.vector_store %arg7[%c0_28, %c0_29, %c0_30], %66 {strides = array<i32>} : memref<1x64x128xf32, #tpu.memory_space<vmem>>, vector<1x64x128xf32>,
    %68 = vector.shape_cast %63 : vector<64x1xf32> to vector<1x64x1xf32>
    %69 = vector.shape_cast %68 : vector<1x64x1xf32> to vector<1x64x1xf32>
    %70 = vector.broadcast %69 : vector<1x64x1xf32> to vector<1x64x128xf32>
    %c0_31 = arith.constant 0 : index
    %c0_32 = arith.constant 0 : index
    %c0_33 = arith.constant 0 : index
    %71 = vector.load %arg8[%c0_31, %c0_32, %c0_33] : memref<1x64x128xf32, #tpu.memory_space<vmem>>, vector<1x64x128xf32>
    tpu.vector_store %arg8[%c0_31, %c0_32, %c0_33], %70 {strides = array<i32>} : memref<1x64x128xf32, #tpu.memory_space<vmem>>, vector<1x64x128xf32>,
    return
  }
  func.func @transform_0(%arg0: i32) -> (i32, i32) {
    %c0_i32 = arith.constant 0 : i32
    %c0_i32_0 = arith.constant 0 : i32
    return %c0_i32, %arg0 : i32, i32
  }
  func.func @transform_1(%arg0: i32) -> (i32, i32, i32) {
    %c0_i32 = arith.constant 0 : i32
    %c0_i32_0 = arith.constant 0 : i32
    %c0_i32_1 = arith.constant 0 : i32
    %c0_i32_2 = arith.constant 0 : i32
    return %c0_i32, %c0_i32_0, %c0_i32_1 : i32, i32, i32
  }
  func.func @transform_2(%arg0: i32) -> (i32, i32) {
    %c0_i32 = arith.constant 0 : i32
    %c0_i32_0 = arith.constant 0 : i32
    %c0_i32_1 = arith.constant 0 : i32
    return %c0_i32, %c0_i32_0 : i32, i32
  }
  func.func @transform_3(%arg0: i32) -> (i32, i32) {
    %c0_i32 = arith.constant 0 : i32
    %c0_i32_0 = arith.constant 0 : i32
    %c0_i32_1 = arith.constant 0 : i32
    return %c0_i32, %c0_i32_0 : i32, i32
  }
  func.func @transform_4(%arg0: i32) -> (i32, i32) {
    %c0_i32 = arith.constant 0 : i32
    %c0_i32_0 = arith.constant 0 : i32
    %c0_i32_1 = arith.constant 0 : i32
    return %c0_i32, %c0_i32_0 : i32, i32
  }
  func.func @transform_5(%arg0: i32) -> (i32, i32) {
    %c0_i32 = arith.constant 0 : i32
    %c0_i32_0 = arith.constant 0 : i32
    return %c0_i32, %arg0 : i32, i32
  }
  func.func @transform_6(%arg0: i32) -> (i32, i32, i32) {
    %c0_i32 = arith.constant 0 : i32
    %c0_i32_0 = arith.constant 0 : i32
    %c0_i32_1 = arith.constant 0 : i32
    return %arg0, %c0_i32, %c0_i32_0 : i32, i32, i32
  }
  func.func @transform_7(%arg0: i32) -> (i32, i32, i32) {
    %c0_i32 = arith.constant 0 : i32
    %c0_i32_0 = arith.constant 0 : i32
    %c0_i32_1 = arith.constant 0 : i32
    return %arg0, %c0_i32, %c0_i32_0 : i32, i32, i32
  }
}

module attributes {stable_mosaic.version = 11 : i64} {
  func.func @_sqnxt_conv_kernel(%arg0: i32, %arg1: memref<64x256xf32, #tpu.memory_space<vmem>>, %arg2: memref<3x64x64xbf16, #tpu.memory_space<vmem>>, %arg3: memref<64x1xf32, #tpu.memory_space<vmem>>, %arg4: memref<64x1xf32, #tpu.memory_space<vmem>>, %arg5: memref<64x1xf32, #tpu.memory_space<vmem>>, %arg6: memref<64x256xf32, #tpu.memory_space<vmem>>, %arg7: memref<1x64x128xf32, #tpu.memory_space<vmem>>, %arg8: memref<1x64x128xf32, #tpu.memory_space<vmem>>) attributes {dimension_semantics = [#tpu.dimension_semantics<parallel>], iteration_bounds = array<i64: 2>, scalar_prefetch = 0 : i64, scratch_operands = 0 : i64, tpu.core_type = #tpu.core_type<tc>, window_params = [{transform_indices = @transform_0, window_bounds = array<i64: 64, 256>}, {pipeline_mode = #tpu.pipeline_mode<synchronous>, transform_indices = @transform_1, window_bounds = array<i64: 3, 64, 64>}, {pipeline_mode = #tpu.pipeline_mode<synchronous>, transform_indices = @transform_2, window_bounds = array<i64: 64, 1>}, {pipeline_mode = #tpu.pipeline_mode<synchronous>, transform_indices = @transform_3, window_bounds = array<i64: 64, 1>}, {pipeline_mode = #tpu.pipeline_mode<synchronous>, transform_indices = @transform_4, window_bounds = array<i64: 64, 1>}, {transform_indices = @transform_5, window_bounds = array<i64: 64, 256>}, {transform_indices = @transform_6, window_bounds = array<i64: 1, 64, 128>}, {transform_indices = @transform_7, window_bounds = array<i64: 1, 64, 128>}]} {
    %c0 = arith.constant 0 : index
    %c0_0 = arith.constant 0 : index
    %0 = vector.load %arg1[%c0, %c0_0] : memref<64x256xf32, #tpu.memory_space<vmem>>, vector<64x256xf32>
    %c0_1 = arith.constant 0 : index
    %c0_2 = arith.constant 0 : index
    %1 = vector.load %arg3[%c0_1, %c0_2] : memref<64x1xf32, #tpu.memory_space<vmem>>, vector<64x1xf32>
    %2 = vector.broadcast %1 : vector<64x1xf32> to vector<64x256xf32>
    %3 = arith.mulf %0, %2 : vector<64x256xf32>
    %c0_3 = arith.constant 0 : index
    %c0_4 = arith.constant 0 : index
    %4 = vector.load %arg4[%c0_3, %c0_4] : memref<64x1xf32, #tpu.memory_space<vmem>>, vector<64x1xf32>
    %5 = vector.broadcast %4 : vector<64x1xf32> to vector<64x256xf32>
    %6 = arith.addf %3, %5 : vector<64x256xf32>
    %cst = arith.constant 0.000000e+00 : f32
    %7 = vector.broadcast %cst : f32 to vector<64x256xf32>
    %8 = arith.maximumf %6, %7 : vector<64x256xf32>
    %9 = arith.truncf %8 : vector<64x256xf32> to vector<64x256xbf16>
    %c1 = arith.constant 1 : index
    %c0_5 = arith.constant 0 : index
    %c0_6 = arith.constant 0 : index
    %10 = vector.load %arg2[%c1, %c0_5, %c0_6] : memref<3x64x64xbf16, #tpu.memory_space<vmem>>, vector<1x64x64xbf16>
    %11 = vector.shape_cast %10 : vector<1x64x64xbf16> to vector<64x64xbf16>
    %cst_7 = arith.constant dense<0.000000e+00> : vector<64x256xf32>
    %12 = tpu.matmul %11, %9, %cst_7 {dimension_numbers = #tpu.dot_dimension_numbers<[1], [0], [0], [1], [0, 0, 1, 1], [], []>} : vector<64x64xbf16>, vector<64x256xbf16>, vector<64x256xf32> -> vector<64x256xf32>
    %cst_8 = arith.constant 0.000000e+00 : bf16
    %13 = vector.broadcast %cst_8 : bf16 to vector<64x16xbf16>
    %14 = tpu.iota {dimensions = array<i32: 1>} : vector<1x256xi32>
    %c256_i32 = arith.constant 256 : i32
    %c0_i32 = arith.constant 0 : i32
    %15 = arith.cmpi eq, %c256_i32, %c0_i32 : i32
    %c1_i32 = arith.constant 1 : i32
    %16 = arith.select %15, %c1_i32, %c256_i32 : i32
    %17 = vector.broadcast %16 : i32 to vector<1x256xi32>
    %18 = arith.remsi %14, %17 : vector<1x256xi32>
    %c0_i32_9 = arith.constant 0 : i32
    %19 = vector.broadcast %c0_i32_9 : i32 to vector<1x256xi32>
    %20 = arith.cmpi ne, %18, %19 : vector<1x256xi32>
    %c0_i32_10 = arith.constant 0 : i32
    %21 = vector.broadcast %c0_i32_10 : i32 to vector<1x256xi32>
    %22 = arith.cmpi slt, %18, %21 : vector<1x256xi32>
    %c0_i32_11 = arith.constant 0 : i32
    %23 = arith.cmpi slt, %16, %c0_i32_11 : i32
    %24 = vector.broadcast %23 : i1 to vector<1x256xi1>
    %25 = vector.broadcast %24 : vector<1x256xi1> to vector<1x256xi1>
    %26 = arith.xori %22, %25 : vector<1x256xi1>
    %27 = arith.andi %26, %20 : vector<1x256xi1>
    %28 = vector.broadcast %16 : i32 to vector<1x256xi32>
    %29 = arith.addi %18, %28 : vector<1x256xi32>
    %30 = arith.select %27, %29, %18 : vector<1x256xi1>, vector<1x256xi32>
    %31 = vector.extract_strided_slice %9 {offsets = [0, 0], sizes = [64, 240], strides = [1, 1]} : vector<64x256xbf16> to vector<64x240xbf16>
    %32 = tpu.concatenate %13, %31 in 1 : vector<64x16xbf16>, vector<64x240xbf16> -> vector<64x256xbf16>
    %c16_i32 = arith.constant 16 : i32
    %33 = vector.broadcast %c16_i32 : i32 to vector<1x256xi32>
    %34 = arith.cmpi sge, %30, %33 : vector<1x256xi32>
    %cst_12 = arith.constant 0.000000e+00 : bf16
    %35 = vector.broadcast %cst_12 : bf16 to vector<64x256xbf16>
    %36 = vector.shape_cast %34 : vector<1x256xi1> to vector<1x256xi1>
    %37 = vector.broadcast %36 : vector<1x256xi1> to vector<64x256xi1>
    %38 = arith.select %37, %32, %35 : vector<64x256xi1>, vector<64x256xbf16>
    %c0_13 = arith.constant 0 : index
    %c0_14 = arith.constant 0 : index
    %c0_15 = arith.constant 0 : index
    %39 = vector.load %arg2[%c0_13, %c0_14, %c0_15] : memref<3x64x64xbf16, #tpu.memory_space<vmem>>, vector<1x64x64xbf16>
    %40 = vector.shape_cast %39 : vector<1x64x64xbf16> to vector<64x64xbf16>
    %cst_16 = arith.constant dense<0.000000e+00> : vector<64x256xf32>
    %41 = tpu.matmul %40, %38, %cst_16 {dimension_numbers = #tpu.dot_dimension_numbers<[1], [0], [0], [1], [0, 0, 1, 1], [], []>} : vector<64x64xbf16>, vector<64x256xbf16>, vector<64x256xf32> -> vector<64x256xf32>
    %42 = arith.addf %12, %41 : vector<64x256xf32>
    %43 = vector.extract_strided_slice %9 {offsets = [0, 16], sizes = [64, 240], strides = [1, 1]} : vector<64x256xbf16> to vector<64x240xbf16>
    %44 = tpu.concatenate %43, %13 in 1 : vector<64x240xbf16>, vector<64x16xbf16> -> vector<64x256xbf16>
    %c240_i32 = arith.constant 240 : i32
    %45 = vector.broadcast %c240_i32 : i32 to vector<1x256xi32>
    %46 = arith.cmpi slt, %30, %45 : vector<1x256xi32>
    %cst_17 = arith.constant 0.000000e+00 : bf16
    %47 = vector.broadcast %cst_17 : bf16 to vector<64x256xbf16>
    %48 = vector.shape_cast %46 : vector<1x256xi1> to vector<1x256xi1>
    %49 = vector.broadcast %48 : vector<1x256xi1> to vector<64x256xi1>
    %50 = arith.select %49, %44, %47 : vector<64x256xi1>, vector<64x256xbf16>
    %c2 = arith.constant 2 : index
    %c0_18 = arith.constant 0 : index
    %c0_19 = arith.constant 0 : index
    %51 = vector.load %arg2[%c2, %c0_18, %c0_19] : memref<3x64x64xbf16, #tpu.memory_space<vmem>>, vector<1x64x64xbf16>
    %52 = vector.shape_cast %51 : vector<1x64x64xbf16> to vector<64x64xbf16>
    %cst_20 = arith.constant dense<0.000000e+00> : vector<64x256xf32>
    %53 = tpu.matmul %52, %50, %cst_20 {dimension_numbers = #tpu.dot_dimension_numbers<[1], [0], [0], [1], [0, 0, 1, 1], [], []>} : vector<64x64xbf16>, vector<64x256xbf16>, vector<64x256xf32> -> vector<64x256xf32>
    %54 = arith.addf %42, %53 : vector<64x256xf32>
    %c0_21 = arith.constant 0 : index
    %c0_22 = arith.constant 0 : index
    %55 = vector.load %arg5[%c0_21, %c0_22] : memref<64x1xf32, #tpu.memory_space<vmem>>, vector<64x1xf32>
    %56 = vector.broadcast %55 : vector<64x1xf32> to vector<64x256xf32>
    %57 = arith.addf %54, %56 : vector<64x256xf32>
    %c0_23 = arith.constant 0 : index
    %c0_24 = arith.constant 0 : index
    %58 = vector.load %arg6[%c0_23, %c0_24] : memref<64x256xf32, #tpu.memory_space<vmem>>, vector<64x256xf32>
    tpu.vector_store %arg6[%c0_23, %c0_24], %57 {strides = array<i32>} : memref<64x256xf32, #tpu.memory_space<vmem>>, vector<64x256xf32>,
    %cst_25 = arith.constant dense<0.000000e+00> : vector<64xf32>
    %59 = vector.multi_reduction <add>, %57, %cst_25 [1] : vector<64x256xf32> to vector<64xf32>
    %60 = vector.shape_cast %59 : vector<64xf32> to vector<64x1xf32>
    %61 = arith.mulf %57, %57 : vector<64x256xf32>
    %cst_26 = arith.constant dense<0.000000e+00> : vector<64xf32>
    %62 = vector.multi_reduction <add>, %61, %cst_26 [1] : vector<64x256xf32> to vector<64xf32>
    %63 = vector.shape_cast %62 : vector<64xf32> to vector<64x1xf32>
    %64 = vector.shape_cast %60 : vector<64x1xf32> to vector<1x64x1xf32>
    %65 = vector.shape_cast %64 : vector<1x64x1xf32> to vector<1x64x1xf32>
    %66 = vector.broadcast %65 : vector<1x64x1xf32> to vector<1x64x128xf32>
    %c0_27 = arith.constant 0 : index
    %c0_28 = arith.constant 0 : index
    %c0_29 = arith.constant 0 : index
    %67 = vector.load %arg7[%c0_27, %c0_28, %c0_29] : memref<1x64x128xf32, #tpu.memory_space<vmem>>, vector<1x64x128xf32>
    tpu.vector_store %arg7[%c0_27, %c0_28, %c0_29], %66 {strides = array<i32>} : memref<1x64x128xf32, #tpu.memory_space<vmem>>, vector<1x64x128xf32>,
    %68 = vector.shape_cast %63 : vector<64x1xf32> to vector<1x64x1xf32>
    %69 = vector.shape_cast %68 : vector<1x64x1xf32> to vector<1x64x1xf32>
    %70 = vector.broadcast %69 : vector<1x64x1xf32> to vector<1x64x128xf32>
    %c0_30 = arith.constant 0 : index
    %c0_31 = arith.constant 0 : index
    %c0_32 = arith.constant 0 : index
    %71 = vector.load %arg8[%c0_30, %c0_31, %c0_32] : memref<1x64x128xf32, #tpu.memory_space<vmem>>, vector<1x64x128xf32>
    tpu.vector_store %arg8[%c0_30, %c0_31, %c0_32], %70 {strides = array<i32>} : memref<1x64x128xf32, #tpu.memory_space<vmem>>, vector<1x64x128xf32>,
    return
  }
  func.func @transform_0(%arg0: i32) -> (i32, i32) {
    %c0_i32 = arith.constant 0 : i32
    %c0_i32_0 = arith.constant 0 : i32
    return %c0_i32, %arg0 : i32, i32
  }
  func.func @transform_1(%arg0: i32) -> (i32, i32, i32) {
    %c0_i32 = arith.constant 0 : i32
    %c0_i32_0 = arith.constant 0 : i32
    %c0_i32_1 = arith.constant 0 : i32
    %c0_i32_2 = arith.constant 0 : i32
    return %c0_i32, %c0_i32_0, %c0_i32_1 : i32, i32, i32
  }
  func.func @transform_2(%arg0: i32) -> (i32, i32) {
    %c0_i32 = arith.constant 0 : i32
    %c0_i32_0 = arith.constant 0 : i32
    %c0_i32_1 = arith.constant 0 : i32
    return %c0_i32, %c0_i32_0 : i32, i32
  }
  func.func @transform_3(%arg0: i32) -> (i32, i32) {
    %c0_i32 = arith.constant 0 : i32
    %c0_i32_0 = arith.constant 0 : i32
    %c0_i32_1 = arith.constant 0 : i32
    return %c0_i32, %c0_i32_0 : i32, i32
  }
  func.func @transform_4(%arg0: i32) -> (i32, i32) {
    %c0_i32 = arith.constant 0 : i32
    %c0_i32_0 = arith.constant 0 : i32
    %c0_i32_1 = arith.constant 0 : i32
    return %c0_i32, %c0_i32_0 : i32, i32
  }
  func.func @transform_5(%arg0: i32) -> (i32, i32) {
    %c0_i32 = arith.constant 0 : i32
    %c0_i32_0 = arith.constant 0 : i32
    return %c0_i32, %arg0 : i32, i32
  }
  func.func @transform_6(%arg0: i32) -> (i32, i32, i32) {
    %c0_i32 = arith.constant 0 : i32
    %c0_i32_0 = arith.constant 0 : i32
    %c0_i32_1 = arith.constant 0 : i32
    return %arg0, %c0_i32, %c0_i32_0 : i32, i32, i32
  }
  func.func @transform_7(%arg0: i32) -> (i32, i32, i32) {
    %c0_i32 = arith.constant 0 : i32
    %c0_i32_0 = arith.constant 0 : i32
    %c0_i32_1 = arith.constant 0 : i32
    return %arg0, %c0_i32, %c0_i32_0 : i32, i32, i32
  }
}

module attributes {stable_mosaic.version = 11 : i64} {
  func.func @_residual_kernel(%arg0: i32, %arg1: memref<64x256xf32, #tpu.memory_space<vmem>>, %arg2: memref<64x1xf32, #tpu.memory_space<vmem>>, %arg3: memref<64x1xf32, #tpu.memory_space<vmem>>, %arg4: memref<64x256xf32, #tpu.memory_space<vmem>>, %arg5: memref<64x1xf32, #tpu.memory_space<vmem>>, %arg6: memref<64x1xf32, #tpu.memory_space<vmem>>, %arg7: memref<64x256xf32, #tpu.memory_space<vmem>>) attributes {dimension_semantics = [#tpu.dimension_semantics<parallel>], iteration_bounds = array<i64: 2>, scalar_prefetch = 0 : i64, scratch_operands = 0 : i64, tpu.core_type = #tpu.core_type<tc>, window_params = [{transform_indices = @transform_0, window_bounds = array<i64: 64, 256>}, {pipeline_mode = #tpu.pipeline_mode<synchronous>, transform_indices = @transform_1, window_bounds = array<i64: 64, 1>}, {pipeline_mode = #tpu.pipeline_mode<synchronous>, transform_indices = @transform_2, window_bounds = array<i64: 64, 1>}, {transform_indices = @transform_3, window_bounds = array<i64: 64, 256>}, {pipeline_mode = #tpu.pipeline_mode<synchronous>, transform_indices = @transform_4, window_bounds = array<i64: 64, 1>}, {pipeline_mode = #tpu.pipeline_mode<synchronous>, transform_indices = @transform_5, window_bounds = array<i64: 64, 1>}, {transform_indices = @transform_6, window_bounds = array<i64: 64, 256>}]} {
    %c0 = arith.constant 0 : index
    %c0_0 = arith.constant 0 : index
    %0 = vector.load %arg1[%c0, %c0_0] : memref<64x256xf32, #tpu.memory_space<vmem>>, vector<64x256xf32>
    %c0_1 = arith.constant 0 : index
    %c0_2 = arith.constant 0 : index
    %1 = vector.load %arg2[%c0_1, %c0_2] : memref<64x1xf32, #tpu.memory_space<vmem>>, vector<64x1xf32>
    %2 = vector.broadcast %1 : vector<64x1xf32> to vector<64x256xf32>
    %3 = arith.mulf %0, %2 : vector<64x256xf32>
    %c0_3 = arith.constant 0 : index
    %c0_4 = arith.constant 0 : index
    %4 = vector.load %arg3[%c0_3, %c0_4] : memref<64x1xf32, #tpu.memory_space<vmem>>, vector<64x1xf32>
    %5 = vector.broadcast %4 : vector<64x1xf32> to vector<64x256xf32>
    %6 = arith.addf %3, %5 : vector<64x256xf32>
    %cst = arith.constant 0.000000e+00 : f32
    %7 = vector.broadcast %cst : f32 to vector<64x256xf32>
    %8 = arith.maximumf %6, %7 : vector<64x256xf32>
    %c0_5 = arith.constant 0 : index
    %c0_6 = arith.constant 0 : index
    %9 = vector.load %arg4[%c0_5, %c0_6] : memref<64x256xf32, #tpu.memory_space<vmem>>, vector<64x256xf32>
    %c0_7 = arith.constant 0 : index
    %c0_8 = arith.constant 0 : index
    %10 = vector.load %arg5[%c0_7, %c0_8] : memref<64x1xf32, #tpu.memory_space<vmem>>, vector<64x1xf32>
    %11 = vector.broadcast %10 : vector<64x1xf32> to vector<64x256xf32>
    %12 = arith.mulf %9, %11 : vector<64x256xf32>
    %c0_9 = arith.constant 0 : index
    %c0_10 = arith.constant 0 : index
    %13 = vector.load %arg6[%c0_9, %c0_10] : memref<64x1xf32, #tpu.memory_space<vmem>>, vector<64x1xf32>
    %14 = vector.broadcast %13 : vector<64x1xf32> to vector<64x256xf32>
    %15 = arith.addf %12, %14 : vector<64x256xf32>
    %cst_11 = arith.constant 0.000000e+00 : f32
    %16 = vector.broadcast %cst_11 : f32 to vector<64x256xf32>
    %17 = arith.maximumf %15, %16 : vector<64x256xf32>
    %18 = arith.addf %8, %17 : vector<64x256xf32>
    %cst_12 = arith.constant 0.000000e+00 : f32
    %19 = vector.broadcast %cst_12 : f32 to vector<64x256xf32>
    %20 = arith.maximumf %18, %19 : vector<64x256xf32>
    %c0_13 = arith.constant 0 : index
    %c0_14 = arith.constant 0 : index
    %21 = vector.load %arg7[%c0_13, %c0_14] : memref<64x256xf32, #tpu.memory_space<vmem>>, vector<64x256xf32>
    tpu.vector_store %arg7[%c0_13, %c0_14], %20 {strides = array<i32>} : memref<64x256xf32, #tpu.memory_space<vmem>>, vector<64x256xf32>,
    return
  }
  func.func @transform_0(%arg0: i32) -> (i32, i32) {
    %c0_i32 = arith.constant 0 : i32
    %c0_i32_0 = arith.constant 0 : i32
    return %c0_i32, %arg0 : i32, i32
  }
  func.func @transform_1(%arg0: i32) -> (i32, i32) {
    %c0_i32 = arith.constant 0 : i32
    %c0_i32_0 = arith.constant 0 : i32
    %c0_i32_1 = arith.constant 0 : i32
    return %c0_i32, %c0_i32_0 : i32, i32
  }
  func.func @transform_2(%arg0: i32) -> (i32, i32) {
    %c0_i32 = arith.constant 0 : i32
    %c0_i32_0 = arith.constant 0 : i32
    %c0_i32_1 = arith.constant 0 : i32
    return %c0_i32, %c0_i32_0 : i32, i32
  }
  func.func @transform_3(%arg0: i32) -> (i32, i32) {
    %c0_i32 = arith.constant 0 : i32
    %c0_i32_0 = arith.constant 0 : i32
    return %c0_i32, %arg0 : i32, i32
  }
  func.func @transform_4(%arg0: i32) -> (i32, i32) {
    %c0_i32 = arith.constant 0 : i32
    %c0_i32_0 = arith.constant 0 : i32
    %c0_i32_1 = arith.constant 0 : i32
    return %c0_i32, %c0_i32_0 : i32, i32
  }
  func.func @transform_5(%arg0: i32) -> (i32, i32) {
    %c0_i32 = arith.constant 0 : i32
    %c0_i32_0 = arith.constant 0 : i32
    %c0_i32_1 = arith.constant 0 : i32
    return %c0_i32, %c0_i32_0 : i32, i32
  }
  func.func @transform_6(%arg0: i32) -> (i32, i32) {
    %c0_i32 = arith.constant 0 : i32
    %c0_i32_0 = arith.constant 0 : i32
    return %c0_i32, %arg0 : i32, i32
  }
}

module attributes {stable_mosaic.version = 11 : i64} {
  func.func @_sqnxt_conv_kernel(%arg0: i32, %arg1: memref<64x256xf32, #tpu.memory_space<vmem>>, %arg2: memref<1x64x64xbf16, #tpu.memory_space<vmem>>, %arg3: memref<64x1xf32, #tpu.memory_space<vmem>>, %arg4: memref<64x1xf32, #tpu.memory_space<vmem>>, %arg5: memref<64x1xf32, #tpu.memory_space<vmem>>, %arg6: memref<64x256xf32, #tpu.memory_space<vmem>>, %arg7: memref<1x64x128xf32, #tpu.memory_space<vmem>>, %arg8: memref<1x64x128xf32, #tpu.memory_space<vmem>>) attributes {dimension_semantics = [#tpu.dimension_semantics<parallel>], iteration_bounds = array<i64: 2>, scalar_prefetch = 0 : i64, scratch_operands = 0 : i64, tpu.core_type = #tpu.core_type<tc>, window_params = [{transform_indices = @transform_0, window_bounds = array<i64: 64, 256>}, {pipeline_mode = #tpu.pipeline_mode<synchronous>, transform_indices = @transform_1, window_bounds = array<i64: 1, 64, 64>}, {pipeline_mode = #tpu.pipeline_mode<synchronous>, transform_indices = @transform_2, window_bounds = array<i64: 64, 1>}, {pipeline_mode = #tpu.pipeline_mode<synchronous>, transform_indices = @transform_3, window_bounds = array<i64: 64, 1>}, {pipeline_mode = #tpu.pipeline_mode<synchronous>, transform_indices = @transform_4, window_bounds = array<i64: 64, 1>}, {transform_indices = @transform_5, window_bounds = array<i64: 64, 256>}, {transform_indices = @transform_6, window_bounds = array<i64: 1, 64, 128>}, {transform_indices = @transform_7, window_bounds = array<i64: 1, 64, 128>}]} {
    %c0 = arith.constant 0 : index
    %c0_0 = arith.constant 0 : index
    %0 = vector.load %arg1[%c0, %c0_0] : memref<64x256xf32, #tpu.memory_space<vmem>>, vector<64x256xf32>
    %c0_1 = arith.constant 0 : index
    %c0_2 = arith.constant 0 : index
    %1 = vector.load %arg3[%c0_1, %c0_2] : memref<64x1xf32, #tpu.memory_space<vmem>>, vector<64x1xf32>
    %2 = vector.broadcast %1 : vector<64x1xf32> to vector<64x256xf32>
    %3 = arith.mulf %0, %2 : vector<64x256xf32>
    %c0_3 = arith.constant 0 : index
    %c0_4 = arith.constant 0 : index
    %4 = vector.load %arg4[%c0_3, %c0_4] : memref<64x1xf32, #tpu.memory_space<vmem>>, vector<64x1xf32>
    %5 = vector.broadcast %4 : vector<64x1xf32> to vector<64x256xf32>
    %6 = arith.addf %3, %5 : vector<64x256xf32>
    %cst = arith.constant 0.000000e+00 : f32
    %7 = vector.broadcast %cst : f32 to vector<64x256xf32>
    %8 = arith.maximumf %6, %7 : vector<64x256xf32>
    %9 = arith.truncf %8 : vector<64x256xf32> to vector<64x256xbf16>
    %c0_5 = arith.constant 0 : index
    %c0_6 = arith.constant 0 : index
    %c0_7 = arith.constant 0 : index
    %10 = vector.load %arg2[%c0_5, %c0_6, %c0_7] : memref<1x64x64xbf16, #tpu.memory_space<vmem>>, vector<1x64x64xbf16>
    %11 = vector.shape_cast %10 : vector<1x64x64xbf16> to vector<64x64xbf16>
    %cst_8 = arith.constant dense<0.000000e+00> : vector<64x256xf32>
    %12 = tpu.matmul %11, %9, %cst_8 {dimension_numbers = #tpu.dot_dimension_numbers<[1], [0], [0], [1], [0, 0, 1, 1], [], []>} : vector<64x64xbf16>, vector<64x256xbf16>, vector<64x256xf32> -> vector<64x256xf32>
    %c0_9 = arith.constant 0 : index
    %c0_10 = arith.constant 0 : index
    %13 = vector.load %arg5[%c0_9, %c0_10] : memref<64x1xf32, #tpu.memory_space<vmem>>, vector<64x1xf32>
    %14 = vector.broadcast %13 : vector<64x1xf32> to vector<64x256xf32>
    %15 = arith.addf %12, %14 : vector<64x256xf32>
    %c0_11 = arith.constant 0 : index
    %c0_12 = arith.constant 0 : index
    %16 = vector.load %arg6[%c0_11, %c0_12] : memref<64x256xf32, #tpu.memory_space<vmem>>, vector<64x256xf32>
    tpu.vector_store %arg6[%c0_11, %c0_12], %15 {strides = array<i32>} : memref<64x256xf32, #tpu.memory_space<vmem>>, vector<64x256xf32>,
    %cst_13 = arith.constant dense<0.000000e+00> : vector<64xf32>
    %17 = vector.multi_reduction <add>, %15, %cst_13 [1] : vector<64x256xf32> to vector<64xf32>
    %18 = vector.shape_cast %17 : vector<64xf32> to vector<64x1xf32>
    %19 = arith.mulf %15, %15 : vector<64x256xf32>
    %cst_14 = arith.constant dense<0.000000e+00> : vector<64xf32>
    %20 = vector.multi_reduction <add>, %19, %cst_14 [1] : vector<64x256xf32> to vector<64xf32>
    %21 = vector.shape_cast %20 : vector<64xf32> to vector<64x1xf32>
    %22 = vector.shape_cast %18 : vector<64x1xf32> to vector<1x64x1xf32>
    %23 = vector.shape_cast %22 : vector<1x64x1xf32> to vector<1x64x1xf32>
    %24 = vector.broadcast %23 : vector<1x64x1xf32> to vector<1x64x128xf32>
    %c0_15 = arith.constant 0 : index
    %c0_16 = arith.constant 0 : index
    %c0_17 = arith.constant 0 : index
    %25 = vector.load %arg7[%c0_15, %c0_16, %c0_17] : memref<1x64x128xf32, #tpu.memory_space<vmem>>, vector<1x64x128xf32>
    tpu.vector_store %arg7[%c0_15, %c0_16, %c0_17], %24 {strides = array<i32>} : memref<1x64x128xf32, #tpu.memory_space<vmem>>, vector<1x64x128xf32>,
    %26 = vector.shape_cast %21 : vector<64x1xf32> to vector<1x64x1xf32>
    %27 = vector.shape_cast %26 : vector<1x64x1xf32> to vector<1x64x1xf32>
    %28 = vector.broadcast %27 : vector<1x64x1xf32> to vector<1x64x128xf32>
    %c0_18 = arith.constant 0 : index
    %c0_19 = arith.constant 0 : index
    %c0_20 = arith.constant 0 : index
    %29 = vector.load %arg8[%c0_18, %c0_19, %c0_20] : memref<1x64x128xf32, #tpu.memory_space<vmem>>, vector<1x64x128xf32>
    tpu.vector_store %arg8[%c0_18, %c0_19, %c0_20], %28 {strides = array<i32>} : memref<1x64x128xf32, #tpu.memory_space<vmem>>, vector<1x64x128xf32>,
    return
  }
  func.func @transform_0(%arg0: i32) -> (i32, i32) {
    %c0_i32 = arith.constant 0 : i32
    %c0_i32_0 = arith.constant 0 : i32
    return %c0_i32, %arg0 : i32, i32
  }
  func.func @transform_1(%arg0: i32) -> (i32, i32, i32) {
    %c0_i32 = arith.constant 0 : i32
    %c0_i32_0 = arith.constant 0 : i32
    %c0_i32_1 = arith.constant 0 : i32
    %c0_i32_2 = arith.constant 0 : i32
    return %c0_i32, %c0_i32_0, %c0_i32_1 : i32, i32, i32
  }
  func.func @transform_2(%arg0: i32) -> (i32, i32) {
    %c0_i32 = arith.constant 0 : i32
    %c0_i32_0 = arith.constant 0 : i32
    %c0_i32_1 = arith.constant 0 : i32
    return %c0_i32, %c0_i32_0 : i32, i32
  }
  func.func @transform_3(%arg0: i32) -> (i32, i32) {
    %c0_i32 = arith.constant 0 : i32
    %c0_i32_0 = arith.constant 0 : i32
    %c0_i32_1 = arith.constant 0 : i32
    return %c0_i32, %c0_i32_0 : i32, i32
  }
  func.func @transform_4(%arg0: i32) -> (i32, i32) {
    %c0_i32 = arith.constant 0 : i32
    %c0_i32_0 = arith.constant 0 : i32
    %c0_i32_1 = arith.constant 0 : i32
    return %c0_i32, %c0_i32_0 : i32, i32
  }
  func.func @transform_5(%arg0: i32) -> (i32, i32) {
    %c0_i32 = arith.constant 0 : i32
    %c0_i32_0 = arith.constant 0 : i32
    return %c0_i32, %arg0 : i32, i32
  }
  func.func @transform_6(%arg0: i32) -> (i32, i32, i32) {
    %c0_i32 = arith.constant 0 : i32
    %c0_i32_0 = arith.constant 0 : i32
    %c0_i32_1 = arith.constant 0 : i32
    return %arg0, %c0_i32, %c0_i32_0 : i32, i32, i32
  }
  func.func @transform_7(%arg0: i32) -> (i32, i32, i32) {
    %c0_i32 = arith.constant 0 : i32
    %c0_i32_0 = arith.constant 0 : i32
    %c0_i32_1 = arith.constant 0 : i32
    return %arg0, %c0_i32, %c0_i32_0 : i32, i32, i32
  }
}

</mosaic_0001>

<llo_original>
// kernel: sqnxt_unit_forward.8
$region0: #{sqnxt_unit_forward.8}
  #allocation0 [shape = 'u32[]', space=smem, size = 0x4, offset = 0x4, fixed_abs, tag = 'smem constant byte address 0x4 - core index']
  #allocation1 [shape = 'u32[144,128]{1,0:T(1,128)}', space=vmem, size = 0x12000, scoped, tag = 'internal scratch']
  %s0 = inlined_call_operand.vmem [shape: f32[64,512], index: 0, kind: input, shape index: {}]
  %s1 = inlined_call_operand.vmem [shape: bf16[1,32,64], index: 1, kind: input, shape index: {}]
  %s2 = inlined_call_operand.vmem [shape: f32[64,1], index: 2, kind: input, shape index: {}]
  %s3 = inlined_call_operand.vmem [shape: f32[64,1], index: 3, kind: input, shape index: {}]
  %s4 = inlined_call_operand.vmem [shape: f32[32,1], index: 4, kind: input, shape index: {}]
  %s5 = inlined_call_operand.vmem [shape: f32[32,512], index: 5, kind: output, shape index: {0}]
  %s6 = inlined_call_operand.vmem [shape: f32[2,32,128], index: 6, kind: output, shape index: {1}]
  %s7 = inlined_call_operand.vmem [shape: f32[2,32,128], index: 7, kind: output, shape index: {2}]
  %8 = xla_tuple %s5, %s6, %s7
  %s9 = sld [smem:[#allocation0]]
  $region111: #{sqnxt_unit_forward.8} parent=0
    _
  %s11 = ssub.s32 1, %s9
  %s12 = scalar_select 0, %s11, %s9
  $region1: #{sqnxt_unit_forward.8} parent=0
    #allocation2 [shape = 'u8[131072]{0}', space=vmem, size = 0x20000, scoped, tag = 'input window, operand 0']
    #allocation3 [shape = 'u8[65536]{0}', space=vmem, size = 0x10000, scoped, tag = 'output window, operand 0']
    loop: start=0, step=1, limit=4
    $region2: #{sqnxt_unit_forward.8} parent=1 // loop_pre_header
      _
    $region3: #{sqnxt_unit_forward.8} parent=1 // loop_header
      %s14 = sphi 0, %s18
      %p15 = scmp.ge.s32.totalorder %s14, 4
      %s24 = sphi 0, %s26
      %s27 = sphi 0, %s24
      %s28 = sphi 0, %s27
      %s44 = sphi 0, %s28
      %s48 = sphi 0, %s48
      %s50 = sphi 0, %s48
      %s51 = sphi 0, %s50
      %s65 = sphi 0, %s51
      %s69 = sphi 0, %s69
      %s71 = sphi 0, %s69
      %s72 = sphi 0, %s71
      %s86 = sphi 0, %s72
      %s90 = sphi 0, %s90
      %s92 = sphi 0, %s90
      %s93 = sphi 0, %s92
      %s107 = sphi 0, %s93
      %s111 = sphi 0, %s111
      %s113 = sphi 0, %s111
      %s114 = sphi 0, %s113
      %s128 = sphi 0, %s114
      %s134 = sphi 0, %s136
      %s137 = sphi 0, %s134
      %s138 = sphi 0, %s137
      %s154 = sphi 0, %s138
      %s160 = sphi 0, %s162
      %s163 = sphi 0, %s160
      %s164 = sphi 0, %s163
      %s180 = sphi 0, %s164
      %s186 = sphi 0, %s188
      %s189 = sphi 0, %s186
      %s190 = sphi 0, %s189
      %s206 = sphi 0, %s190
    $region4: #{sqnxt_unit_forward.8} parent=1 // loop_header_branch
      %17 = sbr.rel (%p15) target = $region8
    $region5: #{sqnxt_unit_forward.8} parent=1 // loop_body
      %s19 = ssub.s32 %s14, 1
      %s20 = ssub.s32 %s14, 2
      %s21 = sadd.s32 %s14, 1
      %s22 = ssub.s32 %s14, %s21
      %p23 = scmp.eq.s32.totalorder %s22, 0
      %s25 = sadd.s32 %s24, 1
      %s26 = scalar_select %p23, %s24, %s25
      %p29 = pneg %p23
      %p30 = scmp.eq.s32.totalorder %s14, 1
      %p31 = por %p29, %p30
      %p32 = scmp.ne.s32.totalorder %s24, %s27
      %p33 = scmp.eq.s32.totalorder %s14, 0
      %p34 = por %p32, %p33
      %p35 = scmp.ne.s32.totalorder %s24, %s27
      %p36 = scmp.eq.s32.totalorder %s19, 1
      %p37 = por %p35, %p36
      %p38 = scmp.ne.s32.totalorder %s27, %s28
      %p39 = scmp.eq.s32.totalorder %s19, 0
      %p40 = por %p38, %p39
      %p41 = scmp.ne.s32.totalorder %s27, %s28
      %p42 = scmp.eq.s32.totalorder %s20, 1
      %p43 = por %p41, %p42
      %p45 = scmp.ne.s32.totalorder %s28, %s44
      %p46 = scmp.eq.s32.totalorder %s20, 0
      %p47 = por %p45, %p46
      %s49 = sadd.s32 %s48, 1
      %p52 = scmp.eq.s32.totalorder %s14, 1
      %p53 = scmp.ne.s32.totalorder %s48, %s50
      %p54 = scmp.eq.s32.totalorder %s14, 0
      %p55 = por %p53, %p54
      %p56 = scmp.ne.s32.totalorder %s48, %s50
      %p57 = scmp.eq.s32.totalorder %s19, 1
      %p58 = por %p56, %p57
      %p59 = scmp.ne.s32.totalorder %s50, %s51
      %p60 = scmp.eq.s32.totalorder %s19, 0
      %p61 = por %p59, %p60
      %p62 = scmp.ne.s32.totalorder %s50, %s51
      %p63 = scmp.eq.s32.totalorder %s20, 1
      %p64 = por %p62, %p63
      %p66 = scmp.ne.s32.totalorder %s51, %s65
      %p67 = scmp.eq.s32.totalorder %s20, 0
      %p68 = por %p66, %p67
      %s70 = sadd.s32 %s69, 1
      %p73 = scmp.eq.s32.totalorder %s14, 1
      %p74 = scmp.ne.s32.totalorder %s69, %s71
      %p75 = scmp.eq.s32.totalorder %s14, 0
      %p76 = por %p74, %p75
      %p77 = scmp.ne.s32.totalorder %s69, %s71
      %p78 = scmp.eq.s32.totalorder %s19, 1
      %p79 = por %p77, %p78
      %p80 = scmp.ne.s32.totalorder %s71, %s72
      %p81 = scmp.eq.s32.totalorder %s19, 0
      %p82 = por %p80, %p81
      %p83 = scmp.ne.s32.totalorder %s71, %s72
      %p84 = scmp.eq.s32.totalorder %s20, 1
      %p85 = por %p83, %p84
      %p87 = scmp.ne.s32.totalorder %s72, %s86
      %p88 = scmp.eq.s32.totalorder %s20, 0
      %p89 = por %p87, %p88
      %s91 = sadd.s32 %s90, 1
      %p94 = scmp.eq.s32.totalorder %s14, 1
      %p95 = scmp.ne.s32.totalorder %s90, %s92
      %p96 = scmp.eq.s32.totalorder %s14, 0
      %p97 = por %p95, %p96
      %p98 = scmp.ne.s32.totalorder %s90, %s92
      %p99 = scmp.eq.s32.totalorder %s19, 1
      %p100 = por %p98, %p99
      %p101 = scmp.ne.s32.totalorder %s92, %s93
      %p102 = scmp.eq.s32.totalorder %s19, 0
      %p103 = por %p101, %p102
      %p104 = scmp.ne.s32.totalorder %s92, %s93
      %p105 = scmp.eq.s32.totalorder %s20, 1
      %p106 = por %p104, %p105
      %p108 = scmp.ne.s32.totalorder %s93, %s107
      %p109 = scmp.eq.s32.totalorder %s20, 0
      %p110 = por %p108, %p109
      %s112 = sadd.s32 %s111, 1
      %p115 = scmp.eq.s32.totalorder %s14, 1
      %p116 = scmp.ne.s32.totalorder %s111, %s113
      %p117 = scmp.eq.s32.totalorder %s14, 0
      %p118 = por %p116, %p117
      %p119 = scmp.ne.s32.totalorder %s111, %s113
      %p120 = scmp.eq.s32.totalorder %s19, 1
      %p121 = por %p119, %p120
      %p122 = scmp.ne.s32.totalorder %s113, %s114
      %p123 = scmp.eq.s32.totalorder %s19, 0
      %p124 = por %p122, %p123
      %p125 = scmp.ne.s32.totalorder %s113, %s114
      %p126 = scmp.eq.s32.totalorder %s20, 1
      %p127 = por %p125, %p126
      %p129 = scmp.ne.s32.totalorder %s114, %s128
      %p130 = scmp.eq.s32.totalorder %s20, 0
      %p131 = por %p129, %p130
      %s132 = ssub.s32 %s14, %s21
      %p133 = scmp.eq.s32.totalorder %s132, 0
      %s135 = sadd.s32 %s134, 1
      %s136 = scalar_select %p133, %s134, %s135
      %p139 = pneg %p133
      %p140 = scmp.eq.s32.totalorder %s14, 1
      %p141 = por %p139, %p140
      %p142 = scmp.ne.s32.totalorder %s134, %s137
      %p143 = scmp.eq.s32.totalorder %s14, 0
      %p144 = por %p142, %p143
      %p145 = scmp.ne.s32.totalorder %s134, %s137
      %p146 = scmp.eq.s32.totalorder %s19, 1
      %p147 = por %p145, %p146
      %p148 = scmp.ne.s32.totalorder %s137, %s138
      %p149 = scmp.eq.s32.totalorder %s19, 0
      %p150 = por %p148, %p149
      %p151 = scmp.ne.s32.totalorder %s137, %s138
      %p152 = scmp.eq.s32.totalorder %s20, 1
      %p153 = por %p151, %p152
      %p155 = scmp.ne.s32.totalorder %s138, %s154
      %p156 = scmp.eq.s32.totalorder %s20, 0
      %p157 = por %p155, %p156
      %s158 = ssub.s32 %s14, %s21
      %p159 = scmp.eq.s32.totalorder %s158, 0
      %s161 = sadd.s32 %s160, 1
      %s162 = scalar_select %p159, %s160, %s161
      %p165 = pneg %p159
      %p166 = scmp.eq.s32.totalorder %s14, 1
      %p167 = por %p165, %p166
      %p168 = scmp.ne.s32.totalorder %s160, %s163
      %p169 = scmp.eq.s32.totalorder %s14, 0
      %p170 = por %p168, %p169
      %p171 = scmp.ne.s32.totalorder %s160, %s163
      %p172 = scmp.eq.s32.totalorder %s19, 1
      %p173 = por %p171, %p172
      %p174 = scmp.ne.s32.totalorder %s163, %s164
      %p175 = scmp.eq.s32.totalorder %s19, 0
      %p176 = por %p174, %p175
      %p177 = scmp.ne.s32.totalorder %s163, %s164
      %p178 = scmp.eq.s32.totalorder %s20, 1
      %p179 = por %p177, %p178
      %p181 = scmp.ne.s32.totalorder %s164, %s180
      %p182 = scmp.eq.s32.totalorder %s20, 0
      %p183 = por %p181, %p182
      %s184 = ssub.s32 %s14, %s21
      %p185 = scmp.eq.s32.totalorder %s184, 0
      %s187 = sadd.s32 %s186, 1
      %s188 = scalar_select %p185, %s186, %s187
      %p191 = pneg %p185
      %p192 = scmp.eq.s32.totalorder %s14, 1
      %p193 = por %p191, %p192
      %p194 = scmp.ne.s32.totalorder %s186, %s189
      %p195 = scmp.eq.s32.totalorder %s14, 0
      %p196 = por %p194, %p195
      %p197 = scmp.ne.s32.totalorder %s186, %s189
      %p198 = scmp.eq.s32.totalorder %s19, 1
      %p199 = por %p197, %p198
      %p200 = scmp.ne.s32.totalorder %s189, %s190
      %p201 = scmp.eq.s32.totalorder %s19, 0
      %p202 = por %p200, %p201
      %p203 = scmp.ne.s32.totalorder %s189, %s190
      %p204 = scmp.eq.s32.totalorder %s20, 1
      %p205 = por %p203, %p204
      %p207 = scmp.ne.s32.totalorder %s190, %s206
      %p208 = scmp.eq.s32.totalorder %s20, 0
      %p209 = por %p207, %p208
      %p210 = scmp.le.s32.totalorder 1, %s14
      %p211 = scmp.lt.s32.totalorder %s14, 3
      %p212 = pnand %p210, %p211
      %p213 = pneg %p212
      // Predicated region
      $region9: #{sqnxt_unit_forward.8} parent=5 // pred_check
        _
      $region10: #{sqnxt_unit_forward.8} parent=5 // pred_check_branch
        %215 = sbr.rel (%p212) target = $region12
      $region11: #{sqnxt_unit_forward.8} parent=5 // pred_region
        %s216 = ssub.s32 %s14, 1
        // Predicated region
        $region13: #{sqnxt_unit_forward.8} parent=11 // pred_check
          %p217 = pneg %p61
        $region14: #{sqnxt_unit_forward.8} parent=11 // pred_check_branch
          %219 = sbr.rel (%p217) target = $region16
        $region15: #{sqnxt_unit_forward.8} parent=11 // pred_region
          _
        $region16: #{sqnxt_unit_forward.8} parent=11 // pred_fallthru
          _
        // Predicated region
        $region17: #{sqnxt_unit_forward.8} parent=11 // pred_check
          %p220 = pneg %p82
        $region18: #{sqnxt_unit_forward.8} parent=11 // pred_check_branch
          %222 = sbr.rel (%p220) target = $region20
        $region19: #{sqnxt_unit_forward.8} parent=11 // pred_region
          _
        $region20: #{sqnxt_unit_forward.8} parent=11 // pred_fallthru
          _
        // Predicated region
        $region21: #{sqnxt_unit_forward.8} parent=11 // pred_check
          %p223 = pneg %p103
        $region22: #{sqnxt_unit_forward.8} parent=11 // pred_check_branch
          %225 = sbr.rel (%p223) target = $region24
        $region23: #{sqnxt_unit_forward.8} parent=11 // pred_region
          _
        $region24: #{sqnxt_unit_forward.8} parent=11 // pred_fallthru
          _
        // Predicated region
        $region25: #{sqnxt_unit_forward.8} parent=11 // pred_check
          %p226 = pneg %p124
        $region26: #{sqnxt_unit_forward.8} parent=11 // pred_check_branch
          %228 = sbr.rel (%p226) target = $region28
        $region27: #{sqnxt_unit_forward.8} parent=11 // pred_region
          _
        $region28: #{sqnxt_unit_forward.8} parent=11 // pred_fallthru
          _
      $region12: #{sqnxt_unit_forward.8} parent=5 // pred_fallthru
        _
      %p229 = scmp.lt.s32.totalorder %s14, 2
      // Predicated region
      $region29: #{sqnxt_unit_forward.8} parent=5 // pred_check
        %p230 = pneg %p229
      $region30: #{sqnxt_unit_forward.8} parent=5 // pred_check_branch
        %232 = sbr.rel (%p230) target = $region32
      $region31: #{sqnxt_unit_forward.8} parent=5 // pred_region
        // Predicated region
        $region33: #{sqnxt_unit_forward.8} parent=31 // pred_check
          %p233 = pneg %p34
        $region34: #{sqnxt_unit_forward.8} parent=31 // pred_check_branch
          %235 = sbr.rel (%p233) target = $region36
        $region35: #{sqnxt_unit_forward.8} parent=31 // pred_region
          %s236 = sand.u32 %s24, 1
          %s237 = sand.u32 %s24, 1
          %s238 = smul.addr %s237, 128
          %s239 = scalar_lea.vmem [#allocation2], %s238
          %s240 = smul.u32 2, %s14
          %s241 = smul.addr %s240, 8
          %s242 = scalar_lea.vmem %s0, %s241
          // Predicated region
          $region37: #{sqnxt_unit_forward.8} parent=35 // pred_check
            _
          $region38: #{sqnxt_unit_forward.8} parent=35 // pred_check_branch
            %244 = sbr.rel (0) target = $region40
          $region39: #{sqnxt_unit_forward.8} parent=35 // pred_region
            // Predicated region
            $region41: #{sqnxt_unit_forward.8} parent=39 // pred_check
              _
            $region42: #{sqnxt_unit_forward.8} parent=39 // pred_check_branch
              %246 = sbr.rel (0) target = $region44
            $region43: #{sqnxt_unit_forward.8} parent=39 // pred_region
              loop: start=0, step=1, limit=1
              $region45: #{sqnxt_unit_forward.8} parent=43 // loop_pre_header
                _
              $region46: #{sqnxt_unit_forward.8} parent=43 // loop_header
                %s248 = sphi 0, %s252
                %p249 = scmp.ge.s32.totalorder %s248, 1
                %s253 = sphi %s242, %s242
                %s254 = sphi %s239, %s239
              $region47: #{sqnxt_unit_forward.8} parent=43 // loop_header_branch
                %251 = sbr.rel (%p249) target = $region51
              $region48: #{sqnxt_unit_forward.8} parent=43 // loop_body
                %v255 = vld [vmem:[%s253] sm:$0xff]
                %256 = vst [vmem:[%s254] sm:$0xff] %v255
                %v257 = vld [vmem:[%s253 + $0x8] sm:$0xff]
                %258 = vst [vmem:[%s254 + $0x8] sm:$0xff] %v257
                %v259 = vld [vmem:[%s253 + $0x20] sm:$0xff]
                %260 = vst [vmem:[%s254 + $0x10] sm:$0xff] %v259
                %v261 = vld [vmem:[%s253 + $0x28] sm:$0xff]
                %262 = vst [vmem:[%s254 + $0x18] sm:$0xff] %v261
                %v263 = vld [vmem:[%s253 + $0x40] sm:$0xff]
                %264 = vst [vmem:[%s254 + $0x20] sm:$0xff] %v263
                %v265 = vld [vmem:[%s253 + $0x48] sm:$0xff]
                %266 = vst [vmem:[%s254 + $0x28] sm:$0xff] %v265
                %v267 = vld [vmem:[%s253 + $0x60] sm:$0xff]
                %268 = vst [vmem:[%s254 + $0x30] sm:$0xff] %v267
                %v269 = vld [vmem:[%s253 + $0x68] sm:$0xff]
                %270 = vst [vmem:[%s254 + $0x38] sm:$0xff] %v269
                %v271 = vld [vmem:[%s253 + $0x80] sm:$0xff]
                %272 = vst [vmem:[%s254 + $0x40] sm:$0xff] %v271
                %v273 = vld [vmem:[%s253 + $0x88] sm:$0xff]
                %274 = vst [vmem:[%s254 + $0x48] sm:$0xff] %v273
                %v275 = vld [vmem:[%s253 + $0xa0] sm:$0xff]
                %276 = vst [vmem:[%s254 + $0x50] sm:$0xff] %v275
                %v277 = vld [vmem:[%s253 + $0xa8] sm:$0xff]
                %278 = vst [vmem:[%s254 + $0x58] sm:$0xff] %v277
                %v279 = vld [vmem:[%s253 + $0xc0] sm:$0xff]
                %280 = vst [vmem:[%s254 + $0x60] sm:$0xff] %v279
                %v281 = vld [vmem:[%s253 + $0xc8] sm:$0xff]
                %282 = vst [vmem:[%s254 + $0x68] sm:$0xff] %v281
                %v283 = vld [vmem:[%s253 + $0xe0] sm:$0xff]
                %284 = vst [vmem:[%s254 + $0x70] sm:$0xff] %v283
                %v285 = vld [vmem:[%s253 + $0xe8] sm:$0xff]
                %286 = vst [vmem:[%s254 + $0x78] sm:$0xff] %v285
              $region49: #{sqnxt_unit_forward.8} parent=43 // loop_footer
                %s252 = sadd.s32 1, %s248
              $region50: #{sqnxt_unit_forward.8} parent=43 // loop_footer_branch
                %247 = sbr.rel target = $region46
              $region51: #{sqnxt_unit_forward.8} parent=43 // loop_exit
                _
            $region44: #{sqnxt_unit_forward.8} parent=39 // pred_fallthru
              _
            // Predicated region
            $region52: #{sqnxt_unit_forward.8} parent=39 // pred_check
              _
            $region53: #{sqnxt_unit_forward.8} parent=39 // pred_check_branch
              %288 = sbr.rel target = $region55
            $region54: #{sqnxt_unit_forward.8} parent=39 // pred_region
              _
            $region55: #{sqnxt_unit_forward.8} parent=39 // pred_fallthru
              _
          $region40: #{sqnxt_unit_forward.8} parent=35 // pred_fallthru
            _
          %289 = vnop
        $region36: #{sqnxt_unit_forward.8} parent=31 // pred_fallthru
          _
      $region32: #{sqnxt_unit_forward.8} parent=5 // pred_fallthru
        _
      %p290 = scmp.le.s32.totalorder 1, %s14
      %p291 = scmp.lt.s32.totalorder %s14, 3
      %p292 = pnand %p290, %p291
      %p293 = pneg %p292
      // Predicated region
      $region56: #{sqnxt_unit_forward.8} parent=5 // pred_check
        _
      $region57: #{sqnxt_unit_forward.8} parent=5 // pred_check_branch
        %295 = sbr.rel (%p292) target = $region59
      $region58: #{sqnxt_unit_forward.8} parent=5 // pred_region
        %s296 = ssub.s32 %s14, 1
        %s297 = sand.u32 %s27, 1
        %s298 = sand.u32 %s27, 1
        %s299 = smul.addr %s298, 128
        %s300 = scalar_lea.vmem [#allocation2], %s299
        // Predicated region
        $region60: #{sqnxt_unit_forward.8} parent=58 // pred_check
          %p301 = pneg %p40
        $region61: #{sqnxt_unit_forward.8} parent=58 // pred_check_branch
          %303 = sbr.rel (%p301) target = $region63
        $region62: #{sqnxt_unit_forward.8} parent=58 // pred_region
          _
        $region63: #{sqnxt_unit_forward.8} parent=58 // pred_fallthru
          _
        %s304 = sand.u32 %s27, 1
        %s305 = sand.u32 %s27, 1
        %s306 = smul.addr %s305, 128
        %s307 = scalar_lea.vmem [#allocation2], %s306
        %p308 = pneg %p40
        %p309 = pneg %p37
        %p310 = pneg %p61
        %p311 = pneg %p58
        %p312 = pneg %p82
        %p313 = pneg %p79
        %p314 = pneg %p103
        %p315 = pneg %p100
        %p316 = pneg %p124
        %p317 = pneg %p121
        %p318 = pneg %p150
        %p319 = pneg %p147
        %s320 = sand.u32 %s137, 1
        %s321 = sand.u32 %s137, 1
        %s322 = smul.addr %s321, 64
        %s323 = scalar_lea.vmem [#allocation3], %s322
        %p324 = pneg %p176
        %p325 = pneg %p173
        %p326 = scmp.lt.s32.totalorder %s19, 1
        %s327 = scalar_select %p326, %s19, 1
        %s328 = smul.addr %s327, 4
        %s329 = smul.addr %s328, 8
        %s330 = scalar_lea.vmem %s6, %s329
        %p331 = pneg %p202
        %p332 = pneg %p199
        %p333 = scmp.lt.s32.totalorder %s19, 1
        %s334 = scalar_select %p333, %s19, 1
        %s335 = smul.addr %s334, 4
        %s336 = smul.addr %s335, 8
        %s337 = scalar_lea.vmem %s7, %s336
        %s338 = smul.u32 2, %s19
        %s339 = smul.u32 2, %s19
        %p340 = scmp.lt.s32.totalorder %s19, 1
        %s341 = scalar_select %p340, %s19, 1
        %s342 = smul.addr %s341, 4
        %s343 = smul.addr %s342, 8
        %s344 = scalar_lea.vmem %s6, %s343
        %p345 = scmp.lt.s32.totalorder %s19, 1
        %s346 = scalar_select %p345, %s19, 1
        %s347 = smul.addr %s346, 4
        %s348 = smul.addr %s347, 8
        %s349 = scalar_lea.vmem %s7, %s348
        %v351 = vld [vmem:[%s300] sm:$0xff]
        %v352 = vld [vmem:[%s300 + $0x8] sm:$0xff]
        %v353 = vld [vmem:[%s300 + $0x10] sm:$0xff]
        %v354 = vld [vmem:[%s300 + $0x18] sm:$0xff]
        %v355 = vld [vmem:[%s300 + $0x20] sm:$0xff]
        %v356 = vld [vmem:[%s300 + $0x28] sm:$0xff]
        %v357 = vld [vmem:[%s300 + $0x30] sm:$0xff]
        %v358 = vld [vmem:[%s300 + $0x38] sm:$0xff]
        %v359 = vld [vmem:[%s300 + $0x40] sm:$0xff]
        %v360 = vld [vmem:[%s300 + $0x48] sm:$0xff]
        %v361 = vld [vmem:[%s300 + $0x50] sm:$0xff]
        %v362 = vld [vmem:[%s300 + $0x58] sm:$0xff]
        %v363 = vld [vmem:[%s300 + $0x60] sm:$0xff]
        %v364 = vld [vmem:[%s300 + $0x68] sm:$0xff]
        %v365 = vld [vmem:[%s300 + $0x70] sm:$0xff]
        %v366 = vld [vmem:[%s300 + $0x78] sm:$0xff]
        %v367 = vld [vmem:[%s2] sm:$0xff]
        %v368 = vld [vmem:[%s2 + $0x8] sm:$0xff]
        %v369 = vld [vmem:[%s2 + $0x10] sm:$0xff]
        %v370 = vld [vmem:[%s2 + $0x18] sm:$0xff]
        %v371 = vld [vmem:[%s2 + $0x20] sm:$0xff]
        %v372 = vld [vmem:[%s2 + $0x28] sm:$0xff]
        %v373 = vld [vmem:[%s2 + $0x30] sm:$0xff]
        %v374 = vld [vmem:[%s2 + $0x38] sm:$0xff]
        %376 = vset.pattern.permute.xlu0 0
        %377 = vperm.xlu0 %376, %v367
        %v378 = vpop.permute.xlu0 %377
        %381 = vset.pattern.permute.xlu0 0
        %382 = vperm.xlu0 %381, %v368
        %v383 = vpop.permute.xlu0 %382
        %386 = vset.pattern.permute.xlu0 0
        %387 = vperm.xlu0 %386, %v369
        %v388 = vpop.permute.xlu0 %387
        %391 = vset.pattern.permute.xlu0 0
        %392 = vperm.xlu0 %391, %v370
        %v393 = vpop.permute.xlu0 %392
        %396 = vset.pattern.permute.xlu0 0
        %397 = vperm.xlu0 %396, %v371
        %v398 = vpop.permute.xlu0 %397
        %401 = vset.pattern.permute.xlu0 0
        %402 = vperm.xlu0 %401, %v372
        %v403 = vpop.permute.xlu0 %402
        %406 = vset.pattern.permute.xlu0 0
        %407 = vperm.xlu0 %406, %v373
        %v408 = vpop.permute.xlu0 %407
        %411 = vset.pattern.permute.xlu0 0
        %412 = vperm.xlu0 %411, %v374
        %v413 = vpop.permute.xlu0 %412
        %v415 = vmul.f32 %v351, %v378
        %v416 = vmul.f32 %v352, %v378
        %v417 = vmul.f32 %v353, %v383
        %v418 = vmul.f32 %v354, %v383
        %v419 = vmul.f32 %v355, %v388
        %v420 = vmul.f32 %v356, %v388
        %v421 = vmul.f32 %v357, %v393
        %v422 = vmul.f32 %v358, %v393
        %v423 = vmul.f32 %v359, %v398
        %v424 = vmul.f32 %v360, %v398
        %v425 = vmul.f32 %v361, %v403
        %v426 = vmul.f32 %v362, %v403
        %v427 = vmul.f32 %v363, %v408
        %v428 = vmul.f32 %v364, %v408
        %v429 = vmul.f32 %v365, %v413
        %v430 = vmul.f32 %v366, %v413
        %v431 = vld [vmem:[%s3] sm:$0xff]
        %v432 = vld [vmem:[%s3 + $0x8] sm:$0xff]
        %v433 = vld [vmem:[%s3 + $0x10] sm:$0xff]
        %v434 = vld [vmem:[%s3 + $0x18] sm:$0xff]
        %v435 = vld [vmem:[%s3 + $0x20] sm:$0xff]
        %v436 = vld [vmem:[%s3 + $0x28] sm:$0xff]
        %v437 = vld [vmem:[%s3 + $0x30] sm:$0xff]
        %v438 = vld [vmem:[%s3 + $0x38] sm:$0xff]
        %440 = vset.pattern.permute.xlu0 0
        %441 = vperm.xlu0 %440, %v431
        %v442 = vpop.permute.xlu0 %441
        %445 = vset.pattern.permute.xlu0 0
        %446 = vperm.xlu0 %445, %v432
        %v447 = vpop.permute.xlu0 %446
        %450 = vset.pattern.permute.xlu0 0
        %451 = vperm.xlu0 %450, %v433
        %v452 = vpop.permute.xlu0 %451
        %455 = vset.pattern.permute.xlu0 0
        %456 = vperm.xlu0 %455, %v434
        %v457 = vpop.permute.xlu0 %456
        %460 = vset.pattern.permute.xlu0 0
        %461 = vperm.xlu0 %460, %v435
        %v462 = vpop.permute.xlu0 %461
        %465 = vset.pattern.permute.xlu0 0
        %466 = vperm.xlu0 %465, %v436
        %v467 = vpop.permute.xlu0 %466
        %470 = vset.pattern.permute.xlu0 0
        %471 = vperm.xlu0 %470, %v437
        %v472 = vpop.permute.xlu0 %471
        %475 = vset.pattern.permute.xlu0 0
        %476 = vperm.xlu0 %475, %v438
        %v477 = vpop.permute.xlu0 %476
        %v479 = vadd.f32 %v415, %v442
        %v480 = vadd.f32 %v416, %v442
        %v481 = vadd.f32 %v417, %v447
        %v482 = vadd.f32 %v418, %v447
        %v483 = vadd.f32 %v419, %v452
        %v484 = vadd.f32 %v420, %v452
        %v485 = vadd.f32 %v421, %v457
        %v486 = vadd.f32 %v422, %v457
        %v487 = vadd.f32 %v423, %v462
        %v488 = vadd.f32 %v424, %v462
        %v489 = vadd.f32 %v425, %v467
        %v490 = vadd.f32 %v426, %v467
        %v491 = vadd.f32 %v427, %v472
        %v492 = vadd.f32 %v428, %v472
        %v493 = vadd.f32 %v429, %v477
        %v494 = vadd.f32 %v430, %v477
        %v495 = vmax.f32 %v479, 0.0
        %v496 = vmax.f32 %v480, 0.0
        %v497 = vmax.f32 %v481, 0.0
        %v498 = vmax.f32 %v482, 0.0
        %v499 = vmax.f32 %v483, 0.0
        %v500 = vmax.f32 %v484, 0.0
        %v501 = vmax.f32 %v485, 0.0
        %v502 = vmax.f32 %v486, 0.0
        %v503 = vmax.f32 %v487, 0.0
        %v504 = vmax.f32 %v488, 0.0
        %v505 = vmax.f32 %v489, 0.0
        %v506 = vmax.f32 %v490, 0.0
        %v507 = vmax.f32 %v491, 0.0
        %v508 = vmax.f32 %v492, 0.0
        %v509 = vmax.f32 %v493, 0.0
        %v510 = vmax.f32 %v494, 0.0
        %v511 = vpack.c.bf16 %v497, %v495
        %v512 = vpack.c.bf16 %v498, %v496
        %v513 = vpack.c.bf16 %v501, %v499
        %v514 = vpack.c.bf16 %v502, %v500
        %v515 = vpack.c.bf16 %v505, %v503
        %v516 = vpack.c.bf16 %v506, %v504
        %v517 = vpack.c.bf16 %v509, %v507
        %v518 = vpack.c.bf16 %v510, %v508
        %v519 = vld [vmem:[%s1] sm:$0xf]
        %v520 = vld [vmem:[%s1 + $0x4] sm:$0xf]
        %v521 = vld [vmem:[%s1 + $0x8] sm:$0xf]
        %v522 = vld [vmem:[%s1 + $0xc] sm:$0xf]
        %v523 = vld [vmem:[%s4] sm:$0xff]
        %v524 = vld [vmem:[%s4 + $0x8] sm:$0xff]
        %v525 = vld [vmem:[%s4 + $0x10] sm:$0xff]
        %v526 = vld [vmem:[%s4 + $0x18] sm:$0xff]
        %528 = vset.pattern.permute.xlu0 0
        %529 = vperm.xlu0 %528, %v523
        %v530 = vpop.permute.xlu0 %529
        %533 = vset.pattern.permute.xlu0 0
        %534 = vperm.xlu0 %533, %v524
        %v535 = vpop.permute.xlu0 %534
        %538 = vset.pattern.permute.xlu0 0
        %539 = vperm.xlu0 %538, %v525
        %v540 = vpop.permute.xlu0 %539
        %543 = vset.pattern.permute.xlu0 0
        %544 = vperm.xlu0 %543, %v526
        %v545 = vpop.permute.xlu0 %544
        %v551 = vunpack.c.l.b16 %v519
        %v552 = vunpack.c.l.b16 %v520
        %v553 = vunpack.c.l.b16 %v521
        %v554 = vunpack.c.l.b16 %v522
        %v555 = vpack.c.b16 %v552, %v551
        %v556 = vpack.c.b16 %v554, %v553
        %vm557 = vcmask 523264
        %v559 = vsel %vm557, %v555, 0
        %v562 = vsel %vm557, %v556, 0
        %564 = vmatprep.subr.bf16.mxu0 %v512
        %565 = vmatpush1.bf16.msra.mxu0 %v511
        %566 = vmatprep.subr.bf16.mxu0 %v514
        %567 = vmatpush1.bf16.msra.mxu0 %v513
        %568 = vmatprep.subr.bf16.mxu0 %v516
        %569 = vmatpush1.bf16.msra.mxu0 %v515
        %570 = vmatprep.subr.bf16.mxu0 %v518
        %571 = vmatpush1.bf16.msra.mxu0 %v517
        %572 = vmatprep.subr.bf16.mxu0 0
        %573 = vmatpush1.bf16.msra.mxu0 0
        %574 = vmatprep.subr.bf16.mxu0 0
        %575 = vmatpush1.bf16.msra.mxu0 0
        %576 = vmatprep.subr.bf16.mxu0 0
        %577 = vmatpush1.bf16.msra.mxu0 0
        %578 = vmatprep.subr.bf16.mxu0 0
        %579 = vmatpush1.bf16.msra.mxu0 0
        %580 = vmatprep.subr.bf16.mxu0 0
        %581 = vmatpush1.bf16.msra.mxu0 0
        %582 = vmatprep.subr.bf16.mxu0 0
        %583 = vmatpush1.bf16.msra.mxu0 0
        %584 = vmatprep.subr.bf16.mxu0 0
        %585 = vmatpush1.bf16.msra.mxu0 0
        %586 = vmatprep.subr.bf16.mxu0 0
        %587 = vmatpush1.bf16.msra.mxu0 0
        %588 = vmatprep.subr.bf16.mxu0 0
        %589 = vmatpush1.bf16.msra.mxu0 0
        %590 = vmatprep.subr.bf16.mxu0 0
        %591 = vmatpush1.bf16.msra.mxu0 0
        %592 = vmatprep.subr.bf16.mxu0 0
        %593 = vmatpush1.bf16.msra.mxu0 0
        %594 = vmatprep.subr.bf16.mxu0 0
        %595 = vmatpush1.bf16.msra.mxu0 0
        %596 = vmatprep.mubr.bf16.mxu0 0
        %597 = vmatmul.mubr.bf16.gmra.mrb[0].mxu0 %v559
        %v598 = vpop.f32.mrb[0].mxu0
        %v599 = vadd.f32 %v530, %v598
        %v600 = vpop.f32.mrb[0].mxu0
        %v601 = vadd.f32 %v530, %v600
        %v602 = vpop.f32.mrb[0].mxu0
        %v603 = vadd.f32 %v535, %v602
        %v604 = vpop.f32.mrb[0].mxu0
        %v605 = vadd.f32 %v535, %v604
        %606 = vmatprep.mubr.bf16.mxu0 0
        %607 = vmatmul.mubr.bf16.gmra.mrb[0].mxu0 %v562
        %v608 = vpop.f32.mrb[0].mxu0
        %v609 = vadd.f32 %v540, %v608
        %v610 = vpop.f32.mrb[0].mxu0
        %v611 = vadd.f32 %v540, %v610
        %v612 = vpop.f32.mrb[0].mxu0
        %v613 = vadd.f32 %v545, %v612
        %v614 = vpop.f32.mrb[0].mxu0
        %v615 = vadd.f32 %v545, %v614
        %616 = vdwg.mxu0
        %617 = vst [vmem:[%s323] sm:$0xff] %v599
        %618 = vst [vmem:[%s323 + $0x8] sm:$0xff] %v601
        %619 = vst [vmem:[%s323 + $0x10] sm:$0xff] %v603
        %620 = vst [vmem:[%s323 + $0x18] sm:$0xff] %v605
        %621 = vst [vmem:[%s323 + $0x20] sm:$0xff] %v609
        %622 = vst [vmem:[%s323 + $0x28] sm:$0xff] %v611
        %623 = vst [vmem:[%s323 + $0x30] sm:$0xff] %v613
        %624 = vst [vmem:[%s323 + $0x38] sm:$0xff] %v615
        %v625 = vadd.f32 %v599, %v601
        %626 = vadd.xlane.f32.xlu0 %v625
        %v627 = vpop.xlane.xlu0 %626
        %v628 = vadd.f32 %v603, %v605
        %629 = vadd.xlane.f32.xlu0 %v628
        %v630 = vpop.xlane.xlu0 %629
        %v631 = vadd.f32 %v609, %v611
        %632 = vadd.xlane.f32.xlu0 %v631
        %v633 = vpop.xlane.xlu0 %632
        %v634 = vadd.f32 %v613, %v615
        %635 = vadd.xlane.f32.xlu0 %v634
        %v636 = vpop.xlane.xlu0 %635
        %v637 = vmul.f32 %v599, %v599
        %v638 = vmul.f32 %v601, %v601
        %v639 = vmul.f32 %v603, %v603
        %v640 = vmul.f32 %v605, %v605
        %v641 = vmul.f32 %v609, %v609
        %v642 = vmul.f32 %v611, %v611
        %v643 = vmul.f32 %v613, %v613
        %v644 = vmul.f32 %v615, %v615
        %v645 = vadd.f32 %v637, %v638
        %646 = vadd.xlane.f32.xlu0 %v645
        %v647 = vpop.xlane.xlu0 %646
        %v648 = vadd.f32 %v639, %v640
        %649 = vadd.xlane.f32.xlu0 %v648
        %v650 = vpop.xlane.xlu0 %649
        %v651 = vadd.f32 %v641, %v642
        %652 = vadd.xlane.f32.xlu0 %v651
        %v653 = vpop.xlane.xlu0 %652
        %v654 = vadd.f32 %v643, %v644
        %655 = vadd.xlane.f32.xlu0 %v654
        %v656 = vpop.xlane.xlu0 %655
        %657 = vst [vmem:[%s344] sm:$0xff] %v627
        %658 = vst [vmem:[%s344 + $0x8] sm:$0xff] %v630
        %659 = vst [vmem:[%s344 + $0x10] sm:$0xff] %v633
        %660 = vst [vmem:[%s344 + $0x18] sm:$0xff] %v636
        %661 = vst [vmem:[%s349] sm:$0xff] %v647
        %662 = vst [vmem:[%s349 + $0x8] sm:$0xff] %v650
        %663 = vst [vmem:[%s349 + $0x10] sm:$0xff] %v653
        %664 = vst [vmem:[%s349 + $0x18] sm:$0xff] %v656
        %s665 = sand.u32 %s137, 1
        %s666 = sand.u32 %s137, 1
        %s667 = smul.addr %s666, 64
        %s668 = scalar_lea.vmem [#allocation3], %s667
        %p669 = scmp.lt.s32.totalorder %s19, 1
        %s670 = scalar_select %p669, %s19, 1
        %s671 = smul.addr %s670, 4
        %s672 = smul.addr %s671, 8
        %s673 = scalar_lea.vmem %s6, %s672
        %p674 = scmp.lt.s32.totalorder %s19, 1
        %s675 = scalar_select %p674, %s19, 1
        %s676 = smul.addr %s675, 4
        %s677 = smul.addr %s676, 8
        %s678 = scalar_lea.vmem %s7, %s677
        // Predicated region
        $region64: #{sqnxt_unit_forward.8} parent=58 // pred_check
          %p679 = pneg %p147
        $region65: #{sqnxt_unit_forward.8} parent=58 // pred_check_branch
          %681 = sbr.rel (%p679) target = $region67
        $region66: #{sqnxt_unit_forward.8} parent=58 // pred_region
          %s682 = smul.u32 2, %s19
          %s683 = smul.addr %s682, 8
          %s684 = scalar_lea.vmem %s5, %s683
          // Predicated region
          $region68: #{sqnxt_unit_forward.8} parent=66 // pred_check
            _
          $region69: #{sqnxt_unit_forward.8} parent=66 // pred_check_branch
            %686 = sbr.rel (0) target = $region71
          $region70: #{sqnxt_unit_forward.8} parent=66 // pred_region
            // Predicated region
            $region72: #{sqnxt_unit_forward.8} parent=70 // pred_check
              _
            $region73: #{sqnxt_unit_forward.8} parent=70 // pred_check_branch
              %688 = sbr.rel (0) target = $region75
            $region74: #{sqnxt_unit_forward.8} parent=70 // pred_region
              loop: start=0, step=1, limit=1
              $region76: #{sqnxt_unit_forward.8} parent=74 // loop_pre_header
                _
              $region77: #{sqnxt_unit_forward.8} parent=74 // loop_header
                %s690 = sphi 0, %s694
                %p691 = scmp.ge.s32.totalorder %s690, 1
                %s695 = sphi %s668, %s668
                %s696 = sphi %s684, %s684
              $region78: #{sqnxt_unit_forward.8} parent=74 // loop_header_branch
                %693 = sbr.rel (%p691) target = $region82
              $region79: #{sqnxt_unit_forward.8} parent=74 // loop_body
                %v697 = vld [vmem:[%s695] sm:$0xff]
                %698 = vst [vmem:[%s696] sm:$0xff] %v697
                %v699 = vld [vmem:[%s695 + $0x8] sm:$0xff]
                %700 = vst [vmem:[%s696 + $0x8] sm:$0xff] %v699
                %v701 = vld [vmem:[%s695 + $0x10] sm:$0xff]
                %702 = vst [vmem:[%s696 + $0x20] sm:$0xff] %v701
                %v703 = vld [vmem:[%s695 + $0x18] sm:$0xff]
                %704 = vst [vmem:[%s696 + $0x28] sm:$0xff] %v703
                %v705 = vld [vmem:[%s695 + $0x20] sm:$0xff]
                %706 = vst [vmem:[%s696 + $0x40] sm:$0xff] %v705
                %v707 = vld [vmem:[%s695 + $0x28] sm:$0xff]
                %708 = vst [vmem:[%s696 + $0x48] sm:$0xff] %v707
                %v709 = vld [vmem:[%s695 + $0x30] sm:$0xff]
                %710 = vst [vmem:[%s696 + $0x60] sm:$0xff] %v709
                %v711 = vld [vmem:[%s695 + $0x38] sm:$0xff]
                %712 = vst [vmem:[%s696 + $0x68] sm:$0xff] %v711
              $region80: #{sqnxt_unit_forward.8} parent=74 // loop_footer
                %s694 = sadd.s32 1, %s690
              $region81: #{sqnxt_unit_forward.8} parent=74 // loop_footer_branch
                %689 = sbr.rel target = $region77
              $region82: #{sqnxt_unit_forward.8} parent=74 // loop_exit
                _
            $region75: #{sqnxt_unit_forward.8} parent=70 // pred_fallthru
              _
            // Predicated region
            $region83: #{sqnxt_unit_forward.8} parent=70 // pred_check
              _
            $region84: #{sqnxt_unit_forward.8} parent=70 // pred_check_branch
              %714 = sbr.rel target = $region86
            $region85: #{sqnxt_unit_forward.8} parent=70 // pred_region
              _
            $region86: #{sqnxt_unit_forward.8} parent=70 // pred_fallthru
              _
          $region71: #{sqnxt_unit_forward.8} parent=66 // pred_fallthru
            _
          %715 = vnop
        $region67: #{sqnxt_unit_forward.8} parent=58 // pred_fallthru
          _
        // Predicated region
        $region87: #{sqnxt_unit_forward.8} parent=58 // pred_check
          %p716 = pneg %p173
        $region88: #{sqnxt_unit_forward.8} parent=58 // pred_check_branch
          %718 = sbr.rel (%p716) target = $region90
        $region89: #{sqnxt_unit_forward.8} parent=58 // pred_region
          _
        $region90: #{sqnxt_unit_forward.8} parent=58 // pred_fallthru
          _
        // Predicated region
        $region91: #{sqnxt_unit_forward.8} parent=58 // pred_check
          %p719 = pneg %p199
        $region92: #{sqnxt_unit_forward.8} parent=58 // pred_check_branch
          %721 = sbr.rel (%p719) target = $region94
        $region93: #{sqnxt_unit_forward.8} parent=58 // pred_region
          _
        $region94: #{sqnxt_unit_forward.8} parent=58 // pred_fallthru
          _
      $region59: #{sqnxt_unit_forward.8} parent=5 // pred_fallthru
        _
      %p722 = scmp.le.s32.totalorder 2, %s14
      // Predicated region
      $region95: #{sqnxt_unit_forward.8} parent=5 // pred_check
        %p723 = pneg %p722
      $region96: #{sqnxt_unit_forward.8} parent=5 // pred_check_branch
        %725 = sbr.rel (%p723) target = $region98
      $region97: #{sqnxt_unit_forward.8} parent=5 // pred_region
        %s726 = ssub.s32 %s14, 2
        // Predicated region
        $region99: #{sqnxt_unit_forward.8} parent=97 // pred_check
          %p727 = pneg %p153
        $region100: #{sqnxt_unit_forward.8} parent=97 // pred_check_branch
          %729 = sbr.rel (%p727) target = $region102
        $region101: #{sqnxt_unit_forward.8} parent=97 // pred_region
          %s730 = sand.u32 %s138, 1
          %s731 = sand.u32 %s138, 1
          %s732 = smul.addr %s731, 64
          %s733 = scalar_lea.vmem [#allocation3], %s732
        $region102: #{sqnxt_unit_forward.8} parent=97 // pred_fallthru
          _
        // Predicated region
        $region103: #{sqnxt_unit_forward.8} parent=97 // pred_check
          %p734 = pneg %p179
        $region104: #{sqnxt_unit_forward.8} parent=97 // pred_check_branch
          %736 = sbr.rel (%p734) target = $region106
        $region105: #{sqnxt_unit_forward.8} parent=97 // pred_region
          %p737 = scmp.lt.s32.totalorder %s20, 1
          %s738 = scalar_select %p737, %s20, 1
          %s739 = smul.addr %s738, 4
          %s740 = smul.addr %s739, 8
          %s741 = scalar_lea.vmem %s6, %s740
        $region106: #{sqnxt_unit_forward.8} parent=97 // pred_fallthru
          _
        // Predicated region
        $region107: #{sqnxt_unit_forward.8} parent=97 // pred_check
          %p742 = pneg %p205
        $region108: #{sqnxt_unit_forward.8} parent=97 // pred_check_branch
          %744 = sbr.rel (%p742) target = $region110
        $region109: #{sqnxt_unit_forward.8} parent=97 // pred_region
          %p745 = scmp.lt.s32.totalorder %s20, 1
          %s746 = scalar_select %p745, %s20, 1
          %s747 = smul.addr %s746, 4
          %s748 = smul.addr %s747, 8
          %s749 = scalar_lea.vmem %s7, %s748
        $region110: #{sqnxt_unit_forward.8} parent=97 // pred_fallthru
          _
      $region98: #{sqnxt_unit_forward.8} parent=5 // pred_fallthru
        _
    $region6: #{sqnxt_unit_forward.8} parent=1 // loop_footer
      %s18 = sadd.s32 1, %s14
    $region7: #{sqnxt_unit_forward.8} parent=1 // loop_footer_branch
      %13 = sbr.rel target = $region3
    $region8: #{sqnxt_unit_forward.8} parent=1 // loop_exit
      _

// kernel: sqnxt_unit_forward.7
$region0: #{sqnxt_unit_forward.7}
  #allocation0 [shape = 'u32[]', space=smem, size = 0x4, offset = 0x4, fixed_abs, tag = 'smem constant byte address 0x4 - core index']
  #allocation1 [shape = 'u32[144,128]{1,0:T(1,128)}', space=vmem, size = 0x12000, scoped, tag = 'internal scratch']
  %s0 = inlined_call_operand.vmem [shape: f32[64,512], index: 0, kind: input, shape index: {}]
  %s1 = inlined_call_operand.vmem [shape: bf16[1,64,64], index: 1, kind: input, shape index: {}]
  %s2 = inlined_call_operand.vmem [shape: f32[64,1], index: 2, kind: input, shape index: {}]
  %s3 = inlined_call_operand.vmem [shape: f32[64,1], index: 3, kind: input, shape index: {}]
  %s4 = inlined_call_operand.vmem [shape: f32[64,1], index: 4, kind: input, shape index: {}]
  %s5 = inlined_call_operand.vmem [shape: f32[64,512], index: 5, kind: output, shape index: {0}]
  %s6 = inlined_call_operand.vmem [shape: f32[2,64,128], index: 6, kind: output, shape index: {1}]
  %s7 = inlined_call_operand.vmem [shape: f32[2,64,128], index: 7, kind: output, shape index: {2}]
  %8 = xla_tuple %s5, %s6, %s7
  %s9 = sld [smem:[#allocation0]]
  $region111: #{sqnxt_unit_forward.7} parent=0
    _
  %s11 = ssub.s32 1, %s9
  %s12 = scalar_select 0, %s11, %s9
  $region1: #{sqnxt_unit_forward.7} parent=0
    #allocation2 [shape = 'u8[131072]{0}', space=vmem, size = 0x20000, scoped, tag = 'input window, operand 0']
    #allocation3 [shape = 'u8[131072]{0}', space=vmem, size = 0x20000, scoped, tag = 'output window, operand 0']
    loop: start=0, step=1, limit=4
    $region2: #{sqnxt_unit_forward.7} parent=1 // loop_pre_header
      _
    $region3: #{sqnxt_unit_forward.7} parent=1 // loop_header
      %s14 = sphi 0, %s18
      %p15 = scmp.ge.s32.totalorder %s14, 4
      %s24 = sphi 0, %s26
      %s27 = sphi 0, %s24
      %s28 = sphi 0, %s27
      %s44 = sphi 0, %s28
      %s48 = sphi 0, %s48
      %s50 = sphi 0, %s48
      %s51 = sphi 0, %s50
      %s65 = sphi 0, %s51
      %s69 = sphi 0, %s69
      %s71 = sphi 0, %s69
      %s72 = sphi 0, %s71
      %s86 = sphi 0, %s72
      %s90 = sphi 0, %s90
      %s92 = sphi 0, %s90
      %s93 = sphi 0, %s92
      %s107 = sphi 0, %s93
      %s111 = sphi 0, %s111
      %s113 = sphi 0, %s111
      %s114 = sphi 0, %s113
      %s128 = sphi 0, %s114
      %s134 = sphi 0, %s136
      %s137 = sphi 0, %s134
      %s138 = sphi 0, %s137
      %s154 = sphi 0, %s138
      %s160 = sphi 0, %s162
      %s163 = sphi 0, %s160
      %s164 = sphi 0, %s163
      %s180 = sphi 0, %s164
      %s186 = sphi 0, %s188
      %s189 = sphi 0, %s186
      %s190 = sphi 0, %s189
      %s206 = sphi 0, %s190
    $region4: #{sqnxt_unit_forward.7} parent=1 // loop_header_branch
      %17 = sbr.rel (%p15) target = $region8
    $region5: #{sqnxt_unit_forward.7} parent=1 // loop_body
      %s19 = ssub.s32 %s14, 1
      %s20 = ssub.s32 %s14, 2
      %s21 = sadd.s32 %s14, 1
      %s22 = ssub.s32 %s14, %s21
      %p23 = scmp.eq.s32.totalorder %s22, 0
      %s25 = sadd.s32 %s24, 1
      %s26 = scalar_select %p23, %s24, %s25
      %p29 = pneg %p23
      %p30 = scmp.eq.s32.totalorder %s14, 1
      %p31 = por %p29, %p30
      %p32 = scmp.ne.s32.totalorder %s24, %s27
      %p33 = scmp.eq.s32.totalorder %s14, 0
      %p34 = por %p32, %p33
      %p35 = scmp.ne.s32.totalorder %s24, %s27
      %p36 = scmp.eq.s32.totalorder %s19, 1
      %p37 = por %p35, %p36
      %p38 = scmp.ne.s32.totalorder %s27, %s28
      %p39 = scmp.eq.s32.totalorder %s19, 0
      %p40 = por %p38, %p39
      %p41 = scmp.ne.s32.totalorder %s27, %s28
      %p42 = scmp.eq.s32.totalorder %s20, 1
      %p43 = por %p41, %p42
      %p45 = scmp.ne.s32.totalorder %s28, %s44
      %p46 = scmp.eq.s32.totalorder %s20, 0
      %p47 = por %p45, %p46
      %s49 = sadd.s32 %s48, 1
      %p52 = scmp.eq.s32.totalorder %s14, 1
      %p53 = scmp.ne.s32.totalorder %s48, %s50
      %p54 = scmp.eq.s32.totalorder %s14, 0
      %p55 = por %p53, %p54
      %p56 = scmp.ne.s32.totalorder %s48, %s50
      %p57 = scmp.eq.s32.totalorder %s19, 1
      %p58 = por %p56, %p57
      %p59 = scmp.ne.s32.totalorder %s50, %s51
      %p60 = scmp.eq.s32.totalorder %s19, 0
      %p61 = por %p59, %p60
      %p62 = scmp.ne.s32.totalorder %s50, %s51
      %p63 = scmp.eq.s32.totalorder %s20, 1
      %p64 = por %p62, %p63
      %p66 = scmp.ne.s32.totalorder %s51, %s65
      %p67 = scmp.eq.s32.totalorder %s20, 0
      %p68 = por %p66, %p67
      %s70 = sadd.s32 %s69, 1
      %p73 = scmp.eq.s32.totalorder %s14, 1
      %p74 = scmp.ne.s32.totalorder %s69, %s71
      %p75 = scmp.eq.s32.totalorder %s14, 0
      %p76 = por %p74, %p75
      %p77 = scmp.ne.s32.totalorder %s69, %s71
      %p78 = scmp.eq.s32.totalorder %s19, 1
      %p79 = por %p77, %p78
      %p80 = scmp.ne.s32.totalorder %s71, %s72
      %p81 = scmp.eq.s32.totalorder %s19, 0
      %p82 = por %p80, %p81
      %p83 = scmp.ne.s32.totalorder %s71, %s72
      %p84 = scmp.eq.s32.totalorder %s20, 1
      %p85 = por %p83, %p84
      %p87 = scmp.ne.s32.totalorder %s72, %s86
      %p88 = scmp.eq.s32.totalorder %s20, 0
      %p89 = por %p87, %p88
      %s91 = sadd.s32 %s90, 1
      %p94 = scmp.eq.s32.totalorder %s14, 1
      %p95 = scmp.ne.s32.totalorder %s90, %s92
      %p96 = scmp.eq.s32.totalorder %s14, 0
      %p97 = por %p95, %p96
      %p98 = scmp.ne.s32.totalorder %s90, %s92
      %p99 = scmp.eq.s32.totalorder %s19, 1
      %p100 = por %p98, %p99
      %p101 = scmp.ne.s32.totalorder %s92, %s93
      %p102 = scmp.eq.s32.totalorder %s19, 0
      %p103 = por %p101, %p102
      %p104 = scmp.ne.s32.totalorder %s92, %s93
      %p105 = scmp.eq.s32.totalorder %s20, 1
      %p106 = por %p104, %p105
      %p108 = scmp.ne.s32.totalorder %s93, %s107
      %p109 = scmp.eq.s32.totalorder %s20, 0
      %p110 = por %p108, %p109
      %s112 = sadd.s32 %s111, 1
      %p115 = scmp.eq.s32.totalorder %s14, 1
      %p116 = scmp.ne.s32.totalorder %s111, %s113
      %p117 = scmp.eq.s32.totalorder %s14, 0
      %p118 = por %p116, %p117
      %p119 = scmp.ne.s32.totalorder %s111, %s113
      %p120 = scmp.eq.s32.totalorder %s19, 1
      %p121 = por %p119, %p120
      %p122 = scmp.ne.s32.totalorder %s113, %s114
      %p123 = scmp.eq.s32.totalorder %s19, 0
      %p124 = por %p122, %p123
      %p125 = scmp.ne.s32.totalorder %s113, %s114
      %p126 = scmp.eq.s32.totalorder %s20, 1
      %p127 = por %p125, %p126
      %p129 = scmp.ne.s32.totalorder %s114, %s128
      %p130 = scmp.eq.s32.totalorder %s20, 0
      %p131 = por %p129, %p130
      %s132 = ssub.s32 %s14, %s21
      %p133 = scmp.eq.s32.totalorder %s132, 0
      %s135 = sadd.s32 %s134, 1
      %s136 = scalar_select %p133, %s134, %s135
      %p139 = pneg %p133
      %p140 = scmp.eq.s32.totalorder %s14, 1
      %p141 = por %p139, %p140
      %p142 = scmp.ne.s32.totalorder %s134, %s137
      %p143 = scmp.eq.s32.totalorder %s14, 0
      %p144 = por %p142, %p143
      %p145 = scmp.ne.s32.totalorder %s134, %s137
      %p146 = scmp.eq.s32.totalorder %s19, 1
      %p147 = por %p145, %p146
      %p148 = scmp.ne.s32.totalorder %s137, %s138
      %p149 = scmp.eq.s32.totalorder %s19, 0
      %p150 = por %p148, %p149
      %p151 = scmp.ne.s32.totalorder %s137, %s138
      %p152 = scmp.eq.s32.totalorder %s20, 1
      %p153 = por %p151, %p152
      %p155 = scmp.ne.s32.totalorder %s138, %s154
      %p156 = scmp.eq.s32.totalorder %s20, 0
      %p157 = por %p155, %p156
      %s158 = ssub.s32 %s14, %s21
      %p159 = scmp.eq.s32.totalorder %s158, 0
      %s161 = sadd.s32 %s160, 1
      %s162 = scalar_select %p159, %s160, %s161
      %p165 = pneg %p159
      %p166 = scmp.eq.s32.totalorder %s14, 1
      %p167 = por %p165, %p166
      %p168 = scmp.ne.s32.totalorder %s160, %s163
      %p169 = scmp.eq.s32.totalorder %s14, 0
      %p170 = por %p168, %p169
      %p171 = scmp.ne.s32.totalorder %s160, %s163
      %p172 = scmp.eq.s32.totalorder %s19, 1
      %p173 = por %p171, %p172
      %p174 = scmp.ne.s32.totalorder %s163, %s164
      %p175 = scmp.eq.s32.totalorder %s19, 0
      %p176 = por %p174, %p175
      %p177 = scmp.ne.s32.totalorder %s163, %s164
      %p178 = scmp.eq.s32.totalorder %s20, 1
      %p179 = por %p177, %p178
      %p181 = scmp.ne.s32.totalorder %s164, %s180
      %p182 = scmp.eq.s32.totalorder %s20, 0
      %p183 = por %p181, %p182
      %s184 = ssub.s32 %s14, %s21
      %p185 = scmp.eq.s32.totalorder %s184, 0
      %s187 = sadd.s32 %s186, 1
      %s188 = scalar_select %p185, %s186, %s187
      %p191 = pneg %p185
      %p192 = scmp.eq.s32.totalorder %s14, 1
      %p193 = por %p191, %p192
      %p194 = scmp.ne.s32.totalorder %s186, %s189
      %p195 = scmp.eq.s32.totalorder %s14, 0
      %p196 = por %p194, %p195
      %p197 = scmp.ne.s32.totalorder %s186, %s189
      %p198 = scmp.eq.s32.totalorder %s19, 1
      %p199 = por %p197, %p198
      %p200 = scmp.ne.s32.totalorder %s189, %s190
      %p201 = scmp.eq.s32.totalorder %s19, 0
      %p202 = por %p200, %p201
      %p203 = scmp.ne.s32.totalorder %s189, %s190
      %p204 = scmp.eq.s32.totalorder %s20, 1
      %p205 = por %p203, %p204
      %p207 = scmp.ne.s32.totalorder %s190, %s206
      %p208 = scmp.eq.s32.totalorder %s20, 0
      %p209 = por %p207, %p208
      %p210 = scmp.le.s32.totalorder 1, %s14
      %p211 = scmp.lt.s32.totalorder %s14, 3
      %p212 = pnand %p210, %p211
      %p213 = pneg %p212
      // Predicated region
      $region9: #{sqnxt_unit_forward.7} parent=5 // pred_check
        _
      $region10: #{sqnxt_unit_forward.7} parent=5 // pred_check_branch
        %215 = sbr.rel (%p212) target = $region12
      $region11: #{sqnxt_unit_forward.7} parent=5 // pred_region
        %s216 = ssub.s32 %s14, 1
        // Predicated region
        $region13: #{sqnxt_unit_forward.7} parent=11 // pred_check
          %p217 = pneg %p61
        $region14: #{sqnxt_unit_forward.7} parent=11 // pred_check_branch
          %219 = sbr.rel (%p217) target = $region16
        $region15: #{sqnxt_unit_forward.7} parent=11 // pred_region
          _
        $region16: #{sqnxt_unit_forward.7} parent=11 // pred_fallthru
          _
        // Predicated region
        $region17: #{sqnxt_unit_forward.7} parent=11 // pred_check
          %p220 = pneg %p82
        $region18: #{sqnxt_unit_forward.7} parent=11 // pred_check_branch
          %222 = sbr.rel (%p220) target = $region20
        $region19: #{sqnxt_unit_forward.7} parent=11 // pred_region
          _
        $region20: #{sqnxt_unit_forward.7} parent=11 // pred_fallthru
          _
        // Predicated region
        $region21: #{sqnxt_unit_forward.7} parent=11 // pred_check
          %p223 = pneg %p103
        $region22: #{sqnxt_unit_forward.7} parent=11 // pred_check_branch
          %225 = sbr.rel (%p223) target = $region24
        $region23: #{sqnxt_unit_forward.7} parent=11 // pred_region
          _
        $region24: #{sqnxt_unit_forward.7} parent=11 // pred_fallthru
          _
        // Predicated region
        $region25: #{sqnxt_unit_forward.7} parent=11 // pred_check
          %p226 = pneg %p124
        $region26: #{sqnxt_unit_forward.7} parent=11 // pred_check_branch
          %228 = sbr.rel (%p226) target = $region28
        $region27: #{sqnxt_unit_forward.7} parent=11 // pred_region
          _
        $region28: #{sqnxt_unit_forward.7} parent=11 // pred_fallthru
          _
      $region12: #{sqnxt_unit_forward.7} parent=5 // pred_fallthru
        _
      %p229 = scmp.lt.s32.totalorder %s14, 2
      // Predicated region
      $region29: #{sqnxt_unit_forward.7} parent=5 // pred_check
        %p230 = pneg %p229
      $region30: #{sqnxt_unit_forward.7} parent=5 // pred_check_branch
        %232 = sbr.rel (%p230) target = $region32
      $region31: #{sqnxt_unit_forward.7} parent=5 // pred_region
        // Predicated region
        $region33: #{sqnxt_unit_forward.7} parent=31 // pred_check
          %p233 = pneg %p34
        $region34: #{sqnxt_unit_forward.7} parent=31 // pred_check_branch
          %235 = sbr.rel (%p233) target = $region36
        $region35: #{sqnxt_unit_forward.7} parent=31 // pred_region
          %s236 = sand.u32 %s24, 1
          %s237 = sand.u32 %s24, 1
          %s238 = smul.addr %s237, 128
          %s239 = scalar_lea.vmem [#allocation2], %s238
          %s240 = smul.u32 2, %s14
          %s241 = smul.addr %s240, 8
          %s242 = scalar_lea.vmem %s0, %s241
          // Predicated region
          $region37: #{sqnxt_unit_forward.7} parent=35 // pred_check
            _
          $region38: #{sqnxt_unit_forward.7} parent=35 // pred_check_branch
            %244 = sbr.rel (0) target = $region40
          $region39: #{sqnxt_unit_forward.7} parent=35 // pred_region
            // Predicated region
            $region41: #{sqnxt_unit_forward.7} parent=39 // pred_check
              _
            $region42: #{sqnxt_unit_forward.7} parent=39 // pred_check_branch
              %246 = sbr.rel (0) target = $region44
            $region43: #{sqnxt_unit_forward.7} parent=39 // pred_region
              loop: start=0, step=1, limit=1
              $region45: #{sqnxt_unit_forward.7} parent=43 // loop_pre_header
                _
              $region46: #{sqnxt_unit_forward.7} parent=43 // loop_header
                %s248 = sphi 0, %s252
                %p249 = scmp.ge.s32.totalorder %s248, 1
                %s253 = sphi %s242, %s242
                %s254 = sphi %s239, %s239
              $region47: #{sqnxt_unit_forward.7} parent=43 // loop_header_branch
                %251 = sbr.rel (%p249) target = $region51
              $region48: #{sqnxt_unit_forward.7} parent=43 // loop_body
                %v255 = vld [vmem:[%s253] sm:$0xff]
                %256 = vst [vmem:[%s254] sm:$0xff] %v255
                %v257 = vld [vmem:[%s253 + $0x8] sm:$0xff]
                %258 = vst [vmem:[%s254 + $0x8] sm:$0xff] %v257
                %v259 = vld [vmem:[%s253 + $0x20] sm:$0xff]
                %260 = vst [vmem:[%s254 + $0x10] sm:$0xff] %v259
                %v261 = vld [vmem:[%s253 + $0x28] sm:$0xff]
                %262 = vst [vmem:[%s254 + $0x18] sm:$0xff] %v261
                %v263 = vld [vmem:[%s253 + $0x40] sm:$0xff]
                %264 = vst [vmem:[%s254 + $0x20] sm:$0xff] %v263
                %v265 = vld [vmem:[%s253 + $0x48] sm:$0xff]
                %266 = vst [vmem:[%s254 + $0x28] sm:$0xff] %v265
                %v267 = vld [vmem:[%s253 + $0x60] sm:$0xff]
                %268 = vst [vmem:[%s254 + $0x30] sm:$0xff] %v267
                %v269 = vld [vmem:[%s253 + $0x68] sm:$0xff]
                %270 = vst [vmem:[%s254 + $0x38] sm:$0xff] %v269
                %v271 = vld [vmem:[%s253 + $0x80] sm:$0xff]
                %272 = vst [vmem:[%s254 + $0x40] sm:$0xff] %v271
                %v273 = vld [vmem:[%s253 + $0x88] sm:$0xff]
                %274 = vst [vmem:[%s254 + $0x48] sm:$0xff] %v273
                %v275 = vld [vmem:[%s253 + $0xa0] sm:$0xff]
                %276 = vst [vmem:[%s254 + $0x50] sm:$0xff] %v275
                %v277 = vld [vmem:[%s253 + $0xa8] sm:$0xff]
                %278 = vst [vmem:[%s254 + $0x58] sm:$0xff] %v277
                %v279 = vld [vmem:[%s253 + $0xc0] sm:$0xff]
                %280 = vst [vmem:[%s254 + $0x60] sm:$0xff] %v279
                %v281 = vld [vmem:[%s253 + $0xc8] sm:$0xff]
                %282 = vst [vmem:[%s254 + $0x68] sm:$0xff] %v281
                %v283 = vld [vmem:[%s253 + $0xe0] sm:$0xff]
                %284 = vst [vmem:[%s254 + $0x70] sm:$0xff] %v283
                %v285 = vld [vmem:[%s253 + $0xe8] sm:$0xff]
                %286 = vst [vmem:[%s254 + $0x78] sm:$0xff] %v285
              $region49: #{sqnxt_unit_forward.7} parent=43 // loop_footer
                %s252 = sadd.s32 1, %s248
              $region50: #{sqnxt_unit_forward.7} parent=43 // loop_footer_branch
                %247 = sbr.rel target = $region46
              $region51: #{sqnxt_unit_forward.7} parent=43 // loop_exit
                _
            $region44: #{sqnxt_unit_forward.7} parent=39 // pred_fallthru
              _
            // Predicated region
            $region52: #{sqnxt_unit_forward.7} parent=39 // pred_check
              _
            $region53: #{sqnxt_unit_forward.7} parent=39 // pred_check_branch
              %288 = sbr.rel target = $region55
            $region54: #{sqnxt_unit_forward.7} parent=39 // pred_region
              _
            $region55: #{sqnxt_unit_forward.7} parent=39 // pred_fallthru
              _
          $region40: #{sqnxt_unit_forward.7} parent=35 // pred_fallthru
            _
          %289 = vnop
        $region36: #{sqnxt_unit_forward.7} parent=31 // pred_fallthru
          _
      $region32: #{sqnxt_unit_forward.7} parent=5 // pred_fallthru
        _
      %p290 = scmp.le.s32.totalorder 1, %s14
      %p291 = scmp.lt.s32.totalorder %s14, 3
      %p292 = pnand %p290, %p291
      %p293 = pneg %p292
      // Predicated region
      $region56: #{sqnxt_unit_forward.7} parent=5 // pred_check
        _
      $region57: #{sqnxt_unit_forward.7} parent=5 // pred_check_branch
        %295 = sbr.rel (%p292) target = $region59
      $region58: #{sqnxt_unit_forward.7} parent=5 // pred_region
        %s296 = ssub.s32 %s14, 1
        %s297 = sand.u32 %s27, 1
        %s298 = sand.u32 %s27, 1
        %s299 = smul.addr %s298, 128
        %s300 = scalar_lea.vmem [#allocation2], %s299
        // Predicated region
        $region60: #{sqnxt_unit_forward.7} parent=58 // pred_check
          %p301 = pneg %p40
        $region61: #{sqnxt_unit_forward.7} parent=58 // pred_check_branch
          %303 = sbr.rel (%p301) target = $region63
        $region62: #{sqnxt_unit_forward.7} parent=58 // pred_region
          _
        $region63: #{sqnxt_unit_forward.7} parent=58 // pred_fallthru
          _
        %s304 = sand.u32 %s27, 1
        %s305 = sand.u32 %s27, 1
        %s306 = smul.addr %s305, 128
        %s307 = scalar_lea.vmem [#allocation2], %s306
        %p308 = pneg %p40
        %p309 = pneg %p37
        %p310 = pneg %p61
        %p311 = pneg %p58
        %p312 = pneg %p82
        %p313 = pneg %p79
        %p314 = pneg %p103
        %p315 = pneg %p100
        %p316 = pneg %p124
        %p317 = pneg %p121
        %p318 = pneg %p150
        %p319 = pneg %p147
        %s320 = sand.u32 %s137, 1
        %s321 = sand.u32 %s137, 1
        %s322 = smul.addr %s321, 128
        %s323 = scalar_lea.vmem [#allocation3], %s322
        %p324 = pneg %p176
        %p325 = pneg %p173
        %p326 = scmp.lt.s32.totalorder %s19, 1
        %s327 = scalar_select %p326, %s19, 1
        %s328 = smul.addr %s327, 8
        %s329 = smul.addr %s328, 8
        %s330 = scalar_lea.vmem %s6, %s329
        %p331 = pneg %p202
        %p332 = pneg %p199
        %p333 = scmp.lt.s32.totalorder %s19, 1
        %s334 = scalar_select %p333, %s19, 1
        %s335 = smul.addr %s334, 8
        %s336 = smul.addr %s335, 8
        %s337 = scalar_lea.vmem %s7, %s336
        %s338 = smul.u32 2, %s19
        %s339 = smul.u32 2, %s19
        %p340 = scmp.lt.s32.totalorder %s19, 1
        %s341 = scalar_select %p340, %s19, 1
        %s342 = smul.addr %s341, 8
        %s343 = smul.addr %s342, 8
        %s344 = scalar_lea.vmem %s6, %s343
        %p345 = scmp.lt.s32.totalorder %s19, 1
        %s346 = scalar_select %p345, %s19, 1
        %s347 = smul.addr %s346, 8
        %s348 = smul.addr %s347, 8
        %s349 = scalar_lea.vmem %s7, %s348
        %v351 = vld [vmem:[%s300] sm:$0xff]
        %v352 = vld [vmem:[%s300 + $0x8] sm:$0xff]
        %v353 = vld [vmem:[%s300 + $0x10] sm:$0xff]
        %v354 = vld [vmem:[%s300 + $0x18] sm:$0xff]
        %v355 = vld [vmem:[%s300 + $0x20] sm:$0xff]
        %v356 = vld [vmem:[%s300 + $0x28] sm:$0xff]
        %v357 = vld [vmem:[%s300 + $0x30] sm:$0xff]
        %v358 = vld [vmem:[%s300 + $0x38] sm:$0xff]
        %v359 = vld [vmem:[%s300 + $0x40] sm:$0xff]
        %v360 = vld [vmem:[%s300 + $0x48] sm:$0xff]
        %v361 = vld [vmem:[%s300 + $0x50] sm:$0xff]
        %v362 = vld [vmem:[%s300 + $0x58] sm:$0xff]
        %v363 = vld [vmem:[%s300 + $0x60] sm:$0xff]
        %v364 = vld [vmem:[%s300 + $0x68] sm:$0xff]
        %v365 = vld [vmem:[%s300 + $0x70] sm:$0xff]
        %v366 = vld [vmem:[%s300 + $0x78] sm:$0xff]
        %v367 = vld [vmem:[%s2] sm:$0xff]
        %v368 = vld [vmem:[%s2 + $0x8] sm:$0xff]
        %v369 = vld [vmem:[%s2 + $0x10] sm:$0xff]
        %v370 = vld [vmem:[%s2 + $0x18] sm:$0xff]
        %v371 = vld [vmem:[%s2 + $0x20] sm:$0xff]
        %v372 = vld [vmem:[%s2 + $0x28] sm:$0xff]
        %v373 = vld [vmem:[%s2 + $0x30] sm:$0xff]
        %v374 = vld [vmem:[%s2 + $0x38] sm:$0xff]
        %376 = vset.pattern.permute.xlu0 0
        %377 = vperm.xlu0 %376, %v367
        %v378 = vpop.permute.xlu0 %377
        %381 = vset.pattern.permute.xlu0 0
        %382 = vperm.xlu0 %381, %v368
        %v383 = vpop.permute.xlu0 %382
        %386 = vset.pattern.permute.xlu0 0
        %387 = vperm.xlu0 %386, %v369
        %v388 = vpop.permute.xlu0 %387
        %391 = vset.pattern.permute.xlu0 0
        %392 = vperm.xlu0 %391, %v370
        %v393 = vpop.permute.xlu0 %392
        %396 = vset.pattern.permute.xlu0 0
        %397 = vperm.xlu0 %396, %v371
        %v398 = vpop.permute.xlu0 %397
        %401 = vset.pattern.permute.xlu0 0
        %402 = vperm.xlu0 %401, %v372
        %v403 = vpop.permute.xlu0 %402
        %406 = vset.pattern.permute.xlu0 0
        %407 = vperm.xlu0 %406, %v373
        %v408 = vpop.permute.xlu0 %407
        %411 = vset.pattern.permute.xlu0 0
        %412 = vperm.xlu0 %411, %v374
        %v413 = vpop.permute.xlu0 %412
        %v415 = vmul.f32 %v351, %v378
        %v416 = vmul.f32 %v352, %v378
        %v417 = vmul.f32 %v353, %v383
        %v418 = vmul.f32 %v354, %v383
        %v419 = vmul.f32 %v355, %v388
        %v420 = vmul.f32 %v356, %v388
        %v421 = vmul.f32 %v357, %v393
        %v422 = vmul.f32 %v358, %v393
        %v423 = vmul.f32 %v359, %v398
        %v424 = vmul.f32 %v360, %v398
        %v425 = vmul.f32 %v361, %v403
        %v426 = vmul.f32 %v362, %v403
        %v427 = vmul.f32 %v363, %v408
        %v428 = vmul.f32 %v364, %v408
        %v429 = vmul.f32 %v365, %v413
        %v430 = vmul.f32 %v366, %v413
        %v431 = vld [vmem:[%s3] sm:$0xff]
        %v432 = vld [vmem:[%s3 + $0x8] sm:$0xff]
        %v433 = vld [vmem:[%s3 + $0x10] sm:$0xff]
        %v434 = vld [vmem:[%s3 + $0x18] sm:$0xff]
        %v435 = vld [vmem:[%s3 + $0x20] sm:$0xff]
        %v436 = vld [vmem:[%s3 + $0x28] sm:$0xff]
        %v437 = vld [vmem:[%s3 + $0x30] sm:$0xff]
        %v438 = vld [vmem:[%s3 + $0x38] sm:$0xff]
        %440 = vset.pattern.permute.xlu0 0
        %441 = vperm.xlu0 %440, %v431
        %v442 = vpop.permute.xlu0 %441
        %445 = vset.pattern.permute.xlu0 0
        %446 = vperm.xlu0 %445, %v432
        %v447 = vpop.permute.xlu0 %446
        %450 = vset.pattern.permute.xlu0 0
        %451 = vperm.xlu0 %450, %v433
        %v452 = vpop.permute.xlu0 %451
        %455 = vset.pattern.permute.xlu0 0
        %456 = vperm.xlu0 %455, %v434
        %v457 = vpop.permute.xlu0 %456
        %460 = vset.pattern.permute.xlu0 0
        %461 = vperm.xlu0 %460, %v435
        %v462 = vpop.permute.xlu0 %461
        %465 = vset.pattern.permute.xlu0 0
        %466 = vperm.xlu0 %465, %v436
        %v467 = vpop.permute.xlu0 %466
        %470 = vset.pattern.permute.xlu0 0
        %471 = vperm.xlu0 %470, %v437
        %v472 = vpop.permute.xlu0 %471
        %475 = vset.pattern.permute.xlu0 0
        %476 = vperm.xlu0 %475, %v438
        %v477 = vpop.permute.xlu0 %476
        %v479 = vadd.f32 %v415, %v442
        %v480 = vadd.f32 %v416, %v442
        %v481 = vadd.f32 %v417, %v447
        %v482 = vadd.f32 %v418, %v447
        %v483 = vadd.f32 %v419, %v452
        %v484 = vadd.f32 %v420, %v452
        %v485 = vadd.f32 %v421, %v457
        %v486 = vadd.f32 %v422, %v457
        %v487 = vadd.f32 %v423, %v462
        %v488 = vadd.f32 %v424, %v462
        %v489 = vadd.f32 %v425, %v467
        %v490 = vadd.f32 %v426, %v467
        %v491 = vadd.f32 %v427, %v472
        %v492 = vadd.f32 %v428, %v472
        %v493 = vadd.f32 %v429, %v477
        %v494 = vadd.f32 %v430, %v477
        %v495 = vpack.c.bf16 %v481, %v479
        %v496 = vpack.c.bf16 %v482, %v480
        %v497 = vpack.c.bf16 %v485, %v483
        %v498 = vpack.c.bf16 %v486, %v484
        %v499 = vpack.c.bf16 %v489, %v487
        %v500 = vpack.c.bf16 %v490, %v488
        %v501 = vpack.c.bf16 %v493, %v491
        %v502 = vpack.c.bf16 %v494, %v492
        %v503 = vld [vmem:[%s1] sm:$0xf]
        %v504 = vld [vmem:[%s1 + $0x4] sm:$0xf]
        %v505 = vld [vmem:[%s1 + $0x8] sm:$0xf]
        %v506 = vld [vmem:[%s1 + $0xc] sm:$0xf]
        %v507 = vld [vmem:[%s1 + $0x10] sm:$0xf]
        %v508 = vld [vmem:[%s1 + $0x14] sm:$0xf]
        %v509 = vld [vmem:[%s1 + $0x18] sm:$0xf]
        %v510 = vld [vmem:[%s1 + $0x1c] sm:$0xf]
        %v511 = vld [vmem:[%s4] sm:$0xff]
        %v512 = vld [vmem:[%s4 + $0x8] sm:$0xff]
        %v513 = vld [vmem:[%s4 + $0x10] sm:$0xff]
        %v514 = vld [vmem:[%s4 + $0x18] sm:$0xff]
        %v515 = vld [vmem:[%s4 + $0x20] sm:$0xff]
        %v516 = vld [vmem:[%s4 + $0x28] sm:$0xff]
        %v517 = vld [vmem:[%s4 + $0x30] sm:$0xff]
        %v518 = vld [vmem:[%s4 + $0x38] sm:$0xff]
        %520 = vset.pattern.permute.xlu0 0
        %521 = vperm.xlu0 %520, %v511
        %v522 = vpop.permute.xlu0 %521
        %525 = vset.pattern.permute.xlu0 0
        %526 = vperm.xlu0 %525, %v512
        %v527 = vpop.permute.xlu0 %526
        %530 = vset.pattern.permute.xlu0 0
        %531 = vperm.xlu0 %530, %v513
        %v532 = vpop.permute.xlu0 %531
        %535 = vset.pattern.permute.xlu0 0
        %536 = vperm.xlu0 %535, %v514
        %v537 = vpop.permute.xlu0 %536
        %540 = vset.pattern.permute.xlu0 0
        %541 = vperm.xlu0 %540, %v515
        %v542 = vpop.permute.xlu0 %541
        %545 = vset.pattern.permute.xlu0 0
        %546 = vperm.xlu0 %545, %v516
        %v547 = vpop.permute.xlu0 %546
        %550 = vset.pattern.permute.xlu0 0
        %551 = vperm.xlu0 %550, %v517
        %v552 = vpop.permute.xlu0 %551
        %555 = vset.pattern.permute.xlu0 0
        %556 = vperm.xlu0 %555, %v518
        %v557 = vpop.permute.xlu0 %556
        %v567 = vunpack.c.l.b16 %v503
        %v568 = vunpack.c.l.b16 %v504
        %v569 = vunpack.c.l.b16 %v505
        %v570 = vunpack.c.l.b16 %v506
        %v571 = vunpack.c.l.b16 %v507
        %v572 = vunpack.c.l.b16 %v508
        %v573 = vunpack.c.l.b16 %v509
        %v574 = vunpack.c.l.b16 %v510
        %v575 = vpack.c.b16 %v568, %v567
        %v576 = vpack.c.b16 %v570, %v569
        %v577 = vpack.c.b16 %v572, %v571
        %v578 = vpack.c.b16 %v574, %v573
        %vm579 = vcmask 523264
        %v581 = vsel %vm579, %v575, 0
        %v584 = vsel %vm579, %v576, 0
        %v587 = vsel %vm579, %v577, 0
        %v590 = vsel %vm579, %v578, 0
        %592 = vmatprep.subr.bf16.mxu0 %v496
        %593 = vmatpush1.bf16.msra.mxu0 %v495
        %594 = vmatprep.subr.bf16.mxu0 %v498
        %595 = vmatpush1.bf16.msra.mxu0 %v497
        %596 = vmatprep.subr.bf16.mxu0 %v500
        %597 = vmatpush1.bf16.msra.mxu0 %v499
        %598 = vmatprep.subr.bf16.mxu0 %v502
        %599 = vmatpush1.bf16.msra.mxu0 %v501
        %600 = vmatprep.subr.bf16.mxu0 0
        %601 = vmatpush1.bf16.msra.mxu0 0
        %602 = vmatprep.subr.bf16.mxu0 0
        %603 = vmatpush1.bf16.msra.mxu0 0
        %604 = vmatprep.subr.bf16.mxu0 0
        %605 = vmatpush1.bf16.msra.mxu0 0
        %606 = vmatprep.subr.bf16.mxu0 0
        %607 = vmatpush1.bf16.msra.mxu0 0
        %608 = vmatprep.subr.bf16.mxu0 0
        %609 = vmatpush1.bf16.msra.mxu0 0
        %610 = vmatprep.subr.bf16.mxu0 0
        %611 = vmatpush1.bf16.msra.mxu0 0
        %612 = vmatprep.subr.bf16.mxu0 0
        %613 = vmatpush1.bf16.msra.mxu0 0
        %614 = vmatprep.subr.bf16.mxu0 0
        %615 = vmatpush1.bf16.msra.mxu0 0
        %616 = vmatprep.subr.bf16.mxu0 0
        %617 = vmatpush1.bf16.msra.mxu0 0
        %618 = vmatprep.subr.bf16.mxu0 0
        %619 = vmatpush1.bf16.msra.mxu0 0
        %620 = vmatprep.subr.bf16.mxu0 0
        %621 = vmatpush1.bf16.msra.mxu0 0
        %622 = vmatprep.subr.bf16.mxu0 0
        %623 = vmatpush1.bf16.msra.mxu0 0
        %624 = vmatprep.mubr.bf16.mxu0 0
        %625 = vmatmul.mubr.bf16.gmra.mrb[0].mxu0 %v581
        %v626 = vpop.f32.mrb[0].mxu0
        %v627 = vadd.f32 %v522, %v626
        %v628 = vpop.f32.mrb[0].mxu0
        %v629 = vadd.f32 %v522, %v628
        %v630 = vpop.f32.mrb[0].mxu0
        %v631 = vadd.f32 %v527, %v630
        %v632 = vpop.f32.mrb[0].mxu0
        %v633 = vadd.f32 %v527, %v632
        %634 = vmatprep.mubr.bf16.mxu0 0
        %635 = vmatmul.mubr.bf16.gmra.mrb[0].mxu0 %v584
        %v636 = vpop.f32.mrb[0].mxu0
        %v637 = vadd.f32 %v532, %v636
        %v638 = vpop.f32.mrb[0].mxu0
        %v639 = vadd.f32 %v532, %v638
        %v640 = vpop.f32.mrb[0].mxu0
        %v641 = vadd.f32 %v537, %v640
        %v642 = vpop.f32.mrb[0].mxu0
        %v643 = vadd.f32 %v537, %v642
        %644 = vmatprep.mubr.bf16.mxu0 0
        %645 = vmatmul.mubr.bf16.gmra.mrb[0].mxu0 %v587
        %v646 = vpop.f32.mrb[0].mxu0
        %v647 = vadd.f32 %v542, %v646
        %v648 = vpop.f32.mrb[0].mxu0
        %v649 = vadd.f32 %v542, %v648
        %v650 = vpop.f32.mrb[0].mxu0
        %v651 = vadd.f32 %v547, %v650
        %v652 = vpop.f32.mrb[0].mxu0
        %v653 = vadd.f32 %v547, %v652
        %654 = vmatprep.mubr.bf16.mxu0 0
        %655 = vmatmul.mubr.bf16.gmra.mrb[0].mxu0 %v590
        %v656 = vpop.f32.mrb[0].mxu0
        %v657 = vadd.f32 %v552, %v656
        %v658 = vpop.f32.mrb[0].mxu0
        %v659 = vadd.f32 %v552, %v658
        %v660 = vpop.f32.mrb[0].mxu0
        %v661 = vadd.f32 %v557, %v660
        %v662 = vpop.f32.mrb[0].mxu0
        %v663 = vadd.f32 %v557, %v662
        %664 = vdwg.mxu0
        %665 = vst [vmem:[%s323] sm:$0xff] %v627
        %666 = vst [vmem:[%s323 + $0x8] sm:$0xff] %v629
        %667 = vst [vmem:[%s323 + $0x10] sm:$0xff] %v631
        %668 = vst [vmem:[%s323 + $0x18] sm:$0xff] %v633
        %669 = vst [vmem:[%s323 + $0x20] sm:$0xff] %v637
        %670 = vst [vmem:[%s323 + $0x28] sm:$0xff] %v639
        %671 = vst [vmem:[%s323 + $0x30] sm:$0xff] %v641
        %672 = vst [vmem:[%s323 + $0x38] sm:$0xff] %v643
        %673 = vst [vmem:[%s323 + $0x40] sm:$0xff] %v647
        %674 = vst [vmem:[%s323 + $0x48] sm:$0xff] %v649
        %675 = vst [vmem:[%s323 + $0x50] sm:$0xff] %v651
        %676 = vst [vmem:[%s323 + $0x58] sm:$0xff] %v653
        %677 = vst [vmem:[%s323 + $0x60] sm:$0xff] %v657
        %678 = vst [vmem:[%s323 + $0x68] sm:$0xff] %v659
        %679 = vst [vmem:[%s323 + $0x70] sm:$0xff] %v661
        %680 = vst [vmem:[%s323 + $0x78] sm:$0xff] %v663
        %v681 = vadd.f32 %v627, %v629
        %682 = vadd.xlane.f32.xlu0 %v681
        %v683 = vpop.xlane.xlu0 %682
        %v684 = vadd.f32 %v631, %v633
        %685 = vadd.xlane.f32.xlu0 %v684
        %v686 = vpop.xlane.xlu0 %685
        %v687 = vadd.f32 %v637, %v639
        %688 = vadd.xlane.f32.xlu0 %v687
        %v689 = vpop.xlane.xlu0 %688
        %v690 = vadd.f32 %v641, %v643
        %691 = vadd.xlane.f32.xlu0 %v690
        %v692 = vpop.xlane.xlu0 %691
        %v693 = vadd.f32 %v647, %v649
        %694 = vadd.xlane.f32.xlu0 %v693
        %v695 = vpop.xlane.xlu0 %694
        %v696 = vadd.f32 %v651, %v653
        %697 = vadd.xlane.f32.xlu0 %v696
        %v698 = vpop.xlane.xlu0 %697
        %v699 = vadd.f32 %v657, %v659
        %700 = vadd.xlane.f32.xlu0 %v699
        %v701 = vpop.xlane.xlu0 %700
        %v702 = vadd.f32 %v661, %v663
        %703 = vadd.xlane.f32.xlu0 %v702
        %v704 = vpop.xlane.xlu0 %703
        %v705 = vmul.f32 %v627, %v627
        %v706 = vmul.f32 %v629, %v629
        %v707 = vmul.f32 %v631, %v631
        %v708 = vmul.f32 %v633, %v633
        %v709 = vmul.f32 %v637, %v637
        %v710 = vmul.f32 %v639, %v639
        %v711 = vmul.f32 %v641, %v641
        %v712 = vmul.f32 %v643, %v643
        %v713 = vmul.f32 %v647, %v647
        %v714 = vmul.f32 %v649, %v649
        %v715 = vmul.f32 %v651, %v651
        %v716 = vmul.f32 %v653, %v653
        %v717 = vmul.f32 %v657, %v657
        %v718 = vmul.f32 %v659, %v659
        %v719 = vmul.f32 %v661, %v661
        %v720 = vmul.f32 %v663, %v663
        %v721 = vadd.f32 %v705, %v706
        %722 = vadd.xlane.f32.xlu0 %v721
        %v723 = vpop.xlane.xlu0 %722
        %v724 = vadd.f32 %v707, %v708
        %725 = vadd.xlane.f32.xlu0 %v724
        %v726 = vpop.xlane.xlu0 %725
        %v727 = vadd.f32 %v709, %v710
        %728 = vadd.xlane.f32.xlu0 %v727
        %v729 = vpop.xlane.xlu0 %728
        %v730 = vadd.f32 %v711, %v712
        %731 = vadd.xlane.f32.xlu0 %v730
        %v732 = vpop.xlane.xlu0 %731
        %v733 = vadd.f32 %v713, %v714
        %734 = vadd.xlane.f32.xlu0 %v733
        %v735 = vpop.xlane.xlu0 %734
        %v736 = vadd.f32 %v715, %v716
        %737 = vadd.xlane.f32.xlu0 %v736
        %v738 = vpop.xlane.xlu0 %737
        %v739 = vadd.f32 %v717, %v718
        %740 = vadd.xlane.f32.xlu0 %v739
        %v741 = vpop.xlane.xlu0 %740
        %v742 = vadd.f32 %v719, %v720
        %743 = vadd.xlane.f32.xlu0 %v742
        %v744 = vpop.xlane.xlu0 %743
        %745 = vst [vmem:[%s344] sm:$0xff] %v683
        %746 = vst [vmem:[%s344 + $0x8] sm:$0xff] %v686
        %747 = vst [vmem:[%s344 + $0x10] sm:$0xff] %v689
        %748 = vst [vmem:[%s344 + $0x18] sm:$0xff] %v692
        %749 = vst [vmem:[%s344 + $0x20] sm:$0xff] %v695
        %750 = vst [vmem:[%s344 + $0x28] sm:$0xff] %v698
        %751 = vst [vmem:[%s344 + $0x30] sm:$0xff] %v701
        %752 = vst [vmem:[%s344 + $0x38] sm:$0xff] %v704
        %753 = vst [vmem:[%s349] sm:$0xff] %v723
        %754 = vst [vmem:[%s349 + $0x8] sm:$0xff] %v726
        %755 = vst [vmem:[%s349 + $0x10] sm:$0xff] %v729
        %756 = vst [vmem:[%s349 + $0x18] sm:$0xff] %v732
        %757 = vst [vmem:[%s349 + $0x20] sm:$0xff] %v735
        %758 = vst [vmem:[%s349 + $0x28] sm:$0xff] %v738
        %759 = vst [vmem:[%s349 + $0x30] sm:$0xff] %v741
        %760 = vst [vmem:[%s349 + $0x38] sm:$0xff] %v744
        %s761 = sand.u32 %s137, 1
        %s762 = sand.u32 %s137, 1
        %s763 = smul.addr %s762, 128
        %s764 = scalar_lea.vmem [#allocation3], %s763
        %p765 = scmp.lt.s32.totalorder %s19, 1
        %s766 = scalar_select %p765, %s19, 1
        %s767 = smul.addr %s766, 8
        %s768 = smul.addr %s767, 8
        %s769 = scalar_lea.vmem %s6, %s768
        %p770 = scmp.lt.s32.totalorder %s19, 1
        %s771 = scalar_select %p770, %s19, 1
        %s772 = smul.addr %s771, 8
        %s773 = smul.addr %s772, 8
        %s774 = scalar_lea.vmem %s7, %s773
        // Predicated region
        $region64: #{sqnxt_unit_forward.7} parent=58 // pred_check
          %p775 = pneg %p147
        $region65: #{sqnxt_unit_forward.7} parent=58 // pred_check_branch
          %777 = sbr.rel (%p775) target = $region67
        $region66: #{sqnxt_unit_forward.7} parent=58 // pred_region
          %s778 = smul.u32 2, %s19
          %s779 = smul.addr %s778, 8
          %s780 = scalar_lea.vmem %s5, %s779
          // Predicated region
          $region68: #{sqnxt_unit_forward.7} parent=66 // pred_check
            _
          $region69: #{sqnxt_unit_forward.7} parent=66 // pred_check_branch
            %782 = sbr.rel (0) target = $region71
          $region70: #{sqnxt_unit_forward.7} parent=66 // pred_region
            // Predicated region
            $region72: #{sqnxt_unit_forward.7} parent=70 // pred_check
              _
            $region73: #{sqnxt_unit_forward.7} parent=70 // pred_check_branch
              %784 = sbr.rel (0) target = $region75
            $region74: #{sqnxt_unit_forward.7} parent=70 // pred_region
              loop: start=0, step=1, limit=1
              $region76: #{sqnxt_unit_forward.7} parent=74 // loop_pre_header
                _
              $region77: #{sqnxt_unit_forward.7} parent=74 // loop_header
                %s786 = sphi 0, %s790
                %p787 = scmp.ge.s32.totalorder %s786, 1
                %s791 = sphi %s764, %s764
                %s792 = sphi %s780, %s780
              $region78: #{sqnxt_unit_forward.7} parent=74 // loop_header_branch
                %789 = sbr.rel (%p787) target = $region82
              $region79: #{sqnxt_unit_forward.7} parent=74 // loop_body
                %v793 = vld [vmem:[%s791] sm:$0xff]
                %794 = vst [vmem:[%s792] sm:$0xff] %v793
                %v795 = vld [vmem:[%s791 + $0x8] sm:$0xff]
                %796 = vst [vmem:[%s792 + $0x8] sm:$0xff] %v795
                %v797 = vld [vmem:[%s791 + $0x10] sm:$0xff]
                %798 = vst [vmem:[%s792 + $0x20] sm:$0xff] %v797
                %v799 = vld [vmem:[%s791 + $0x18] sm:$0xff]
                %800 = vst [vmem:[%s792 + $0x28] sm:$0xff] %v799
                %v801 = vld [vmem:[%s791 + $0x20] sm:$0xff]
                %802 = vst [vmem:[%s792 + $0x40] sm:$0xff] %v801
                %v803 = vld [vmem:[%s791 + $0x28] sm:$0xff]
                %804 = vst [vmem:[%s792 + $0x48] sm:$0xff] %v803
                %v805 = vld [vmem:[%s791 + $0x30] sm:$0xff]
                %806 = vst [vmem:[%s792 + $0x60] sm:$0xff] %v805
                %v807 = vld [vmem:[%s791 + $0x38] sm:$0xff]
                %808 = vst [vmem:[%s792 + $0x68] sm:$0xff] %v807
                %v809 = vld [vmem:[%s791 + $0x40] sm:$0xff]
                %810 = vst [vmem:[%s792 + $0x80] sm:$0xff] %v809
                %v811 = vld [vmem:[%s791 + $0x48] sm:$0xff]
                %812 = vst [vmem:[%s792 + $0x88] sm:$0xff] %v811
                %v813 = vld [vmem:[%s791 + $0x50] sm:$0xff]
                %814 = vst [vmem:[%s792 + $0xa0] sm:$0xff] %v813
                %v815 = vld [vmem:[%s791 + $0x58] sm:$0xff]
                %816 = vst [vmem:[%s792 + $0xa8] sm:$0xff] %v815
                %v817 = vld [vmem:[%s791 + $0x60] sm:$0xff]
                %818 = vst [vmem:[%s792 + $0xc0] sm:$0xff] %v817
                %v819 = vld [vmem:[%s791 + $0x68] sm:$0xff]
                %820 = vst [vmem:[%s792 + $0xc8] sm:$0xff] %v819
                %v821 = vld [vmem:[%s791 + $0x70] sm:$0xff]
                %822 = vst [vmem:[%s792 + $0xe0] sm:$0xff] %v821
                %v823 = vld [vmem:[%s791 + $0x78] sm:$0xff]
                %824 = vst [vmem:[%s792 + $0xe8] sm:$0xff] %v823
              $region80: #{sqnxt_unit_forward.7} parent=74 // loop_footer
                %s790 = sadd.s32 1, %s786
              $region81: #{sqnxt_unit_forward.7} parent=74 // loop_footer_branch
                %785 = sbr.rel target = $region77
              $region82: #{sqnxt_unit_forward.7} parent=74 // loop_exit
                _
            $region75: #{sqnxt_unit_forward.7} parent=70 // pred_fallthru
              _
            // Predicated region
            $region83: #{sqnxt_unit_forward.7} parent=70 // pred_check
              _
            $region84: #{sqnxt_unit_forward.7} parent=70 // pred_check_branch
              %826 = sbr.rel target = $region86
            $region85: #{sqnxt_unit_forward.7} parent=70 // pred_region
              _
            $region86: #{sqnxt_unit_forward.7} parent=70 // pred_fallthru
              _
          $region71: #{sqnxt_unit_forward.7} parent=66 // pred_fallthru
            _
          %827 = vnop
        $region67: #{sqnxt_unit_forward.7} parent=58 // pred_fallthru
          _
        // Predicated region
        $region87: #{sqnxt_unit_forward.7} parent=58 // pred_check
          %p828 = pneg %p173
        $region88: #{sqnxt_unit_forward.7} parent=58 // pred_check_branch
          %830 = sbr.rel (%p828) target = $region90
        $region89: #{sqnxt_unit_forward.7} parent=58 // pred_region
          _
        $region90: #{sqnxt_unit_forward.7} parent=58 // pred_fallthru
          _
        // Predicated region
        $region91: #{sqnxt_unit_forward.7} parent=58 // pred_check
          %p831 = pneg %p199
        $region92: #{sqnxt_unit_forward.7} parent=58 // pred_check_branch
          %833 = sbr.rel (%p831) target = $region94
        $region93: #{sqnxt_unit_forward.7} parent=58 // pred_region
          _
        $region94: #{sqnxt_unit_forward.7} parent=58 // pred_fallthru
          _
      $region59: #{sqnxt_unit_forward.7} parent=5 // pred_fallthru
        _
      %p834 = scmp.le.s32.totalorder 2, %s14
      // Predicated region
      $region95: #{sqnxt_unit_forward.7} parent=5 // pred_check
        %p835 = pneg %p834
      $region96: #{sqnxt_unit_forward.7} parent=5 // pred_check_branch
        %837 = sbr.rel (%p835) target = $region98
      $region97: #{sqnxt_unit_forward.7} parent=5 // pred_region
        %s838 = ssub.s32 %s14, 2
        // Predicated region
        $region99: #{sqnxt_unit_forward.7} parent=97 // pred_check
          %p839 = pneg %p153
        $region100: #{sqnxt_unit_forward.7} parent=97 // pred_check_branch
          %841 = sbr.rel (%p839) target = $region102
        $region101: #{sqnxt_unit_forward.7} parent=97 // pred_region
          %s842 = sand.u32 %s138, 1
          %s843 = sand.u32 %s138, 1
          %s844 = smul.addr %s843, 128
          %s845 = scalar_lea.vmem [#allocation3], %s844
        $region102: #{sqnxt_unit_forward.7} parent=97 // pred_fallthru
          _
        // Predicated region
        $region103: #{sqnxt_unit_forward.7} parent=97 // pred_check
          %p846 = pneg %p179
        $region104: #{sqnxt_unit_forward.7} parent=97 // pred_check_branch
          %848 = sbr.rel (%p846) target = $region106
        $region105: #{sqnxt_unit_forward.7} parent=97 // pred_region
          %p849 = scmp.lt.s32.totalorder %s20, 1
          %s850 = scalar_select %p849, %s20, 1
          %s851 = smul.addr %s850, 8
          %s852 = smul.addr %s851, 8
          %s853 = scalar_lea.vmem %s6, %s852
        $region106: #{sqnxt_unit_forward.7} parent=97 // pred_fallthru
          _
        // Predicated region
        $region107: #{sqnxt_unit_forward.7} parent=97 // pred_check
          %p854 = pneg %p205
        $region108: #{sqnxt_unit_forward.7} parent=97 // pred_check_branch
          %856 = sbr.rel (%p854) target = $region110
        $region109: #{sqnxt_unit_forward.7} parent=97 // pred_region
          %p857 = scmp.lt.s32.totalorder %s20, 1
          %s858 = scalar_select %p857, %s20, 1
          %s859 = smul.addr %s858, 8
          %s860 = smul.addr %s859, 8
          %s861 = scalar_lea.vmem %s7, %s860
        $region110: #{sqnxt_unit_forward.7} parent=97 // pred_fallthru
          _
      $region98: #{sqnxt_unit_forward.7} parent=5 // pred_fallthru
        _
    $region6: #{sqnxt_unit_forward.7} parent=1 // loop_footer
      %s18 = sadd.s32 1, %s14
    $region7: #{sqnxt_unit_forward.7} parent=1 // loop_footer_branch
      %13 = sbr.rel target = $region3
    $region8: #{sqnxt_unit_forward.7} parent=1 // loop_exit
      _

// kernel: sqnxt_unit_forward.9
$region0: #{sqnxt_unit_forward.9}
  #allocation0 [shape = 'u32[]', space=smem, size = 0x4, offset = 0x4, fixed_abs, tag = 'smem constant byte address 0x4 - core index']
  #allocation1 [shape = 'u32[144,128]{1,0:T(1,128)}', space=vmem, size = 0x12000, scoped, tag = 'internal scratch']
  %s0 = inlined_call_operand.vmem [shape: f32[32,512], index: 0, kind: input, shape index: {}]
  %s1 = inlined_call_operand.vmem [shape: bf16[3,64,32], index: 1, kind: input, shape index: {}]
  %s2 = inlined_call_operand.vmem [shape: f32[32,1], index: 2, kind: input, shape index: {}]
  %s3 = inlined_call_operand.vmem [shape: f32[32,1], index: 3, kind: input, shape index: {}]
  %s4 = inlined_call_operand.vmem [shape: f32[64,1], index: 4, kind: input, shape index: {}]
  %s5 = inlined_call_operand.vmem [shape: f32[64,512], index: 5, kind: output, shape index: {0}]
  %s6 = inlined_call_operand.vmem [shape: f32[2,64,128], index: 6, kind: output, shape index: {1}]
  %s7 = inlined_call_operand.vmem [shape: f32[2,64,128], index: 7, kind: output, shape index: {2}]
  %8 = xla_tuple %s5, %s6, %s7
  %s9 = sld [smem:[#allocation0]]
  $region111: #{sqnxt_unit_forward.9} parent=0
    _
  %s11 = ssub.s32 1, %s9
  %s12 = scalar_select 0, %s11, %s9
  $region1: #{sqnxt_unit_forward.9} parent=0
    #allocation2 [shape = 'u8[65536]{0}', space=vmem, size = 0x10000, scoped, tag = 'input window, operand 0']
    #allocation3 [shape = 'u8[131072]{0}', space=vmem, size = 0x20000, scoped, tag = 'output window, operand 0']
    loop: start=0, step=1, limit=4
    $region2: #{sqnxt_unit_forward.9} parent=1 // loop_pre_header
      _
    $region3: #{sqnxt_unit_forward.9} parent=1 // loop_header
      %s14 = sphi 0, %s18
      %p15 = scmp.ge.s32.totalorder %s14, 4
      %s24 = sphi 0, %s26
      %s27 = sphi 0, %s24
      %s28 = sphi 0, %s27
      %s44 = sphi 0, %s28
      %s48 = sphi 0, %s48
      %s50 = sphi 0, %s48
      %s51 = sphi 0, %s50
      %s65 = sphi 0, %s51
      %s69 = sphi 0, %s69
      %s71 = sphi 0, %s69
      %s72 = sphi 0, %s71
      %s86 = sphi 0, %s72
      %s90 = sphi 0, %s90
      %s92 = sphi 0, %s90
      %s93 = sphi 0, %s92
      %s107 = sphi 0, %s93
      %s111 = sphi 0, %s111
      %s113 = sphi 0, %s111
      %s114 = sphi 0, %s113
      %s128 = sphi 0, %s114
      %s134 = sphi 0, %s136
      %s137 = sphi 0, %s134
      %s138 = sphi 0, %s137
      %s154 = sphi 0, %s138
      %s160 = sphi 0, %s162
      %s163 = sphi 0, %s160
      %s164 = sphi 0, %s163
      %s180 = sphi 0, %s164
      %s186 = sphi 0, %s188
      %s189 = sphi 0, %s186
      %s190 = sphi 0, %s189
      %s206 = sphi 0, %s190
    $region4: #{sqnxt_unit_forward.9} parent=1 // loop_header_branch
      %17 = sbr.rel (%p15) target = $region8
    $region5: #{sqnxt_unit_forward.9} parent=1 // loop_body
      %s19 = ssub.s32 %s14, 1
      %s20 = ssub.s32 %s14, 2
      %s21 = sadd.s32 %s14, 1
      %s22 = ssub.s32 %s14, %s21
      %p23 = scmp.eq.s32.totalorder %s22, 0
      %s25 = sadd.s32 %s24, 1
      %s26 = scalar_select %p23, %s24, %s25
      %p29 = pneg %p23
      %p30 = scmp.eq.s32.totalorder %s14, 1
      %p31 = por %p29, %p30
      %p32 = scmp.ne.s32.totalorder %s24, %s27
      %p33 = scmp.eq.s32.totalorder %s14, 0
      %p34 = por %p32, %p33
      %p35 = scmp.ne.s32.totalorder %s24, %s27
      %p36 = scmp.eq.s32.totalorder %s19, 1
      %p37 = por %p35, %p36
      %p38 = scmp.ne.s32.totalorder %s27, %s28
      %p39 = scmp.eq.s32.totalorder %s19, 0
      %p40 = por %p38, %p39
      %p41 = scmp.ne.s32.totalorder %s27, %s28
      %p42 = scmp.eq.s32.totalorder %s20, 1
      %p43 = por %p41, %p42
      %p45 = scmp.ne.s32.totalorder %s28, %s44
      %p46 = scmp.eq.s32.totalorder %s20, 0
      %p47 = por %p45, %p46
      %s49 = sadd.s32 %s48, 1
      %p52 = scmp.eq.s32.totalorder %s14, 1
      %p53 = scmp.ne.s32.totalorder %s48, %s50
      %p54 = scmp.eq.s32.totalorder %s14, 0
      %p55 = por %p53, %p54
      %p56 = scmp.ne.s32.totalorder %s48, %s50
      %p57 = scmp.eq.s32.totalorder %s19, 1
      %p58 = por %p56, %p57
      %p59 = scmp.ne.s32.totalorder %s50, %s51
      %p60 = scmp.eq.s32.totalorder %s19, 0
      %p61 = por %p59, %p60
      %p62 = scmp.ne.s32.totalorder %s50, %s51
      %p63 = scmp.eq.s32.totalorder %s20, 1
      %p64 = por %p62, %p63
      %p66 = scmp.ne.s32.totalorder %s51, %s65
      %p67 = scmp.eq.s32.totalorder %s20, 0
      %p68 = por %p66, %p67
      %s70 = sadd.s32 %s69, 1
      %p73 = scmp.eq.s32.totalorder %s14, 1
      %p74 = scmp.ne.s32.totalorder %s69, %s71
      %p75 = scmp.eq.s32.totalorder %s14, 0
      %p76 = por %p74, %p75
      %p77 = scmp.ne.s32.totalorder %s69, %s71
      %p78 = scmp.eq.s32.totalorder %s19, 1
      %p79 = por %p77, %p78
      %p80 = scmp.ne.s32.totalorder %s71, %s72
      %p81 = scmp.eq.s32.totalorder %s19, 0
      %p82 = por %p80, %p81
      %p83 = scmp.ne.s32.totalorder %s71, %s72
      %p84 = scmp.eq.s32.totalorder %s20, 1
      %p85 = por %p83, %p84
      %p87 = scmp.ne.s32.totalorder %s72, %s86
      %p88 = scmp.eq.s32.totalorder %s20, 0
      %p89 = por %p87, %p88
      %s91 = sadd.s32 %s90, 1
      %p94 = scmp.eq.s32.totalorder %s14, 1
      %p95 = scmp.ne.s32.totalorder %s90, %s92
      %p96 = scmp.eq.s32.totalorder %s14, 0
      %p97 = por %p95, %p96
      %p98 = scmp.ne.s32.totalorder %s90, %s92
      %p99 = scmp.eq.s32.totalorder %s19, 1
      %p100 = por %p98, %p99
      %p101 = scmp.ne.s32.totalorder %s92, %s93
      %p102 = scmp.eq.s32.totalorder %s19, 0
      %p103 = por %p101, %p102
      %p104 = scmp.ne.s32.totalorder %s92, %s93
      %p105 = scmp.eq.s32.totalorder %s20, 1
      %p106 = por %p104, %p105
      %p108 = scmp.ne.s32.totalorder %s93, %s107
      %p109 = scmp.eq.s32.totalorder %s20, 0
      %p110 = por %p108, %p109
      %s112 = sadd.s32 %s111, 1
      %p115 = scmp.eq.s32.totalorder %s14, 1
      %p116 = scmp.ne.s32.totalorder %s111, %s113
      %p117 = scmp.eq.s32.totalorder %s14, 0
      %p118 = por %p116, %p117
      %p119 = scmp.ne.s32.totalorder %s111, %s113
      %p120 = scmp.eq.s32.totalorder %s19, 1
      %p121 = por %p119, %p120
      %p122 = scmp.ne.s32.totalorder %s113, %s114
      %p123 = scmp.eq.s32.totalorder %s19, 0
      %p124 = por %p122, %p123
      %p125 = scmp.ne.s32.totalorder %s113, %s114
      %p126 = scmp.eq.s32.totalorder %s20, 1
      %p127 = por %p125, %p126
      %p129 = scmp.ne.s32.totalorder %s114, %s128
      %p130 = scmp.eq.s32.totalorder %s20, 0
      %p131 = por %p129, %p130
      %s132 = ssub.s32 %s14, %s21
      %p133 = scmp.eq.s32.totalorder %s132, 0
      %s135 = sadd.s32 %s134, 1
      %s136 = scalar_select %p133, %s134, %s135
      %p139 = pneg %p133
      %p140 = scmp.eq.s32.totalorder %s14, 1
      %p141 = por %p139, %p140
      %p142 = scmp.ne.s32.totalorder %s134, %s137
      %p143 = scmp.eq.s32.totalorder %s14, 0
      %p144 = por %p142, %p143
      %p145 = scmp.ne.s32.totalorder %s134, %s137
      %p146 = scmp.eq.s32.totalorder %s19, 1
      %p147 = por %p145, %p146
      %p148 = scmp.ne.s32.totalorder %s137, %s138
      %p149 = scmp.eq.s32.totalorder %s19, 0
      %p150 = por %p148, %p149
      %p151 = scmp.ne.s32.totalorder %s137, %s138
      %p152 = scmp.eq.s32.totalorder %s20, 1
      %p153 = por %p151, %p152
      %p155 = scmp.ne.s32.totalorder %s138, %s154
      %p156 = scmp.eq.s32.totalorder %s20, 0
      %p157 = por %p155, %p156
      %s158 = ssub.s32 %s14, %s21
      %p159 = scmp.eq.s32.totalorder %s158, 0
      %s161 = sadd.s32 %s160, 1
      %s162 = scalar_select %p159, %s160, %s161
      %p165 = pneg %p159
      %p166 = scmp.eq.s32.totalorder %s14, 1
      %p167 = por %p165, %p166
      %p168 = scmp.ne.s32.totalorder %s160, %s163
      %p169 = scmp.eq.s32.totalorder %s14, 0
      %p170 = por %p168, %p169
      %p171 = scmp.ne.s32.totalorder %s160, %s163
      %p172 = scmp.eq.s32.totalorder %s19, 1
      %p173 = por %p171, %p172
      %p174 = scmp.ne.s32.totalorder %s163, %s164
      %p175 = scmp.eq.s32.totalorder %s19, 0
      %p176 = por %p174, %p175
      %p177 = scmp.ne.s32.totalorder %s163, %s164
      %p178 = scmp.eq.s32.totalorder %s20, 1
      %p179 = por %p177, %p178
      %p181 = scmp.ne.s32.totalorder %s164, %s180
      %p182 = scmp.eq.s32.totalorder %s20, 0
      %p183 = por %p181, %p182
      %s184 = ssub.s32 %s14, %s21
      %p185 = scmp.eq.s32.totalorder %s184, 0
      %s187 = sadd.s32 %s186, 1
      %s188 = scalar_select %p185, %s186, %s187
      %p191 = pneg %p185
      %p192 = scmp.eq.s32.totalorder %s14, 1
      %p193 = por %p191, %p192
      %p194 = scmp.ne.s32.totalorder %s186, %s189
      %p195 = scmp.eq.s32.totalorder %s14, 0
      %p196 = por %p194, %p195
      %p197 = scmp.ne.s32.totalorder %s186, %s189
      %p198 = scmp.eq.s32.totalorder %s19, 1
      %p199 = por %p197, %p198
      %p200 = scmp.ne.s32.totalorder %s189, %s190
      %p201 = scmp.eq.s32.totalorder %s19, 0
      %p202 = por %p200, %p201
      %p203 = scmp.ne.s32.totalorder %s189, %s190
      %p204 = scmp.eq.s32.totalorder %s20, 1
      %p205 = por %p203, %p204
      %p207 = scmp.ne.s32.totalorder %s190, %s206
      %p208 = scmp.eq.s32.totalorder %s20, 0
      %p209 = por %p207, %p208
      %p210 = scmp.le.s32.totalorder 1, %s14
      %p211 = scmp.lt.s32.totalorder %s14, 3
      %p212 = pnand %p210, %p211
      %p213 = pneg %p212
      // Predicated region
      $region9: #{sqnxt_unit_forward.9} parent=5 // pred_check
        _
      $region10: #{sqnxt_unit_forward.9} parent=5 // pred_check_branch
        %215 = sbr.rel (%p212) target = $region12
      $region11: #{sqnxt_unit_forward.9} parent=5 // pred_region
        %s216 = ssub.s32 %s14, 1
        // Predicated region
        $region13: #{sqnxt_unit_forward.9} parent=11 // pred_check
          %p217 = pneg %p61
        $region14: #{sqnxt_unit_forward.9} parent=11 // pred_check_branch
          %219 = sbr.rel (%p217) target = $region16
        $region15: #{sqnxt_unit_forward.9} parent=11 // pred_region
          _
        $region16: #{sqnxt_unit_forward.9} parent=11 // pred_fallthru
          _
        // Predicated region
        $region17: #{sqnxt_unit_forward.9} parent=11 // pred_check
          %p220 = pneg %p82
        $region18: #{sqnxt_unit_forward.9} parent=11 // pred_check_branch
          %222 = sbr.rel (%p220) target = $region20
        $region19: #{sqnxt_unit_forward.9} parent=11 // pred_region
          _
        $region20: #{sqnxt_unit_forward.9} parent=11 // pred_fallthru
          _
        // Predicated region
        $region21: #{sqnxt_unit_forward.9} parent=11 // pred_check
          %p223 = pneg %p103
        $region22: #{sqnxt_unit_forward.9} parent=11 // pred_check_branch
          %225 = sbr.rel (%p223) target = $region24
        $region23: #{sqnxt_unit_forward.9} parent=11 // pred_region
          _
        $region24: #{sqnxt_unit_forward.9} parent=11 // pred_fallthru
          _
        // Predicated region
        $region25: #{sqnxt_unit_forward.9} parent=11 // pred_check
          %p226 = pneg %p124
        $region26: #{sqnxt_unit_forward.9} parent=11 // pred_check_branch
          %228 = sbr.rel (%p226) target = $region28
        $region27: #{sqnxt_unit_forward.9} parent=11 // pred_region
          _
        $region28: #{sqnxt_unit_forward.9} parent=11 // pred_fallthru
          _
      $region12: #{sqnxt_unit_forward.9} parent=5 // pred_fallthru
        _
      %p229 = scmp.lt.s32.totalorder %s14, 2
      // Predicated region
      $region29: #{sqnxt_unit_forward.9} parent=5 // pred_check
        %p230 = pneg %p229
      $region30: #{sqnxt_unit_forward.9} parent=5 // pred_check_branch
        %232 = sbr.rel (%p230) target = $region32
      $region31: #{sqnxt_unit_forward.9} parent=5 // pred_region
        // Predicated region
        $region33: #{sqnxt_unit_forward.9} parent=31 // pred_check
          %p233 = pneg %p34
        $region34: #{sqnxt_unit_forward.9} parent=31 // pred_check_branch
          %235 = sbr.rel (%p233) target = $region36
        $region35: #{sqnxt_unit_forward.9} parent=31 // pred_region
          %s236 = sand.u32 %s24, 1
          %s237 = sand.u32 %s24, 1
          %s238 = smul.addr %s237, 64
          %s239 = scalar_lea.vmem [#allocation2], %s238
          %s240 = smul.u32 2, %s14
          %s241 = smul.addr %s240, 8
          %s242 = scalar_lea.vmem %s0, %s241
          // Predicated region
          $region37: #{sqnxt_unit_forward.9} parent=35 // pred_check
            _
          $region38: #{sqnxt_unit_forward.9} parent=35 // pred_check_branch
            %244 = sbr.rel (0) target = $region40
          $region39: #{sqnxt_unit_forward.9} parent=35 // pred_region
            // Predicated region
            $region41: #{sqnxt_unit_forward.9} parent=39 // pred_check
              _
            $region42: #{sqnxt_unit_forward.9} parent=39 // pred_check_branch
              %246 = sbr.rel (0) target = $region44
            $region43: #{sqnxt_unit_forward.9} parent=39 // pred_region
              loop: start=0, step=1, limit=1
              $region45: #{sqnxt_unit_forward.9} parent=43 // loop_pre_header
                _
              $region46: #{sqnxt_unit_forward.9} parent=43 // loop_header
                %s248 = sphi 0, %s252
                %p249 = scmp.ge.s32.totalorder %s248, 1
                %s253 = sphi %s242, %s242
                %s254 = sphi %s239, %s239
              $region47: #{sqnxt_unit_forward.9} parent=43 // loop_header_branch
                %251 = sbr.rel (%p249) target = $region51
              $region48: #{sqnxt_unit_forward.9} parent=43 // loop_body
                %v255 = vld [vmem:[%s253] sm:$0xff]
                %256 = vst [vmem:[%s254] sm:$0xff] %v255
                %v257 = vld [vmem:[%s253 + $0x8] sm:$0xff]
                %258 = vst [vmem:[%s254 + $0x8] sm:$0xff] %v257
                %v259 = vld [vmem:[%s253 + $0x20] sm:$0xff]
                %260 = vst [vmem:[%s254 + $0x10] sm:$0xff] %v259
                %v261 = vld [vmem:[%s253 + $0x28] sm:$0xff]
                %262 = vst [vmem:[%s254 + $0x18] sm:$0xff] %v261
                %v263 = vld [vmem:[%s253 + $0x40] sm:$0xff]
                %264 = vst [vmem:[%s254 + $0x20] sm:$0xff] %v263
                %v265 = vld [vmem:[%s253 + $0x48] sm:$0xff]
                %266 = vst [vmem:[%s254 + $0x28] sm:$0xff] %v265
                %v267 = vld [vmem:[%s253 + $0x60] sm:$0xff]
                %268 = vst [vmem:[%s254 + $0x30] sm:$0xff] %v267
                %v269 = vld [vmem:[%s253 + $0x68] sm:$0xff]
                %270 = vst [vmem:[%s254 + $0x38] sm:$0xff] %v269
              $region49: #{sqnxt_unit_forward.9} parent=43 // loop_footer
                %s252 = sadd.s32 1, %s248
              $region50: #{sqnxt_unit_forward.9} parent=43 // loop_footer_branch
                %247 = sbr.rel target = $region46
              $region51: #{sqnxt_unit_forward.9} parent=43 // loop_exit
                _
            $region44: #{sqnxt_unit_forward.9} parent=39 // pred_fallthru
              _
            // Predicated region
            $region52: #{sqnxt_unit_forward.9} parent=39 // pred_check
              _
            $region53: #{sqnxt_unit_forward.9} parent=39 // pred_check_branch
              %272 = sbr.rel target = $region55
            $region54: #{sqnxt_unit_forward.9} parent=39 // pred_region
              _
            $region55: #{sqnxt_unit_forward.9} parent=39 // pred_fallthru
              _
          $region40: #{sqnxt_unit_forward.9} parent=35 // pred_fallthru
            _
          %273 = vnop
        $region36: #{sqnxt_unit_forward.9} parent=31 // pred_fallthru
          _
      $region32: #{sqnxt_unit_forward.9} parent=5 // pred_fallthru
        _
      %p274 = scmp.le.s32.totalorder 1, %s14
      %p275 = scmp.lt.s32.totalorder %s14, 3
      %p276 = pnand %p274, %p275
      %p277 = pneg %p276
      // Predicated region
      $region56: #{sqnxt_unit_forward.9} parent=5 // pred_check
        _
      $region57: #{sqnxt_unit_forward.9} parent=5 // pred_check_branch
        %279 = sbr.rel (%p276) target = $region59
      $region58: #{sqnxt_unit_forward.9} parent=5 // pred_region
        %s280 = ssub.s32 %s14, 1
        %s281 = sand.u32 %s27, 1
        %s282 = sand.u32 %s27, 1
        %s283 = smul.addr %s282, 64
        %s284 = scalar_lea.vmem [#allocation2], %s283
        // Predicated region
        $region60: #{sqnxt_unit_forward.9} parent=58 // pred_check
          %p285 = pneg %p40
        $region61: #{sqnxt_unit_forward.9} parent=58 // pred_check_branch
          %287 = sbr.rel (%p285) target = $region63
        $region62: #{sqnxt_unit_forward.9} parent=58 // pred_region
          _
        $region63: #{sqnxt_unit_forward.9} parent=58 // pred_fallthru
          _
        %s288 = sand.u32 %s27, 1
        %s289 = sand.u32 %s27, 1
        %s290 = smul.addr %s289, 64
        %s291 = scalar_lea.vmem [#allocation2], %s290
        %p292 = pneg %p40
        %p293 = pneg %p37
        %p294 = pneg %p61
        %p295 = pneg %p58
        %p296 = pneg %p82
        %p297 = pneg %p79
        %p298 = pneg %p103
        %p299 = pneg %p100
        %p300 = pneg %p124
        %p301 = pneg %p121
        %p302 = pneg %p150
        %p303 = pneg %p147
        %s304 = sand.u32 %s137, 1
        %s305 = sand.u32 %s137, 1
        %s306 = smul.addr %s305, 128
        %s307 = scalar_lea.vmem [#allocation3], %s306
        %p308 = pneg %p176
        %p309 = pneg %p173
        %p310 = scmp.lt.s32.totalorder %s19, 1
        %s311 = scalar_select %p310, %s19, 1
        %s312 = smul.addr %s311, 8
        %s313 = smul.addr %s312, 8
        %s314 = scalar_lea.vmem %s6, %s313
        %p315 = pneg %p202
        %p316 = pneg %p199
        %p317 = scmp.lt.s32.totalorder %s19, 1
        %s318 = scalar_select %p317, %s19, 1
        %s319 = smul.addr %s318, 8
        %s320 = smul.addr %s319, 8
        %s321 = scalar_lea.vmem %s7, %s320
        %s322 = smul.u32 2, %s19
        %s323 = smul.u32 2, %s19
        %p324 = scmp.lt.s32.totalorder %s19, 1
        %s325 = scalar_select %p324, %s19, 1
        %s326 = smul.addr %s325, 8
        %s327 = smul.addr %s326, 8
        %s328 = scalar_lea.vmem %s6, %s327
        %p329 = scmp.lt.s32.totalorder %s19, 1
        %s330 = scalar_select %p329, %s19, 1
        %s331 = smul.addr %s330, 8
        %s332 = smul.addr %s331, 8
        %s333 = scalar_lea.vmem %s7, %s332
        %v337 = vld [vmem:[%s284] sm:$0xff]
        %v338 = vld [vmem:[%s284 + $0x8] sm:$0xff]
        %v339 = vld [vmem:[%s284 + $0x10] sm:$0xff]
        %v340 = vld [vmem:[%s284 + $0x18] sm:$0xff]
        %v341 = vld [vmem:[%s284 + $0x20] sm:$0xff]
        %v342 = vld [vmem:[%s284 + $0x28] sm:$0xff]
        %v343 = vld [vmem:[%s284 + $0x30] sm:$0xff]
        %v344 = vld [vmem:[%s284 + $0x38] sm:$0xff]
        %v345 = vld [vmem:[%s2] sm:$0xff]
        %v346 = vld [vmem:[%s2 + $0x8] sm:$0xff]
        %v347 = vld [vmem:[%s2 + $0x10] sm:$0xff]
        %v348 = vld [vmem:[%s2 + $0x18] sm:$0xff]
        %350 = vset.pattern.permute.xlu0 0
        %351 = vperm.xlu0 %350, %v345
        %v352 = vpop.permute.xlu0 %351
        %355 = vset.pattern.permute.xlu0 0
        %356 = vperm.xlu0 %355, %v346
        %v357 = vpop.permute.xlu0 %356
        %360 = vset.pattern.permute.xlu0 0
        %361 = vperm.xlu0 %360, %v347
        %v362 = vpop.permute.xlu0 %361
        %365 = vset.pattern.permute.xlu0 0
        %366 = vperm.xlu0 %365, %v348
        %v367 = vpop.permute.xlu0 %366
        %v369 = vmul.f32 %v337, %v352
        %v370 = vmul.f32 %v338, %v352
        %v371 = vmul.f32 %v339, %v357
        %v372 = vmul.f32 %v340, %v357
        %v373 = vmul.f32 %v341, %v362
        %v374 = vmul.f32 %v342, %v362
        %v375 = vmul.f32 %v343, %v367
        %v376 = vmul.f32 %v344, %v367
        %v377 = vld [vmem:[%s3] sm:$0xff]
        %v378 = vld [vmem:[%s3 + $0x8] sm:$0xff]
        %v379 = vld [vmem:[%s3 + $0x10] sm:$0xff]
        %v380 = vld [vmem:[%s3 + $0x18] sm:$0xff]
        %382 = vset.pattern.permute.xlu0 0
        %383 = vperm.xlu0 %382, %v377
        %v384 = vpop.permute.xlu0 %383
        %387 = vset.pattern.permute.xlu0 0
        %388 = vperm.xlu0 %387, %v378
        %v389 = vpop.permute.xlu0 %388
        %392 = vset.pattern.permute.xlu0 0
        %393 = vperm.xlu0 %392, %v379
        %v394 = vpop.permute.xlu0 %393
        %397 = vset.pattern.permute.xlu0 0
        %398 = vperm.xlu0 %397, %v380
        %v399 = vpop.permute.xlu0 %398
        %v401 = vadd.f32 %v369, %v384
        %v402 = vadd.f32 %v370, %v384
        %v403 = vadd.f32 %v371, %v389
        %v404 = vadd.f32 %v372, %v389
        %v405 = vadd.f32 %v373, %v394
        %v406 = vadd.f32 %v374, %v394
        %v407 = vadd.f32 %v375, %v399
        %v408 = vadd.f32 %v376, %v399
        %v409 = vmax.f32 %v401, 0.0
        %v410 = vmax.f32 %v402, 0.0
        %v411 = vmax.f32 %v403, 0.0
        %v412 = vmax.f32 %v404, 0.0
        %v413 = vmax.f32 %v405, 0.0
        %v414 = vmax.f32 %v406, 0.0
        %v415 = vmax.f32 %v407, 0.0
        %v416 = vmax.f32 %v408, 0.0
        %v417 = vpack.c.bf16 %v411, %v409
        %v418 = vpack.c.bf16 %v412, %v410
        %v419 = vpack.c.bf16 %v415, %v413
        %v420 = vpack.c.bf16 %v416, %v414
        %s421 = scalar_lea.vmem %s1, 32
        %v422 = vld [vmem:[%s421] sm:$0xf]
        %v423 = vld [vmem:[%s421 + $0x4] sm:$0xf]
        %v424 = vld [vmem:[%s421 + $0x8] sm:$0xf]
        %v425 = vld [vmem:[%s421 + $0xc] sm:$0xf]
        %v426 = vld [vmem:[%s421 + $0x10] sm:$0xf]
        %v427 = vld [vmem:[%s421 + $0x14] sm:$0xf]
        %v428 = vld [vmem:[%s421 + $0x18] sm:$0xf]
        %v429 = vld [vmem:[%s421 + $0x1c] sm:$0xf]
        %v430 = vlaneseq
        %v431 = vand.u32 %v430, 127
        %v432 = vadd.s32 %v431, 128
        %vm433 = vcmp.lt.s32.totalorder %v431, 0
        %v434 = vsub.s32 0, %v431
        %v435 = vsel %vm433, %v434, %v431
        %v436 = vshrl.u32 %v435, 4
        %v437 = vand.u32 %v435, 15
        %v438 = vsub.s32 0, %v437
        %v439 = vsel %vm433, %v438, %v437
        %vm440 = vcmp.lt.s32.totalorder %v432, 0
        %v441 = vsub.s32 0, %v432
        %v442 = vsel %vm440, %v441, %v432
        %v443 = vshrl.u32 %v442, 4
        %v444 = vand.u32 %v442, 15
        %v445 = vsub.s32 0, %v444
        %v446 = vsel %vm440, %v445, %v444
        %vm447 = vcmp.ne.s32.totalorder %v439, 0
        %vm448 = vcmp.ne.s32.totalorder %v446, 0
        %vm449 = vcmp.lt.s32.totalorder %v439, 0
        %vm450 = vcmp.lt.s32.totalorder %v446, 0
        %vm451 = vmand %vm449, %vm447
        %vm452 = vmand %vm450, %vm448
        %v453 = vadd.s32 %v439, 16
        %v454 = vadd.s32 %v446, 16
        %v455 = vsel %vm451, %v453, %v439
        %v456 = vsel %vm452, %v454, %v446
        %461 = vrot.lane.b32.xlu0 %v417, 1
        %v462 = vpop.permute.xlu0 %461
        %463 = vrot.lane.b32.xlu0 %v418, 1
        %v464 = vpop.permute.xlu0 %463
        %465 = vrot.lane.b32.xlu0 %v419, 1
        %v466 = vpop.permute.xlu0 %465
        %467 = vrot.lane.b32.xlu0 %v420, 1
        %v468 = vpop.permute.xlu0 %467
        %vm469 = vcmask 7168
        %v470 = vsel %vm469, %v462, %v464
        %v471 = vsel %vm469, %v466, %v468
        %vm474 = vcmask 7168
        %v477 = vsel %vm474, 0, %v462
        %v480 = vsel %vm474, 0, %v466
        %vm482 = vcmp.ge.s32.totalorder %v455, 1
        %vm483 = vcmp.ge.s32.totalorder %v456, 1
        %v484 = vsel %vm482, 1, 0
        %v485 = vsel %vm483, 1, 0
        %vm486 = vcmp.eq.s32.totalorder %v484, 1
        %vm487 = vcmp.eq.s32.totalorder %v485, 1
        %vm488 = vmpackc.low %vm487, %vm486
        %v489 = vsel %vm488, 65537, 0
        %v490 = vlaneseq
        %v491 = vshrl.u32 %v490, 7
        %v492 = vsub.s32 0, %v491
        %v493 = vrot.slane %v489, %v492
        %v494 = vlaneseq
        %v495 = vshrl.u32 %v494, 7
        %v496 = vsub.s32 4, %v495
        %v497 = vrot.slane %v489, %v496
        %vm498 = vcmp.ne.s16.totalorder %v493, 0
        %vm499 = vcmp.ne.s16.totalorder %v497, 0
        %v500 = vsel %vm498, %v477, 0
        %v501 = vsel %vm499, %v470, 0
        %v502 = vsel %vm498, %v480, 0
        %v503 = vsel %vm499, %v471, 0
        %v504 = vld [vmem:[%s1] sm:$0xf]
        %v505 = vld [vmem:[%s1 + $0x4] sm:$0xf]
        %v506 = vld [vmem:[%s1 + $0x8] sm:$0xf]
        %v507 = vld [vmem:[%s1 + $0xc] sm:$0xf]
        %v508 = vld [vmem:[%s1 + $0x10] sm:$0xf]
        %v509 = vld [vmem:[%s1 + $0x14] sm:$0xf]
        %v510 = vld [vmem:[%s1 + $0x18] sm:$0xf]
        %v511 = vld [vmem:[%s1 + $0x1c] sm:$0xf]
        %v520 = vunpack.c.l.b16 %v504
        %v521 = vunpack.c.l.b16 %v505
        %v522 = vunpack.c.l.b16 %v506
        %v523 = vunpack.c.l.b16 %v507
        %v524 = vunpack.c.l.b16 %v508
        %v525 = vunpack.c.l.b16 %v509
        %v526 = vunpack.c.l.b16 %v510
        %v527 = vunpack.c.l.b16 %v511
        %v528 = vpack.c.b16 %v521, %v520
        %v529 = vpack.c.b16 %v523, %v522
        %v530 = vpack.c.b16 %v525, %v524
        %v531 = vpack.c.b16 %v527, %v526
        %vm532 = vcmask 261120
        %v534 = vsel %vm532, %v528, 0
        %v537 = vsel %vm532, %v529, 0
        %v540 = vsel %vm532, %v530, 0
        %v543 = vsel %vm532, %v531, 0
        %545 = vmatprep.subr.bf16.mxu0 %v501
        %546 = vmatpush1.bf16.msra.mxu0 %v500
        %547 = vmatprep.subr.bf16.mxu0 %v503
        %548 = vmatpush1.bf16.msra.mxu0 %v502
        %549 = vmatprep.subr.bf16.mxu0 0
        %550 = vmatpush1.bf16.msra.mxu0 0
        %551 = vmatprep.subr.bf16.mxu0 0
        %552 = vmatpush1.bf16.msra.mxu0 0
        %553 = vmatprep.subr.bf16.mxu0 0
        %554 = vmatpush1.bf16.msra.mxu0 0
        %555 = vmatprep.subr.bf16.mxu0 0
        %556 = vmatpush1.bf16.msra.mxu0 0
        %557 = vmatprep.subr.bf16.mxu0 0
        %558 = vmatpush1.bf16.msra.mxu0 0
        %559 = vmatprep.subr.bf16.mxu0 0
        %560 = vmatpush1.bf16.msra.mxu0 0
        %561 = vmatprep.subr.bf16.mxu0 0
        %562 = vmatpush1.bf16.msra.mxu0 0
        %563 = vmatprep.subr.bf16.mxu0 0
        %564 = vmatpush1.bf16.msra.mxu0 0
        %565 = vmatprep.subr.bf16.mxu0 0
        %566 = vmatpush1.bf16.msra.mxu0 0
        %567 = vmatprep.subr.bf16.mxu0 0
        %568 = vmatpush1.bf16.msra.mxu0 0
        %569 = vmatprep.subr.bf16.mxu0 0
        %570 = vmatpush1.bf16.msra.mxu0 0
        %571 = vmatprep.subr.bf16.mxu0 0
        %572 = vmatpush1.bf16.msra.mxu0 0
        %573 = vmatprep.subr.bf16.mxu0 0
        %574 = vmatpush1.bf16.msra.mxu0 0
        %575 = vmatprep.subr.bf16.mxu0 0
        %576 = vmatpush1.bf16.msra.mxu0 0
        %577 = vmatprep.mubr.bf16.mxu0 0
        %578 = vmatmul.mubr.bf16.gmra.mrb[0].mxu0 %v534
        %v579 = vpop.f32.mrb[0].mxu0
        %v580 = vadd.f32 0.0, %v579
        %v581 = vpop.f32.mrb[0].mxu0
        %v582 = vadd.f32 0.0, %v581
        %v583 = vpop.f32.mrb[0].mxu0
        %v584 = vadd.f32 0.0, %v583
        %v585 = vpop.f32.mrb[0].mxu0
        %v586 = vadd.f32 0.0, %v585
        %587 = vmatprep.mubr.bf16.mxu0 0
        %588 = vmatmul.mubr.bf16.gmra.mrb[0].mxu0 %v537
        %v589 = vpop.f32.mrb[0].mxu0
        %v590 = vadd.f32 0.0, %v589
        %v591 = vpop.f32.mrb[0].mxu0
        %v592 = vadd.f32 0.0, %v591
        %v593 = vpop.f32.mrb[0].mxu0
        %v594 = vadd.f32 0.0, %v593
        %v595 = vpop.f32.mrb[0].mxu0
        %v596 = vadd.f32 0.0, %v595
        %597 = vmatprep.mubr.bf16.mxu0 0
        %598 = vmatmul.mubr.bf16.gmra.mrb[0].mxu0 %v540
        %v599 = vpop.f32.mrb[0].mxu0
        %v600 = vadd.f32 0.0, %v599
        %v601 = vpop.f32.mrb[0].mxu0
        %v602 = vadd.f32 0.0, %v601
        %v603 = vpop.f32.mrb[0].mxu0
        %v604 = vadd.f32 0.0, %v603
        %v605 = vpop.f32.mrb[0].mxu0
        %v606 = vadd.f32 0.0, %v605
        %607 = vmatprep.mubr.bf16.mxu0 0
        %608 = vmatmul.mubr.bf16.gmra.mrb[0].mxu0 %v543
        %v609 = vpop.f32.mrb[0].mxu0
        %v610 = vadd.f32 0.0, %v609
        %v611 = vpop.f32.mrb[0].mxu0
        %v612 = vadd.f32 0.0, %v611
        %v613 = vpop.f32.mrb[0].mxu0
        %v614 = vadd.f32 0.0, %v613
        %v615 = vpop.f32.mrb[0].mxu0
        %v616 = vadd.f32 0.0, %v615
        %617 = vdwg.mxu0
        %v626 = vunpack.c.l.b16 %v422
        %v627 = vunpack.c.l.b16 %v423
        %v628 = vunpack.c.l.b16 %v424
        %v629 = vunpack.c.l.b16 %v425
        %v630 = vunpack.c.l.b16 %v426
        %v631 = vunpack.c.l.b16 %v427
        %v632 = vunpack.c.l.b16 %v428
        %v633 = vunpack.c.l.b16 %v429
        %v634 = vpack.c.b16 %v627, %v626
        %v635 = vpack.c.b16 %v629, %v628
        %v636 = vpack.c.b16 %v631, %v630
        %v637 = vpack.c.b16 %v633, %v632
        %v639 = vsel %vm532, %v634, 0
        %v642 = vsel %vm532, %v635, 0
        %v645 = vsel %vm532, %v636, 0
        %v648 = vsel %vm532, %v637, 0
        %650 = vmatprep.subr.bf16.mxu0 %v418
        %651 = vmatpush1.bf16.msra.mxu0 %v417
        %652 = vmatprep.subr.bf16.mxu0 %v420
        %653 = vmatpush1.bf16.msra.mxu0 %v419
        %654 = vmatprep.subr.bf16.mxu0 0
        %655 = vmatpush1.bf16.msra.mxu0 0
        %656 = vmatprep.subr.bf16.mxu0 0
        %657 = vmatpush1.bf16.msra.mxu0 0
        %658 = vmatprep.subr.bf16.mxu0 0
        %659 = vmatpush1.bf16.msra.mxu0 0
        %660 = vmatprep.subr.bf16.mxu0 0
        %661 = vmatpush1.bf16.msra.mxu0 0
        %662 = vmatprep.subr.bf16.mxu0 0
        %663 = vmatpush1.bf16.msra.mxu0 0
        %664 = vmatprep.subr.bf16.mxu0 0
        %665 = vmatpush1.bf16.msra.mxu0 0
        %666 = vmatprep.subr.bf16.mxu0 0
        %667 = vmatpush1.bf16.msra.mxu0 0
        %668 = vmatprep.subr.bf16.mxu0 0
        %669 = vmatpush1.bf16.msra.mxu0 0
        %670 = vmatprep.subr.bf16.mxu0 0
        %671 = vmatpush1.bf16.msra.mxu0 0
        %672 = vmatprep.subr.bf16.mxu0 0
        %673 = vmatpush1.bf16.msra.mxu0 0
        %674 = vmatprep.subr.bf16.mxu0 0
        %675 = vmatpush1.bf16.msra.mxu0 0
        %676 = vmatprep.subr.bf16.mxu0 0
        %677 = vmatpush1.bf16.msra.mxu0 0
        %678 = vmatprep.subr.bf16.mxu0 0
        %679 = vmatpush1.bf16.msra.mxu0 0
        %680 = vmatprep.subr.bf16.mxu0 0
        %681 = vmatpush1.bf16.msra.mxu0 0
        %682 = vmatprep.mubr.bf16.mxu0 0
        %683 = vmatmul.mubr.bf16.gmra.mrb[0].mxu0 %v639
        %v684 = vpop.f32.mrb[0].mxu0
        %v685 = vadd.f32 %v580, %v684
        %v686 = vpop.f32.mrb[0].mxu0
        %v687 = vadd.f32 %v582, %v686
        %v688 = vpop.f32.mrb[0].mxu0
        %v689 = vadd.f32 %v584, %v688
        %v690 = vpop.f32.mrb[0].mxu0
        %v691 = vadd.f32 %v586, %v690
        %692 = vmatprep.mubr.bf16.mxu0 0
        %693 = vmatmul.mubr.bf16.gmra.mrb[0].mxu0 %v642
        %v694 = vpop.f32.mrb[0].mxu0
        %v695 = vadd.f32 %v590, %v694
        %v696 = vpop.f32.mrb[0].mxu0
        %v697 = vadd.f32 %v592, %v696
        %v698 = vpop.f32.mrb[0].mxu0
        %v699 = vadd.f32 %v594, %v698
        %v700 = vpop.f32.mrb[0].mxu0
        %v701 = vadd.f32 %v596, %v700
        %702 = vmatprep.mubr.bf16.mxu0 0
        %703 = vmatmul.mubr.bf16.gmra.mrb[0].mxu0 %v645
        %v704 = vpop.f32.mrb[0].mxu0
        %v705 = vadd.f32 %v600, %v704
        %v706 = vpop.f32.mrb[0].mxu0
        %v707 = vadd.f32 %v602, %v706
        %v708 = vpop.f32.mrb[0].mxu0
        %v709 = vadd.f32 %v604, %v708
        %v710 = vpop.f32.mrb[0].mxu0
        %v711 = vadd.f32 %v606, %v710
        %712 = vmatprep.mubr.bf16.mxu0 0
        %713 = vmatmul.mubr.bf16.gmra.mrb[0].mxu0 %v648
        %v714 = vpop.f32.mrb[0].mxu0
        %v715 = vadd.f32 %v610, %v714
        %v716 = vpop.f32.mrb[0].mxu0
        %v717 = vadd.f32 %v612, %v716
        %v718 = vpop.f32.mrb[0].mxu0
        %v719 = vadd.f32 %v614, %v718
        %v720 = vpop.f32.mrb[0].mxu0
        %v721 = vadd.f32 %v616, %v720
        %722 = vdwg.mxu0
        %723 = vrot.lane.b32.xlu0 %v417, 127
        %v724 = vpop.permute.xlu0 %723
        %725 = vrot.lane.b32.xlu0 %v418, 127
        %v726 = vpop.permute.xlu0 %725
        %727 = vrot.lane.b32.xlu0 %v419, 127
        %v728 = vpop.permute.xlu0 %727
        %729 = vrot.lane.b32.xlu0 %v420, 127
        %v730 = vpop.permute.xlu0 %729
        %vm731 = vcmask 1039360
        %v732 = vsel %vm731, %v724, %v726
        %v733 = vsel %vm731, %v728, %v730
        %vm736 = vcmask 1039360
        %v738 = vsel %vm736, %v726, 0
        %v741 = vsel %vm736, %v730, 0
        %vm743 = vcmp.lt.s32.totalorder %v455, 15
        %vm744 = vcmp.lt.s32.totalorder %v456, 15
        %v745 = vsel %vm743, 1, 0
        %v746 = vsel %vm744, 1, 0
        %vm747 = vcmp.eq.s32.totalorder %v745, 1
        %vm748 = vcmp.eq.s32.totalorder %v746, 1
        %vm749 = vmpackc.low %vm748, %vm747
        %v750 = vsel %vm749, 65537, 0
        %v751 = vlaneseq
        %v752 = vshrl.u32 %v751, 7
        %v753 = vsub.s32 0, %v752
        %v754 = vrot.slane %v750, %v753
        %v755 = vlaneseq
        %v756 = vshrl.u32 %v755, 7
        %v757 = vsub.s32 4, %v756
        %v758 = vrot.slane %v750, %v757
        %vm759 = vcmp.ne.s16.totalorder %v754, 0
        %vm760 = vcmp.ne.s16.totalorder %v758, 0
        %v761 = vsel %vm759, %v732, 0
        %v762 = vsel %vm760, %v738, 0
        %v763 = vsel %vm759, %v733, 0
        %v764 = vsel %vm760, %v741, 0
        %s765 = scalar_lea.vmem %s1, 64
        %v766 = vld [vmem:[%s765] sm:$0xf]
        %v767 = vld [vmem:[%s765 + $0x4] sm:$0xf]
        %v768 = vld [vmem:[%s765 + $0x8] sm:$0xf]
        %v769 = vld [vmem:[%s765 + $0xc] sm:$0xf]
        %v770 = vld [vmem:[%s765 + $0x10] sm:$0xf]
        %v771 = vld [vmem:[%s765 + $0x14] sm:$0xf]
        %v772 = vld [vmem:[%s765 + $0x18] sm:$0xf]
        %v773 = vld [vmem:[%s765 + $0x1c] sm:$0xf]
        %v782 = vunpack.c.l.b16 %v766
        %v783 = vunpack.c.l.b16 %v767
        %v784 = vunpack.c.l.b16 %v768
        %v785 = vunpack.c.l.b16 %v769
        %v786 = vunpack.c.l.b16 %v770
        %v787 = vunpack.c.l.b16 %v771
        %v788 = vunpack.c.l.b16 %v772
        %v789 = vunpack.c.l.b16 %v773
        %v790 = vpack.c.b16 %v783, %v782
        %v791 = vpack.c.b16 %v785, %v784
        %v792 = vpack.c.b16 %v787, %v786
        %v793 = vpack.c.b16 %v789, %v788
        %v795 = vsel %vm532, %v790, 0
        %v798 = vsel %vm532, %v791, 0
        %v801 = vsel %vm532, %v792, 0
        %v804 = vsel %vm532, %v793, 0
        %806 = vmatprep.subr.bf16.mxu0 %v762
        %807 = vmatpush1.bf16.msra.mxu0 %v761
        %808 = vmatprep.subr.bf16.mxu0 %v764
        %809 = vmatpush1.bf16.msra.mxu0 %v763
        %810 = vmatprep.subr.bf16.mxu0 0
        %811 = vmatpush1.bf16.msra.mxu0 0
        %812 = vmatprep.subr.bf16.mxu0 0
        %813 = vmatpush1.bf16.msra.mxu0 0
        %814 = vmatprep.subr.bf16.mxu0 0
        %815 = vmatpush1.bf16.msra.mxu0 0
        %816 = vmatprep.subr.bf16.mxu0 0
        %817 = vmatpush1.bf16.msra.mxu0 0
        %818 = vmatprep.subr.bf16.mxu0 0
        %819 = vmatpush1.bf16.msra.mxu0 0
        %820 = vmatprep.subr.bf16.mxu0 0
        %821 = vmatpush1.bf16.msra.mxu0 0
        %822 = vmatprep.subr.bf16.mxu0 0
        %823 = vmatpush1.bf16.msra.mxu0 0
        %824 = vmatprep.subr.bf16.mxu0 0
        %825 = vmatpush1.bf16.msra.mxu0 0
        %826 = vmatprep.subr.bf16.mxu0 0
        %827 = vmatpush1.bf16.msra.mxu0 0
        %828 = vmatprep.subr.bf16.mxu0 0
        %829 = vmatpush1.bf16.msra.mxu0 0
        %830 = vmatprep.subr.bf16.mxu0 0
        %831 = vmatpush1.bf16.msra.mxu0 0
        %832 = vmatprep.subr.bf16.mxu0 0
        %833 = vmatpush1.bf16.msra.mxu0 0
        %834 = vmatprep.subr.bf16.mxu0 0
        %835 = vmatpush1.bf16.msra.mxu0 0
        %836 = vmatprep.subr.bf16.mxu0 0
        %837 = vmatpush1.bf16.msra.mxu0 0
        %838 = vmatprep.mubr.bf16.mxu0 0
        %839 = vmatmul.mubr.bf16.gmra.mrb[0].mxu0 %v795
        %v840 = vpop.f32.mrb[0].mxu0
        %v841 = vadd.f32 0.0, %v840
        %v842 = vpop.f32.mrb[0].mxu0
        %v843 = vadd.f32 0.0, %v842
        %v844 = vpop.f32.mrb[0].mxu0
        %v845 = vadd.f32 0.0, %v844
        %v846 = vpop.f32.mrb[0].mxu0
        %v847 = vadd.f32 0.0, %v846
        %848 = vmatprep.mubr.bf16.mxu0 0
        %849 = vmatmul.mubr.bf16.gmra.mrb[0].mxu0 %v798
        %v850 = vpop.f32.mrb[0].mxu0
        %v851 = vadd.f32 0.0, %v850
        %v852 = vpop.f32.mrb[0].mxu0
        %v853 = vadd.f32 0.0, %v852
        %v854 = vpop.f32.mrb[0].mxu0
        %v855 = vadd.f32 0.0, %v854
        %v856 = vpop.f32.mrb[0].mxu0
        %v857 = vadd.f32 0.0, %v856
        %858 = vmatprep.mubr.bf16.mxu0 0
        %859 = vmatmul.mubr.bf16.gmra.mrb[0].mxu0 %v801
        %v860 = vpop.f32.mrb[0].mxu0
        %v861 = vadd.f32 0.0, %v860
        %v862 = vpop.f32.mrb[0].mxu0
        %v863 = vadd.f32 0.0, %v862
        %v864 = vpop.f32.mrb[0].mxu0
        %v865 = vadd.f32 0.0, %v864
        %v866 = vpop.f32.mrb[0].mxu0
        %v867 = vadd.f32 0.0, %v866
        %868 = vmatprep.mubr.bf16.mxu0 0
        %869 = vmatmul.mubr.bf16.gmra.mrb[0].mxu0 %v804
        %v870 = vpop.f32.mrb[0].mxu0
        %v871 = vadd.f32 0.0, %v870
        %v872 = vpop.f32.mrb[0].mxu0
        %v873 = vadd.f32 0.0, %v872
        %v874 = vpop.f32.mrb[0].mxu0
        %v875 = vadd.f32 0.0, %v874
        %v876 = vpop.f32.mrb[0].mxu0
        %v877 = vadd.f32 0.0, %v876
        %878 = vdwg.mxu0
        %v879 = vadd.f32 %v685, %v841
        %v880 = vadd.f32 %v687, %v843
        %v881 = vadd.f32 %v689, %v845
        %v882 = vadd.f32 %v691, %v847
        %v883 = vadd.f32 %v695, %v851
        %v884 = vadd.f32 %v697, %v853
        %v885 = vadd.f32 %v699, %v855
        %v886 = vadd.f32 %v701, %v857
        %v887 = vadd.f32 %v705, %v861
        %v888 = vadd.f32 %v707, %v863
        %v889 = vadd.f32 %v709, %v865
        %v890 = vadd.f32 %v711, %v867
        %v891 = vadd.f32 %v715, %v871
        %v892 = vadd.f32 %v717, %v873
        %v893 = vadd.f32 %v719, %v875
        %v894 = vadd.f32 %v721, %v877
        %v895 = vld [vmem:[%s4] sm:$0xff]
        %v896 = vld [vmem:[%s4 + $0x8] sm:$0xff]
        %v897 = vld [vmem:[%s4 + $0x10] sm:$0xff]
        %v898 = vld [vmem:[%s4 + $0x18] sm:$0xff]
        %v899 = vld [vmem:[%s4 + $0x20] sm:$0xff]
        %v900 = vld [vmem:[%s4 + $0x28] sm:$0xff]
        %v901 = vld [vmem:[%s4 + $0x30] sm:$0xff]
        %v902 = vld [vmem:[%s4 + $0x38] sm:$0xff]
        %904 = vset.pattern.permute.xlu0 0
        %905 = vperm.xlu0 %904, %v895
        %v906 = vpop.permute.xlu0 %905
        %909 = vset.pattern.permute.xlu0 0
        %910 = vperm.xlu0 %909, %v896
        %v911 = vpop.permute.xlu0 %910
        %914 = vset.pattern.permute.xlu0 0
        %915 = vperm.xlu0 %914, %v897
        %v916 = vpop.permute.xlu0 %915
        %919 = vset.pattern.permute.xlu0 0
        %920 = vperm.xlu0 %919, %v898
        %v921 = vpop.permute.xlu0 %920
        %924 = vset.pattern.permute.xlu0 0
        %925 = vperm.xlu0 %924, %v899
        %v926 = vpop.permute.xlu0 %925
        %929 = vset.pattern.permute.xlu0 0
        %930 = vperm.xlu0 %929, %v900
        %v931 = vpop.permute.xlu0 %930
        %934 = vset.pattern.permute.xlu0 0
        %935 = vperm.xlu0 %934, %v901
        %v936 = vpop.permute.xlu0 %935
        %939 = vset.pattern.permute.xlu0 0
        %940 = vperm.xlu0 %939, %v902
        %v941 = vpop.permute.xlu0 %940
        %v943 = vadd.f32 %v879, %v906
        %v944 = vadd.f32 %v880, %v906
        %v945 = vadd.f32 %v881, %v911
        %v946 = vadd.f32 %v882, %v911
        %v947 = vadd.f32 %v883, %v916
        %v948 = vadd.f32 %v884, %v916
        %v949 = vadd.f32 %v885, %v921
        %v950 = vadd.f32 %v886, %v921
        %v951 = vadd.f32 %v887, %v926
        %v952 = vadd.f32 %v888, %v926
        %v953 = vadd.f32 %v889, %v931
        %v954 = vadd.f32 %v890, %v931
        %v955 = vadd.f32 %v891, %v936
        %v956 = vadd.f32 %v892, %v936
        %v957 = vadd.f32 %v893, %v941
        %v958 = vadd.f32 %v894, %v941
        %959 = vst [vmem:[%s307] sm:$0xff] %v943
        %960 = vst [vmem:[%s307 + $0x8] sm:$0xff] %v944
        %961 = vst [vmem:[%s307 + $0x10] sm:$0xff] %v945
        %962 = vst [vmem:[%s307 + $0x18] sm:$0xff] %v946
        %963 = vst [vmem:[%s307 + $0x20] sm:$0xff] %v947
        %964 = vst [vmem:[%s307 + $0x28] sm:$0xff] %v948
        %965 = vst [vmem:[%s307 + $0x30] sm:$0xff] %v949
        %966 = vst [vmem:[%s307 + $0x38] sm:$0xff] %v950
        %967 = vst [vmem:[%s307 + $0x40] sm:$0xff] %v951
        %968 = vst [vmem:[%s307 + $0x48] sm:$0xff] %v952
        %969 = vst [vmem:[%s307 + $0x50] sm:$0xff] %v953
        %970 = vst [vmem:[%s307 + $0x58] sm:$0xff] %v954
        %971 = vst [vmem:[%s307 + $0x60] sm:$0xff] %v955
        %972 = vst [vmem:[%s307 + $0x68] sm:$0xff] %v956
        %973 = vst [vmem:[%s307 + $0x70] sm:$0xff] %v957
        %974 = vst [vmem:[%s307 + $0x78] sm:$0xff] %v958
        %v975 = vadd.f32 %v943, %v944
        %976 = vadd.xlane.f32.xlu0 %v975
        %v977 = vpop.xlane.xlu0 %976
        %v978 = vadd.f32 %v945, %v946
        %979 = vadd.xlane.f32.xlu0 %v978
        %v980 = vpop.xlane.xlu0 %979
        %v981 = vadd.f32 %v947, %v948
        %982 = vadd.xlane.f32.xlu0 %v981
        %v983 = vpop.xlane.xlu0 %982
        %v984 = vadd.f32 %v949, %v950
        %985 = vadd.xlane.f32.xlu0 %v984
        %v986 = vpop.xlane.xlu0 %985
        %v987 = vadd.f32 %v951, %v952
        %988 = vadd.xlane.f32.xlu0 %v987
        %v989 = vpop.xlane.xlu0 %988
        %v990 = vadd.f32 %v953, %v954
        %991 = vadd.xlane.f32.xlu0 %v990
        %v992 = vpop.xlane.xlu0 %991
        %v993 = vadd.f32 %v955, %v956
        %994 = vadd.xlane.f32.xlu0 %v993
        %v995 = vpop.xlane.xlu0 %994
        %v996 = vadd.f32 %v957, %v958
        %997 = vadd.xlane.f32.xlu0 %v996
        %v998 = vpop.xlane.xlu0 %997
        %v999 = vmul.f32 %v943, %v943
        %v1000 = vmul.f32 %v944, %v944
        %v1001 = vmul.f32 %v945, %v945
        %v1002 = vmul.f32 %v946, %v946
        %v1003 = vmul.f32 %v947, %v947
        %v1004 = vmul.f32 %v948, %v948
        %v1005 = vmul.f32 %v949, %v949
        %v1006 = vmul.f32 %v950, %v950
        %v1007 = vmul.f32 %v951, %v951
        %v1008 = vmul.f32 %v952, %v952
        %v1009 = vmul.f32 %v953, %v953
        %v1010 = vmul.f32 %v954, %v954
        %v1011 = vmul.f32 %v955, %v955
        %v1012 = vmul.f32 %v956, %v956
        %v1013 = vmul.f32 %v957, %v957
        %v1014 = vmul.f32 %v958, %v958
        %v1015 = vadd.f32 %v999, %v1000
        %1016 = vadd.xlane.f32.xlu0 %v1015
        %v1017 = vpop.xlane.xlu0 %1016
        %v1018 = vadd.f32 %v1001, %v1002
        %1019 = vadd.xlane.f32.xlu0 %v1018
        %v1020 = vpop.xlane.xlu0 %1019
        %v1021 = vadd.f32 %v1003, %v1004
        %1022 = vadd.xlane.f32.xlu0 %v1021
        %v1023 = vpop.xlane.xlu0 %1022
        %v1024 = vadd.f32 %v1005, %v1006
        %1025 = vadd.xlane.f32.xlu0 %v1024
        %v1026 = vpop.xlane.xlu0 %1025
        %v1027 = vadd.f32 %v1007, %v1008
        %1028 = vadd.xlane.f32.xlu0 %v1027
        %v1029 = vpop.xlane.xlu0 %1028
        %v1030 = vadd.f32 %v1009, %v1010
        %1031 = vadd.xlane.f32.xlu0 %v1030
        %v1032 = vpop.xlane.xlu0 %1031
        %v1033 = vadd.f32 %v1011, %v1012
        %1034 = vadd.xlane.f32.xlu0 %v1033
        %v1035 = vpop.xlane.xlu0 %1034
        %v1036 = vadd.f32 %v1013, %v1014
        %1037 = vadd.xlane.f32.xlu0 %v1036
        %v1038 = vpop.xlane.xlu0 %1037
        %1039 = vst [vmem:[%s328] sm:$0xff] %v977
        %1040 = vst [vmem:[%s328 + $0x8] sm:$0xff] %v980
        %1041 = vst [vmem:[%s328 + $0x10] sm:$0xff] %v983
        %1042 = vst [vmem:[%s328 + $0x18] sm:$0xff] %v986
        %1043 = vst [vmem:[%s328 + $0x20] sm:$0xff] %v989
        %1044 = vst [vmem:[%s328 + $0x28] sm:$0xff] %v992
        %1045 = vst [vmem:[%s328 + $0x30] sm:$0xff] %v995
        %1046 = vst [vmem:[%s328 + $0x38] sm:$0xff] %v998
        %1047 = vst [vmem:[%s333] sm:$0xff] %v1017
        %1048 = vst [vmem:[%s333 + $0x8] sm:$0xff] %v1020
        %1049 = vst [vmem:[%s333 + $0x10] sm:$0xff] %v1023
        %1050 = vst [vmem:[%s333 + $0x18] sm:$0xff] %v1026
        %1051 = vst [vmem:[%s333 + $0x20] sm:$0xff] %v1029
        %1052 = vst [vmem:[%s333 + $0x28] sm:$0xff] %v1032
        %1053 = vst [vmem:[%s333 + $0x30] sm:$0xff] %v1035
        %1054 = vst [vmem:[%s333 + $0x38] sm:$0xff] %v1038
        %s1055 = sand.u32 %s137, 1
        %s1056 = sand.u32 %s137, 1
        %s1057 = smul.addr %s1056, 128
        %s1058 = scalar_lea.vmem [#allocation3], %s1057
        %p1059 = scmp.lt.s32.totalorder %s19, 1
        %s1060 = scalar_select %p1059, %s19, 1
        %s1061 = smul.addr %s1060, 8
        %s1062 = smul.addr %s1061, 8
        %s1063 = scalar_lea.vmem %s6, %s1062
        %p1064 = scmp.lt.s32.totalorder %s19, 1
        %s1065 = scalar_select %p1064, %s19, 1
        %s1066 = smul.addr %s1065, 8
        %s1067 = smul.addr %s1066, 8
        %s1068 = scalar_lea.vmem %s7, %s1067
        // Predicated region
        $region64: #{sqnxt_unit_forward.9} parent=58 // pred_check
          %p1069 = pneg %p147
        $region65: #{sqnxt_unit_forward.9} parent=58 // pred_check_branch
          %1071 = sbr.rel (%p1069) target = $region67
        $region66: #{sqnxt_unit_forward.9} parent=58 // pred_region
          %s1072 = smul.u32 2, %s19
          %s1073 = smul.addr %s1072, 8
          %s1074 = scalar_lea.vmem %s5, %s1073
          // Predicated region
          $region68: #{sqnxt_unit_forward.9} parent=66 // pred_check
            _
          $region69: #{sqnxt_unit_forward.9} parent=66 // pred_check_branch
            %1076 = sbr.rel (0) target = $region71
          $region70: #{sqnxt_unit_forward.9} parent=66 // pred_region
            // Predicated region
            $region72: #{sqnxt_unit_forward.9} parent=70 // pred_check
              _
            $region73: #{sqnxt_unit_forward.9} parent=70 // pred_check_branch
              %1078 = sbr.rel (0) target = $region75
            $region74: #{sqnxt_unit_forward.9} parent=70 // pred_region
              loop: start=0, step=1, limit=1
              $region76: #{sqnxt_unit_forward.9} parent=74 // loop_pre_header
                _
              $region77: #{sqnxt_unit_forward.9} parent=74 // loop_header
                %s1080 = sphi 0, %s1084
                %p1081 = scmp.ge.s32.totalorder %s1080, 1
                %s1085 = sphi %s1058, %s1058
                %s1086 = sphi %s1074, %s1074
              $region78: #{sqnxt_unit_forward.9} parent=74 // loop_header_branch
                %1083 = sbr.rel (%p1081) target = $region82
              $region79: #{sqnxt_unit_forward.9} parent=74 // loop_body
                %v1087 = vld [vmem:[%s1085] sm:$0xff]
                %1088 = vst [vmem:[%s1086] sm:$0xff] %v1087
                %v1089 = vld [vmem:[%s1085 + $0x8] sm:$0xff]
                %1090 = vst [vmem:[%s1086 + $0x8] sm:$0xff] %v1089
                %v1091 = vld [vmem:[%s1085 + $0x10] sm:$0xff]
                %1092 = vst [vmem:[%s1086 + $0x20] sm:$0xff] %v1091
                %v1093 = vld [vmem:[%s1085 + $0x18] sm:$0xff]
                %1094 = vst [vmem:[%s1086 + $0x28] sm:$0xff] %v1093
                %v1095 = vld [vmem:[%s1085 + $0x20] sm:$0xff]
                %1096 = vst [vmem:[%s1086 + $0x40] sm:$0xff] %v1095
                %v1097 = vld [vmem:[%s1085 + $0x28] sm:$0xff]
                %1098 = vst [vmem:[%s1086 + $0x48] sm:$0xff] %v1097
                %v1099 = vld [vmem:[%s1085 + $0x30] sm:$0xff]
                %1100 = vst [vmem:[%s1086 + $0x60] sm:$0xff] %v1099
                %v1101 = vld [vmem:[%s1085 + $0x38] sm:$0xff]
                %1102 = vst [vmem:[%s1086 + $0x68] sm:$0xff] %v1101
                %v1103 = vld [vmem:[%s1085 + $0x40] sm:$0xff]
                %1104 = vst [vmem:[%s1086 + $0x80] sm:$0xff] %v1103
                %v1105 = vld [vmem:[%s1085 + $0x48] sm:$0xff]
                %1106 = vst [vmem:[%s1086 + $0x88] sm:$0xff] %v1105
                %v1107 = vld [vmem:[%s1085 + $0x50] sm:$0xff]
                %1108 = vst [vmem:[%s1086 + $0xa0] sm:$0xff] %v1107
                %v1109 = vld [vmem:[%s1085 + $0x58] sm:$0xff]
                %1110 = vst [vmem:[%s1086 + $0xa8] sm:$0xff] %v1109
                %v1111 = vld [vmem:[%s1085 + $0x60] sm:$0xff]
                %1112 = vst [vmem:[%s1086 + $0xc0] sm:$0xff] %v1111
                %v1113 = vld [vmem:[%s1085 + $0x68] sm:$0xff]
                %1114 = vst [vmem:[%s1086 + $0xc8] sm:$0xff] %v1113
                %v1115 = vld [vmem:[%s1085 + $0x70] sm:$0xff]
                %1116 = vst [vmem:[%s1086 + $0xe0] sm:$0xff] %v1115
                %v1117 = vld [vmem:[%s1085 + $0x78] sm:$0xff]
                %1118 = vst [vmem:[%s1086 + $0xe8] sm:$0xff] %v1117
              $region80: #{sqnxt_unit_forward.9} parent=74 // loop_footer
                %s1084 = sadd.s32 1, %s1080
              $region81: #{sqnxt_unit_forward.9} parent=74 // loop_footer_branch
                %1079 = sbr.rel target = $region77
              $region82: #{sqnxt_unit_forward.9} parent=74 // loop_exit
                _
            $region75: #{sqnxt_unit_forward.9} parent=70 // pred_fallthru
              _
            // Predicated region
            $region83: #{sqnxt_unit_forward.9} parent=70 // pred_check
              _
            $region84: #{sqnxt_unit_forward.9} parent=70 // pred_check_branch
              %1120 = sbr.rel target = $region86
            $region85: #{sqnxt_unit_forward.9} parent=70 // pred_region
              _
            $region86: #{sqnxt_unit_forward.9} parent=70 // pred_fallthru
              _
          $region71: #{sqnxt_unit_forward.9} parent=66 // pred_fallthru
            _
          %1121 = vnop
        $region67: #{sqnxt_unit_forward.9} parent=58 // pred_fallthru
          _
        // Predicated region
        $region87: #{sqnxt_unit_forward.9} parent=58 // pred_check
          %p1122 = pneg %p173
        $region88: #{sqnxt_unit_forward.9} parent=58 // pred_check_branch
          %1124 = sbr.rel (%p1122) target = $region90
        $region89: #{sqnxt_unit_forward.9} parent=58 // pred_region
          _
        $region90: #{sqnxt_unit_forward.9} parent=58 // pred_fallthru
          _
        // Predicated region
        $region91: #{sqnxt_unit_forward.9} parent=58 // pred_check
          %p1125 = pneg %p199
        $region92: #{sqnxt_unit_forward.9} parent=58 // pred_check_branch
          %1127 = sbr.rel (%p1125) target = $region94
        $region93: #{sqnxt_unit_forward.9} parent=58 // pred_region
          _
        $region94: #{sqnxt_unit_forward.9} parent=58 // pred_fallthru
          _
      $region59: #{sqnxt_unit_forward.9} parent=5 // pred_fallthru
        _
      %p1128 = scmp.le.s32.totalorder 2, %s14
      // Predicated region
      $region95: #{sqnxt_unit_forward.9} parent=5 // pred_check
        %p1129 = pneg %p1128
      $region96: #{sqnxt_unit_forward.9} parent=5 // pred_check_branch
        %1131 = sbr.rel (%p1129) target = $region98
      $region97: #{sqnxt_unit_forward.9} parent=5 // pred_region
        %s1132 = ssub.s32 %s14, 2
        // Predicated region
        $region99: #{sqnxt_unit_forward.9} parent=97 // pred_check
          %p1133 = pneg %p153
        $region100: #{sqnxt_unit_forward.9} parent=97 // pred_check_branch
          %1135 = sbr.rel (%p1133) target = $region102
        $region101: #{sqnxt_unit_forward.9} parent=97 // pred_region
          %s1136 = sand.u32 %s138, 1
          %s1137 = sand.u32 %s138, 1
          %s1138 = smul.addr %s1137, 128
          %s1139 = scalar_lea.vmem [#allocation3], %s1138
        $region102: #{sqnxt_unit_forward.9} parent=97 // pred_fallthru
          _
        // Predicated region
        $region103: #{sqnxt_unit_forward.9} parent=97 // pred_check
          %p1140 = pneg %p179
        $region104: #{sqnxt_unit_forward.9} parent=97 // pred_check_branch
          %1142 = sbr.rel (%p1140) target = $region106
        $region105: #{sqnxt_unit_forward.9} parent=97 // pred_region
          %p1143 = scmp.lt.s32.totalorder %s20, 1
          %s1144 = scalar_select %p1143, %s20, 1
          %s1145 = smul.addr %s1144, 8
          %s1146 = smul.addr %s1145, 8
          %s1147 = scalar_lea.vmem %s6, %s1146
        $region106: #{sqnxt_unit_forward.9} parent=97 // pred_fallthru
          _
        // Predicated region
        $region107: #{sqnxt_unit_forward.9} parent=97 // pred_check
          %p1148 = pneg %p205
        $region108: #{sqnxt_unit_forward.9} parent=97 // pred_check_branch
          %1150 = sbr.rel (%p1148) target = $region110
        $region109: #{sqnxt_unit_forward.9} parent=97 // pred_region
          %p1151 = scmp.lt.s32.totalorder %s20, 1
          %s1152 = scalar_select %p1151, %s20, 1
          %s1153 = smul.addr %s1152, 8
          %s1154 = smul.addr %s1153, 8
          %s1155 = scalar_lea.vmem %s7, %s1154
        $region110: #{sqnxt_unit_forward.9} parent=97 // pred_fallthru
          _
      $region98: #{sqnxt_unit_forward.9} parent=5 // pred_fallthru
        _
    $region6: #{sqnxt_unit_forward.9} parent=1 // loop_footer
      %s18 = sadd.s32 1, %s14
    $region7: #{sqnxt_unit_forward.9} parent=1 // loop_footer_branch
      %13 = sbr.rel target = $region3
    $region8: #{sqnxt_unit_forward.9} parent=1 // loop_exit
      _

// kernel: sqnxt_unit_forward.10
$region0: #{sqnxt_unit_forward.10}
  #allocation0 [shape = 'u32[]', space=smem, size = 0x4, offset = 0x4, fixed_abs, tag = 'smem constant byte address 0x4 - core index']
  #allocation1 [shape = 'u32[144,128]{1,0:T(1,128)}', space=vmem, size = 0x12000, scoped, tag = 'internal scratch']
  %s0 = inlined_call_operand.vmem [shape: f32[64,512], index: 0, kind: input, shape index: {}]
  %s1 = inlined_call_operand.vmem [shape: bf16[3,64,64], index: 1, kind: input, shape index: {}]
  %s2 = inlined_call_operand.vmem [shape: f32[64,1], index: 2, kind: input, shape index: {}]
  %s3 = inlined_call_operand.vmem [shape: f32[64,1], index: 3, kind: input, shape index: {}]
  %s4 = inlined_call_operand.vmem [shape: f32[64,1], index: 4, kind: input, shape index: {}]
  %s5 = inlined_call_operand.vmem [shape: f32[64,512], index: 5, kind: output, shape index: {0}]
  %s6 = inlined_call_operand.vmem [shape: f32[2,64,128], index: 6, kind: output, shape index: {1}]
  %s7 = inlined_call_operand.vmem [shape: f32[2,64,128], index: 7, kind: output, shape index: {2}]
  %8 = xla_tuple %s5, %s6, %s7
  %s9 = sld [smem:[#allocation0]]
  $region111: #{sqnxt_unit_forward.10} parent=0
    _
  %s11 = ssub.s32 1, %s9
  %s12 = scalar_select 0, %s11, %s9
  $region1: #{sqnxt_unit_forward.10} parent=0
    #allocation2 [shape = 'u8[131072]{0}', space=vmem, size = 0x20000, scoped, tag = 'input window, operand 0']
    #allocation3 [shape = 'u8[131072]{0}', space=vmem, size = 0x20000, scoped, tag = 'output window, operand 0']
    loop: start=0, step=1, limit=4
    $region2: #{sqnxt_unit_forward.10} parent=1 // loop_pre_header
      _
    $region3: #{sqnxt_unit_forward.10} parent=1 // loop_header
      %s14 = sphi 0, %s18
      %p15 = scmp.ge.s32.totalorder %s14, 4
      %s24 = sphi 0, %s26
      %s27 = sphi 0, %s24
      %s28 = sphi 0, %s27
      %s44 = sphi 0, %s28
      %s48 = sphi 0, %s48
      %s50 = sphi 0, %s48
      %s51 = sphi 0, %s50
      %s65 = sphi 0, %s51
      %s69 = sphi 0, %s69
      %s71 = sphi 0, %s69
      %s72 = sphi 0, %s71
      %s86 = sphi 0, %s72
      %s90 = sphi 0, %s90
      %s92 = sphi 0, %s90
      %s93 = sphi 0, %s92
      %s107 = sphi 0, %s93
      %s111 = sphi 0, %s111
      %s113 = sphi 0, %s111
      %s114 = sphi 0, %s113
      %s128 = sphi 0, %s114
      %s134 = sphi 0, %s136
      %s137 = sphi 0, %s134
      %s138 = sphi 0, %s137
      %s154 = sphi 0, %s138
      %s160 = sphi 0, %s162
      %s163 = sphi 0, %s160
      %s164 = sphi 0, %s163
      %s180 = sphi 0, %s164
      %s186 = sphi 0, %s188
      %s189 = sphi 0, %s186
      %s190 = sphi 0, %s189
      %s206 = sphi 0, %s190
    $region4: #{sqnxt_unit_forward.10} parent=1 // loop_header_branch
      %17 = sbr.rel (%p15) target = $region8
    $region5: #{sqnxt_unit_forward.10} parent=1 // loop_body
      %s19 = ssub.s32 %s14, 1
      %s20 = ssub.s32 %s14, 2
      %s21 = sadd.s32 %s14, 1
      %s22 = ssub.s32 %s14, %s21
      %p23 = scmp.eq.s32.totalorder %s22, 0
      %s25 = sadd.s32 %s24, 1
      %s26 = scalar_select %p23, %s24, %s25
      %p29 = pneg %p23
      %p30 = scmp.eq.s32.totalorder %s14, 1
      %p31 = por %p29, %p30
      %p32 = scmp.ne.s32.totalorder %s24, %s27
      %p33 = scmp.eq.s32.totalorder %s14, 0
      %p34 = por %p32, %p33
      %p35 = scmp.ne.s32.totalorder %s24, %s27
      %p36 = scmp.eq.s32.totalorder %s19, 1
      %p37 = por %p35, %p36
      %p38 = scmp.ne.s32.totalorder %s27, %s28
      %p39 = scmp.eq.s32.totalorder %s19, 0
      %p40 = por %p38, %p39
      %p41 = scmp.ne.s32.totalorder %s27, %s28
      %p42 = scmp.eq.s32.totalorder %s20, 1
      %p43 = por %p41, %p42
      %p45 = scmp.ne.s32.totalorder %s28, %s44
      %p46 = scmp.eq.s32.totalorder %s20, 0
      %p47 = por %p45, %p46
      %s49 = sadd.s32 %s48, 1
      %p52 = scmp.eq.s32.totalorder %s14, 1
      %p53 = scmp.ne.s32.totalorder %s48, %s50
      %p54 = scmp.eq.s32.totalorder %s14, 0
      %p55 = por %p53, %p54
      %p56 = scmp.ne.s32.totalorder %s48, %s50
      %p57 = scmp.eq.s32.totalorder %s19, 1
      %p58 = por %p56, %p57
      %p59 = scmp.ne.s32.totalorder %s50, %s51
      %p60 = scmp.eq.s32.totalorder %s19, 0
      %p61 = por %p59, %p60
      %p62 = scmp.ne.s32.totalorder %s50, %s51
      %p63 = scmp.eq.s32.totalorder %s20, 1
      %p64 = por %p62, %p63
      %p66 = scmp.ne.s32.totalorder %s51, %s65
      %p67 = scmp.eq.s32.totalorder %s20, 0
      %p68 = por %p66, %p67
      %s70 = sadd.s32 %s69, 1
      %p73 = scmp.eq.s32.totalorder %s14, 1
      %p74 = scmp.ne.s32.totalorder %s69, %s71
      %p75 = scmp.eq.s32.totalorder %s14, 0
      %p76 = por %p74, %p75
      %p77 = scmp.ne.s32.totalorder %s69, %s71
      %p78 = scmp.eq.s32.totalorder %s19, 1
      %p79 = por %p77, %p78
      %p80 = scmp.ne.s32.totalorder %s71, %s72
      %p81 = scmp.eq.s32.totalorder %s19, 0
      %p82 = por %p80, %p81
      %p83 = scmp.ne.s32.totalorder %s71, %s72
      %p84 = scmp.eq.s32.totalorder %s20, 1
      %p85 = por %p83, %p84
      %p87 = scmp.ne.s32.totalorder %s72, %s86
      %p88 = scmp.eq.s32.totalorder %s20, 0
      %p89 = por %p87, %p88
      %s91 = sadd.s32 %s90, 1
      %p94 = scmp.eq.s32.totalorder %s14, 1
      %p95 = scmp.ne.s32.totalorder %s90, %s92
      %p96 = scmp.eq.s32.totalorder %s14, 0
      %p97 = por %p95, %p96
      %p98 = scmp.ne.s32.totalorder %s90, %s92
      %p99 = scmp.eq.s32.totalorder %s19, 1
      %p100 = por %p98, %p99
      %p101 = scmp.ne.s32.totalorder %s92, %s93
      %p102 = scmp.eq.s32.totalorder %s19, 0
      %p103 = por %p101, %p102
      %p104 = scmp.ne.s32.totalorder %s92, %s93
      %p105 = scmp.eq.s32.totalorder %s20, 1
      %p106 = por %p104, %p105
      %p108 = scmp.ne.s32.totalorder %s93, %s107
      %p109 = scmp.eq.s32.totalorder %s20, 0
      %p110 = por %p108, %p109
      %s112 = sadd.s32 %s111, 1
      %p115 = scmp.eq.s32.totalorder %s14, 1
      %p116 = scmp.ne.s32.totalorder %s111, %s113
      %p117 = scmp.eq.s32.totalorder %s14, 0
      %p118 = por %p116, %p117
      %p119 = scmp.ne.s32.totalorder %s111, %s113
      %p120 = scmp.eq.s32.totalorder %s19, 1
      %p121 = por %p119, %p120
      %p122 = scmp.ne.s32.totalorder %s113, %s114
      %p123 = scmp.eq.s32.totalorder %s19, 0
      %p124 = por %p122, %p123
      %p125 = scmp.ne.s32.totalorder %s113, %s114
      %p126 = scmp.eq.s32.totalorder %s20, 1
      %p127 = por %p125, %p126
      %p129 = scmp.ne.s32.totalorder %s114, %s128
      %p130 = scmp.eq.s32.totalorder %s20, 0
      %p131 = por %p129, %p130
      %s132 = ssub.s32 %s14, %s21
      %p133 = scmp.eq.s32.totalorder %s132, 0
      %s135 = sadd.s32 %s134, 1
      %s136 = scalar_select %p133, %s134, %s135
      %p139 = pneg %p133
      %p140 = scmp.eq.s32.totalorder %s14, 1
      %p141 = por %p139, %p140
      %p142 = scmp.ne.s32.totalorder %s134, %s137
      %p143 = scmp.eq.s32.totalorder %s14, 0
      %p144 = por %p142, %p143
      %p145 = scmp.ne.s32.totalorder %s134, %s137
      %p146 = scmp.eq.s32.totalorder %s19, 1
      %p147 = por %p145, %p146
      %p148 = scmp.ne.s32.totalorder %s137, %s138
      %p149 = scmp.eq.s32.totalorder %s19, 0
      %p150 = por %p148, %p149
      %p151 = scmp.ne.s32.totalorder %s137, %s138
      %p152 = scmp.eq.s32.totalorder %s20, 1
      %p153 = por %p151, %p152
      %p155 = scmp.ne.s32.totalorder %s138, %s154
      %p156 = scmp.eq.s32.totalorder %s20, 0
      %p157 = por %p155, %p156
      %s158 = ssub.s32 %s14, %s21
      %p159 = scmp.eq.s32.totalorder %s158, 0
      %s161 = sadd.s32 %s160, 1
      %s162 = scalar_select %p159, %s160, %s161
      %p165 = pneg %p159
      %p166 = scmp.eq.s32.totalorder %s14, 1
      %p167 = por %p165, %p166
      %p168 = scmp.ne.s32.totalorder %s160, %s163
      %p169 = scmp.eq.s32.totalorder %s14, 0
      %p170 = por %p168, %p169
      %p171 = scmp.ne.s32.totalorder %s160, %s163
      %p172 = scmp.eq.s32.totalorder %s19, 1
      %p173 = por %p171, %p172
      %p174 = scmp.ne.s32.totalorder %s163, %s164
      %p175 = scmp.eq.s32.totalorder %s19, 0
      %p176 = por %p174, %p175
      %p177 = scmp.ne.s32.totalorder %s163, %s164
      %p178 = scmp.eq.s32.totalorder %s20, 1
      %p179 = por %p177, %p178
      %p181 = scmp.ne.s32.totalorder %s164, %s180
      %p182 = scmp.eq.s32.totalorder %s20, 0
      %p183 = por %p181, %p182
      %s184 = ssub.s32 %s14, %s21
      %p185 = scmp.eq.s32.totalorder %s184, 0
      %s187 = sadd.s32 %s186, 1
      %s188 = scalar_select %p185, %s186, %s187
      %p191 = pneg %p185
      %p192 = scmp.eq.s32.totalorder %s14, 1
      %p193 = por %p191, %p192
      %p194 = scmp.ne.s32.totalorder %s186, %s189
      %p195 = scmp.eq.s32.totalorder %s14, 0
      %p196 = por %p194, %p195
      %p197 = scmp.ne.s32.totalorder %s186, %s189
      %p198 = scmp.eq.s32.totalorder %s19, 1
      %p199 = por %p197, %p198
      %p200 = scmp.ne.s32.totalorder %s189, %s190
      %p201 = scmp.eq.s32.totalorder %s19, 0
      %p202 = por %p200, %p201
      %p203 = scmp.ne.s32.totalorder %s189, %s190
      %p204 = scmp.eq.s32.totalorder %s20, 1
      %p205 = por %p203, %p204
      %p207 = scmp.ne.s32.totalorder %s190, %s206
      %p208 = scmp.eq.s32.totalorder %s20, 0
      %p209 = por %p207, %p208
      %p210 = scmp.le.s32.totalorder 1, %s14
      %p211 = scmp.lt.s32.totalorder %s14, 3
      %p212 = pnand %p210, %p211
      %p213 = pneg %p212
      // Predicated region
      $region9: #{sqnxt_unit_forward.10} parent=5 // pred_check
        _
      $region10: #{sqnxt_unit_forward.10} parent=5 // pred_check_branch
        %215 = sbr.rel (%p212) target = $region12
      $region11: #{sqnxt_unit_forward.10} parent=5 // pred_region
        %s216 = ssub.s32 %s14, 1
        // Predicated region
        $region13: #{sqnxt_unit_forward.10} parent=11 // pred_check
          %p217 = pneg %p61
        $region14: #{sqnxt_unit_forward.10} parent=11 // pred_check_branch
          %219 = sbr.rel (%p217) target = $region16
        $region15: #{sqnxt_unit_forward.10} parent=11 // pred_region
          _
        $region16: #{sqnxt_unit_forward.10} parent=11 // pred_fallthru
          _
        // Predicated region
        $region17: #{sqnxt_unit_forward.10} parent=11 // pred_check
          %p220 = pneg %p82
        $region18: #{sqnxt_unit_forward.10} parent=11 // pred_check_branch
          %222 = sbr.rel (%p220) target = $region20
        $region19: #{sqnxt_unit_forward.10} parent=11 // pred_region
          _
        $region20: #{sqnxt_unit_forward.10} parent=11 // pred_fallthru
          _
        // Predicated region
        $region21: #{sqnxt_unit_forward.10} parent=11 // pred_check
          %p223 = pneg %p103
        $region22: #{sqnxt_unit_forward.10} parent=11 // pred_check_branch
          %225 = sbr.rel (%p223) target = $region24
        $region23: #{sqnxt_unit_forward.10} parent=11 // pred_region
          _
        $region24: #{sqnxt_unit_forward.10} parent=11 // pred_fallthru
          _
        // Predicated region
        $region25: #{sqnxt_unit_forward.10} parent=11 // pred_check
          %p226 = pneg %p124
        $region26: #{sqnxt_unit_forward.10} parent=11 // pred_check_branch
          %228 = sbr.rel (%p226) target = $region28
        $region27: #{sqnxt_unit_forward.10} parent=11 // pred_region
          _
        $region28: #{sqnxt_unit_forward.10} parent=11 // pred_fallthru
          _
      $region12: #{sqnxt_unit_forward.10} parent=5 // pred_fallthru
        _
      %p229 = scmp.lt.s32.totalorder %s14, 2
      // Predicated region
      $region29: #{sqnxt_unit_forward.10} parent=5 // pred_check
        %p230 = pneg %p229
      $region30: #{sqnxt_unit_forward.10} parent=5 // pred_check_branch
        %232 = sbr.rel (%p230) target = $region32
      $region31: #{sqnxt_unit_forward.10} parent=5 // pred_region
        // Predicated region
        $region33: #{sqnxt_unit_forward.10} parent=31 // pred_check
          %p233 = pneg %p34
        $region34: #{sqnxt_unit_forward.10} parent=31 // pred_check_branch
          %235 = sbr.rel (%p233) target = $region36
        $region35: #{sqnxt_unit_forward.10} parent=31 // pred_region
          %s236 = sand.u32 %s24, 1
          %s237 = sand.u32 %s24, 1
          %s238 = smul.addr %s237, 128
          %s239 = scalar_lea.vmem [#allocation2], %s238
          %s240 = smul.u32 2, %s14
          %s241 = smul.addr %s240, 8
          %s242 = scalar_lea.vmem %s0, %s241
          // Predicated region
          $region37: #{sqnxt_unit_forward.10} parent=35 // pred_check
            _
          $region38: #{sqnxt_unit_forward.10} parent=35 // pred_check_branch
            %244 = sbr.rel (0) target = $region40
          $region39: #{sqnxt_unit_forward.10} parent=35 // pred_region
            // Predicated region
            $region41: #{sqnxt_unit_forward.10} parent=39 // pred_check
              _
            $region42: #{sqnxt_unit_forward.10} parent=39 // pred_check_branch
              %246 = sbr.rel (0) target = $region44
            $region43: #{sqnxt_unit_forward.10} parent=39 // pred_region
              loop: start=0, step=1, limit=1
              $region45: #{sqnxt_unit_forward.10} parent=43 // loop_pre_header
                _
              $region46: #{sqnxt_unit_forward.10} parent=43 // loop_header
                %s248 = sphi 0, %s252
                %p249 = scmp.ge.s32.totalorder %s248, 1
                %s253 = sphi %s242, %s242
                %s254 = sphi %s239, %s239
              $region47: #{sqnxt_unit_forward.10} parent=43 // loop_header_branch
                %251 = sbr.rel (%p249) target = $region51
              $region48: #{sqnxt_unit_forward.10} parent=43 // loop_body
                %v255 = vld [vmem:[%s253] sm:$0xff]
                %256 = vst [vmem:[%s254] sm:$0xff] %v255
                %v257 = vld [vmem:[%s253 + $0x8] sm:$0xff]
                %258 = vst [vmem:[%s254 + $0x8] sm:$0xff] %v257
                %v259 = vld [vmem:[%s253 + $0x20] sm:$0xff]
                %260 = vst [vmem:[%s254 + $0x10] sm:$0xff] %v259
                %v261 = vld [vmem:[%s253 + $0x28] sm:$0xff]
                %262 = vst [vmem:[%s254 + $0x18] sm:$0xff] %v261
                %v263 = vld [vmem:[%s253 + $0x40] sm:$0xff]
                %264 = vst [vmem:[%s254 + $0x20] sm:$0xff] %v263
                %v265 = vld [vmem:[%s253 + $0x48] sm:$0xff]
                %266 = vst [vmem:[%s254 + $0x28] sm:$0xff] %v265
                %v267 = vld [vmem:[%s253 + $0x60] sm:$0xff]
                %268 = vst [vmem:[%s254 + $0x30] sm:$0xff] %v267
                %v269 = vld [vmem:[%s253 + $0x68] sm:$0xff]
                %270 = vst [vmem:[%s254 + $0x38] sm:$0xff] %v269
                %v271 = vld [vmem:[%s253 + $0x80] sm:$0xff]
                %272 = vst [vmem:[%s254 + $0x40] sm:$0xff] %v271
                %v273 = vld [vmem:[%s253 + $0x88] sm:$0xff]
                %274 = vst [vmem:[%s254 + $0x48] sm:$0xff] %v273
                %v275 = vld [vmem:[%s253 + $0xa0] sm:$0xff]
                %276 = vst [vmem:[%s254 + $0x50] sm:$0xff] %v275
                %v277 = vld [vmem:[%s253 + $0xa8] sm:$0xff]
                %278 = vst [vmem:[%s254 + $0x58] sm:$0xff] %v277
                %v279 = vld [vmem:[%s253 + $0xc0] sm:$0xff]
                %280 = vst [vmem:[%s254 + $0x60] sm:$0xff] %v279
                %v281 = vld [vmem:[%s253 + $0xc8] sm:$0xff]
                %282 = vst [vmem:[%s254 + $0x68] sm:$0xff] %v281
                %v283 = vld [vmem:[%s253 + $0xe0] sm:$0xff]
                %284 = vst [vmem:[%s254 + $0x70] sm:$0xff] %v283
                %v285 = vld [vmem:[%s253 + $0xe8] sm:$0xff]
                %286 = vst [vmem:[%s254 + $0x78] sm:$0xff] %v285
              $region49: #{sqnxt_unit_forward.10} parent=43 // loop_footer
                %s252 = sadd.s32 1, %s248
              $region50: #{sqnxt_unit_forward.10} parent=43 // loop_footer_branch
                %247 = sbr.rel target = $region46
              $region51: #{sqnxt_unit_forward.10} parent=43 // loop_exit
                _
            $region44: #{sqnxt_unit_forward.10} parent=39 // pred_fallthru
              _
            // Predicated region
            $region52: #{sqnxt_unit_forward.10} parent=39 // pred_check
              _
            $region53: #{sqnxt_unit_forward.10} parent=39 // pred_check_branch
              %288 = sbr.rel target = $region55
            $region54: #{sqnxt_unit_forward.10} parent=39 // pred_region
              _
            $region55: #{sqnxt_unit_forward.10} parent=39 // pred_fallthru
              _
          $region40: #{sqnxt_unit_forward.10} parent=35 // pred_fallthru
            _
          %289 = vnop
        $region36: #{sqnxt_unit_forward.10} parent=31 // pred_fallthru
          _
      $region32: #{sqnxt_unit_forward.10} parent=5 // pred_fallthru
        _
      %p290 = scmp.le.s32.totalorder 1, %s14
      %p291 = scmp.lt.s32.totalorder %s14, 3
      %p292 = pnand %p290, %p291
      %p293 = pneg %p292
      // Predicated region
      $region56: #{sqnxt_unit_forward.10} parent=5 // pred_check
        _
      $region57: #{sqnxt_unit_forward.10} parent=5 // pred_check_branch
        %295 = sbr.rel (%p292) target = $region59
      $region58: #{sqnxt_unit_forward.10} parent=5 // pred_region
        %s296 = ssub.s32 %s14, 1
        %s297 = sand.u32 %s27, 1
        %s298 = sand.u32 %s27, 1
        %s299 = smul.addr %s298, 128
        %s300 = scalar_lea.vmem [#allocation2], %s299
        // Predicated region
        $region60: #{sqnxt_unit_forward.10} parent=58 // pred_check
          %p301 = pneg %p40
        $region61: #{sqnxt_unit_forward.10} parent=58 // pred_check_branch
          %303 = sbr.rel (%p301) target = $region63
        $region62: #{sqnxt_unit_forward.10} parent=58 // pred_region
          _
        $region63: #{sqnxt_unit_forward.10} parent=58 // pred_fallthru
          _
        %s304 = sand.u32 %s27, 1
        %s305 = sand.u32 %s27, 1
        %s306 = smul.addr %s305, 128
        %s307 = scalar_lea.vmem [#allocation2], %s306
        %p308 = pneg %p40
        %p309 = pneg %p37
        %p310 = pneg %p61
        %p311 = pneg %p58
        %p312 = pneg %p82
        %p313 = pneg %p79
        %p314 = pneg %p103
        %p315 = pneg %p100
        %p316 = pneg %p124
        %p317 = pneg %p121
        %p318 = pneg %p150
        %p319 = pneg %p147
        %s320 = sand.u32 %s137, 1
        %s321 = sand.u32 %s137, 1
        %s322 = smul.addr %s321, 128
        %s323 = scalar_lea.vmem [#allocation3], %s322
        %p324 = pneg %p176
        %p325 = pneg %p173
        %p326 = scmp.lt.s32.totalorder %s19, 1
        %s327 = scalar_select %p326, %s19, 1
        %s328 = smul.addr %s327, 8
        %s329 = smul.addr %s328, 8
        %s330 = scalar_lea.vmem %s6, %s329
        %p331 = pneg %p202
        %p332 = pneg %p199
        %p333 = scmp.lt.s32.totalorder %s19, 1
        %s334 = scalar_select %p333, %s19, 1
        %s335 = smul.addr %s334, 8
        %s336 = smul.addr %s335, 8
        %s337 = scalar_lea.vmem %s7, %s336
        %s338 = smul.u32 2, %s19
        %s339 = smul.u32 2, %s19
        %p340 = scmp.lt.s32.totalorder %s19, 1
        %s341 = scalar_select %p340, %s19, 1
        %s342 = smul.addr %s341, 8
        %s343 = smul.addr %s342, 8
        %s344 = scalar_lea.vmem %s6, %s343
        %p345 = scmp.lt.s32.totalorder %s19, 1
        %s346 = scalar_select %p345, %s19, 1
        %s347 = smul.addr %s346, 8
        %s348 = smul.addr %s347, 8
        %s349 = scalar_lea.vmem %s7, %s348
        %v353 = vld [vmem:[%s300] sm:$0xff]
        %v354 = vld [vmem:[%s300 + $0x8] sm:$0xff]
        %v355 = vld [vmem:[%s300 + $0x10] sm:$0xff]
        %v356 = vld [vmem:[%s300 + $0x18] sm:$0xff]
        %v357 = vld [vmem:[%s300 + $0x20] sm:$0xff]
        %v358 = vld [vmem:[%s300 + $0x28] sm:$0xff]
        %v359 = vld [vmem:[%s300 + $0x30] sm:$0xff]
        %v360 = vld [vmem:[%s300 + $0x38] sm:$0xff]
        %v361 = vld [vmem:[%s300 + $0x40] sm:$0xff]
        %v362 = vld [vmem:[%s300 + $0x48] sm:$0xff]
        %v363 = vld [vmem:[%s300 + $0x50] sm:$0xff]
        %v364 = vld [vmem:[%s300 + $0x58] sm:$0xff]
        %v365 = vld [vmem:[%s300 + $0x60] sm:$0xff]
        %v366 = vld [vmem:[%s300 + $0x68] sm:$0xff]
        %v367 = vld [vmem:[%s300 + $0x70] sm:$0xff]
        %v368 = vld [vmem:[%s300 + $0x78] sm:$0xff]
        %v369 = vld [vmem:[%s2] sm:$0xff]
        %v370 = vld [vmem:[%s2 + $0x8] sm:$0xff]
        %v371 = vld [vmem:[%s2 + $0x10] sm:$0xff]
        %v372 = vld [vmem:[%s2 + $0x18] sm:$0xff]
        %v373 = vld [vmem:[%s2 + $0x20] sm:$0xff]
        %v374 = vld [vmem:[%s2 + $0x28] sm:$0xff]
        %v375 = vld [vmem:[%s2 + $0x30] sm:$0xff]
        %v376 = vld [vmem:[%s2 + $0x38] sm:$0xff]
        %378 = vset.pattern.permute.xlu0 0
        %379 = vperm.xlu0 %378, %v369
        %v380 = vpop.permute.xlu0 %379
        %383 = vset.pattern.permute.xlu0 0
        %384 = vperm.xlu0 %383, %v370
        %v385 = vpop.permute.xlu0 %384
        %388 = vset.pattern.permute.xlu0 0
        %389 = vperm.xlu0 %388, %v371
        %v390 = vpop.permute.xlu0 %389
        %393 = vset.pattern.permute.xlu0 0
        %394 = vperm.xlu0 %393, %v372
        %v395 = vpop.permute.xlu0 %394
        %398 = vset.pattern.permute.xlu0 0
        %399 = vperm.xlu0 %398, %v373
        %v400 = vpop.permute.xlu0 %399
        %403 = vset.pattern.permute.xlu0 0
        %404 = vperm.xlu0 %403, %v374
        %v405 = vpop.permute.xlu0 %404
        %408 = vset.pattern.permute.xlu0 0
        %409 = vperm.xlu0 %408, %v375
        %v410 = vpop.permute.xlu0 %409
        %413 = vset.pattern.permute.xlu0 0
        %414 = vperm.xlu0 %413, %v376
        %v415 = vpop.permute.xlu0 %414
        %v417 = vmul.f32 %v353, %v380
        %v418 = vmul.f32 %v354, %v380
        %v419 = vmul.f32 %v355, %v385
        %v420 = vmul.f32 %v356, %v385
        %v421 = vmul.f32 %v357, %v390
        %v422 = vmul.f32 %v358, %v390
        %v423 = vmul.f32 %v359, %v395
        %v424 = vmul.f32 %v360, %v395
        %v425 = vmul.f32 %v361, %v400
        %v426 = vmul.f32 %v362, %v400
        %v427 = vmul.f32 %v363, %v405
        %v428 = vmul.f32 %v364, %v405
        %v429 = vmul.f32 %v365, %v410
        %v430 = vmul.f32 %v366, %v410
        %v431 = vmul.f32 %v367, %v415
        %v432 = vmul.f32 %v368, %v415
        %v433 = vld [vmem:[%s3] sm:$0xff]
        %v434 = vld [vmem:[%s3 + $0x8] sm:$0xff]
        %v435 = vld [vmem:[%s3 + $0x10] sm:$0xff]
        %v436 = vld [vmem:[%s3 + $0x18] sm:$0xff]
        %v437 = vld [vmem:[%s3 + $0x20] sm:$0xff]
        %v438 = vld [vmem:[%s3 + $0x28] sm:$0xff]
        %v439 = vld [vmem:[%s3 + $0x30] sm:$0xff]
        %v440 = vld [vmem:[%s3 + $0x38] sm:$0xff]
        %442 = vset.pattern.permute.xlu0 0
        %443 = vperm.xlu0 %442, %v433
        %v444 = vpop.permute.xlu0 %443
        %447 = vset.pattern.permute.xlu0 0
        %448 = vperm.xlu0 %447, %v434
        %v449 = vpop.permute.xlu0 %448
        %452 = vset.pattern.permute.xlu0 0
        %453 = vperm.xlu0 %452, %v435
        %v454 = vpop.permute.xlu0 %453
        %457 = vset.pattern.permute.xlu0 0
        %458 = vperm.xlu0 %457, %v436
        %v459 = vpop.permute.xlu0 %458
        %462 = vset.pattern.permute.xlu0 0
        %463 = vperm.xlu0 %462, %v437
        %v464 = vpop.permute.xlu0 %463
        %467 = vset.pattern.permute.xlu0 0
        %468 = vperm.xlu0 %467, %v438
        %v469 = vpop.permute.xlu0 %468
        %472 = vset.pattern.permute.xlu0 0
        %473 = vperm.xlu0 %472, %v439
        %v474 = vpop.permute.xlu0 %473
        %477 = vset.pattern.permute.xlu0 0
        %478 = vperm.xlu0 %477, %v440
        %v479 = vpop.permute.xlu0 %478
        %v481 = vadd.f32 %v417, %v444
        %v482 = vadd.f32 %v418, %v444
        %v483 = vadd.f32 %v419, %v449
        %v484 = vadd.f32 %v420, %v449
        %v485 = vadd.f32 %v421, %v454
        %v486 = vadd.f32 %v422, %v454
        %v487 = vadd.f32 %v423, %v459
        %v488 = vadd.f32 %v424, %v459
        %v489 = vadd.f32 %v425, %v464
        %v490 = vadd.f32 %v426, %v464
        %v491 = vadd.f32 %v427, %v469
        %v492 = vadd.f32 %v428, %v469
        %v493 = vadd.f32 %v429, %v474
        %v494 = vadd.f32 %v430, %v474
        %v495 = vadd.f32 %v431, %v479
        %v496 = vadd.f32 %v432, %v479
        %v497 = vmax.f32 %v481, 0.0
        %v498 = vmax.f32 %v482, 0.0
        %v499 = vmax.f32 %v483, 0.0
        %v500 = vmax.f32 %v484, 0.0
        %v501 = vmax.f32 %v485, 0.0
        %v502 = vmax.f32 %v486, 0.0
        %v503 = vmax.f32 %v487, 0.0
        %v504 = vmax.f32 %v488, 0.0
        %v505 = vmax.f32 %v489, 0.0
        %v506 = vmax.f32 %v490, 0.0
        %v507 = vmax.f32 %v491, 0.0
        %v508 = vmax.f32 %v492, 0.0
        %v509 = vmax.f32 %v493, 0.0
        %v510 = vmax.f32 %v494, 0.0
        %v511 = vmax.f32 %v495, 0.0
        %v512 = vmax.f32 %v496, 0.0
        %v513 = vpack.c.bf16 %v499, %v497
        %v514 = vpack.c.bf16 %v500, %v498
        %v515 = vpack.c.bf16 %v503, %v501
        %v516 = vpack.c.bf16 %v504, %v502
        %v517 = vpack.c.bf16 %v507, %v505
        %v518 = vpack.c.bf16 %v508, %v506
        %v519 = vpack.c.bf16 %v511, %v509
        %v520 = vpack.c.bf16 %v512, %v510
        %s521 = scalar_lea.vmem %s1, 32
        %v522 = vld [vmem:[%s521] sm:$0xf]
        %v523 = vld [vmem:[%s521 + $0x4] sm:$0xf]
        %v524 = vld [vmem:[%s521 + $0x8] sm:$0xf]
        %v525 = vld [vmem:[%s521 + $0xc] sm:$0xf]
        %v526 = vld [vmem:[%s521 + $0x10] sm:$0xf]
        %v527 = vld [vmem:[%s521 + $0x14] sm:$0xf]
        %v528 = vld [vmem:[%s521 + $0x18] sm:$0xf]
        %v529 = vld [vmem:[%s521 + $0x1c] sm:$0xf]
        %v530 = vlaneseq
        %v531 = vand.u32 %v530, 127
        %v532 = vadd.s32 %v531, 128
        %vm533 = vcmp.lt.s32.totalorder %v531, 0
        %v534 = vsub.s32 0, %v531
        %v535 = vsel %vm533, %v534, %v531
        %v536 = vshrl.u32 %v535, 8
        %v537 = vand.u32 %v535, 255
        %v538 = vsub.s32 0, %v537
        %v539 = vsel %vm533, %v538, %v537
        %vm540 = vcmp.lt.s32.totalorder %v532, 0
        %v541 = vsub.s32 0, %v532
        %v542 = vsel %vm540, %v541, %v532
        %v543 = vshrl.u32 %v542, 8
        %v544 = vand.u32 %v542, 255
        %v545 = vsub.s32 0, %v544
        %v546 = vsel %vm540, %v545, %v544
        %vm547 = vcmp.ne.s32.totalorder %v539, 0
        %vm548 = vcmp.ne.s32.totalorder %v546, 0
        %vm549 = vcmp.lt.s32.totalorder %v539, 0
        %vm550 = vcmp.lt.s32.totalorder %v546, 0
        %vm551 = vmand %vm549, %vm547
        %vm552 = vmand %vm550, %vm548
        %v553 = vadd.s32 %v539, 256
        %v554 = vadd.s32 %v546, 256
        %v555 = vsel %vm551, %v553, %v539
        %v556 = vsel %vm552, %v554, %v546
        %565 = vrot.lane.b32.xlu0 %v513, 16
        %v566 = vpop.permute.xlu0 %565
        %567 = vrot.lane.b32.xlu0 %v514, 16
        %v568 = vpop.permute.xlu0 %567
        %569 = vrot.lane.b32.xlu0 %v515, 16
        %v570 = vpop.permute.xlu0 %569
        %571 = vrot.lane.b32.xlu0 %v516, 16
        %v572 = vpop.permute.xlu0 %571
        %573 = vrot.lane.b32.xlu0 %v517, 16
        %v574 = vpop.permute.xlu0 %573
        %575 = vrot.lane.b32.xlu0 %v518, 16
        %v576 = vpop.permute.xlu0 %575
        %577 = vrot.lane.b32.xlu0 %v519, 16
        %v578 = vpop.permute.xlu0 %577
        %579 = vrot.lane.b32.xlu0 %v520, 16
        %v580 = vpop.permute.xlu0 %579
        %vm581 = vcmask 130048
        %v582 = vsel %vm581, %v566, %v568
        %v583 = vsel %vm581, %v570, %v572
        %v584 = vsel %vm581, %v574, %v576
        %v585 = vsel %vm581, %v578, %v580
        %vm590 = vcmask 130048
        %v593 = vsel %vm590, 0, %v566
        %v596 = vsel %vm590, 0, %v570
        %v599 = vsel %vm590, 0, %v574
        %v602 = vsel %vm590, 0, %v578
        %vm604 = vcmp.ge.s32.totalorder %v555, 16
        %vm605 = vcmp.ge.s32.totalorder %v556, 16
        %v606 = vsel %vm604, 1, 0
        %v607 = vsel %vm605, 1, 0
        %vm608 = vcmp.eq.s32.totalorder %v606, 1
        %vm609 = vcmp.eq.s32.totalorder %v607, 1
        %vm610 = vmpackc.low %vm609, %vm608
        %v611 = vsel %vm610, 65537, 0
        %v612 = vlaneseq
        %v613 = vshrl.u32 %v612, 7
        %v614 = vsub.s32 0, %v613
        %v615 = vrot.slane %v611, %v614
        %v616 = vlaneseq
        %v617 = vshrl.u32 %v616, 7
        %v618 = vsub.s32 4, %v617
        %v619 = vrot.slane %v611, %v618
        %vm620 = vcmp.ne.s16.totalorder %v615, 0
        %vm621 = vcmp.ne.s16.totalorder %v619, 0
        %v622 = vsel %vm620, %v593, 0
        %v623 = vsel %vm621, %v582, 0
        %v624 = vsel %vm620, %v596, 0
        %v625 = vsel %vm621, %v583, 0
        %v626 = vsel %vm620, %v599, 0
        %v627 = vsel %vm621, %v584, 0
        %v628 = vsel %vm620, %v602, 0
        %v629 = vsel %vm621, %v585, 0
        %v630 = vld [vmem:[%s1] sm:$0xf]
        %v631 = vld [vmem:[%s1 + $0x4] sm:$0xf]
        %v632 = vld [vmem:[%s1 + $0x8] sm:$0xf]
        %v633 = vld [vmem:[%s1 + $0xc] sm:$0xf]
        %v634 = vld [vmem:[%s1 + $0x10] sm:$0xf]
        %v635 = vld [vmem:[%s1 + $0x14] sm:$0xf]
        %v636 = vld [vmem:[%s1 + $0x18] sm:$0xf]
        %v637 = vld [vmem:[%s1 + $0x1c] sm:$0xf]
        %v646 = vunpack.c.l.b16 %v630
        %v647 = vunpack.c.l.b16 %v631
        %v648 = vunpack.c.l.b16 %v632
        %v649 = vunpack.c.l.b16 %v633
        %v650 = vunpack.c.l.b16 %v634
        %v651 = vunpack.c.l.b16 %v635
        %v652 = vunpack.c.l.b16 %v636
        %v653 = vunpack.c.l.b16 %v637
        %v654 = vpack.c.b16 %v647, %v646
        %v655 = vpack.c.b16 %v649, %v648
        %v656 = vpack.c.b16 %v651, %v650
        %v657 = vpack.c.b16 %v653, %v652
        %vm658 = vcmask 523264
        %v660 = vsel %vm658, %v654, 0
        %v663 = vsel %vm658, %v655, 0
        %v666 = vsel %vm658, %v656, 0
        %v669 = vsel %vm658, %v657, 0
        %671 = vmatprep.subr.bf16.mxu0 %v623
        %672 = vmatpush1.bf16.msra.mxu0 %v622
        %673 = vmatprep.subr.bf16.mxu0 %v625
        %674 = vmatpush1.bf16.msra.mxu0 %v624
        %675 = vmatprep.subr.bf16.mxu0 %v627
        %676 = vmatpush1.bf16.msra.mxu0 %v626
        %677 = vmatprep.subr.bf16.mxu0 %v629
        %678 = vmatpush1.bf16.msra.mxu0 %v628
        %679 = vmatprep.subr.bf16.mxu0 0
        %680 = vmatpush1.bf16.msra.mxu0 0
        %681 = vmatprep.subr.bf16.mxu0 0
        %682 = vmatpush1.bf16.msra.mxu0 0
        %683 = vmatprep.subr.bf16.mxu0 0
        %684 = vmatpush1.bf16.msra.mxu0 0
        %685 = vmatprep.subr.bf16.mxu0 0
        %686 = vmatpush1.bf16.msra.mxu0 0
        %687 = vmatprep.subr.bf16.mxu0 0
        %688 = vmatpush1.bf16.msra.mxu0 0
        %689 = vmatprep.subr.bf16.mxu0 0
        %690 = vmatpush1.bf16.msra.mxu0 0
        %691 = vmatprep.subr.bf16.mxu0 0
        %692 = vmatpush1.bf16.msra.mxu0 0
        %693 = vmatprep.subr.bf16.mxu0 0
        %694 = vmatpush1.bf16.msra.mxu0 0
        %695 = vmatprep.subr.bf16.mxu0 0
        %696 = vmatpush1.bf16.msra.mxu0 0
        %697 = vmatprep.subr.bf16.mxu0 0
        %698 = vmatpush1.bf16.msra.mxu0 0
        %699 = vmatprep.subr.bf16.mxu0 0
        %700 = vmatpush1.bf16.msra.mxu0 0
        %701 = vmatprep.subr.bf16.mxu0 0
        %702 = vmatpush1.bf16.msra.mxu0 0
        %703 = vmatprep.mubr.bf16.mxu0 0
        %704 = vmatmul.mubr.bf16.gmra.mrb[0].mxu0 %v660
        %v705 = vpop.f32.mrb[0].mxu0
        %v706 = vadd.f32 0.0, %v705
        %v707 = vpop.f32.mrb[0].mxu0
        %v708 = vadd.f32 0.0, %v707
        %v709 = vpop.f32.mrb[0].mxu0
        %v710 = vadd.f32 0.0, %v709
        %v711 = vpop.f32.mrb[0].mxu0
        %v712 = vadd.f32 0.0, %v711
        %713 = vmatprep.mubr.bf16.mxu0 0
        %714 = vmatmul.mubr.bf16.gmra.mrb[0].mxu0 %v663
        %v715 = vpop.f32.mrb[0].mxu0
        %v716 = vadd.f32 0.0, %v715
        %v717 = vpop.f32.mrb[0].mxu0
        %v718 = vadd.f32 0.0, %v717
        %v719 = vpop.f32.mrb[0].mxu0
        %v720 = vadd.f32 0.0, %v719
        %v721 = vpop.f32.mrb[0].mxu0
        %v722 = vadd.f32 0.0, %v721
        %723 = vmatprep.mubr.bf16.mxu0 0
        %724 = vmatmul.mubr.bf16.gmra.mrb[0].mxu0 %v666
        %v725 = vpop.f32.mrb[0].mxu0
        %v726 = vadd.f32 0.0, %v725
        %v727 = vpop.f32.mrb[0].mxu0
        %v728 = vadd.f32 0.0, %v727
        %v729 = vpop.f32.mrb[0].mxu0
        %v730 = vadd.f32 0.0, %v729
        %v731 = vpop.f32.mrb[0].mxu0
        %v732 = vadd.f32 0.0, %v731
        %733 = vmatprep.mubr.bf16.mxu0 0
        %734 = vmatmul.mubr.bf16.gmra.mrb[0].mxu0 %v669
        %v735 = vpop.f32.mrb[0].mxu0
        %v736 = vadd.f32 0.0, %v735
        %v737 = vpop.f32.mrb[0].mxu0
        %v738 = vadd.f32 0.0, %v737
        %v739 = vpop.f32.mrb[0].mxu0
        %v740 = vadd.f32 0.0, %v739
        %v741 = vpop.f32.mrb[0].mxu0
        %v742 = vadd.f32 0.0, %v741
        %743 = vdwg.mxu0
        %v752 = vunpack.c.l.b16 %v522
        %v753 = vunpack.c.l.b16 %v523
        %v754 = vunpack.c.l.b16 %v524
        %v755 = vunpack.c.l.b16 %v525
        %v756 = vunpack.c.l.b16 %v526
        %v757 = vunpack.c.l.b16 %v527
        %v758 = vunpack.c.l.b16 %v528
        %v759 = vunpack.c.l.b16 %v529
        %v760 = vpack.c.b16 %v753, %v752
        %v761 = vpack.c.b16 %v755, %v754
        %v762 = vpack.c.b16 %v757, %v756
        %v763 = vpack.c.b16 %v759, %v758
        %v765 = vsel %vm658, %v760, 0
        %v768 = vsel %vm658, %v761, 0
        %v771 = vsel %vm658, %v762, 0
        %v774 = vsel %vm658, %v763, 0
        %776 = vmatprep.subr.bf16.mxu0 %v514
        %777 = vmatpush1.bf16.msra.mxu0 %v513
        %778 = vmatprep.subr.bf16.mxu0 %v516
        %779 = vmatpush1.bf16.msra.mxu0 %v515
        %780 = vmatprep.subr.bf16.mxu0 %v518
        %781 = vmatpush1.bf16.msra.mxu0 %v517
        %782 = vmatprep.subr.bf16.mxu0 %v520
        %783 = vmatpush1.bf16.msra.mxu0 %v519
        %784 = vmatprep.subr.bf16.mxu0 0
        %785 = vmatpush1.bf16.msra.mxu0 0
        %786 = vmatprep.subr.bf16.mxu0 0
        %787 = vmatpush1.bf16.msra.mxu0 0
        %788 = vmatprep.subr.bf16.mxu0 0
        %789 = vmatpush1.bf16.msra.mxu0 0
        %790 = vmatprep.subr.bf16.mxu0 0
        %791 = vmatpush1.bf16.msra.mxu0 0
        %792 = vmatprep.subr.bf16.mxu0 0
        %793 = vmatpush1.bf16.msra.mxu0 0
        %794 = vmatprep.subr.bf16.mxu0 0
        %795 = vmatpush1.bf16.msra.mxu0 0
        %796 = vmatprep.subr.bf16.mxu0 0
        %797 = vmatpush1.bf16.msra.mxu0 0
        %798 = vmatprep.subr.bf16.mxu0 0
        %799 = vmatpush1.bf16.msra.mxu0 0
        %800 = vmatprep.subr.bf16.mxu0 0
        %801 = vmatpush1.bf16.msra.mxu0 0
        %802 = vmatprep.subr.bf16.mxu0 0
        %803 = vmatpush1.bf16.msra.mxu0 0
        %804 = vmatprep.subr.bf16.mxu0 0
        %805 = vmatpush1.bf16.msra.mxu0 0
        %806 = vmatprep.subr.bf16.mxu0 0
        %807 = vmatpush1.bf16.msra.mxu0 0
        %808 = vmatprep.mubr.bf16.mxu0 0
        %809 = vmatmul.mubr.bf16.gmra.mrb[0].mxu0 %v765
        %v810 = vpop.f32.mrb[0].mxu0
        %v811 = vadd.f32 %v706, %v810
        %v812 = vpop.f32.mrb[0].mxu0
        %v813 = vadd.f32 %v708, %v812
        %v814 = vpop.f32.mrb[0].mxu0
        %v815 = vadd.f32 %v710, %v814
        %v816 = vpop.f32.mrb[0].mxu0
        %v817 = vadd.f32 %v712, %v816
        %818 = vmatprep.mubr.bf16.mxu0 0
        %819 = vmatmul.mubr.bf16.gmra.mrb[0].mxu0 %v768
        %v820 = vpop.f32.mrb[0].mxu0
        %v821 = vadd.f32 %v716, %v820
        %v822 = vpop.f32.mrb[0].mxu0
        %v823 = vadd.f32 %v718, %v822
        %v824 = vpop.f32.mrb[0].mxu0
        %v825 = vadd.f32 %v720, %v824
        %v826 = vpop.f32.mrb[0].mxu0
        %v827 = vadd.f32 %v722, %v826
        %828 = vmatprep.mubr.bf16.mxu0 0
        %829 = vmatmul.mubr.bf16.gmra.mrb[0].mxu0 %v771
        %v830 = vpop.f32.mrb[0].mxu0
        %v831 = vadd.f32 %v726, %v830
        %v832 = vpop.f32.mrb[0].mxu0
        %v833 = vadd.f32 %v728, %v832
        %v834 = vpop.f32.mrb[0].mxu0
        %v835 = vadd.f32 %v730, %v834
        %v836 = vpop.f32.mrb[0].mxu0
        %v837 = vadd.f32 %v732, %v836
        %838 = vmatprep.mubr.bf16.mxu0 0
        %839 = vmatmul.mubr.bf16.gmra.mrb[0].mxu0 %v774
        %v840 = vpop.f32.mrb[0].mxu0
        %v841 = vadd.f32 %v736, %v840
        %v842 = vpop.f32.mrb[0].mxu0
        %v843 = vadd.f32 %v738, %v842
        %v844 = vpop.f32.mrb[0].mxu0
        %v845 = vadd.f32 %v740, %v844
        %v846 = vpop.f32.mrb[0].mxu0
        %v847 = vadd.f32 %v742, %v846
        %848 = vdwg.mxu0
        %849 = vrot.lane.b32.xlu0 %v513, 112
        %v850 = vpop.permute.xlu0 %849
        %851 = vrot.lane.b32.xlu0 %v514, 112
        %v852 = vpop.permute.xlu0 %851
        %853 = vrot.lane.b32.xlu0 %v515, 112
        %v854 = vpop.permute.xlu0 %853
        %855 = vrot.lane.b32.xlu0 %v516, 112
        %v856 = vpop.permute.xlu0 %855
        %857 = vrot.lane.b32.xlu0 %v517, 112
        %v858 = vpop.permute.xlu0 %857
        %859 = vrot.lane.b32.xlu0 %v518, 112
        %v860 = vpop.permute.xlu0 %859
        %861 = vrot.lane.b32.xlu0 %v519, 112
        %v862 = vpop.permute.xlu0 %861
        %863 = vrot.lane.b32.xlu0 %v520, 112
        %v864 = vpop.permute.xlu0 %863
        %vm865 = vcmask 916480
        %v866 = vsel %vm865, %v850, %v852
        %v867 = vsel %vm865, %v854, %v856
        %v868 = vsel %vm865, %v858, %v860
        %v869 = vsel %vm865, %v862, %v864
        %vm874 = vcmask 916480
        %v876 = vsel %vm874, %v852, 0
        %v879 = vsel %vm874, %v856, 0
        %v882 = vsel %vm874, %v860, 0
        %v885 = vsel %vm874, %v864, 0
        %vm887 = vcmp.lt.s32.totalorder %v555, 240
        %vm888 = vcmp.lt.s32.totalorder %v556, 240
        %v889 = vsel %vm887, 1, 0
        %v890 = vsel %vm888, 1, 0
        %vm891 = vcmp.eq.s32.totalorder %v889, 1
        %vm892 = vcmp.eq.s32.totalorder %v890, 1
        %vm893 = vmpackc.low %vm892, %vm891
        %v894 = vsel %vm893, 65537, 0
        %v895 = vlaneseq
        %v896 = vshrl.u32 %v895, 7
        %v897 = vsub.s32 0, %v896
        %v898 = vrot.slane %v894, %v897
        %v899 = vlaneseq
        %v900 = vshrl.u32 %v899, 7
        %v901 = vsub.s32 4, %v900
        %v902 = vrot.slane %v894, %v901
        %vm903 = vcmp.ne.s16.totalorder %v898, 0
        %vm904 = vcmp.ne.s16.totalorder %v902, 0
        %v905 = vsel %vm903, %v866, 0
        %v906 = vsel %vm904, %v876, 0
        %v907 = vsel %vm903, %v867, 0
        %v908 = vsel %vm904, %v879, 0
        %v909 = vsel %vm903, %v868, 0
        %v910 = vsel %vm904, %v882, 0
        %v911 = vsel %vm903, %v869, 0
        %v912 = vsel %vm904, %v885, 0
        %s913 = scalar_lea.vmem %s1, 64
        %v914 = vld [vmem:[%s913] sm:$0xf]
        %v915 = vld [vmem:[%s913 + $0x4] sm:$0xf]
        %v916 = vld [vmem:[%s913 + $0x8] sm:$0xf]
        %v917 = vld [vmem:[%s913 + $0xc] sm:$0xf]
        %v918 = vld [vmem:[%s913 + $0x10] sm:$0xf]
        %v919 = vld [vmem:[%s913 + $0x14] sm:$0xf]
        %v920 = vld [vmem:[%s913 + $0x18] sm:$0xf]
        %v921 = vld [vmem:[%s913 + $0x1c] sm:$0xf]
        %v930 = vunpack.c.l.b16 %v914
        %v931 = vunpack.c.l.b16 %v915
        %v932 = vunpack.c.l.b16 %v916
        %v933 = vunpack.c.l.b16 %v917
        %v934 = vunpack.c.l.b16 %v918
        %v935 = vunpack.c.l.b16 %v919
        %v936 = vunpack.c.l.b16 %v920
        %v937 = vunpack.c.l.b16 %v921
        %v938 = vpack.c.b16 %v931, %v930
        %v939 = vpack.c.b16 %v933, %v932
        %v940 = vpack.c.b16 %v935, %v934
        %v941 = vpack.c.b16 %v937, %v936
        %v943 = vsel %vm658, %v938, 0
        %v946 = vsel %vm658, %v939, 0
        %v949 = vsel %vm658, %v940, 0
        %v952 = vsel %vm658, %v941, 0
        %954 = vmatprep.subr.bf16.mxu0 %v906
        %955 = vmatpush1.bf16.msra.mxu0 %v905
        %956 = vmatprep.subr.bf16.mxu0 %v908
        %957 = vmatpush1.bf16.msra.mxu0 %v907
        %958 = vmatprep.subr.bf16.mxu0 %v910
        %959 = vmatpush1.bf16.msra.mxu0 %v909
        %960 = vmatprep.subr.bf16.mxu0 %v912
        %961 = vmatpush1.bf16.msra.mxu0 %v911
        %962 = vmatprep.subr.bf16.mxu0 0
        %963 = vmatpush1.bf16.msra.mxu0 0
        %964 = vmatprep.subr.bf16.mxu0 0
        %965 = vmatpush1.bf16.msra.mxu0 0
        %966 = vmatprep.subr.bf16.mxu0 0
        %967 = vmatpush1.bf16.msra.mxu0 0
        %968 = vmatprep.subr.bf16.mxu0 0
        %969 = vmatpush1.bf16.msra.mxu0 0
        %970 = vmatprep.subr.bf16.mxu0 0
        %971 = vmatpush1.bf16.msra.mxu0 0
        %972 = vmatprep.subr.bf16.mxu0 0
        %973 = vmatpush1.bf16.msra.mxu0 0
        %974 = vmatprep.subr.bf16.mxu0 0
        %975 = vmatpush1.bf16.msra.mxu0 0
        %976 = vmatprep.subr.bf16.mxu0 0
        %977 = vmatpush1.bf16.msra.mxu0 0
        %978 = vmatprep.subr.bf16.mxu0 0
        %979 = vmatpush1.bf16.msra.mxu0 0
        %980 = vmatprep.subr.bf16.mxu0 0
        %981 = vmatpush1.bf16.msra.mxu0 0
        %982 = vmatprep.subr.bf16.mxu0 0
        %983 = vmatpush1.bf16.msra.mxu0 0
        %984 = vmatprep.subr.bf16.mxu0 0
        %985 = vmatpush1.bf16.msra.mxu0 0
        %986 = vmatprep.mubr.bf16.mxu0 0
        %987 = vmatmul.mubr.bf16.gmra.mrb[0].mxu0 %v943
        %v988 = vpop.f32.mrb[0].mxu0
        %v989 = vadd.f32 0.0, %v988
        %v990 = vpop.f32.mrb[0].mxu0
        %v991 = vadd.f32 0.0, %v990
        %v992 = vpop.f32.mrb[0].mxu0
        %v993 = vadd.f32 0.0, %v992
        %v994 = vpop.f32.mrb[0].mxu0
        %v995 = vadd.f32 0.0, %v994
        %996 = vmatprep.mubr.bf16.mxu0 0
        %997 = vmatmul.mubr.bf16.gmra.mrb[0].mxu0 %v946
        %v998 = vpop.f32.mrb[0].mxu0
        %v999 = vadd.f32 0.0, %v998
        %v1000 = vpop.f32.mrb[0].mxu0
        %v1001 = vadd.f32 0.0, %v1000
        %v1002 = vpop.f32.mrb[0].mxu0
        %v1003 = vadd.f32 0.0, %v1002
        %v1004 = vpop.f32.mrb[0].mxu0
        %v1005 = vadd.f32 0.0, %v1004
        %1006 = vmatprep.mubr.bf16.mxu0 0
        %1007 = vmatmul.mubr.bf16.gmra.mrb[0].mxu0 %v949
        %v1008 = vpop.f32.mrb[0].mxu0
        %v1009 = vadd.f32 0.0, %v1008
        %v1010 = vpop.f32.mrb[0].mxu0
        %v1011 = vadd.f32 0.0, %v1010
        %v1012 = vpop.f32.mrb[0].mxu0
        %v1013 = vadd.f32 0.0, %v1012
        %v1014 = vpop.f32.mrb[0].mxu0
        %v1015 = vadd.f32 0.0, %v1014
        %1016 = vmatprep.mubr.bf16.mxu0 0
        %1017 = vmatmul.mubr.bf16.gmra.mrb[0].mxu0 %v952
        %v1018 = vpop.f32.mrb[0].mxu0
        %v1019 = vadd.f32 0.0, %v1018
        %v1020 = vpop.f32.mrb[0].mxu0
        %v1021 = vadd.f32 0.0, %v1020
        %v1022 = vpop.f32.mrb[0].mxu0
        %v1023 = vadd.f32 0.0, %v1022
        %v1024 = vpop.f32.mrb[0].mxu0
        %v1025 = vadd.f32 0.0, %v1024
        %1026 = vdwg.mxu0
        %v1027 = vadd.f32 %v811, %v989
        %v1028 = vadd.f32 %v813, %v991
        %v1029 = vadd.f32 %v815, %v993
        %v1030 = vadd.f32 %v817, %v995
        %v1031 = vadd.f32 %v821, %v999
        %v1032 = vadd.f32 %v823, %v1001
        %v1033 = vadd.f32 %v825, %v1003
        %v1034 = vadd.f32 %v827, %v1005
        %v1035 = vadd.f32 %v831, %v1009
        %v1036 = vadd.f32 %v833, %v1011
        %v1037 = vadd.f32 %v835, %v1013
        %v1038 = vadd.f32 %v837, %v1015
        %v1039 = vadd.f32 %v841, %v1019
        %v1040 = vadd.f32 %v843, %v1021
        %v1041 = vadd.f32 %v845, %v1023
        %v1042 = vadd.f32 %v847, %v1025
        %v1043 = vld [vmem:[%s4] sm:$0xff]
        %v1044 = vld [vmem:[%s4 + $0x8] sm:$0xff]
        %v1045 = vld [vmem:[%s4 + $0x10] sm:$0xff]
        %v1046 = vld [vmem:[%s4 + $0x18] sm:$0xff]
        %v1047 = vld [vmem:[%s4 + $0x20] sm:$0xff]
        %v1048 = vld [vmem:[%s4 + $0x28] sm:$0xff]
        %v1049 = vld [vmem:[%s4 + $0x30] sm:$0xff]
        %v1050 = vld [vmem:[%s4 + $0x38] sm:$0xff]
        %1052 = vset.pattern.permute.xlu0 0
        %1053 = vperm.xlu0 %1052, %v1043
        %v1054 = vpop.permute.xlu0 %1053
        %1057 = vset.pattern.permute.xlu0 0
        %1058 = vperm.xlu0 %1057, %v1044
        %v1059 = vpop.permute.xlu0 %1058
        %1062 = vset.pattern.permute.xlu0 0
        %1063 = vperm.xlu0 %1062, %v1045
        %v1064 = vpop.permute.xlu0 %1063
        %1067 = vset.pattern.permute.xlu0 0
        %1068 = vperm.xlu0 %1067, %v1046
        %v1069 = vpop.permute.xlu0 %1068
        %1072 = vset.pattern.permute.xlu0 0
        %1073 = vperm.xlu0 %1072, %v1047
        %v1074 = vpop.permute.xlu0 %1073
        %1077 = vset.pattern.permute.xlu0 0
        %1078 = vperm.xlu0 %1077, %v1048
        %v1079 = vpop.permute.xlu0 %1078
        %1082 = vset.pattern.permute.xlu0 0
        %1083 = vperm.xlu0 %1082, %v1049
        %v1084 = vpop.permute.xlu0 %1083
        %1087 = vset.pattern.permute.xlu0 0
        %1088 = vperm.xlu0 %1087, %v1050
        %v1089 = vpop.permute.xlu0 %1088
        %v1091 = vadd.f32 %v1027, %v1054
        %v1092 = vadd.f32 %v1028, %v1054
        %v1093 = vadd.f32 %v1029, %v1059
        %v1094 = vadd.f32 %v1030, %v1059
        %v1095 = vadd.f32 %v1031, %v1064
        %v1096 = vadd.f32 %v1032, %v1064
        %v1097 = vadd.f32 %v1033, %v1069
        %v1098 = vadd.f32 %v1034, %v1069
        %v1099 = vadd.f32 %v1035, %v1074
        %v1100 = vadd.f32 %v1036, %v1074
        %v1101 = vadd.f32 %v1037, %v1079
        %v1102 = vadd.f32 %v1038, %v1079
        %v1103 = vadd.f32 %v1039, %v1084
        %v1104 = vadd.f32 %v1040, %v1084
        %v1105 = vadd.f32 %v1041, %v1089
        %v1106 = vadd.f32 %v1042, %v1089
        %1107 = vst [vmem:[%s323] sm:$0xff] %v1091
        %1108 = vst [vmem:[%s323 + $0x8] sm:$0xff] %v1092
        %1109 = vst [vmem:[%s323 + $0x10] sm:$0xff] %v1093
        %1110 = vst [vmem:[%s323 + $0x18] sm:$0xff] %v1094
        %1111 = vst [vmem:[%s323 + $0x20] sm:$0xff] %v1095
        %1112 = vst [vmem:[%s323 + $0x28] sm:$0xff] %v1096
        %1113 = vst [vmem:[%s323 + $0x30] sm:$0xff] %v1097
        %1114 = vst [vmem:[%s323 + $0x38] sm:$0xff] %v1098
        %1115 = vst [vmem:[%s323 + $0x40] sm:$0xff] %v1099
        %1116 = vst [vmem:[%s323 + $0x48] sm:$0xff] %v1100
        %1117 = vst [vmem:[%s323 + $0x50] sm:$0xff] %v1101
        %1118 = vst [vmem:[%s323 + $0x58] sm:$0xff] %v1102
        %1119 = vst [vmem:[%s323 + $0x60] sm:$0xff] %v1103
        %1120 = vst [vmem:[%s323 + $0x68] sm:$0xff] %v1104
        %1121 = vst [vmem:[%s323 + $0x70] sm:$0xff] %v1105
        %1122 = vst [vmem:[%s323 + $0x78] sm:$0xff] %v1106
        %v1123 = vadd.f32 %v1091, %v1092
        %1124 = vadd.xlane.f32.xlu0 %v1123
        %v1125 = vpop.xlane.xlu0 %1124
        %v1126 = vadd.f32 %v1093, %v1094
        %1127 = vadd.xlane.f32.xlu0 %v1126
        %v1128 = vpop.xlane.xlu0 %1127
        %v1129 = vadd.f32 %v1095, %v1096
        %1130 = vadd.xlane.f32.xlu0 %v1129
        %v1131 = vpop.xlane.xlu0 %1130
        %v1132 = vadd.f32 %v1097, %v1098
        %1133 = vadd.xlane.f32.xlu0 %v1132
        %v1134 = vpop.xlane.xlu0 %1133
        %v1135 = vadd.f32 %v1099, %v1100
        %1136 = vadd.xlane.f32.xlu0 %v1135
        %v1137 = vpop.xlane.xlu0 %1136
        %v1138 = vadd.f32 %v1101, %v1102
        %1139 = vadd.xlane.f32.xlu0 %v1138
        %v1140 = vpop.xlane.xlu0 %1139
        %v1141 = vadd.f32 %v1103, %v1104
        %1142 = vadd.xlane.f32.xlu0 %v1141
        %v1143 = vpop.xlane.xlu0 %1142
        %v1144 = vadd.f32 %v1105, %v1106
        %1145 = vadd.xlane.f32.xlu0 %v1144
        %v1146 = vpop.xlane.xlu0 %1145
        %v1147 = vmul.f32 %v1091, %v1091
        %v1148 = vmul.f32 %v1092, %v1092
        %v1149 = vmul.f32 %v1093, %v1093
        %v1150 = vmul.f32 %v1094, %v1094
        %v1151 = vmul.f32 %v1095, %v1095
        %v1152 = vmul.f32 %v1096, %v1096
        %v1153 = vmul.f32 %v1097, %v1097
        %v1154 = vmul.f32 %v1098, %v1098
        %v1155 = vmul.f32 %v1099, %v1099
        %v1156 = vmul.f32 %v1100, %v1100
        %v1157 = vmul.f32 %v1101, %v1101
        %v1158 = vmul.f32 %v1102, %v1102
        %v1159 = vmul.f32 %v1103, %v1103
        %v1160 = vmul.f32 %v1104, %v1104
        %v1161 = vmul.f32 %v1105, %v1105
        %v1162 = vmul.f32 %v1106, %v1106
        %v1163 = vadd.f32 %v1147, %v1148
        %1164 = vadd.xlane.f32.xlu0 %v1163
        %v1165 = vpop.xlane.xlu0 %1164
        %v1166 = vadd.f32 %v1149, %v1150
        %1167 = vadd.xlane.f32.xlu0 %v1166
        %v1168 = vpop.xlane.xlu0 %1167
        %v1169 = vadd.f32 %v1151, %v1152
        %1170 = vadd.xlane.f32.xlu0 %v1169
        %v1171 = vpop.xlane.xlu0 %1170
        %v1172 = vadd.f32 %v1153, %v1154
        %1173 = vadd.xlane.f32.xlu0 %v1172
        %v1174 = vpop.xlane.xlu0 %1173
        %v1175 = vadd.f32 %v1155, %v1156
        %1176 = vadd.xlane.f32.xlu0 %v1175
        %v1177 = vpop.xlane.xlu0 %1176
        %v1178 = vadd.f32 %v1157, %v1158
        %1179 = vadd.xlane.f32.xlu0 %v1178
        %v1180 = vpop.xlane.xlu0 %1179
        %v1181 = vadd.f32 %v1159, %v1160
        %1182 = vadd.xlane.f32.xlu0 %v1181
        %v1183 = vpop.xlane.xlu0 %1182
        %v1184 = vadd.f32 %v1161, %v1162
        %1185 = vadd.xlane.f32.xlu0 %v1184
        %v1186 = vpop.xlane.xlu0 %1185
        %1187 = vst [vmem:[%s344] sm:$0xff] %v1125
        %1188 = vst [vmem:[%s344 + $0x8] sm:$0xff] %v1128
        %1189 = vst [vmem:[%s344 + $0x10] sm:$0xff] %v1131
        %1190 = vst [vmem:[%s344 + $0x18] sm:$0xff] %v1134
        %1191 = vst [vmem:[%s344 + $0x20] sm:$0xff] %v1137
        %1192 = vst [vmem:[%s344 + $0x28] sm:$0xff] %v1140
        %1193 = vst [vmem:[%s344 + $0x30] sm:$0xff] %v1143
        %1194 = vst [vmem:[%s344 + $0x38] sm:$0xff] %v1146
        %1195 = vst [vmem:[%s349] sm:$0xff] %v1165
        %1196 = vst [vmem:[%s349 + $0x8] sm:$0xff] %v1168
        %1197 = vst [vmem:[%s349 + $0x10] sm:$0xff] %v1171
        %1198 = vst [vmem:[%s349 + $0x18] sm:$0xff] %v1174
        %1199 = vst [vmem:[%s349 + $0x20] sm:$0xff] %v1177
        %1200 = vst [vmem:[%s349 + $0x28] sm:$0xff] %v1180
        %1201 = vst [vmem:[%s349 + $0x30] sm:$0xff] %v1183
        %1202 = vst [vmem:[%s349 + $0x38] sm:$0xff] %v1186
        %s1203 = sand.u32 %s137, 1
        %s1204 = sand.u32 %s137, 1
        %s1205 = smul.addr %s1204, 128
        %s1206 = scalar_lea.vmem [#allocation3], %s1205
        %p1207 = scmp.lt.s32.totalorder %s19, 1
        %s1208 = scalar_select %p1207, %s19, 1
        %s1209 = smul.addr %s1208, 8
        %s1210 = smul.addr %s1209, 8
        %s1211 = scalar_lea.vmem %s6, %s1210
        %p1212 = scmp.lt.s32.totalorder %s19, 1
        %s1213 = scalar_select %p1212, %s19, 1
        %s1214 = smul.addr %s1213, 8
        %s1215 = smul.addr %s1214, 8
        %s1216 = scalar_lea.vmem %s7, %s1215
        // Predicated region
        $region64: #{sqnxt_unit_forward.10} parent=58 // pred_check
          %p1217 = pneg %p147
        $region65: #{sqnxt_unit_forward.10} parent=58 // pred_check_branch
          %1219 = sbr.rel (%p1217) target = $region67
        $region66: #{sqnxt_unit_forward.10} parent=58 // pred_region
          %s1220 = smul.u32 2, %s19
          %s1221 = smul.addr %s1220, 8
          %s1222 = scalar_lea.vmem %s5, %s1221
          // Predicated region
          $region68: #{sqnxt_unit_forward.10} parent=66 // pred_check
            _
          $region69: #{sqnxt_unit_forward.10} parent=66 // pred_check_branch
            %1224 = sbr.rel (0) target = $region71
          $region70: #{sqnxt_unit_forward.10} parent=66 // pred_region
            // Predicated region
            $region72: #{sqnxt_unit_forward.10} parent=70 // pred_check
              _
            $region73: #{sqnxt_unit_forward.10} parent=70 // pred_check_branch
              %1226 = sbr.rel (0) target = $region75
            $region74: #{sqnxt_unit_forward.10} parent=70 // pred_region
              loop: start=0, step=1, limit=1
              $region76: #{sqnxt_unit_forward.10} parent=74 // loop_pre_header
                _
              $region77: #{sqnxt_unit_forward.10} parent=74 // loop_header
                %s1228 = sphi 0, %s1232
                %p1229 = scmp.ge.s32.totalorder %s1228, 1
                %s1233 = sphi %s1206, %s1206
                %s1234 = sphi %s1222, %s1222
              $region78: #{sqnxt_unit_forward.10} parent=74 // loop_header_branch
                %1231 = sbr.rel (%p1229) target = $region82
              $region79: #{sqnxt_unit_forward.10} parent=74 // loop_body
                %v1235 = vld [vmem:[%s1233] sm:$0xff]
                %1236 = vst [vmem:[%s1234] sm:$0xff] %v1235
                %v1237 = vld [vmem:[%s1233 + $0x8] sm:$0xff]
                %1238 = vst [vmem:[%s1234 + $0x8] sm:$0xff] %v1237
                %v1239 = vld [vmem:[%s1233 + $0x10] sm:$0xff]
                %1240 = vst [vmem:[%s1234 + $0x20] sm:$0xff] %v1239
                %v1241 = vld [vmem:[%s1233 + $0x18] sm:$0xff]
                %1242 = vst [vmem:[%s1234 + $0x28] sm:$0xff] %v1241
                %v1243 = vld [vmem:[%s1233 + $0x20] sm:$0xff]
                %1244 = vst [vmem:[%s1234 + $0x40] sm:$0xff] %v1243
                %v1245 = vld [vmem:[%s1233 + $0x28] sm:$0xff]
                %1246 = vst [vmem:[%s1234 + $0x48] sm:$0xff] %v1245
                %v1247 = vld [vmem:[%s1233 + $0x30] sm:$0xff]
                %1248 = vst [vmem:[%s1234 + $0x60] sm:$0xff] %v1247
                %v1249 = vld [vmem:[%s1233 + $0x38] sm:$0xff]
                %1250 = vst [vmem:[%s1234 + $0x68] sm:$0xff] %v1249
                %v1251 = vld [vmem:[%s1233 + $0x40] sm:$0xff]
                %1252 = vst [vmem:[%s1234 + $0x80] sm:$0xff] %v1251
                %v1253 = vld [vmem:[%s1233 + $0x48] sm:$0xff]
                %1254 = vst [vmem:[%s1234 + $0x88] sm:$0xff] %v1253
                %v1255 = vld [vmem:[%s1233 + $0x50] sm:$0xff]
                %1256 = vst [vmem:[%s1234 + $0xa0] sm:$0xff] %v1255
                %v1257 = vld [vmem:[%s1233 + $0x58] sm:$0xff]
                %1258 = vst [vmem:[%s1234 + $0xa8] sm:$0xff] %v1257
                %v1259 = vld [vmem:[%s1233 + $0x60] sm:$0xff]
                %1260 = vst [vmem:[%s1234 + $0xc0] sm:$0xff] %v1259
                %v1261 = vld [vmem:[%s1233 + $0x68] sm:$0xff]
                %1262 = vst [vmem:[%s1234 + $0xc8] sm:$0xff] %v1261
                %v1263 = vld [vmem:[%s1233 + $0x70] sm:$0xff]
                %1264 = vst [vmem:[%s1234 + $0xe0] sm:$0xff] %v1263
                %v1265 = vld [vmem:[%s1233 + $0x78] sm:$0xff]
                %1266 = vst [vmem:[%s1234 + $0xe8] sm:$0xff] %v1265
              $region80: #{sqnxt_unit_forward.10} parent=74 // loop_footer
                %s1232 = sadd.s32 1, %s1228
              $region81: #{sqnxt_unit_forward.10} parent=74 // loop_footer_branch
                %1227 = sbr.rel target = $region77
              $region82: #{sqnxt_unit_forward.10} parent=74 // loop_exit
                _
            $region75: #{sqnxt_unit_forward.10} parent=70 // pred_fallthru
              _
            // Predicated region
            $region83: #{sqnxt_unit_forward.10} parent=70 // pred_check
              _
            $region84: #{sqnxt_unit_forward.10} parent=70 // pred_check_branch
              %1268 = sbr.rel target = $region86
            $region85: #{sqnxt_unit_forward.10} parent=70 // pred_region
              _
            $region86: #{sqnxt_unit_forward.10} parent=70 // pred_fallthru
              _
          $region71: #{sqnxt_unit_forward.10} parent=66 // pred_fallthru
            _
          %1269 = vnop
        $region67: #{sqnxt_unit_forward.10} parent=58 // pred_fallthru
          _
        // Predicated region
        $region87: #{sqnxt_unit_forward.10} parent=58 // pred_check
          %p1270 = pneg %p173
        $region88: #{sqnxt_unit_forward.10} parent=58 // pred_check_branch
          %1272 = sbr.rel (%p1270) target = $region90
        $region89: #{sqnxt_unit_forward.10} parent=58 // pred_region
          _
        $region90: #{sqnxt_unit_forward.10} parent=58 // pred_fallthru
          _
        // Predicated region
        $region91: #{sqnxt_unit_forward.10} parent=58 // pred_check
          %p1273 = pneg %p199
        $region92: #{sqnxt_unit_forward.10} parent=58 // pred_check_branch
          %1275 = sbr.rel (%p1273) target = $region94
        $region93: #{sqnxt_unit_forward.10} parent=58 // pred_region
          _
        $region94: #{sqnxt_unit_forward.10} parent=58 // pred_fallthru
          _
      $region59: #{sqnxt_unit_forward.10} parent=5 // pred_fallthru
        _
      %p1276 = scmp.le.s32.totalorder 2, %s14
      // Predicated region
      $region95: #{sqnxt_unit_forward.10} parent=5 // pred_check
        %p1277 = pneg %p1276
      $region96: #{sqnxt_unit_forward.10} parent=5 // pred_check_branch
        %1279 = sbr.rel (%p1277) target = $region98
      $region97: #{sqnxt_unit_forward.10} parent=5 // pred_region
        %s1280 = ssub.s32 %s14, 2
        // Predicated region
        $region99: #{sqnxt_unit_forward.10} parent=97 // pred_check
          %p1281 = pneg %p153
        $region100: #{sqnxt_unit_forward.10} parent=97 // pred_check_branch
          %1283 = sbr.rel (%p1281) target = $region102
        $region101: #{sqnxt_unit_forward.10} parent=97 // pred_region
          %s1284 = sand.u32 %s138, 1
          %s1285 = sand.u32 %s138, 1
          %s1286 = smul.addr %s1285, 128
          %s1287 = scalar_lea.vmem [#allocation3], %s1286
        $region102: #{sqnxt_unit_forward.10} parent=97 // pred_fallthru
          _
        // Predicated region
        $region103: #{sqnxt_unit_forward.10} parent=97 // pred_check
          %p1288 = pneg %p179
        $region104: #{sqnxt_unit_forward.10} parent=97 // pred_check_branch
          %1290 = sbr.rel (%p1288) target = $region106
        $region105: #{sqnxt_unit_forward.10} parent=97 // pred_region
          %p1291 = scmp.lt.s32.totalorder %s20, 1
          %s1292 = scalar_select %p1291, %s20, 1
          %s1293 = smul.addr %s1292, 8
          %s1294 = smul.addr %s1293, 8
          %s1295 = scalar_lea.vmem %s6, %s1294
        $region106: #{sqnxt_unit_forward.10} parent=97 // pred_fallthru
          _
        // Predicated region
        $region107: #{sqnxt_unit_forward.10} parent=97 // pred_check
          %p1296 = pneg %p205
        $region108: #{sqnxt_unit_forward.10} parent=97 // pred_check_branch
          %1298 = sbr.rel (%p1296) target = $region110
        $region109: #{sqnxt_unit_forward.10} parent=97 // pred_region
          %p1299 = scmp.lt.s32.totalorder %s20, 1
          %s1300 = scalar_select %p1299, %s20, 1
          %s1301 = smul.addr %s1300, 8
          %s1302 = smul.addr %s1301, 8
          %s1303 = scalar_lea.vmem %s7, %s1302
        $region110: #{sqnxt_unit_forward.10} parent=97 // pred_fallthru
          _
      $region98: #{sqnxt_unit_forward.10} parent=5 // pred_fallthru
        _
    $region6: #{sqnxt_unit_forward.10} parent=1 // loop_footer
      %s18 = sadd.s32 1, %s14
    $region7: #{sqnxt_unit_forward.10} parent=1 // loop_footer_branch
      %13 = sbr.rel target = $region3
    $region8: #{sqnxt_unit_forward.10} parent=1 // loop_exit
      _

// kernel: sqnxt_unit_forward.13
$region0: #{sqnxt_unit_forward.13}
  #allocation0 [shape = 'u32[]', space=smem, size = 0x4, offset = 0x4, fixed_abs, tag = 'smem constant byte address 0x4 - core index']
  #allocation1 [shape = 'u32[144,128]{1,0:T(1,128)}', space=vmem, size = 0x12000, scoped, tag = 'internal scratch']
  %s0 = inlined_call_operand.vmem [shape: f32[64,512], index: 0, kind: input, shape index: {}]
  %s1 = inlined_call_operand.vmem [shape: f32[64,1], index: 1, kind: input, shape index: {}]
  %s2 = inlined_call_operand.vmem [shape: f32[64,1], index: 2, kind: input, shape index: {}]
  %s3 = inlined_call_operand.vmem [shape: f32[64,512], index: 3, kind: input, shape index: {}]
  %s4 = inlined_call_operand.vmem [shape: f32[64,1], index: 4, kind: input, shape index: {}]
  %s5 = inlined_call_operand.vmem [shape: f32[64,1], index: 5, kind: input, shape index: {}]
  %s6 = inlined_call_operand.vmem [shape: f32[64,512], index: 6, kind: output, shape index: {}]
  %s7 = sld [smem:[#allocation0]]
  $region122: #{sqnxt_unit_forward.13} parent=0
    _
  %s9 = ssub.s32 1, %s7
  %s10 = scalar_select 0, %s9, %s7
  $region1: #{sqnxt_unit_forward.13} parent=0
    #allocation2 [shape = 'u8[131072]{0}', space=vmem, size = 0x20000, scoped, tag = 'input window, operand 0']
    #allocation3 [shape = 'u8[131072]{0}', space=vmem, size = 0x20000, scoped, tag = 'input window, operand 3']
    #allocation4 [shape = 'u8[131072]{0}', space=vmem, size = 0x20000, scoped, tag = 'output window, operand 0']
    loop: start=0, step=1, limit=4
    $region2: #{sqnxt_unit_forward.13} parent=1 // loop_pre_header
      _
    $region3: #{sqnxt_unit_forward.13} parent=1 // loop_header
      %s12 = sphi 0, %s16
      %p13 = scmp.ge.s32.totalorder %s12, 4
      %s22 = sphi 0, %s24
      %s25 = sphi 0, %s22
      %s26 = sphi 0, %s25
      %s42 = sphi 0, %s26
      %s46 = sphi 0, %s46
      %s48 = sphi 0, %s46
      %s49 = sphi 0, %s48
      %s63 = sphi 0, %s49
      %s67 = sphi 0, %s67
      %s69 = sphi 0, %s67
      %s70 = sphi 0, %s69
      %s84 = sphi 0, %s70
      %s90 = sphi 0, %s92
      %s93 = sphi 0, %s90
      %s94 = sphi 0, %s93
      %s110 = sphi 0, %s94
      %s114 = sphi 0, %s114
      %s116 = sphi 0, %s114
      %s117 = sphi 0, %s116
      %s131 = sphi 0, %s117
      %s135 = sphi 0, %s135
      %s137 = sphi 0, %s135
      %s138 = sphi 0, %s137
      %s152 = sphi 0, %s138
      %s158 = sphi 0, %s160
      %s161 = sphi 0, %s158
      %s162 = sphi 0, %s161
      %s178 = sphi 0, %s162
    $region4: #{sqnxt_unit_forward.13} parent=1 // loop_header_branch
      %15 = sbr.rel (%p13) target = $region8
    $region5: #{sqnxt_unit_forward.13} parent=1 // loop_body
      %s17 = ssub.s32 %s12, 1
      %s18 = ssub.s32 %s12, 2
      %s19 = sadd.s32 %s12, 1
      %s20 = ssub.s32 %s12, %s19
      %p21 = scmp.eq.s32.totalorder %s20, 0
      %s23 = sadd.s32 %s22, 1
      %s24 = scalar_select %p21, %s22, %s23
      %p27 = pneg %p21
      %p28 = scmp.eq.s32.totalorder %s12, 1
      %p29 = por %p27, %p28
      %p30 = scmp.ne.s32.totalorder %s22, %s25
      %p31 = scmp.eq.s32.totalorder %s12, 0
      %p32 = por %p30, %p31
      %p33 = scmp.ne.s32.totalorder %s22, %s25
      %p34 = scmp.eq.s32.totalorder %s17, 1
      %p35 = por %p33, %p34
      %p36 = scmp.ne.s32.totalorder %s25, %s26
      %p37 = scmp.eq.s32.totalorder %s17, 0
      %p38 = por %p36, %p37
      %p39 = scmp.ne.s32.totalorder %s25, %s26
      %p40 = scmp.eq.s32.totalorder %s18, 1
      %p41 = por %p39, %p40
      %p43 = scmp.ne.s32.totalorder %s26, %s42
      %p44 = scmp.eq.s32.totalorder %s18, 0
      %p45 = por %p43, %p44
      %s47 = sadd.s32 %s46, 1
      %p50 = scmp.eq.s32.totalorder %s12, 1
      %p51 = scmp.ne.s32.totalorder %s46, %s48
      %p52 = scmp.eq.s32.totalorder %s12, 0
      %p53 = por %p51, %p52
      %p54 = scmp.ne.s32.totalorder %s46, %s48
      %p55 = scmp.eq.s32.totalorder %s17, 1
      %p56 = por %p54, %p55
      %p57 = scmp.ne.s32.totalorder %s48, %s49
      %p58 = scmp.eq.s32.totalorder %s17, 0
      %p59 = por %p57, %p58
      %p60 = scmp.ne.s32.totalorder %s48, %s49
      %p61 = scmp.eq.s32.totalorder %s18, 1
      %p62 = por %p60, %p61
      %p64 = scmp.ne.s32.totalorder %s49, %s63
      %p65 = scmp.eq.s32.totalorder %s18, 0
      %p66 = por %p64, %p65
      %s68 = sadd.s32 %s67, 1
      %p71 = scmp.eq.s32.totalorder %s12, 1
      %p72 = scmp.ne.s32.totalorder %s67, %s69
      %p73 = scmp.eq.s32.totalorder %s12, 0
      %p74 = por %p72, %p73
      %p75 = scmp.ne.s32.totalorder %s67, %s69
      %p76 = scmp.eq.s32.totalorder %s17, 1
      %p77 = por %p75, %p76
      %p78 = scmp.ne.s32.totalorder %s69, %s70
      %p79 = scmp.eq.s32.totalorder %s17, 0
      %p80 = por %p78, %p79
      %p81 = scmp.ne.s32.totalorder %s69, %s70
      %p82 = scmp.eq.s32.totalorder %s18, 1
      %p83 = por %p81, %p82
      %p85 = scmp.ne.s32.totalorder %s70, %s84
      %p86 = scmp.eq.s32.totalorder %s18, 0
      %p87 = por %p85, %p86
      %s88 = ssub.s32 %s12, %s19
      %p89 = scmp.eq.s32.totalorder %s88, 0
      %s91 = sadd.s32 %s90, 1
      %s92 = scalar_select %p89, %s90, %s91
      %p95 = pneg %p89
      %p96 = scmp.eq.s32.totalorder %s12, 1
      %p97 = por %p95, %p96
      %p98 = scmp.ne.s32.totalorder %s90, %s93
      %p99 = scmp.eq.s32.totalorder %s12, 0
      %p100 = por %p98, %p99
      %p101 = scmp.ne.s32.totalorder %s90, %s93
      %p102 = scmp.eq.s32.totalorder %s17, 1
      %p103 = por %p101, %p102
      %p104 = scmp.ne.s32.totalorder %s93, %s94
      %p105 = scmp.eq.s32.totalorder %s17, 0
      %p106 = por %p104, %p105
      %p107 = scmp.ne.s32.totalorder %s93, %s94
      %p108 = scmp.eq.s32.totalorder %s18, 1
      %p109 = por %p107, %p108
      %p111 = scmp.ne.s32.totalorder %s94, %s110
      %p112 = scmp.eq.s32.totalorder %s18, 0
      %p113 = por %p111, %p112
      %s115 = sadd.s32 %s114, 1
      %p118 = scmp.eq.s32.totalorder %s12, 1
      %p119 = scmp.ne.s32.totalorder %s114, %s116
      %p120 = scmp.eq.s32.totalorder %s12, 0
      %p121 = por %p119, %p120
      %p122 = scmp.ne.s32.totalorder %s114, %s116
      %p123 = scmp.eq.s32.totalorder %s17, 1
      %p124 = por %p122, %p123
      %p125 = scmp.ne.s32.totalorder %s116, %s117
      %p126 = scmp.eq.s32.totalorder %s17, 0
      %p127 = por %p125, %p126
      %p128 = scmp.ne.s32.totalorder %s116, %s117
      %p129 = scmp.eq.s32.totalorder %s18, 1
      %p130 = por %p128, %p129
      %p132 = scmp.ne.s32.totalorder %s117, %s131
      %p133 = scmp.eq.s32.totalorder %s18, 0
      %p134 = por %p132, %p133
      %s136 = sadd.s32 %s135, 1
      %p139 = scmp.eq.s32.totalorder %s12, 1
      %p140 = scmp.ne.s32.totalorder %s135, %s137
      %p141 = scmp.eq.s32.totalorder %s12, 0
      %p142 = por %p140, %p141
      %p143 = scmp.ne.s32.totalorder %s135, %s137
      %p144 = scmp.eq.s32.totalorder %s17, 1
      %p145 = por %p143, %p144
      %p146 = scmp.ne.s32.totalorder %s137, %s138
      %p147 = scmp.eq.s32.totalorder %s17, 0
      %p148 = por %p146, %p147
      %p149 = scmp.ne.s32.totalorder %s137, %s138
      %p150 = scmp.eq.s32.totalorder %s18, 1
      %p151 = por %p149, %p150
      %p153 = scmp.ne.s32.totalorder %s138, %s152
      %p154 = scmp.eq.s32.totalorder %s18, 0
      %p155 = por %p153, %p154
      %s156 = ssub.s32 %s12, %s19
      %p157 = scmp.eq.s32.totalorder %s156, 0
      %s159 = sadd.s32 %s158, 1
      %s160 = scalar_select %p157, %s158, %s159
      %p163 = pneg %p157
      %p164 = scmp.eq.s32.totalorder %s12, 1
      %p165 = por %p163, %p164
      %p166 = scmp.ne.s32.totalorder %s158, %s161
      %p167 = scmp.eq.s32.totalorder %s12, 0
      %p168 = por %p166, %p167
      %p169 = scmp.ne.s32.totalorder %s158, %s161
      %p170 = scmp.eq.s32.totalorder %s17, 1
      %p171 = por %p169, %p170
      %p172 = scmp.ne.s32.totalorder %s161, %s162
      %p173 = scmp.eq.s32.totalorder %s17, 0
      %p174 = por %p172, %p173
      %p175 = scmp.ne.s32.totalorder %s161, %s162
      %p176 = scmp.eq.s32.totalorder %s18, 1
      %p177 = por %p175, %p176
      %p179 = scmp.ne.s32.totalorder %s162, %s178
      %p180 = scmp.eq.s32.totalorder %s18, 0
      %p181 = por %p179, %p180
      %p182 = scmp.le.s32.totalorder 1, %s12
      %p183 = scmp.lt.s32.totalorder %s12, 3
      %p184 = pnand %p182, %p183
      %p185 = pneg %p184
      // Predicated region
      $region9: #{sqnxt_unit_forward.13} parent=5 // pred_check
        _
      $region10: #{sqnxt_unit_forward.13} parent=5 // pred_check_branch
        %187 = sbr.rel (%p184) target = $region12
      $region11: #{sqnxt_unit_forward.13} parent=5 // pred_region
        %s188 = ssub.s32 %s12, 1
        // Predicated region
        $region13: #{sqnxt_unit_forward.13} parent=11 // pred_check
          %p189 = pneg %p59
        $region14: #{sqnxt_unit_forward.13} parent=11 // pred_check_branch
          %191 = sbr.rel (%p189) target = $region16
        $region15: #{sqnxt_unit_forward.13} parent=11 // pred_region
          _
        $region16: #{sqnxt_unit_forward.13} parent=11 // pred_fallthru
          _
        // Predicated region
        $region17: #{sqnxt_unit_forward.13} parent=11 // pred_check
          %p192 = pneg %p80
        $region18: #{sqnxt_unit_forward.13} parent=11 // pred_check_branch
          %194 = sbr.rel (%p192) target = $region20
        $region19: #{sqnxt_unit_forward.13} parent=11 // pred_region
          _
        $region20: #{sqnxt_unit_forward.13} parent=11 // pred_fallthru
          _
        // Predicated region
        $region21: #{sqnxt_unit_forward.13} parent=11 // pred_check
          %p195 = pneg %p127
        $region22: #{sqnxt_unit_forward.13} parent=11 // pred_check_branch
          %197 = sbr.rel (%p195) target = $region24
        $region23: #{sqnxt_unit_forward.13} parent=11 // pred_region
          _
        $region24: #{sqnxt_unit_forward.13} parent=11 // pred_fallthru
          _
        // Predicated region
        $region25: #{sqnxt_unit_forward.13} parent=11 // pred_check
          %p198 = pneg %p148
        $region26: #{sqnxt_unit_forward.13} parent=11 // pred_check_branch
          %200 = sbr.rel (%p198) target = $region28
        $region27: #{sqnxt_unit_forward.13} parent=11 // pred_region
          _
        $region28: #{sqnxt_unit_forward.13} parent=11 // pred_fallthru
          _
      $region12: #{sqnxt_unit_forward.13} parent=5 // pred_fallthru
        _
      %p201 = scmp.lt.s32.totalorder %s12, 2
      // Predicated region
      $region29: #{sqnxt_unit_forward.13} parent=5 // pred_check
        %p202 = pneg %p201
      $region30: #{sqnxt_unit_forward.13} parent=5 // pred_check_branch
        %204 = sbr.rel (%p202) target = $region32
      $region31: #{sqnxt_unit_forward.13} parent=5 // pred_region
        // Predicated region
        $region33: #{sqnxt_unit_forward.13} parent=31 // pred_check
          %p205 = pneg %p32
        $region34: #{sqnxt_unit_forward.13} parent=31 // pred_check_branch
          %207 = sbr.rel (%p205) target = $region36
        $region35: #{sqnxt_unit_forward.13} parent=31 // pred_region
          %s208 = sand.u32 %s22, 1
          %s209 = sand.u32 %s22, 1
          %s210 = smul.addr %s209, 128
          %s211 = scalar_lea.vmem [#allocation2], %s210
          %s212 = smul.u32 2, %s12
          %s213 = smul.addr %s212, 8
          %s214 = scalar_lea.vmem %s0, %s213
          // Predicated region
          $region37: #{sqnxt_unit_forward.13} parent=35 // pred_check
            _
          $region38: #{sqnxt_unit_forward.13} parent=35 // pred_check_branch
            %216 = sbr.rel (0) target = $region40
          $region39: #{sqnxt_unit_forward.13} parent=35 // pred_region
            // Predicated region
            $region41: #{sqnxt_unit_forward.13} parent=39 // pred_check
              _
            $region42: #{sqnxt_unit_forward.13} parent=39 // pred_check_branch
              %218 = sbr.rel (0) target = $region44
            $region43: #{sqnxt_unit_forward.13} parent=39 // pred_region
              loop: start=0, step=1, limit=1
              $region45: #{sqnxt_unit_forward.13} parent=43 // loop_pre_header
                _
              $region46: #{sqnxt_unit_forward.13} parent=43 // loop_header
                %s220 = sphi 0, %s224
                %p221 = scmp.ge.s32.totalorder %s220, 1
                %s225 = sphi %s214, %s214
                %s226 = sphi %s211, %s211
              $region47: #{sqnxt_unit_forward.13} parent=43 // loop_header_branch
                %223 = sbr.rel (%p221) target = $region51
              $region48: #{sqnxt_unit_forward.13} parent=43 // loop_body
                %v227 = vld [vmem:[%s225] sm:$0xff]
                %228 = vst [vmem:[%s226] sm:$0xff] %v227
                %v229 = vld [vmem:[%s225 + $0x8] sm:$0xff]
                %230 = vst [vmem:[%s226 + $0x8] sm:$0xff] %v229
                %v231 = vld [vmem:[%s225 + $0x20] sm:$0xff]
                %232 = vst [vmem:[%s226 + $0x10] sm:$0xff] %v231
                %v233 = vld [vmem:[%s225 + $0x28] sm:$0xff]
                %234 = vst [vmem:[%s226 + $0x18] sm:$0xff] %v233
                %v235 = vld [vmem:[%s225 + $0x40] sm:$0xff]
                %236 = vst [vmem:[%s226 + $0x20] sm:$0xff] %v235
                %v237 = vld [vmem:[%s225 + $0x48] sm:$0xff]
                %238 = vst [vmem:[%s226 + $0x28] sm:$0xff] %v237
                %v239 = vld [vmem:[%s225 + $0x60] sm:$0xff]
                %240 = vst [vmem:[%s226 + $0x30] sm:$0xff] %v239
                %v241 = vld [vmem:[%s225 + $0x68] sm:$0xff]
                %242 = vst [vmem:[%s226 + $0x38] sm:$0xff] %v241
                %v243 = vld [vmem:[%s225 + $0x80] sm:$0xff]
                %244 = vst [vmem:[%s226 + $0x40] sm:$0xff] %v243
                %v245 = vld [vmem:[%s225 + $0x88] sm:$0xff]
                %246 = vst [vmem:[%s226 + $0x48] sm:$0xff] %v245
                %v247 = vld [vmem:[%s225 + $0xa0] sm:$0xff]
                %248 = vst [vmem:[%s226 + $0x50] sm:$0xff] %v247
                %v249 = vld [vmem:[%s225 + $0xa8] sm:$0xff]
                %250 = vst [vmem:[%s226 + $0x58] sm:$0xff] %v249
                %v251 = vld [vmem:[%s225 + $0xc0] sm:$0xff]
                %252 = vst [vmem:[%s226 + $0x60] sm:$0xff] %v251
                %v253 = vld [vmem:[%s225 + $0xc8] sm:$0xff]
                %254 = vst [vmem:[%s226 + $0x68] sm:$0xff] %v253
                %v255 = vld [vmem:[%s225 + $0xe0] sm:$0xff]
                %256 = vst [vmem:[%s226 + $0x70] sm:$0xff] %v255
                %v257 = vld [vmem:[%s225 + $0xe8] sm:$0xff]
                %258 = vst [vmem:[%s226 + $0x78] sm:$0xff] %v257
              $region49: #{sqnxt_unit_forward.13} parent=43 // loop_footer
                %s224 = sadd.s32 1, %s220
              $region50: #{sqnxt_unit_forward.13} parent=43 // loop_footer_branch
                %219 = sbr.rel target = $region46
              $region51: #{sqnxt_unit_forward.13} parent=43 // loop_exit
                _
            $region44: #{sqnxt_unit_forward.13} parent=39 // pred_fallthru
              _
            // Predicated region
            $region52: #{sqnxt_unit_forward.13} parent=39 // pred_check
              _
            $region53: #{sqnxt_unit_forward.13} parent=39 // pred_check_branch
              %260 = sbr.rel target = $region55
            $region54: #{sqnxt_unit_forward.13} parent=39 // pred_region
              _
            $region55: #{sqnxt_unit_forward.13} parent=39 // pred_fallthru
              _
          $region40: #{sqnxt_unit_forward.13} parent=35 // pred_fallthru
            _
          %261 = vnop
        $region36: #{sqnxt_unit_forward.13} parent=31 // pred_fallthru
          _
        // Predicated region
        $region56: #{sqnxt_unit_forward.13} parent=31 // pred_check
          %p262 = pneg %p100
        $region57: #{sqnxt_unit_forward.13} parent=31 // pred_check_branch
          %264 = sbr.rel (%p262) target = $region59
        $region58: #{sqnxt_unit_forward.13} parent=31 // pred_region
          %s265 = sand.u32 %s90, 1
          %s266 = sand.u32 %s90, 1
          %s267 = smul.addr %s266, 128
          %s268 = scalar_lea.vmem [#allocation3], %s267
          %s269 = smul.u32 2, %s12
          %s270 = smul.addr %s269, 8
          %s271 = scalar_lea.vmem %s3, %s270
          // Predicated region
          $region60: #{sqnxt_unit_forward.13} parent=58 // pred_check
            _
          $region61: #{sqnxt_unit_forward.13} parent=58 // pred_check_branch
            %273 = sbr.rel (0) target = $region63
          $region62: #{sqnxt_unit_forward.13} parent=58 // pred_region
            // Predicated region
            $region64: #{sqnxt_unit_forward.13} parent=62 // pred_check
              _
            $region65: #{sqnxt_unit_forward.13} parent=62 // pred_check_branch
              %275 = sbr.rel (0) target = $region67
            $region66: #{sqnxt_unit_forward.13} parent=62 // pred_region
              loop: start=0, step=1, limit=1
              $region68: #{sqnxt_unit_forward.13} parent=66 // loop_pre_header
                _
              $region69: #{sqnxt_unit_forward.13} parent=66 // loop_header
                %s277 = sphi 0, %s281
                %p278 = scmp.ge.s32.totalorder %s277, 1
                %s282 = sphi %s271, %s271
                %s283 = sphi %s268, %s268
              $region70: #{sqnxt_unit_forward.13} parent=66 // loop_header_branch
                %280 = sbr.rel (%p278) target = $region74
              $region71: #{sqnxt_unit_forward.13} parent=66 // loop_body
                %v284 = vld [vmem:[%s282] sm:$0xff]
                %285 = vst [vmem:[%s283] sm:$0xff] %v284
                %v286 = vld [vmem:[%s282 + $0x8] sm:$0xff]
                %287 = vst [vmem:[%s283 + $0x8] sm:$0xff] %v286
                %v288 = vld [vmem:[%s282 + $0x20] sm:$0xff]
                %289 = vst [vmem:[%s283 + $0x10] sm:$0xff] %v288
                %v290 = vld [vmem:[%s282 + $0x28] sm:$0xff]
                %291 = vst [vmem:[%s283 + $0x18] sm:$0xff] %v290
                %v292 = vld [vmem:[%s282 + $0x40] sm:$0xff]
                %293 = vst [vmem:[%s283 + $0x20] sm:$0xff] %v292
                %v294 = vld [vmem:[%s282 + $0x48] sm:$0xff]
                %295 = vst [vmem:[%s283 + $0x28] sm:$0xff] %v294
                %v296 = vld [vmem:[%s282 + $0x60] sm:$0xff]
                %297 = vst [vmem:[%s283 + $0x30] sm:$0xff] %v296
                %v298 = vld [vmem:[%s282 + $0x68] sm:$0xff]
                %299 = vst [vmem:[%s283 + $0x38] sm:$0xff] %v298
                %v300 = vld [vmem:[%s282 + $0x80] sm:$0xff]
                %301 = vst [vmem:[%s283 + $0x40] sm:$0xff] %v300
                %v302 = vld [vmem:[%s282 + $0x88] sm:$0xff]
                %303 = vst [vmem:[%s283 + $0x48] sm:$0xff] %v302
                %v304 = vld [vmem:[%s282 + $0xa0] sm:$0xff]
                %305 = vst [vmem:[%s283 + $0x50] sm:$0xff] %v304
                %v306 = vld [vmem:[%s282 + $0xa8] sm:$0xff]
                %307 = vst [vmem:[%s283 + $0x58] sm:$0xff] %v306
                %v308 = vld [vmem:[%s282 + $0xc0] sm:$0xff]
                %309 = vst [vmem:[%s283 + $0x60] sm:$0xff] %v308
                %v310 = vld [vmem:[%s282 + $0xc8] sm:$0xff]
                %311 = vst [vmem:[%s283 + $0x68] sm:$0xff] %v310
                %v312 = vld [vmem:[%s282 + $0xe0] sm:$0xff]
                %313 = vst [vmem:[%s283 + $0x70] sm:$0xff] %v312
                %v314 = vld [vmem:[%s282 + $0xe8] sm:$0xff]
                %315 = vst [vmem:[%s283 + $0x78] sm:$0xff] %v314
              $region72: #{sqnxt_unit_forward.13} parent=66 // loop_footer
                %s281 = sadd.s32 1, %s277
              $region73: #{sqnxt_unit_forward.13} parent=66 // loop_footer_branch
                %276 = sbr.rel target = $region69
              $region74: #{sqnxt_unit_forward.13} parent=66 // loop_exit
                _
            $region67: #{sqnxt_unit_forward.13} parent=62 // pred_fallthru
              _
            // Predicated region
            $region75: #{sqnxt_unit_forward.13} parent=62 // pred_check
              _
            $region76: #{sqnxt_unit_forward.13} parent=62 // pred_check_branch
              %317 = sbr.rel target = $region78
            $region77: #{sqnxt_unit_forward.13} parent=62 // pred_region
              _
            $region78: #{sqnxt_unit_forward.13} parent=62 // pred_fallthru
              _
          $region63: #{sqnxt_unit_forward.13} parent=58 // pred_fallthru
            _
          %318 = vnop
        $region59: #{sqnxt_unit_forward.13} parent=31 // pred_fallthru
          _
      $region32: #{sqnxt_unit_forward.13} parent=5 // pred_fallthru
        _
      %p319 = scmp.le.s32.totalorder 1, %s12
      %p320 = scmp.lt.s32.totalorder %s12, 3
      %p321 = pnand %p319, %p320
      %p322 = pneg %p321
      // Predicated region
      $region79: #{sqnxt_unit_forward.13} parent=5 // pred_check
        _
      $region80: #{sqnxt_unit_forward.13} parent=5 // pred_check_branch
        %324 = sbr.rel (%p321) target = $region82
      $region81: #{sqnxt_unit_forward.13} parent=5 // pred_region
        %s325 = ssub.s32 %s12, 1
        %s326 = sand.u32 %s25, 1
        %s327 = sand.u32 %s25, 1
        %s328 = smul.addr %s327, 128
        %s329 = scalar_lea.vmem [#allocation2], %s328
        // Predicated region
        $region83: #{sqnxt_unit_forward.13} parent=81 // pred_check
          %p330 = pneg %p38
        $region84: #{sqnxt_unit_forward.13} parent=81 // pred_check_branch
          %332 = sbr.rel (%p330) target = $region86
        $region85: #{sqnxt_unit_forward.13} parent=81 // pred_region
          _
        $region86: #{sqnxt_unit_forward.13} parent=81 // pred_fallthru
          _
        %s333 = sand.u32 %s93, 1
        %s334 = sand.u32 %s93, 1
        %s335 = smul.addr %s334, 128
        %s336 = scalar_lea.vmem [#allocation3], %s335
        // Predicated region
        $region87: #{sqnxt_unit_forward.13} parent=81 // pred_check
          %p337 = pneg %p106
        $region88: #{sqnxt_unit_forward.13} parent=81 // pred_check_branch
          %339 = sbr.rel (%p337) target = $region90
        $region89: #{sqnxt_unit_forward.13} parent=81 // pred_region
          _
        $region90: #{sqnxt_unit_forward.13} parent=81 // pred_fallthru
          _
        %s340 = sand.u32 %s25, 1
        %s341 = sand.u32 %s25, 1
        %s342 = smul.addr %s341, 128
        %s343 = scalar_lea.vmem [#allocation2], %s342
        %p344 = pneg %p38
        %p345 = pneg %p35
        %p346 = pneg %p59
        %p347 = pneg %p56
        %p348 = pneg %p80
        %p349 = pneg %p77
        %s350 = sand.u32 %s93, 1
        %s351 = sand.u32 %s93, 1
        %s352 = smul.addr %s351, 128
        %s353 = scalar_lea.vmem [#allocation3], %s352
        %p354 = pneg %p106
        %p355 = pneg %p103
        %p356 = pneg %p127
        %p357 = pneg %p124
        %p358 = pneg %p148
        %p359 = pneg %p145
        %p360 = pneg %p174
        %p361 = pneg %p171
        %s362 = sand.u32 %s161, 1
        %s363 = sand.u32 %s161, 1
        %s364 = smul.addr %s363, 128
        %s365 = scalar_lea.vmem [#allocation4], %s364
        %s366 = smul.u32 2, %s17
        %s367 = smul.u32 2, %s17
        %s368 = smul.u32 2, %s17
        %v369 = vld [vmem:[%s329] sm:$0xff]
        %v370 = vld [vmem:[%s329 + $0x8] sm:$0xff]
        %v371 = vld [vmem:[%s329 + $0x10] sm:$0xff]
        %v372 = vld [vmem:[%s329 + $0x18] sm:$0xff]
        %v373 = vld [vmem:[%s329 + $0x20] sm:$0xff]
        %v374 = vld [vmem:[%s329 + $0x28] sm:$0xff]
        %v375 = vld [vmem:[%s329 + $0x30] sm:$0xff]
        %v376 = vld [vmem:[%s329 + $0x38] sm:$0xff]
        %v377 = vld [vmem:[%s329 + $0x40] sm:$0xff]
        %v378 = vld [vmem:[%s329 + $0x48] sm:$0xff]
        %v379 = vld [vmem:[%s329 + $0x50] sm:$0xff]
        %v380 = vld [vmem:[%s329 + $0x58] sm:$0xff]
        %v381 = vld [vmem:[%s329 + $0x60] sm:$0xff]
        %v382 = vld [vmem:[%s329 + $0x68] sm:$0xff]
        %v383 = vld [vmem:[%s329 + $0x70] sm:$0xff]
        %v384 = vld [vmem:[%s329 + $0x78] sm:$0xff]
        %v385 = vld [vmem:[%s1] sm:$0xff]
        %v386 = vld [vmem:[%s1 + $0x8] sm:$0xff]
        %v387 = vld [vmem:[%s1 + $0x10] sm:$0xff]
        %v388 = vld [vmem:[%s1 + $0x18] sm:$0xff]
        %v389 = vld [vmem:[%s1 + $0x20] sm:$0xff]
        %v390 = vld [vmem:[%s1 + $0x28] sm:$0xff]
        %v391 = vld [vmem:[%s1 + $0x30] sm:$0xff]
        %v392 = vld [vmem:[%s1 + $0x38] sm:$0xff]
        %394 = vset.pattern.permute.xlu0 0
        %395 = vperm.xlu0 %394, %v385
        %v396 = vpop.permute.xlu0 %395
        %399 = vset.pattern.permute.xlu0 0
        %400 = vperm.xlu0 %399, %v386
        %v401 = vpop.permute.xlu0 %400
        %404 = vset.pattern.permute.xlu0 0
        %405 = vperm.xlu0 %404, %v387
        %v406 = vpop.permute.xlu0 %405
        %409 = vset.pattern.permute.xlu0 0
        %410 = vperm.xlu0 %409, %v388
        %v411 = vpop.permute.xlu0 %410
        %414 = vset.pattern.permute.xlu0 0
        %415 = vperm.xlu0 %414, %v389
        %v416 = vpop.permute.xlu0 %415
        %419 = vset.pattern.permute.xlu0 0
        %420 = vperm.xlu0 %419, %v390
        %v421 = vpop.permute.xlu0 %420
        %424 = vset.pattern.permute.xlu0 0
        %425 = vperm.xlu0 %424, %v391
        %v426 = vpop.permute.xlu0 %425
        %429 = vset.pattern.permute.xlu0 0
        %430 = vperm.xlu0 %429, %v392
        %v431 = vpop.permute.xlu0 %430
        %v433 = vmul.f32 %v369, %v396
        %v434 = vmul.f32 %v370, %v396
        %v435 = vmul.f32 %v371, %v401
        %v436 = vmul.f32 %v372, %v401
        %v437 = vmul.f32 %v373, %v406
        %v438 = vmul.f32 %v374, %v406
        %v439 = vmul.f32 %v375, %v411
        %v440 = vmul.f32 %v376, %v411
        %v441 = vmul.f32 %v377, %v416
        %v442 = vmul.f32 %v378, %v416
        %v443 = vmul.f32 %v379, %v421
        %v444 = vmul.f32 %v380, %v421
        %v445 = vmul.f32 %v381, %v426
        %v446 = vmul.f32 %v382, %v426
        %v447 = vmul.f32 %v383, %v431
        %v448 = vmul.f32 %v384, %v431
        %v449 = vld [vmem:[%s2] sm:$0xff]
        %v450 = vld [vmem:[%s2 + $0x8] sm:$0xff]
        %v451 = vld [vmem:[%s2 + $0x10] sm:$0xff]
        %v452 = vld [vmem:[%s2 + $0x18] sm:$0xff]
        %v453 = vld [vmem:[%s2 + $0x20] sm:$0xff]
        %v454 = vld [vmem:[%s2 + $0x28] sm:$0xff]
        %v455 = vld [vmem:[%s2 + $0x30] sm:$0xff]
        %v456 = vld [vmem:[%s2 + $0x38] sm:$0xff]
        %458 = vset.pattern.permute.xlu0 0
        %459 = vperm.xlu0 %458, %v449
        %v460 = vpop.permute.xlu0 %459
        %463 = vset.pattern.permute.xlu0 0
        %464 = vperm.xlu0 %463, %v450
        %v465 = vpop.permute.xlu0 %464
        %468 = vset.pattern.permute.xlu0 0
        %469 = vperm.xlu0 %468, %v451
        %v470 = vpop.permute.xlu0 %469
        %473 = vset.pattern.permute.xlu0 0
        %474 = vperm.xlu0 %473, %v452
        %v475 = vpop.permute.xlu0 %474
        %478 = vset.pattern.permute.xlu0 0
        %479 = vperm.xlu0 %478, %v453
        %v480 = vpop.permute.xlu0 %479
        %483 = vset.pattern.permute.xlu0 0
        %484 = vperm.xlu0 %483, %v454
        %v485 = vpop.permute.xlu0 %484
        %488 = vset.pattern.permute.xlu0 0
        %489 = vperm.xlu0 %488, %v455
        %v490 = vpop.permute.xlu0 %489
        %493 = vset.pattern.permute.xlu0 0
        %494 = vperm.xlu0 %493, %v456
        %v495 = vpop.permute.xlu0 %494
        %v497 = vadd.f32 %v433, %v460
        %v498 = vadd.f32 %v434, %v460
        %v499 = vadd.f32 %v435, %v465
        %v500 = vadd.f32 %v436, %v465
        %v501 = vadd.f32 %v437, %v470
        %v502 = vadd.f32 %v438, %v470
        %v503 = vadd.f32 %v439, %v475
        %v504 = vadd.f32 %v440, %v475
        %v505 = vadd.f32 %v441, %v480
        %v506 = vadd.f32 %v442, %v480
        %v507 = vadd.f32 %v443, %v485
        %v508 = vadd.f32 %v444, %v485
        %v509 = vadd.f32 %v445, %v490
        %v510 = vadd.f32 %v446, %v490
        %v511 = vadd.f32 %v447, %v495
        %v512 = vadd.f32 %v448, %v495
        %v513 = vmax.f32 %v497, 0.0
        %v514 = vmax.f32 %v498, 0.0
        %v515 = vmax.f32 %v499, 0.0
        %v516 = vmax.f32 %v500, 0.0
        %v517 = vmax.f32 %v501, 0.0
        %v518 = vmax.f32 %v502, 0.0
        %v519 = vmax.f32 %v503, 0.0
        %v520 = vmax.f32 %v504, 0.0
        %v521 = vmax.f32 %v505, 0.0
        %v522 = vmax.f32 %v506, 0.0
        %v523 = vmax.f32 %v507, 0.0
        %v524 = vmax.f32 %v508, 0.0
        %v525 = vmax.f32 %v509, 0.0
        %v526 = vmax.f32 %v510, 0.0
        %v527 = vmax.f32 %v511, 0.0
        %v528 = vmax.f32 %v512, 0.0
        %v529 = vld [vmem:[%s336] sm:$0xff]
        %v530 = vld [vmem:[%s336 + $0x8] sm:$0xff]
        %v531 = vld [vmem:[%s336 + $0x10] sm:$0xff]
        %v532 = vld [vmem:[%s336 + $0x18] sm:$0xff]
        %v533 = vld [vmem:[%s336 + $0x20] sm:$0xff]
        %v534 = vld [vmem:[%s336 + $0x28] sm:$0xff]
        %v535 = vld [vmem:[%s336 + $0x30] sm:$0xff]
        %v536 = vld [vmem:[%s336 + $0x38] sm:$0xff]
        %v537 = vld [vmem:[%s336 + $0x40] sm:$0xff]
        %v538 = vld [vmem:[%s336 + $0x48] sm:$0xff]
        %v539 = vld [vmem:[%s336 + $0x50] sm:$0xff]
        %v540 = vld [vmem:[%s336 + $0x58] sm:$0xff]
        %v541 = vld [vmem:[%s336 + $0x60] sm:$0xff]
        %v542 = vld [vmem:[%s336 + $0x68] sm:$0xff]
        %v543 = vld [vmem:[%s336 + $0x70] sm:$0xff]
        %v544 = vld [vmem:[%s336 + $0x78] sm:$0xff]
        %v545 = vld [vmem:[%s4] sm:$0xff]
        %v546 = vld [vmem:[%s4 + $0x8] sm:$0xff]
        %v547 = vld [vmem:[%s4 + $0x10] sm:$0xff]
        %v548 = vld [vmem:[%s4 + $0x18] sm:$0xff]
        %v549 = vld [vmem:[%s4 + $0x20] sm:$0xff]
        %v550 = vld [vmem:[%s4 + $0x28] sm:$0xff]
        %v551 = vld [vmem:[%s4 + $0x30] sm:$0xff]
        %v552 = vld [vmem:[%s4 + $0x38] sm:$0xff]
        %554 = vset.pattern.permute.xlu0 0
        %555 = vperm.xlu0 %554, %v545
        %v556 = vpop.permute.xlu0 %555
        %559 = vset.pattern.permute.xlu0 0
        %560 = vperm.xlu0 %559, %v546
        %v561 = vpop.permute.xlu0 %560
        %564 = vset.pattern.permute.xlu0 0
        %565 = vperm.xlu0 %564, %v547
        %v566 = vpop.permute.xlu0 %565
        %569 = vset.pattern.permute.xlu0 0
        %570 = vperm.xlu0 %569, %v548
        %v571 = vpop.permute.xlu0 %570
        %574 = vset.pattern.permute.xlu0 0
        %575 = vperm.xlu0 %574, %v549
        %v576 = vpop.permute.xlu0 %575
        %579 = vset.pattern.permute.xlu0 0
        %580 = vperm.xlu0 %579, %v550
        %v581 = vpop.permute.xlu0 %580
        %584 = vset.pattern.permute.xlu0 0
        %585 = vperm.xlu0 %584, %v551
        %v586 = vpop.permute.xlu0 %585
        %589 = vset.pattern.permute.xlu0 0
        %590 = vperm.xlu0 %589, %v552
        %v591 = vpop.permute.xlu0 %590
        %v593 = vmul.f32 %v529, %v556
        %v594 = vmul.f32 %v530, %v556
        %v595 = vmul.f32 %v531, %v561
        %v596 = vmul.f32 %v532, %v561
        %v597 = vmul.f32 %v533, %v566
        %v598 = vmul.f32 %v534, %v566
        %v599 = vmul.f32 %v535, %v571
        %v600 = vmul.f32 %v536, %v571
        %v601 = vmul.f32 %v537, %v576
        %v602 = vmul.f32 %v538, %v576
        %v603 = vmul.f32 %v539, %v581
        %v604 = vmul.f32 %v540, %v581
        %v605 = vmul.f32 %v541, %v586
        %v606 = vmul.f32 %v542, %v586
        %v607 = vmul.f32 %v543, %v591
        %v608 = vmul.f32 %v544, %v591
        %v609 = vld [vmem:[%s5] sm:$0xff]
        %v610 = vld [vmem:[%s5 + $0x8] sm:$0xff]
        %v611 = vld [vmem:[%s5 + $0x10] sm:$0xff]
        %v612 = vld [vmem:[%s5 + $0x18] sm:$0xff]
        %v613 = vld [vmem:[%s5 + $0x20] sm:$0xff]
        %v614 = vld [vmem:[%s5 + $0x28] sm:$0xff]
        %v615 = vld [vmem:[%s5 + $0x30] sm:$0xff]
        %v616 = vld [vmem:[%s5 + $0x38] sm:$0xff]
        %618 = vset.pattern.permute.xlu0 0
        %619 = vperm.xlu0 %618, %v609
        %v620 = vpop.permute.xlu0 %619
        %623 = vset.pattern.permute.xlu0 0
        %624 = vperm.xlu0 %623, %v610
        %v625 = vpop.permute.xlu0 %624
        %628 = vset.pattern.permute.xlu0 0
        %629 = vperm.xlu0 %628, %v611
        %v630 = vpop.permute.xlu0 %629
        %633 = vset.pattern.permute.xlu0 0
        %634 = vperm.xlu0 %633, %v612
        %v635 = vpop.permute.xlu0 %634
        %638 = vset.pattern.permute.xlu0 0
        %639 = vperm.xlu0 %638, %v613
        %v640 = vpop.permute.xlu0 %639
        %643 = vset.pattern.permute.xlu0 0
        %644 = vperm.xlu0 %643, %v614
        %v645 = vpop.permute.xlu0 %644
        %648 = vset.pattern.permute.xlu0 0
        %649 = vperm.xlu0 %648, %v615
        %v650 = vpop.permute.xlu0 %649
        %653 = vset.pattern.permute.xlu0 0
        %654 = vperm.xlu0 %653, %v616
        %v655 = vpop.permute.xlu0 %654
        %v657 = vadd.f32 %v593, %v620
        %v658 = vadd.f32 %v594, %v620
        %v659 = vadd.f32 %v595, %v625
        %v660 = vadd.f32 %v596, %v625
        %v661 = vadd.f32 %v597, %v630
        %v662 = vadd.f32 %v598, %v630
        %v663 = vadd.f32 %v599, %v635
        %v664 = vadd.f32 %v600, %v635
        %v665 = vadd.f32 %v601, %v640
        %v666 = vadd.f32 %v602, %v640
        %v667 = vadd.f32 %v603, %v645
        %v668 = vadd.f32 %v604, %v645
        %v669 = vadd.f32 %v605, %v650
        %v670 = vadd.f32 %v606, %v650
        %v671 = vadd.f32 %v607, %v655
        %v672 = vadd.f32 %v608, %v655
        %v673 = vmax.f32 %v657, 0.0
        %v674 = vmax.f32 %v658, 0.0
        %v675 = vmax.f32 %v659, 0.0
        %v676 = vmax.f32 %v660, 0.0
        %v677 = vmax.f32 %v661, 0.0
        %v678 = vmax.f32 %v662, 0.0
        %v679 = vmax.f32 %v663, 0.0
        %v680 = vmax.f32 %v664, 0.0
        %v681 = vmax.f32 %v665, 0.0
        %v682 = vmax.f32 %v666, 0.0
        %v683 = vmax.f32 %v667, 0.0
        %v684 = vmax.f32 %v668, 0.0
        %v685 = vmax.f32 %v669, 0.0
        %v686 = vmax.f32 %v670, 0.0
        %v687 = vmax.f32 %v671, 0.0
        %v688 = vmax.f32 %v672, 0.0
        %v689 = vadd.f32 %v513, %v673
        %v690 = vadd.f32 %v514, %v674
        %v691 = vadd.f32 %v515, %v675
        %v692 = vadd.f32 %v516, %v676
        %v693 = vadd.f32 %v517, %v677
        %v694 = vadd.f32 %v518, %v678
        %v695 = vadd.f32 %v519, %v679
        %v696 = vadd.f32 %v520, %v680
        %v697 = vadd.f32 %v521, %v681
        %v698 = vadd.f32 %v522, %v682
        %v699 = vadd.f32 %v523, %v683
        %v700 = vadd.f32 %v524, %v684
        %v701 = vadd.f32 %v525, %v685
        %v702 = vadd.f32 %v526, %v686
        %v703 = vadd.f32 %v527, %v687
        %v704 = vadd.f32 %v528, %v688
        %v705 = vmax.f32 %v689, 0.0
        %v706 = vmax.f32 %v690, 0.0
        %v707 = vmax.f32 %v691, 0.0
        %v708 = vmax.f32 %v692, 0.0
        %v709 = vmax.f32 %v693, 0.0
        %v710 = vmax.f32 %v694, 0.0
        %v711 = vmax.f32 %v695, 0.0
        %v712 = vmax.f32 %v696, 0.0
        %v713 = vmax.f32 %v697, 0.0
        %v714 = vmax.f32 %v698, 0.0
        %v715 = vmax.f32 %v699, 0.0
        %v716 = vmax.f32 %v700, 0.0
        %v717 = vmax.f32 %v701, 0.0
        %v718 = vmax.f32 %v702, 0.0
        %v719 = vmax.f32 %v703, 0.0
        %v720 = vmax.f32 %v704, 0.0
        %721 = vst [vmem:[%s365] sm:$0xff] %v705
        %722 = vst [vmem:[%s365 + $0x8] sm:$0xff] %v706
        %723 = vst [vmem:[%s365 + $0x10] sm:$0xff] %v707
        %724 = vst [vmem:[%s365 + $0x18] sm:$0xff] %v708
        %725 = vst [vmem:[%s365 + $0x20] sm:$0xff] %v709
        %726 = vst [vmem:[%s365 + $0x28] sm:$0xff] %v710
        %727 = vst [vmem:[%s365 + $0x30] sm:$0xff] %v711
        %728 = vst [vmem:[%s365 + $0x38] sm:$0xff] %v712
        %729 = vst [vmem:[%s365 + $0x40] sm:$0xff] %v713
        %730 = vst [vmem:[%s365 + $0x48] sm:$0xff] %v714
        %731 = vst [vmem:[%s365 + $0x50] sm:$0xff] %v715
        %732 = vst [vmem:[%s365 + $0x58] sm:$0xff] %v716
        %733 = vst [vmem:[%s365 + $0x60] sm:$0xff] %v717
        %734 = vst [vmem:[%s365 + $0x68] sm:$0xff] %v718
        %735 = vst [vmem:[%s365 + $0x70] sm:$0xff] %v719
        %736 = vst [vmem:[%s365 + $0x78] sm:$0xff] %v720
        %s737 = sand.u32 %s161, 1
        %s738 = sand.u32 %s161, 1
        %s739 = smul.addr %s738, 128
        %s740 = scalar_lea.vmem [#allocation4], %s739
        // Predicated region
        $region91: #{sqnxt_unit_forward.13} parent=81 // pred_check
          %p741 = pneg %p171
        $region92: #{sqnxt_unit_forward.13} parent=81 // pred_check_branch
          %743 = sbr.rel (%p741) target = $region94
        $region93: #{sqnxt_unit_forward.13} parent=81 // pred_region
          %s744 = smul.u32 2, %s17
          %s745 = smul.addr %s744, 8
          %s746 = scalar_lea.vmem %s6, %s745
          // Predicated region
          $region95: #{sqnxt_unit_forward.13} parent=93 // pred_check
            _
          $region96: #{sqnxt_unit_forward.13} parent=93 // pred_check_branch
            %748 = sbr.rel (0) target = $region98
          $region97: #{sqnxt_unit_forward.13} parent=93 // pred_region
            // Predicated region
            $region99: #{sqnxt_unit_forward.13} parent=97 // pred_check
              _
            $region100: #{sqnxt_unit_forward.13} parent=97 // pred_check_branch
              %750 = sbr.rel (0) target = $region102
            $region101: #{sqnxt_unit_forward.13} parent=97 // pred_region
              loop: start=0, step=1, limit=1
              $region103: #{sqnxt_unit_forward.13} parent=101 // loop_pre_header
                _
              $region104: #{sqnxt_unit_forward.13} parent=101 // loop_header
                %s752 = sphi 0, %s756
                %p753 = scmp.ge.s32.totalorder %s752, 1
                %s757 = sphi %s740, %s740
                %s758 = sphi %s746, %s746
              $region105: #{sqnxt_unit_forward.13} parent=101 // loop_header_branch
                %755 = sbr.rel (%p753) target = $region109
              $region106: #{sqnxt_unit_forward.13} parent=101 // loop_body
                %v759 = vld [vmem:[%s757] sm:$0xff]
                %760 = vst [vmem:[%s758] sm:$0xff] %v759
                %v761 = vld [vmem:[%s757 + $0x8] sm:$0xff]
                %762 = vst [vmem:[%s758 + $0x8] sm:$0xff] %v761
                %v763 = vld [vmem:[%s757 + $0x10] sm:$0xff]
                %764 = vst [vmem:[%s758 + $0x20] sm:$0xff] %v763
                %v765 = vld [vmem:[%s757 + $0x18] sm:$0xff]
                %766 = vst [vmem:[%s758 + $0x28] sm:$0xff] %v765
                %v767 = vld [vmem:[%s757 + $0x20] sm:$0xff]
                %768 = vst [vmem:[%s758 + $0x40] sm:$0xff] %v767
                %v769 = vld [vmem:[%s757 + $0x28] sm:$0xff]
                %770 = vst [vmem:[%s758 + $0x48] sm:$0xff] %v769
                %v771 = vld [vmem:[%s757 + $0x30] sm:$0xff]
                %772 = vst [vmem:[%s758 + $0x60] sm:$0xff] %v771
                %v773 = vld [vmem:[%s757 + $0x38] sm:$0xff]
                %774 = vst [vmem:[%s758 + $0x68] sm:$0xff] %v773
                %v775 = vld [vmem:[%s757 + $0x40] sm:$0xff]
                %776 = vst [vmem:[%s758 + $0x80] sm:$0xff] %v775
                %v777 = vld [vmem:[%s757 + $0x48] sm:$0xff]
                %778 = vst [vmem:[%s758 + $0x88] sm:$0xff] %v777
                %v779 = vld [vmem:[%s757 + $0x50] sm:$0xff]
                %780 = vst [vmem:[%s758 + $0xa0] sm:$0xff] %v779
                %v781 = vld [vmem:[%s757 + $0x58] sm:$0xff]
                %782 = vst [vmem:[%s758 + $0xa8] sm:$0xff] %v781
                %v783 = vld [vmem:[%s757 + $0x60] sm:$0xff]
                %784 = vst [vmem:[%s758 + $0xc0] sm:$0xff] %v783
                %v785 = vld [vmem:[%s757 + $0x68] sm:$0xff]
                %786 = vst [vmem:[%s758 + $0xc8] sm:$0xff] %v785
                %v787 = vld [vmem:[%s757 + $0x70] sm:$0xff]
                %788 = vst [vmem:[%s758 + $0xe0] sm:$0xff] %v787
                %v789 = vld [vmem:[%s757 + $0x78] sm:$0xff]
                %790 = vst [vmem:[%s758 + $0xe8] sm:$0xff] %v789
              $region107: #{sqnxt_unit_forward.13} parent=101 // loop_footer
                %s756 = sadd.s32 1, %s752
              $region108: #{sqnxt_unit_forward.13} parent=101 // loop_footer_branch
                %751 = sbr.rel target = $region104
              $region109: #{sqnxt_unit_forward.13} parent=101 // loop_exit
                _
            $region102: #{sqnxt_unit_forward.13} parent=97 // pred_fallthru
              _
            // Predicated region
            $region110: #{sqnxt_unit_forward.13} parent=97 // pred_check
              _
            $region111: #{sqnxt_unit_forward.13} parent=97 // pred_check_branch
              %792 = sbr.rel target = $region113
            $region112: #{sqnxt_unit_forward.13} parent=97 // pred_region
              _
            $region113: #{sqnxt_unit_forward.13} parent=97 // pred_fallthru
              _
          $region98: #{sqnxt_unit_forward.13} parent=93 // pred_fallthru
            _
          %793 = vnop
        $region94: #{sqnxt_unit_forward.13} parent=81 // pred_fallthru
          _
      $region82: #{sqnxt_unit_forward.13} parent=5 // pred_fallthru
        _
      %p794 = scmp.le.s32.totalorder 2, %s12
      // Predicated region
      $region114: #{sqnxt_unit_forward.13} parent=5 // pred_check
        %p795 = pneg %p794
      $region115: #{sqnxt_unit_forward.13} parent=5 // pred_check_branch
        %797 = sbr.rel (%p795) target = $region117
      $region116: #{sqnxt_unit_forward.13} parent=5 // pred_region
        %s798 = ssub.s32 %s12, 2
        // Predicated region
        $region118: #{sqnxt_unit_forward.13} parent=116 // pred_check
          %p799 = pneg %p177
        $region119: #{sqnxt_unit_forward.13} parent=116 // pred_check_branch
          %801 = sbr.rel (%p799) target = $region121
        $region120: #{sqnxt_unit_forward.13} parent=116 // pred_region
          %s802 = sand.u32 %s162, 1
          %s803 = sand.u32 %s162, 1
          %s804 = smul.addr %s803, 128
          %s805 = scalar_lea.vmem [#allocation4], %s804
        $region121: #{sqnxt_unit_forward.13} parent=116 // pred_fallthru
          _
      $region117: #{sqnxt_unit_forward.13} parent=5 // pred_fallthru
        _
    $region6: #{sqnxt_unit_forward.13} parent=1 // loop_footer
      %s16 = sadd.s32 1, %s12
    $region7: #{sqnxt_unit_forward.13} parent=1 // loop_footer_branch
      %11 = sbr.rel target = $region3
    $region8: #{sqnxt_unit_forward.13} parent=1 // loop_exit
      _

// kernel: sqnxt_unit_forward.11
$region0: #{sqnxt_unit_forward.11}
  #allocation0 [shape = 'u32[]', space=smem, size = 0x4, offset = 0x4, fixed_abs, tag = 'smem constant byte address 0x4 - core index']
  #allocation1 [shape = 'u32[144,128]{1,0:T(1,128)}', space=vmem, size = 0x12000, scoped, tag = 'internal scratch']
  %s0 = inlined_call_operand.vmem [shape: f32[64,512], index: 0, kind: input, shape index: {}]
  %s1 = inlined_call_operand.vmem [shape: bf16[1,64,64], index: 1, kind: input, shape index: {}]
  %s2 = inlined_call_operand.vmem [shape: f32[64,1], index: 2, kind: input, shape index: {}]
  %s3 = inlined_call_operand.vmem [shape: f32[64,1], index: 3, kind: input, shape index: {}]
  %s4 = inlined_call_operand.vmem [shape: f32[64,1], index: 4, kind: input, shape index: {}]
  %s5 = inlined_call_operand.vmem [shape: f32[64,512], index: 5, kind: output, shape index: {0}]
  %s6 = inlined_call_operand.vmem [shape: f32[2,64,128], index: 6, kind: output, shape index: {1}]
  %s7 = inlined_call_operand.vmem [shape: f32[2,64,128], index: 7, kind: output, shape index: {2}]
  %8 = xla_tuple %s5, %s6, %s7
  %s9 = sld [smem:[#allocation0]]
  $region111: #{sqnxt_unit_forward.11} parent=0
    _
  %s11 = ssub.s32 1, %s9
  %s12 = scalar_select 0, %s11, %s9
  $region1: #{sqnxt_unit_forward.11} parent=0
    #allocation2 [shape = 'u8[131072]{0}', space=vmem, size = 0x20000, scoped, tag = 'input window, operand 0']
    #allocation3 [shape = 'u8[131072]{0}', space=vmem, size = 0x20000, scoped, tag = 'output window, operand 0']
    loop: start=0, step=1, limit=4
    $region2: #{sqnxt_unit_forward.11} parent=1 // loop_pre_header
      _
    $region3: #{sqnxt_unit_forward.11} parent=1 // loop_header
      %s14 = sphi 0, %s18
      %p15 = scmp.ge.s32.totalorder %s14, 4
      %s24 = sphi 0, %s26
      %s27 = sphi 0, %s24
      %s28 = sphi 0, %s27
      %s44 = sphi 0, %s28
      %s48 = sphi 0, %s48
      %s50 = sphi 0, %s48
      %s51 = sphi 0, %s50
      %s65 = sphi 0, %s51
      %s69 = sphi 0, %s69
      %s71 = sphi 0, %s69
      %s72 = sphi 0, %s71
      %s86 = sphi 0, %s72
      %s90 = sphi 0, %s90
      %s92 = sphi 0, %s90
      %s93 = sphi 0, %s92
      %s107 = sphi 0, %s93
      %s111 = sphi 0, %s111
      %s113 = sphi 0, %s111
      %s114 = sphi 0, %s113
      %s128 = sphi 0, %s114
      %s134 = sphi 0, %s136
      %s137 = sphi 0, %s134
      %s138 = sphi 0, %s137
      %s154 = sphi 0, %s138
      %s160 = sphi 0, %s162
      %s163 = sphi 0, %s160
      %s164 = sphi 0, %s163
      %s180 = sphi 0, %s164
      %s186 = sphi 0, %s188
      %s189 = sphi 0, %s186
      %s190 = sphi 0, %s189
      %s206 = sphi 0, %s190
    $region4: #{sqnxt_unit_forward.11} parent=1 // loop_header_branch
      %17 = sbr.rel (%p15) target = $region8
    $region5: #{sqnxt_unit_forward.11} parent=1 // loop_body
      %s19 = ssub.s32 %s14, 1
      %s20 = ssub.s32 %s14, 2
      %s21 = sadd.s32 %s14, 1
      %s22 = ssub.s32 %s14, %s21
      %p23 = scmp.eq.s32.totalorder %s22, 0
      %s25 = sadd.s32 %s24, 1
      %s26 = scalar_select %p23, %s24, %s25
      %p29 = pneg %p23
      %p30 = scmp.eq.s32.totalorder %s14, 1
      %p31 = por %p29, %p30
      %p32 = scmp.ne.s32.totalorder %s24, %s27
      %p33 = scmp.eq.s32.totalorder %s14, 0
      %p34 = por %p32, %p33
      %p35 = scmp.ne.s32.totalorder %s24, %s27
      %p36 = scmp.eq.s32.totalorder %s19, 1
      %p37 = por %p35, %p36
      %p38 = scmp.ne.s32.totalorder %s27, %s28
      %p39 = scmp.eq.s32.totalorder %s19, 0
      %p40 = por %p38, %p39
      %p41 = scmp.ne.s32.totalorder %s27, %s28
      %p42 = scmp.eq.s32.totalorder %s20, 1
      %p43 = por %p41, %p42
      %p45 = scmp.ne.s32.totalorder %s28, %s44
      %p46 = scmp.eq.s32.totalorder %s20, 0
      %p47 = por %p45, %p46
      %s49 = sadd.s32 %s48, 1
      %p52 = scmp.eq.s32.totalorder %s14, 1
      %p53 = scmp.ne.s32.totalorder %s48, %s50
      %p54 = scmp.eq.s32.totalorder %s14, 0
      %p55 = por %p53, %p54
      %p56 = scmp.ne.s32.totalorder %s48, %s50
      %p57 = scmp.eq.s32.totalorder %s19, 1
      %p58 = por %p56, %p57
      %p59 = scmp.ne.s32.totalorder %s50, %s51
      %p60 = scmp.eq.s32.totalorder %s19, 0
      %p61 = por %p59, %p60
      %p62 = scmp.ne.s32.totalorder %s50, %s51
      %p63 = scmp.eq.s32.totalorder %s20, 1
      %p64 = por %p62, %p63
      %p66 = scmp.ne.s32.totalorder %s51, %s65
      %p67 = scmp.eq.s32.totalorder %s20, 0
      %p68 = por %p66, %p67
      %s70 = sadd.s32 %s69, 1
      %p73 = scmp.eq.s32.totalorder %s14, 1
      %p74 = scmp.ne.s32.totalorder %s69, %s71
      %p75 = scmp.eq.s32.totalorder %s14, 0
      %p76 = por %p74, %p75
      %p77 = scmp.ne.s32.totalorder %s69, %s71
      %p78 = scmp.eq.s32.totalorder %s19, 1
      %p79 = por %p77, %p78
      %p80 = scmp.ne.s32.totalorder %s71, %s72
      %p81 = scmp.eq.s32.totalorder %s19, 0
      %p82 = por %p80, %p81
      %p83 = scmp.ne.s32.totalorder %s71, %s72
      %p84 = scmp.eq.s32.totalorder %s20, 1
      %p85 = por %p83, %p84
      %p87 = scmp.ne.s32.totalorder %s72, %s86
      %p88 = scmp.eq.s32.totalorder %s20, 0
      %p89 = por %p87, %p88
      %s91 = sadd.s32 %s90, 1
      %p94 = scmp.eq.s32.totalorder %s14, 1
      %p95 = scmp.ne.s32.totalorder %s90, %s92
      %p96 = scmp.eq.s32.totalorder %s14, 0
      %p97 = por %p95, %p96
      %p98 = scmp.ne.s32.totalorder %s90, %s92
      %p99 = scmp.eq.s32.totalorder %s19, 1
      %p100 = por %p98, %p99
      %p101 = scmp.ne.s32.totalorder %s92, %s93
      %p102 = scmp.eq.s32.totalorder %s19, 0
      %p103 = por %p101, %p102
      %p104 = scmp.ne.s32.totalorder %s92, %s93
      %p105 = scmp.eq.s32.totalorder %s20, 1
      %p106 = por %p104, %p105
      %p108 = scmp.ne.s32.totalorder %s93, %s107
      %p109 = scmp.eq.s32.totalorder %s20, 0
      %p110 = por %p108, %p109
      %s112 = sadd.s32 %s111, 1
      %p115 = scmp.eq.s32.totalorder %s14, 1
      %p116 = scmp.ne.s32.totalorder %s111, %s113
      %p117 = scmp.eq.s32.totalorder %s14, 0
      %p118 = por %p116, %p117
      %p119 = scmp.ne.s32.totalorder %s111, %s113
      %p120 = scmp.eq.s32.totalorder %s19, 1
      %p121 = por %p119, %p120
      %p122 = scmp.ne.s32.totalorder %s113, %s114
      %p123 = scmp.eq.s32.totalorder %s19, 0
      %p124 = por %p122, %p123
      %p125 = scmp.ne.s32.totalorder %s113, %s114
      %p126 = scmp.eq.s32.totalorder %s20, 1
      %p127 = por %p125, %p126
      %p129 = scmp.ne.s32.totalorder %s114, %s128
      %p130 = scmp.eq.s32.totalorder %s20, 0
      %p131 = por %p129, %p130
      %s132 = ssub.s32 %s14, %s21
      %p133 = scmp.eq.s32.totalorder %s132, 0
      %s135 = sadd.s32 %s134, 1
      %s136 = scalar_select %p133, %s134, %s135
      %p139 = pneg %p133
      %p140 = scmp.eq.s32.totalorder %s14, 1
      %p141 = por %p139, %p140
      %p142 = scmp.ne.s32.totalorder %s134, %s137
      %p143 = scmp.eq.s32.totalorder %s14, 0
      %p144 = por %p142, %p143
      %p145 = scmp.ne.s32.totalorder %s134, %s137
      %p146 = scmp.eq.s32.totalorder %s19, 1
      %p147 = por %p145, %p146
      %p148 = scmp.ne.s32.totalorder %s137, %s138
      %p149 = scmp.eq.s32.totalorder %s19, 0
      %p150 = por %p148, %p149
      %p151 = scmp.ne.s32.totalorder %s137, %s138
      %p152 = scmp.eq.s32.totalorder %s20, 1
      %p153 = por %p151, %p152
      %p155 = scmp.ne.s32.totalorder %s138, %s154
      %p156 = scmp.eq.s32.totalorder %s20, 0
      %p157 = por %p155, %p156
      %s158 = ssub.s32 %s14, %s21
      %p159 = scmp.eq.s32.totalorder %s158, 0
      %s161 = sadd.s32 %s160, 1
      %s162 = scalar_select %p159, %s160, %s161
      %p165 = pneg %p159
      %p166 = scmp.eq.s32.totalorder %s14, 1
      %p167 = por %p165, %p166
      %p168 = scmp.ne.s32.totalorder %s160, %s163
      %p169 = scmp.eq.s32.totalorder %s14, 0
      %p170 = por %p168, %p169
      %p171 = scmp.ne.s32.totalorder %s160, %s163
      %p172 = scmp.eq.s32.totalorder %s19, 1
      %p173 = por %p171, %p172
      %p174 = scmp.ne.s32.totalorder %s163, %s164
      %p175 = scmp.eq.s32.totalorder %s19, 0
      %p176 = por %p174, %p175
      %p177 = scmp.ne.s32.totalorder %s163, %s164
      %p178 = scmp.eq.s32.totalorder %s20, 1
      %p179 = por %p177, %p178
      %p181 = scmp.ne.s32.totalorder %s164, %s180
      %p182 = scmp.eq.s32.totalorder %s20, 0
      %p183 = por %p181, %p182
      %s184 = ssub.s32 %s14, %s21
      %p185 = scmp.eq.s32.totalorder %s184, 0
      %s187 = sadd.s32 %s186, 1
      %s188 = scalar_select %p185, %s186, %s187
      %p191 = pneg %p185
      %p192 = scmp.eq.s32.totalorder %s14, 1
      %p193 = por %p191, %p192
      %p194 = scmp.ne.s32.totalorder %s186, %s189
      %p195 = scmp.eq.s32.totalorder %s14, 0
      %p196 = por %p194, %p195
      %p197 = scmp.ne.s32.totalorder %s186, %s189
      %p198 = scmp.eq.s32.totalorder %s19, 1
      %p199 = por %p197, %p198
      %p200 = scmp.ne.s32.totalorder %s189, %s190
      %p201 = scmp.eq.s32.totalorder %s19, 0
      %p202 = por %p200, %p201
      %p203 = scmp.ne.s32.totalorder %s189, %s190
      %p204 = scmp.eq.s32.totalorder %s20, 1
      %p205 = por %p203, %p204
      %p207 = scmp.ne.s32.totalorder %s190, %s206
      %p208 = scmp.eq.s32.totalorder %s20, 0
      %p209 = por %p207, %p208
      %p210 = scmp.le.s32.totalorder 1, %s14
      %p211 = scmp.lt.s32.totalorder %s14, 3
      %p212 = pnand %p210, %p211
      %p213 = pneg %p212
      // Predicated region
      $region9: #{sqnxt_unit_forward.11} parent=5 // pred_check
        _
      $region10: #{sqnxt_unit_forward.11} parent=5 // pred_check_branch
        %215 = sbr.rel (%p212) target = $region12
      $region11: #{sqnxt_unit_forward.11} parent=5 // pred_region
        %s216 = ssub.s32 %s14, 1
        // Predicated region
        $region13: #{sqnxt_unit_forward.11} parent=11 // pred_check
          %p217 = pneg %p61
        $region14: #{sqnxt_unit_forward.11} parent=11 // pred_check_branch
          %219 = sbr.rel (%p217) target = $region16
        $region15: #{sqnxt_unit_forward.11} parent=11 // pred_region
          _
        $region16: #{sqnxt_unit_forward.11} parent=11 // pred_fallthru
          _
        // Predicated region
        $region17: #{sqnxt_unit_forward.11} parent=11 // pred_check
          %p220 = pneg %p82
        $region18: #{sqnxt_unit_forward.11} parent=11 // pred_check_branch
          %222 = sbr.rel (%p220) target = $region20
        $region19: #{sqnxt_unit_forward.11} parent=11 // pred_region
          _
        $region20: #{sqnxt_unit_forward.11} parent=11 // pred_fallthru
          _
        // Predicated region
        $region21: #{sqnxt_unit_forward.11} parent=11 // pred_check
          %p223 = pneg %p103
        $region22: #{sqnxt_unit_forward.11} parent=11 // pred_check_branch
          %225 = sbr.rel (%p223) target = $region24
        $region23: #{sqnxt_unit_forward.11} parent=11 // pred_region
          _
        $region24: #{sqnxt_unit_forward.11} parent=11 // pred_fallthru
          _
        // Predicated region
        $region25: #{sqnxt_unit_forward.11} parent=11 // pred_check
          %p226 = pneg %p124
        $region26: #{sqnxt_unit_forward.11} parent=11 // pred_check_branch
          %228 = sbr.rel (%p226) target = $region28
        $region27: #{sqnxt_unit_forward.11} parent=11 // pred_region
          _
        $region28: #{sqnxt_unit_forward.11} parent=11 // pred_fallthru
          _
      $region12: #{sqnxt_unit_forward.11} parent=5 // pred_fallthru
        _
      %p229 = scmp.lt.s32.totalorder %s14, 2
      // Predicated region
      $region29: #{sqnxt_unit_forward.11} parent=5 // pred_check
        %p230 = pneg %p229
      $region30: #{sqnxt_unit_forward.11} parent=5 // pred_check_branch
        %232 = sbr.rel (%p230) target = $region32
      $region31: #{sqnxt_unit_forward.11} parent=5 // pred_region
        // Predicated region
        $region33: #{sqnxt_unit_forward.11} parent=31 // pred_check
          %p233 = pneg %p34
        $region34: #{sqnxt_unit_forward.11} parent=31 // pred_check_branch
          %235 = sbr.rel (%p233) target = $region36
        $region35: #{sqnxt_unit_forward.11} parent=31 // pred_region
          %s236 = sand.u32 %s24, 1
          %s237 = sand.u32 %s24, 1
          %s238 = smul.addr %s237, 128
          %s239 = scalar_lea.vmem [#allocation2], %s238
          %s240 = smul.u32 2, %s14
          %s241 = smul.addr %s240, 8
          %s242 = scalar_lea.vmem %s0, %s241
          // Predicated region
          $region37: #{sqnxt_unit_forward.11} parent=35 // pred_check
            _
          $region38: #{sqnxt_unit_forward.11} parent=35 // pred_check_branch
            %244 = sbr.rel (0) target = $region40
          $region39: #{sqnxt_unit_forward.11} parent=35 // pred_region
            // Predicated region
            $region41: #{sqnxt_unit_forward.11} parent=39 // pred_check
              _
            $region42: #{sqnxt_unit_forward.11} parent=39 // pred_check_branch
              %246 = sbr.rel (0) target = $region44
            $region43: #{sqnxt_unit_forward.11} parent=39 // pred_region
              loop: start=0, step=1, limit=1
              $region45: #{sqnxt_unit_forward.11} parent=43 // loop_pre_header
                _
              $region46: #{sqnxt_unit_forward.11} parent=43 // loop_header
                %s248 = sphi 0, %s252
                %p249 = scmp.ge.s32.totalorder %s248, 1
                %s253 = sphi %s242, %s242
                %s254 = sphi %s239, %s239
              $region47: #{sqnxt_unit_forward.11} parent=43 // loop_header_branch
                %251 = sbr.rel (%p249) target = $region51
              $region48: #{sqnxt_unit_forward.11} parent=43 // loop_body
                %v255 = vld [vmem:[%s253] sm:$0xff]
                %256 = vst [vmem:[%s254] sm:$0xff] %v255
                %v257 = vld [vmem:[%s253 + $0x8] sm:$0xff]
                %258 = vst [vmem:[%s254 + $0x8] sm:$0xff] %v257
                %v259 = vld [vmem:[%s253 + $0x20] sm:$0xff]
                %260 = vst [vmem:[%s254 + $0x10] sm:$0xff] %v259
                %v261 = vld [vmem:[%s253 + $0x28] sm:$0xff]
                %262 = vst [vmem:[%s254 + $0x18] sm:$0xff] %v261
                %v263 = vld [vmem:[%s253 + $0x40] sm:$0xff]
                %264 = vst [vmem:[%s254 + $0x20] sm:$0xff] %v263
                %v265 = vld [vmem:[%s253 + $0x48] sm:$0xff]
                %266 = vst [vmem:[%s254 + $0x28] sm:$0xff] %v265
                %v267 = vld [vmem:[%s253 + $0x60] sm:$0xff]
                %268 = vst [vmem:[%s254 + $0x30] sm:$0xff] %v267
                %v269 = vld [vmem:[%s253 + $0x68] sm:$0xff]
                %270 = vst [vmem:[%s254 + $0x38] sm:$0xff] %v269
                %v271 = vld [vmem:[%s253 + $0x80] sm:$0xff]
                %272 = vst [vmem:[%s254 + $0x40] sm:$0xff] %v271
                %v273 = vld [vmem:[%s253 + $0x88] sm:$0xff]
                %274 = vst [vmem:[%s254 + $0x48] sm:$0xff] %v273
                %v275 = vld [vmem:[%s253 + $0xa0] sm:$0xff]
                %276 = vst [vmem:[%s254 + $0x50] sm:$0xff] %v275
                %v277 = vld [vmem:[%s253 + $0xa8] sm:$0xff]
                %278 = vst [vmem:[%s254 + $0x58] sm:$0xff] %v277
                %v279 = vld [vmem:[%s253 + $0xc0] sm:$0xff]
                %280 = vst [vmem:[%s254 + $0x60] sm:$0xff] %v279
                %v281 = vld [vmem:[%s253 + $0xc8] sm:$0xff]
                %282 = vst [vmem:[%s254 + $0x68] sm:$0xff] %v281
                %v283 = vld [vmem:[%s253 + $0xe0] sm:$0xff]
                %284 = vst [vmem:[%s254 + $0x70] sm:$0xff] %v283
                %v285 = vld [vmem:[%s253 + $0xe8] sm:$0xff]
                %286 = vst [vmem:[%s254 + $0x78] sm:$0xff] %v285
              $region49: #{sqnxt_unit_forward.11} parent=43 // loop_footer
                %s252 = sadd.s32 1, %s248
              $region50: #{sqnxt_unit_forward.11} parent=43 // loop_footer_branch
                %247 = sbr.rel target = $region46
              $region51: #{sqnxt_unit_forward.11} parent=43 // loop_exit
                _
            $region44: #{sqnxt_unit_forward.11} parent=39 // pred_fallthru
              _
            // Predicated region
            $region52: #{sqnxt_unit_forward.11} parent=39 // pred_check
              _
            $region53: #{sqnxt_unit_forward.11} parent=39 // pred_check_branch
              %288 = sbr.rel target = $region55
            $region54: #{sqnxt_unit_forward.11} parent=39 // pred_region
              _
            $region55: #{sqnxt_unit_forward.11} parent=39 // pred_fallthru
              _
          $region40: #{sqnxt_unit_forward.11} parent=35 // pred_fallthru
            _
          %289 = vnop
        $region36: #{sqnxt_unit_forward.11} parent=31 // pred_fallthru
          _
      $region32: #{sqnxt_unit_forward.11} parent=5 // pred_fallthru
        _
      %p290 = scmp.le.s32.totalorder 1, %s14
      %p291 = scmp.lt.s32.totalorder %s14, 3
      %p292 = pnand %p290, %p291
      %p293 = pneg %p292
      // Predicated region
      $region56: #{sqnxt_unit_forward.11} parent=5 // pred_check
        _
      $region57: #{sqnxt_unit_forward.11} parent=5 // pred_check_branch
        %295 = sbr.rel (%p292) target = $region59
      $region58: #{sqnxt_unit_forward.11} parent=5 // pred_region
        %s296 = ssub.s32 %s14, 1
        %s297 = sand.u32 %s27, 1
        %s298 = sand.u32 %s27, 1
        %s299 = smul.addr %s298, 128
        %s300 = scalar_lea.vmem [#allocation2], %s299
        // Predicated region
        $region60: #{sqnxt_unit_forward.11} parent=58 // pred_check
          %p301 = pneg %p40
        $region61: #{sqnxt_unit_forward.11} parent=58 // pred_check_branch
          %303 = sbr.rel (%p301) target = $region63
        $region62: #{sqnxt_unit_forward.11} parent=58 // pred_region
          _
        $region63: #{sqnxt_unit_forward.11} parent=58 // pred_fallthru
          _
        %s304 = sand.u32 %s27, 1
        %s305 = sand.u32 %s27, 1
        %s306 = smul.addr %s305, 128
        %s307 = scalar_lea.vmem [#allocation2], %s306
        %p308 = pneg %p40
        %p309 = pneg %p37
        %p310 = pneg %p61
        %p311 = pneg %p58
        %p312 = pneg %p82
        %p313 = pneg %p79
        %p314 = pneg %p103
        %p315 = pneg %p100
        %p316 = pneg %p124
        %p317 = pneg %p121
        %p318 = pneg %p150
        %p319 = pneg %p147
        %s320 = sand.u32 %s137, 1
        %s321 = sand.u32 %s137, 1
        %s322 = smul.addr %s321, 128
        %s323 = scalar_lea.vmem [#allocation3], %s322
        %p324 = pneg %p176
        %p325 = pneg %p173
        %p326 = scmp.lt.s32.totalorder %s19, 1
        %s327 = scalar_select %p326, %s19, 1
        %s328 = smul.addr %s327, 8
        %s329 = smul.addr %s328, 8
        %s330 = scalar_lea.vmem %s6, %s329
        %p331 = pneg %p202
        %p332 = pneg %p199
        %p333 = scmp.lt.s32.totalorder %s19, 1
        %s334 = scalar_select %p333, %s19, 1
        %s335 = smul.addr %s334, 8
        %s336 = smul.addr %s335, 8
        %s337 = scalar_lea.vmem %s7, %s336
        %s338 = smul.u32 2, %s19
        %s339 = smul.u32 2, %s19
        %p340 = scmp.lt.s32.totalorder %s19, 1
        %s341 = scalar_select %p340, %s19, 1
        %s342 = smul.addr %s341, 8
        %s343 = smul.addr %s342, 8
        %s344 = scalar_lea.vmem %s6, %s343
        %p345 = scmp.lt.s32.totalorder %s19, 1
        %s346 = scalar_select %p345, %s19, 1
        %s347 = smul.addr %s346, 8
        %s348 = smul.addr %s347, 8
        %s349 = scalar_lea.vmem %s7, %s348
        %v351 = vld [vmem:[%s300] sm:$0xff]
        %v352 = vld [vmem:[%s300 + $0x8] sm:$0xff]
        %v353 = vld [vmem:[%s300 + $0x10] sm:$0xff]
        %v354 = vld [vmem:[%s300 + $0x18] sm:$0xff]
        %v355 = vld [vmem:[%s300 + $0x20] sm:$0xff]
        %v356 = vld [vmem:[%s300 + $0x28] sm:$0xff]
        %v357 = vld [vmem:[%s300 + $0x30] sm:$0xff]
        %v358 = vld [vmem:[%s300 + $0x38] sm:$0xff]
        %v359 = vld [vmem:[%s300 + $0x40] sm:$0xff]
        %v360 = vld [vmem:[%s300 + $0x48] sm:$0xff]
        %v361 = vld [vmem:[%s300 + $0x50] sm:$0xff]
        %v362 = vld [vmem:[%s300 + $0x58] sm:$0xff]
        %v363 = vld [vmem:[%s300 + $0x60] sm:$0xff]
        %v364 = vld [vmem:[%s300 + $0x68] sm:$0xff]
        %v365 = vld [vmem:[%s300 + $0x70] sm:$0xff]
        %v366 = vld [vmem:[%s300 + $0x78] sm:$0xff]
        %v367 = vld [vmem:[%s2] sm:$0xff]
        %v368 = vld [vmem:[%s2 + $0x8] sm:$0xff]
        %v369 = vld [vmem:[%s2 + $0x10] sm:$0xff]
        %v370 = vld [vmem:[%s2 + $0x18] sm:$0xff]
        %v371 = vld [vmem:[%s2 + $0x20] sm:$0xff]
        %v372 = vld [vmem:[%s2 + $0x28] sm:$0xff]
        %v373 = vld [vmem:[%s2 + $0x30] sm:$0xff]
        %v374 = vld [vmem:[%s2 + $0x38] sm:$0xff]
        %376 = vset.pattern.permute.xlu0 0
        %377 = vperm.xlu0 %376, %v367
        %v378 = vpop.permute.xlu0 %377
        %381 = vset.pattern.permute.xlu0 0
        %382 = vperm.xlu0 %381, %v368
        %v383 = vpop.permute.xlu0 %382
        %386 = vset.pattern.permute.xlu0 0
        %387 = vperm.xlu0 %386, %v369
        %v388 = vpop.permute.xlu0 %387
        %391 = vset.pattern.permute.xlu0 0
        %392 = vperm.xlu0 %391, %v370
        %v393 = vpop.permute.xlu0 %392
        %396 = vset.pattern.permute.xlu0 0
        %397 = vperm.xlu0 %396, %v371
        %v398 = vpop.permute.xlu0 %397
        %401 = vset.pattern.permute.xlu0 0
        %402 = vperm.xlu0 %401, %v372
        %v403 = vpop.permute.xlu0 %402
        %406 = vset.pattern.permute.xlu0 0
        %407 = vperm.xlu0 %406, %v373
        %v408 = vpop.permute.xlu0 %407
        %411 = vset.pattern.permute.xlu0 0
        %412 = vperm.xlu0 %411, %v374
        %v413 = vpop.permute.xlu0 %412
        %v415 = vmul.f32 %v351, %v378
        %v416 = vmul.f32 %v352, %v378
        %v417 = vmul.f32 %v353, %v383
        %v418 = vmul.f32 %v354, %v383
        %v419 = vmul.f32 %v355, %v388
        %v420 = vmul.f32 %v356, %v388
        %v421 = vmul.f32 %v357, %v393
        %v422 = vmul.f32 %v358, %v393
        %v423 = vmul.f32 %v359, %v398
        %v424 = vmul.f32 %v360, %v398
        %v425 = vmul.f32 %v361, %v403
        %v426 = vmul.f32 %v362, %v403
        %v427 = vmul.f32 %v363, %v408
        %v428 = vmul.f32 %v364, %v408
        %v429 = vmul.f32 %v365, %v413
        %v430 = vmul.f32 %v366, %v413
        %v431 = vld [vmem:[%s3] sm:$0xff]
        %v432 = vld [vmem:[%s3 + $0x8] sm:$0xff]
        %v433 = vld [vmem:[%s3 + $0x10] sm:$0xff]
        %v434 = vld [vmem:[%s3 + $0x18] sm:$0xff]
        %v435 = vld [vmem:[%s3 + $0x20] sm:$0xff]
        %v436 = vld [vmem:[%s3 + $0x28] sm:$0xff]
        %v437 = vld [vmem:[%s3 + $0x30] sm:$0xff]
        %v438 = vld [vmem:[%s3 + $0x38] sm:$0xff]
        %440 = vset.pattern.permute.xlu0 0
        %441 = vperm.xlu0 %440, %v431
        %v442 = vpop.permute.xlu0 %441
        %445 = vset.pattern.permute.xlu0 0
        %446 = vperm.xlu0 %445, %v432
        %v447 = vpop.permute.xlu0 %446
        %450 = vset.pattern.permute.xlu0 0
        %451 = vperm.xlu0 %450, %v433
        %v452 = vpop.permute.xlu0 %451
        %455 = vset.pattern.permute.xlu0 0
        %456 = vperm.xlu0 %455, %v434
        %v457 = vpop.permute.xlu0 %456
        %460 = vset.pattern.permute.xlu0 0
        %461 = vperm.xlu0 %460, %v435
        %v462 = vpop.permute.xlu0 %461
        %465 = vset.pattern.permute.xlu0 0
        %466 = vperm.xlu0 %465, %v436
        %v467 = vpop.permute.xlu0 %466
        %470 = vset.pattern.permute.xlu0 0
        %471 = vperm.xlu0 %470, %v437
        %v472 = vpop.permute.xlu0 %471
        %475 = vset.pattern.permute.xlu0 0
        %476 = vperm.xlu0 %475, %v438
        %v477 = vpop.permute.xlu0 %476
        %v479 = vadd.f32 %v415, %v442
        %v480 = vadd.f32 %v416, %v442
        %v481 = vadd.f32 %v417, %v447
        %v482 = vadd.f32 %v418, %v447
        %v483 = vadd.f32 %v419, %v452
        %v484 = vadd.f32 %v420, %v452
        %v485 = vadd.f32 %v421, %v457
        %v486 = vadd.f32 %v422, %v457
        %v487 = vadd.f32 %v423, %v462
        %v488 = vadd.f32 %v424, %v462
        %v489 = vadd.f32 %v425, %v467
        %v490 = vadd.f32 %v426, %v467
        %v491 = vadd.f32 %v427, %v472
        %v492 = vadd.f32 %v428, %v472
        %v493 = vadd.f32 %v429, %v477
        %v494 = vadd.f32 %v430, %v477
        %v495 = vmax.f32 %v479, 0.0
        %v496 = vmax.f32 %v480, 0.0
        %v497 = vmax.f32 %v481, 0.0
        %v498 = vmax.f32 %v482, 0.0
        %v499 = vmax.f32 %v483, 0.0
        %v500 = vmax.f32 %v484, 0.0
        %v501 = vmax.f32 %v485, 0.0
        %v502 = vmax.f32 %v486, 0.0
        %v503 = vmax.f32 %v487, 0.0
        %v504 = vmax.f32 %v488, 0.0
        %v505 = vmax.f32 %v489, 0.0
        %v506 = vmax.f32 %v490, 0.0
        %v507 = vmax.f32 %v491, 0.0
        %v508 = vmax.f32 %v492, 0.0
        %v509 = vmax.f32 %v493, 0.0
        %v510 = vmax.f32 %v494, 0.0
        %v511 = vpack.c.bf16 %v497, %v495
        %v512 = vpack.c.bf16 %v498, %v496
        %v513 = vpack.c.bf16 %v501, %v499
        %v514 = vpack.c.bf16 %v502, %v500
        %v515 = vpack.c.bf16 %v505, %v503
        %v516 = vpack.c.bf16 %v506, %v504
        %v517 = vpack.c.bf16 %v509, %v507
        %v518 = vpack.c.bf16 %v510, %v508
        %v519 = vld [vmem:[%s1] sm:$0xf]
        %v520 = vld [vmem:[%s1 + $0x4] sm:$0xf]
        %v521 = vld [vmem:[%s1 + $0x8] sm:$0xf]
        %v522 = vld [vmem:[%s1 + $0xc] sm:$0xf]
        %v523 = vld [vmem:[%s1 + $0x10] sm:$0xf]
        %v524 = vld [vmem:[%s1 + $0x14] sm:$0xf]
        %v525 = vld [vmem:[%s1 + $0x18] sm:$0xf]
        %v526 = vld [vmem:[%s1 + $0x1c] sm:$0xf]
        %v527 = vld [vmem:[%s4] sm:$0xff]
        %v528 = vld [vmem:[%s4 + $0x8] sm:$0xff]
        %v529 = vld [vmem:[%s4 + $0x10] sm:$0xff]
        %v530 = vld [vmem:[%s4 + $0x18] sm:$0xff]
        %v531 = vld [vmem:[%s4 + $0x20] sm:$0xff]
        %v532 = vld [vmem:[%s4 + $0x28] sm:$0xff]
        %v533 = vld [vmem:[%s4 + $0x30] sm:$0xff]
        %v534 = vld [vmem:[%s4 + $0x38] sm:$0xff]
        %536 = vset.pattern.permute.xlu0 0
        %537 = vperm.xlu0 %536, %v527
        %v538 = vpop.permute.xlu0 %537
        %541 = vset.pattern.permute.xlu0 0
        %542 = vperm.xlu0 %541, %v528
        %v543 = vpop.permute.xlu0 %542
        %546 = vset.pattern.permute.xlu0 0
        %547 = vperm.xlu0 %546, %v529
        %v548 = vpop.permute.xlu0 %547
        %551 = vset.pattern.permute.xlu0 0
        %552 = vperm.xlu0 %551, %v530
        %v553 = vpop.permute.xlu0 %552
        %556 = vset.pattern.permute.xlu0 0
        %557 = vperm.xlu0 %556, %v531
        %v558 = vpop.permute.xlu0 %557
        %561 = vset.pattern.permute.xlu0 0
        %562 = vperm.xlu0 %561, %v532
        %v563 = vpop.permute.xlu0 %562
        %566 = vset.pattern.permute.xlu0 0
        %567 = vperm.xlu0 %566, %v533
        %v568 = vpop.permute.xlu0 %567
        %571 = vset.pattern.permute.xlu0 0
        %572 = vperm.xlu0 %571, %v534
        %v573 = vpop.permute.xlu0 %572
        %v583 = vunpack.c.l.b16 %v519
        %v584 = vunpack.c.l.b16 %v520
        %v585 = vunpack.c.l.b16 %v521
        %v586 = vunpack.c.l.b16 %v522
        %v587 = vunpack.c.l.b16 %v523
        %v588 = vunpack.c.l.b16 %v524
        %v589 = vunpack.c.l.b16 %v525
        %v590 = vunpack.c.l.b16 %v526
        %v591 = vpack.c.b16 %v584, %v583
        %v592 = vpack.c.b16 %v586, %v585
        %v593 = vpack.c.b16 %v588, %v587
        %v594 = vpack.c.b16 %v590, %v589
        %vm595 = vcmask 523264
        %v597 = vsel %vm595, %v591, 0
        %v600 = vsel %vm595, %v592, 0
        %v603 = vsel %vm595, %v593, 0
        %v606 = vsel %vm595, %v594, 0
        %608 = vmatprep.subr.bf16.mxu0 %v512
        %609 = vmatpush1.bf16.msra.mxu0 %v511
        %610 = vmatprep.subr.bf16.mxu0 %v514
        %611 = vmatpush1.bf16.msra.mxu0 %v513
        %612 = vmatprep.subr.bf16.mxu0 %v516
        %613 = vmatpush1.bf16.msra.mxu0 %v515
        %614 = vmatprep.subr.bf16.mxu0 %v518
        %615 = vmatpush1.bf16.msra.mxu0 %v517
        %616 = vmatprep.subr.bf16.mxu0 0
        %617 = vmatpush1.bf16.msra.mxu0 0
        %618 = vmatprep.subr.bf16.mxu0 0
        %619 = vmatpush1.bf16.msra.mxu0 0
        %620 = vmatprep.subr.bf16.mxu0 0
        %621 = vmatpush1.bf16.msra.mxu0 0
        %622 = vmatprep.subr.bf16.mxu0 0
        %623 = vmatpush1.bf16.msra.mxu0 0
        %624 = vmatprep.subr.bf16.mxu0 0
        %625 = vmatpush1.bf16.msra.mxu0 0
        %626 = vmatprep.subr.bf16.mxu0 0
        %627 = vmatpush1.bf16.msra.mxu0 0
        %628 = vmatprep.subr.bf16.mxu0 0
        %629 = vmatpush1.bf16.msra.mxu0 0
        %630 = vmatprep.subr.bf16.mxu0 0
        %631 = vmatpush1.bf16.msra.mxu0 0
        %632 = vmatprep.subr.bf16.mxu0 0
        %633 = vmatpush1.bf16.msra.mxu0 0
        %634 = vmatprep.subr.bf16.mxu0 0
        %635 = vmatpush1.bf16.msra.mxu0 0
        %636 = vmatprep.subr.bf16.mxu0 0
        %637 = vmatpush1.bf16.msra.mxu0 0
        %638 = vmatprep.subr.bf16.mxu0 0
        %639 = vmatpush1.bf16.msra.mxu0 0
        %640 = vmatprep.mubr.bf16.mxu0 0
        %641 = vmatmul.mubr.bf16.gmra.mrb[0].mxu0 %v597
        %v642 = vpop.f32.mrb[0].mxu0
        %v643 = vadd.f32 %v538, %v642
        %v644 = vpop.f32.mrb[0].mxu0
        %v645 = vadd.f32 %v538, %v644
        %v646 = vpop.f32.mrb[0].mxu0
        %v647 = vadd.f32 %v543, %v646
        %v648 = vpop.f32.mrb[0].mxu0
        %v649 = vadd.f32 %v543, %v648
        %650 = vmatprep.mubr.bf16.mxu0 0
        %651 = vmatmul.mubr.bf16.gmra.mrb[0].mxu0 %v600
        %v652 = vpop.f32.mrb[0].mxu0
        %v653 = vadd.f32 %v548, %v652
        %v654 = vpop.f32.mrb[0].mxu0
        %v655 = vadd.f32 %v548, %v654
        %v656 = vpop.f32.mrb[0].mxu0
        %v657 = vadd.f32 %v553, %v656
        %v658 = vpop.f32.mrb[0].mxu0
        %v659 = vadd.f32 %v553, %v658
        %660 = vmatprep.mubr.bf16.mxu0 0
        %661 = vmatmul.mubr.bf16.gmra.mrb[0].mxu0 %v603
        %v662 = vpop.f32.mrb[0].mxu0
        %v663 = vadd.f32 %v558, %v662
        %v664 = vpop.f32.mrb[0].mxu0
        %v665 = vadd.f32 %v558, %v664
        %v666 = vpop.f32.mrb[0].mxu0
        %v667 = vadd.f32 %v563, %v666
        %v668 = vpop.f32.mrb[0].mxu0
        %v669 = vadd.f32 %v563, %v668
        %670 = vmatprep.mubr.bf16.mxu0 0
        %671 = vmatmul.mubr.bf16.gmra.mrb[0].mxu0 %v606
        %v672 = vpop.f32.mrb[0].mxu0
        %v673 = vadd.f32 %v568, %v672
        %v674 = vpop.f32.mrb[0].mxu0
        %v675 = vadd.f32 %v568, %v674
        %v676 = vpop.f32.mrb[0].mxu0
        %v677 = vadd.f32 %v573, %v676
        %v678 = vpop.f32.mrb[0].mxu0
        %v679 = vadd.f32 %v573, %v678
        %680 = vdwg.mxu0
        %681 = vst [vmem:[%s323] sm:$0xff] %v643
        %682 = vst [vmem:[%s323 + $0x8] sm:$0xff] %v645
        %683 = vst [vmem:[%s323 + $0x10] sm:$0xff] %v647
        %684 = vst [vmem:[%s323 + $0x18] sm:$0xff] %v649
        %685 = vst [vmem:[%s323 + $0x20] sm:$0xff] %v653
        %686 = vst [vmem:[%s323 + $0x28] sm:$0xff] %v655
        %687 = vst [vmem:[%s323 + $0x30] sm:$0xff] %v657
        %688 = vst [vmem:[%s323 + $0x38] sm:$0xff] %v659
        %689 = vst [vmem:[%s323 + $0x40] sm:$0xff] %v663
        %690 = vst [vmem:[%s323 + $0x48] sm:$0xff] %v665
        %691 = vst [vmem:[%s323 + $0x50] sm:$0xff] %v667
        %692 = vst [vmem:[%s323 + $0x58] sm:$0xff] %v669
        %693 = vst [vmem:[%s323 + $0x60] sm:$0xff] %v673
        %694 = vst [vmem:[%s323 + $0x68] sm:$0xff] %v675
        %695 = vst [vmem:[%s323 + $0x70] sm:$0xff] %v677
        %696 = vst [vmem:[%s323 + $0x78] sm:$0xff] %v679
        %v697 = vadd.f32 %v643, %v645
        %698 = vadd.xlane.f32.xlu0 %v697
        %v699 = vpop.xlane.xlu0 %698
        %v700 = vadd.f32 %v647, %v649
        %701 = vadd.xlane.f32.xlu0 %v700
        %v702 = vpop.xlane.xlu0 %701
        %v703 = vadd.f32 %v653, %v655
        %704 = vadd.xlane.f32.xlu0 %v703
        %v705 = vpop.xlane.xlu0 %704
        %v706 = vadd.f32 %v657, %v659
        %707 = vadd.xlane.f32.xlu0 %v706
        %v708 = vpop.xlane.xlu0 %707
        %v709 = vadd.f32 %v663, %v665
        %710 = vadd.xlane.f32.xlu0 %v709
        %v711 = vpop.xlane.xlu0 %710
        %v712 = vadd.f32 %v667, %v669
        %713 = vadd.xlane.f32.xlu0 %v712
        %v714 = vpop.xlane.xlu0 %713
        %v715 = vadd.f32 %v673, %v675
        %716 = vadd.xlane.f32.xlu0 %v715
        %v717 = vpop.xlane.xlu0 %716
        %v718 = vadd.f32 %v677, %v679
        %719 = vadd.xlane.f32.xlu0 %v718
        %v720 = vpop.xlane.xlu0 %719
        %v721 = vmul.f32 %v643, %v643
        %v722 = vmul.f32 %v645, %v645
        %v723 = vmul.f32 %v647, %v647
        %v724 = vmul.f32 %v649, %v649
        %v725 = vmul.f32 %v653, %v653
        %v726 = vmul.f32 %v655, %v655
        %v727 = vmul.f32 %v657, %v657
        %v728 = vmul.f32 %v659, %v659
        %v729 = vmul.f32 %v663, %v663
        %v730 = vmul.f32 %v665, %v665
        %v731 = vmul.f32 %v667, %v667
        %v732 = vmul.f32 %v669, %v669
        %v733 = vmul.f32 %v673, %v673
        %v734 = vmul.f32 %v675, %v675
        %v735 = vmul.f32 %v677, %v677
        %v736 = vmul.f32 %v679, %v679
        %v737 = vadd.f32 %v721, %v722
        %738 = vadd.xlane.f32.xlu0 %v737
        %v739 = vpop.xlane.xlu0 %738
        %v740 = vadd.f32 %v723, %v724
        %741 = vadd.xlane.f32.xlu0 %v740
        %v742 = vpop.xlane.xlu0 %741
        %v743 = vadd.f32 %v725, %v726
        %744 = vadd.xlane.f32.xlu0 %v743
        %v745 = vpop.xlane.xlu0 %744
        %v746 = vadd.f32 %v727, %v728
        %747 = vadd.xlane.f32.xlu0 %v746
        %v748 = vpop.xlane.xlu0 %747
        %v749 = vadd.f32 %v729, %v730
        %750 = vadd.xlane.f32.xlu0 %v749
        %v751 = vpop.xlane.xlu0 %750
        %v752 = vadd.f32 %v731, %v732
        %753 = vadd.xlane.f32.xlu0 %v752
        %v754 = vpop.xlane.xlu0 %753
        %v755 = vadd.f32 %v733, %v734
        %756 = vadd.xlane.f32.xlu0 %v755
        %v757 = vpop.xlane.xlu0 %756
        %v758 = vadd.f32 %v735, %v736
        %759 = vadd.xlane.f32.xlu0 %v758
        %v760 = vpop.xlane.xlu0 %759
        %761 = vst [vmem:[%s344] sm:$0xff] %v699
        %762 = vst [vmem:[%s344 + $0x8] sm:$0xff] %v702
        %763 = vst [vmem:[%s344 + $0x10] sm:$0xff] %v705
        %764 = vst [vmem:[%s344 + $0x18] sm:$0xff] %v708
        %765 = vst [vmem:[%s344 + $0x20] sm:$0xff] %v711
        %766 = vst [vmem:[%s344 + $0x28] sm:$0xff] %v714
        %767 = vst [vmem:[%s344 + $0x30] sm:$0xff] %v717
        %768 = vst [vmem:[%s344 + $0x38] sm:$0xff] %v720
        %769 = vst [vmem:[%s349] sm:$0xff] %v739
        %770 = vst [vmem:[%s349 + $0x8] sm:$0xff] %v742
        %771 = vst [vmem:[%s349 + $0x10] sm:$0xff] %v745
        %772 = vst [vmem:[%s349 + $0x18] sm:$0xff] %v748
        %773 = vst [vmem:[%s349 + $0x20] sm:$0xff] %v751
        %774 = vst [vmem:[%s349 + $0x28] sm:$0xff] %v754
        %775 = vst [vmem:[%s349 + $0x30] sm:$0xff] %v757
        %776 = vst [vmem:[%s349 + $0x38] sm:$0xff] %v760
        %s777 = sand.u32 %s137, 1
        %s778 = sand.u32 %s137, 1
        %s779 = smul.addr %s778, 128
        %s780 = scalar_lea.vmem [#allocation3], %s779
        %p781 = scmp.lt.s32.totalorder %s19, 1
        %s782 = scalar_select %p781, %s19, 1
        %s783 = smul.addr %s782, 8
        %s784 = smul.addr %s783, 8
        %s785 = scalar_lea.vmem %s6, %s784
        %p786 = scmp.lt.s32.totalorder %s19, 1
        %s787 = scalar_select %p786, %s19, 1
        %s788 = smul.addr %s787, 8
        %s789 = smul.addr %s788, 8
        %s790 = scalar_lea.vmem %s7, %s789
        // Predicated region
        $region64: #{sqnxt_unit_forward.11} parent=58 // pred_check
          %p791 = pneg %p147
        $region65: #{sqnxt_unit_forward.11} parent=58 // pred_check_branch
          %793 = sbr.rel (%p791) target = $region67
        $region66: #{sqnxt_unit_forward.11} parent=58 // pred_region
          %s794 = smul.u32 2, %s19
          %s795 = smul.addr %s794, 8
          %s796 = scalar_lea.vmem %s5, %s795
          // Predicated region
          $region68: #{sqnxt_unit_forward.11} parent=66 // pred_check
            _
          $region69: #{sqnxt_unit_forward.11} parent=66 // pred_check_branch
            %798 = sbr.rel (0) target = $region71
          $region70: #{sqnxt_unit_forward.11} parent=66 // pred_region
            // Predicated region
            $region72: #{sqnxt_unit_forward.11} parent=70 // pred_check
              _
            $region73: #{sqnxt_unit_forward.11} parent=70 // pred_check_branch
              %800 = sbr.rel (0) target = $region75
            $region74: #{sqnxt_unit_forward.11} parent=70 // pred_region
              loop: start=0, step=1, limit=1
              $region76: #{sqnxt_unit_forward.11} parent=74 // loop_pre_header
                _
              $region77: #{sqnxt_unit_forward.11} parent=74 // loop_header
                %s802 = sphi 0, %s806
                %p803 = scmp.ge.s32.totalorder %s802, 1
                %s807 = sphi %s780, %s780
                %s808 = sphi %s796, %s796
              $region78: #{sqnxt_unit_forward.11} parent=74 // loop_header_branch
                %805 = sbr.rel (%p803) target = $region82
              $region79: #{sqnxt_unit_forward.11} parent=74 // loop_body
                %v809 = vld [vmem:[%s807] sm:$0xff]
                %810 = vst [vmem:[%s808] sm:$0xff] %v809
                %v811 = vld [vmem:[%s807 + $0x8] sm:$0xff]
                %812 = vst [vmem:[%s808 + $0x8] sm:$0xff] %v811
                %v813 = vld [vmem:[%s807 + $0x10] sm:$0xff]
                %814 = vst [vmem:[%s808 + $0x20] sm:$0xff] %v813
                %v815 = vld [vmem:[%s807 + $0x18] sm:$0xff]
                %816 = vst [vmem:[%s808 + $0x28] sm:$0xff] %v815
                %v817 = vld [vmem:[%s807 + $0x20] sm:$0xff]
                %818 = vst [vmem:[%s808 + $0x40] sm:$0xff] %v817
                %v819 = vld [vmem:[%s807 + $0x28] sm:$0xff]
                %820 = vst [vmem:[%s808 + $0x48] sm:$0xff] %v819
                %v821 = vld [vmem:[%s807 + $0x30] sm:$0xff]
                %822 = vst [vmem:[%s808 + $0x60] sm:$0xff] %v821
                %v823 = vld [vmem:[%s807 + $0x38] sm:$0xff]
                %824 = vst [vmem:[%s808 + $0x68] sm:$0xff] %v823
                %v825 = vld [vmem:[%s807 + $0x40] sm:$0xff]
                %826 = vst [vmem:[%s808 + $0x80] sm:$0xff] %v825
                %v827 = vld [vmem:[%s807 + $0x48] sm:$0xff]
                %828 = vst [vmem:[%s808 + $0x88] sm:$0xff] %v827
                %v829 = vld [vmem:[%s807 + $0x50] sm:$0xff]
                %830 = vst [vmem:[%s808 + $0xa0] sm:$0xff] %v829
                %v831 = vld [vmem:[%s807 + $0x58] sm:$0xff]
                %832 = vst [vmem:[%s808 + $0xa8] sm:$0xff] %v831
                %v833 = vld [vmem:[%s807 + $0x60] sm:$0xff]
                %834 = vst [vmem:[%s808 + $0xc0] sm:$0xff] %v833
                %v835 = vld [vmem:[%s807 + $0x68] sm:$0xff]
                %836 = vst [vmem:[%s808 + $0xc8] sm:$0xff] %v835
                %v837 = vld [vmem:[%s807 + $0x70] sm:$0xff]
                %838 = vst [vmem:[%s808 + $0xe0] sm:$0xff] %v837
                %v839 = vld [vmem:[%s807 + $0x78] sm:$0xff]
                %840 = vst [vmem:[%s808 + $0xe8] sm:$0xff] %v839
              $region80: #{sqnxt_unit_forward.11} parent=74 // loop_footer
                %s806 = sadd.s32 1, %s802
              $region81: #{sqnxt_unit_forward.11} parent=74 // loop_footer_branch
                %801 = sbr.rel target = $region77
              $region82: #{sqnxt_unit_forward.11} parent=74 // loop_exit
                _
            $region75: #{sqnxt_unit_forward.11} parent=70 // pred_fallthru
              _
            // Predicated region
            $region83: #{sqnxt_unit_forward.11} parent=70 // pred_check
              _
            $region84: #{sqnxt_unit_forward.11} parent=70 // pred_check_branch
              %842 = sbr.rel target = $region86
            $region85: #{sqnxt_unit_forward.11} parent=70 // pred_region
              _
            $region86: #{sqnxt_unit_forward.11} parent=70 // pred_fallthru
              _
          $region71: #{sqnxt_unit_forward.11} parent=66 // pred_fallthru
            _
          %843 = vnop
        $region67: #{sqnxt_unit_forward.11} parent=58 // pred_fallthru
          _
        // Predicated region
        $region87: #{sqnxt_unit_forward.11} parent=58 // pred_check
          %p844 = pneg %p173
        $region88: #{sqnxt_unit_forward.11} parent=58 // pred_check_branch
          %846 = sbr.rel (%p844) target = $region90
        $region89: #{sqnxt_unit_forward.11} parent=58 // pred_region
          _
        $region90: #{sqnxt_unit_forward.11} parent=58 // pred_fallthru
          _
        // Predicated region
        $region91: #{sqnxt_unit_forward.11} parent=58 // pred_check
          %p847 = pneg %p199
        $region92: #{sqnxt_unit_forward.11} parent=58 // pred_check_branch
          %849 = sbr.rel (%p847) target = $region94
        $region93: #{sqnxt_unit_forward.11} parent=58 // pred_region
          _
        $region94: #{sqnxt_unit_forward.11} parent=58 // pred_fallthru
          _
      $region59: #{sqnxt_unit_forward.11} parent=5 // pred_fallthru
        _
      %p850 = scmp.le.s32.totalorder 2, %s14
      // Predicated region
      $region95: #{sqnxt_unit_forward.11} parent=5 // pred_check
        %p851 = pneg %p850
      $region96: #{sqnxt_unit_forward.11} parent=5 // pred_check_branch
        %853 = sbr.rel (%p851) target = $region98
      $region97: #{sqnxt_unit_forward.11} parent=5 // pred_region
        %s854 = ssub.s32 %s14, 2
        // Predicated region
        $region99: #{sqnxt_unit_forward.11} parent=97 // pred_check
          %p855 = pneg %p153
        $region100: #{sqnxt_unit_forward.11} parent=97 // pred_check_branch
          %857 = sbr.rel (%p855) target = $region102
        $region101: #{sqnxt_unit_forward.11} parent=97 // pred_region
          %s858 = sand.u32 %s138, 1
          %s859 = sand.u32 %s138, 1
          %s860 = smul.addr %s859, 128
          %s861 = scalar_lea.vmem [#allocation3], %s860
        $region102: #{sqnxt_unit_forward.11} parent=97 // pred_fallthru
          _
        // Predicated region
        $region103: #{sqnxt_unit_forward.11} parent=97 // pred_check
          %p862 = pneg %p179
        $region104: #{sqnxt_unit_forward.11} parent=97 // pred_check_branch
          %864 = sbr.rel (%p862) target = $region106
        $region105: #{sqnxt_unit_forward.11} parent=97 // pred_region
          %p865 = scmp.lt.s32.totalorder %s20, 1
          %s866 = scalar_select %p865, %s20, 1
          %s867 = smul.addr %s866, 8
          %s868 = smul.addr %s867, 8
          %s869 = scalar_lea.vmem %s6, %s868
        $region106: #{sqnxt_unit_forward.11} parent=97 // pred_fallthru
          _
        // Predicated region
        $region107: #{sqnxt_unit_forward.11} parent=97 // pred_check
          %p870 = pneg %p205
        $region108: #{sqnxt_unit_forward.11} parent=97 // pred_check_branch
          %872 = sbr.rel (%p870) target = $region110
        $region109: #{sqnxt_unit_forward.11} parent=97 // pred_region
          %p873 = scmp.lt.s32.totalorder %s20, 1
          %s874 = scalar_select %p873, %s20, 1
          %s875 = smul.addr %s874, 8
          %s876 = smul.addr %s875, 8
          %s877 = scalar_lea.vmem %s7, %s876
        $region110: #{sqnxt_unit_forward.11} parent=97 // pred_fallthru
          _
      $region98: #{sqnxt_unit_forward.11} parent=5 // pred_fallthru
        _
    $region6: #{sqnxt_unit_forward.11} parent=1 // loop_footer
      %s18 = sadd.s32 1, %s14
    $region7: #{sqnxt_unit_forward.11} parent=1 // loop_footer_branch
      %13 = sbr.rel target = $region3
    $region8: #{sqnxt_unit_forward.11} parent=1 // loop_exit
      _

</llo_original>
